<compile_context>
chip_gen: v6e
topology: v6e:2x2x1
jax: 0.10.0
libtpu: 0.0.40
codegen_flags: <defaults>
</compile_context>

<pallas_src>
import numpy as np

import jax
import jax.numpy as jnp
from jax.experimental import pallas as pl
from jax.experimental.pallas import tpu as pltpu


# Fixed geometry of CNN_5D (the Linear(15360, 2) pins the input to 1x32x15).
H_IN, W = 32, 15            # input spatial dims
KH, KW = 5, 3               # conv kernel
PAD_H, PAD_W = 2, 1         # conv padding
C1, C2 = 64, 128            # conv channels
H1 = H_IN                   # conv1 output height (32)
H2 = H1 // 2                # after pool1         (16)
H3 = H2 // 2                # after pool2         (8)
R1 = H1 * W                 # conv1 output rows   (480)
R2 = H2 * W                 # conv2 output rows   (240)
EXT = 32                    # zero-extension rows (>= max |shift| = 31, mult of 8)
NEG = 0.01                  # LeakyReLU slope
NCLS = 2                    # linear outputs


def _conv2_masks() -> np.ndarray:
    """{0,1} validity mask per conv2 tap: [KH*KW, 240, 1] (compile-time const)."""
    r = np.arange(R2)
    h1, w = r // W, r % W
    masks = []
    for i in range(KH):
        for j in range(KW):
            oh, ow = i - PAD_H, j - PAD_W
            ok = (h1 + oh >= 0) & (h1 + oh < H2) & (w + ow >= 0) & (w + ow < W)
            masks.append(ok.astype(np.float32))
    return np.stack(masks).reshape(KH * KW, R2, 1)


_CONV2_MASKS = _conv2_masks()


# ----------------------------------------------------------------------------
# Fused Pallas kernel: conv1 + pool1 + conv2 + pool2 + linear + softmax
# (one grid step per batch element)
# ----------------------------------------------------------------------------
def _cnn5d_kernel(p1_ref, mask_ref, w1_ref, b1_ref, w2_ref, b2_ref,
                  wl_ref, bl_ref, o_ref):
    # ---- conv1: one MXU matmul over the im2col patches + bias + LeakyReLU ----
    y1 = jnp.dot(p1_ref[0], w1_ref[...], preferred_element_type=jnp.float32)
    y1 = y1 + b1_ref[...]
    y1 = jnp.maximum(y1, NEG * y1)                        # LeakyReLU
    # MaxPool2d([2,1]): rows [0:240) hold the even conv rows, [240:480) the odd
    # rows of each pool pair -> sublane-aligned split + single VPU max.
    act1 = jnp.maximum(y1[:R2, :], y1[R2:, :])            # [240, 64]

    # ---- conv2: 15 shifted matmuls accumulated in f32 (no im2col tensor) ----
    zpad = jnp.zeros((EXT, C1), jnp.float32)
    ext = jnp.concatenate([zpad, act1, zpad], axis=0)     # [304, 64]
    acc = jnp.zeros((R2, C2), jnp.float32)
    for idx in range(KH * KW):                            # static, unrolled
        i, j = idx // KW, idx % KW
        start = EXT + (i - PAD_H) * W + (j - PAD_W)       # static shift
        shifted = ext[start:start + R2, :]                # [240, 64]
        shifted = shifted * mask_ref[idx]                 # zero out-of-bounds taps
        acc = acc + jnp.dot(shifted, w2_ref[i, j],
                            preferred_element_type=jnp.float32)
    y2 = acc + b2_ref[...]
    y2 = jnp.maximum(y2, NEG * y2)                        # LeakyReLU

    # MaxPool2d([2,1]): max(row r, row r+W).  Only even-h rows are meaningful;
    # the odd ones are multiplied by the zeros baked into wl_ref below.
    y2_ext = jnp.concatenate([y2, jnp.zeros((16, C2), jnp.float32)], axis=0)
    m2 = jnp.maximum(y2, y2_ext[W:W + R2, :])             # [240, 128]

    # ---- Linear(15360 -> 2) as two VPU multiply+reduce passes + softmax ----
    logits = []
    for k in range(NCLS):
        prod = m2 * wl_ref[k]                             # [240, 128]
        col = jnp.sum(prod, axis=0, keepdims=True)        # [1, 128]
        logits.append(jnp.sum(col, axis=1, keepdims=True))  # [1, 1]
    z = jnp.concatenate(logits, axis=1) + bl_ref[...]     # [1, 2]
    z = z - jnp.max(z, axis=-1, keepdims=True)
    e = jnp.exp(z)
    # Exact divide: it is only 2-wide; approx reciprocal would eat tolerance.
    o_ref[0] = e / jnp.sum(e, axis=-1, keepdims=True)


# ----------------------------------------------------------------------------
# Glue (tiny weight/patch preprocessing, all trace-time reshapes)
# ----------------------------------------------------------------------------
def _conv1_patches(x_bhw):
    """im2col for conv1; rows ordered [even conv rows ; odd conv rows]."""
    b = x_bhw.shape[0]
    xp = jnp.pad(x_bhw, ((0, 0), (PAD_H, PAD_H), (PAD_W, PAD_W)))   # [B, 36, 17]
    cols = [xp[:, i:i + H1, j:j + W] for i in range(KH) for j in range(KW)]
    p = jnp.stack(cols, axis=-1)                                    # [B, 32, 15, 15]
    p = jnp.concatenate([p[:, 0::2], p[:, 1::2]], axis=1)           # even | odd rows
    return p.reshape(b, R1, KH * KW)                                # [B, 480, 15]


def _linear_weight(wl):
    """[2, 15360] (PyTorch NCHW flatten) -> [2, 240, 128] in the kernel's row
    layout, with zeros on the odd (dead) pooling rows."""
    wl_nhwc = jnp.transpose(wl.reshape(NCLS, C2, H3, W), (0, 2, 3, 1))  # [2,8,15,128]
    wl_exp = jnp.stack([wl_nhwc, jnp.zeros_like(wl_nhwc)], axis=2)      # [2,8,2,15,128]
    return wl_exp.reshape(NCLS, R2, C2).astype(jnp.float32)             # [2,240,128]


@jax.jit
def cnn_5d_forward(x_nchw, params):
    x = x_nchw.astype(jnp.float32)
    b = x.shape[0]
    patches1 = _conv1_patches(x[:, 0])                                   # [B, 480, 15]
    w1 = jnp.transpose(params["w1"], (2, 3, 1, 0)).reshape(KH * KW, C1)  # [15, 64]
    b1 = params["b1"].reshape(1, C1)
    w2 = jnp.transpose(params["w2"], (2, 3, 1, 0))                       # [5, 3, 64, 128]
    b2 = params["b2"].reshape(1, C2)
    wl = _linear_weight(params["wl"])                                    # [2, 240, 128]
    bl = params["bl"].reshape(1, NCLS)
    masks = jnp.asarray(_CONV2_MASKS)                                    # [15, 240, 1]

    out = pl.pallas_call(
        _cnn5d_kernel,
        out_shape=jax.ShapeDtypeStruct((b, 1, NCLS), jnp.float32),
        grid=(b,),
        in_specs=[
            pl.BlockSpec((1, R1, KH * KW), lambda i: (i, 0, 0)),     # conv1 patches
            pl.BlockSpec((KH * KW, R2, 1), lambda i: (0, 0, 0)),     # conv2 tap masks
            pl.BlockSpec((KH * KW, C1), lambda i: (0, 0)),           # w1
            pl.BlockSpec((1, C1), lambda i: (0, 0)),                 # b1
            pl.BlockSpec((KH, KW, C1, C2), lambda i: (0, 0, 0, 0)),  # w2
            pl.BlockSpec((1, C2), lambda i: (0, 0)),                 # b2
            pl.BlockSpec((NCLS, R2, C2), lambda i: (0, 0, 0)),       # permuted wl
            pl.BlockSpec((1, NCLS), lambda i: (0, 0)),               # bl
        ],
        out_specs=pl.BlockSpec((1, 1, NCLS), lambda i: (i, 0, 0)),
        compiler_params=pltpu.CompilerParams(
            dimension_semantics=("parallel",)),                      # v7x: 2 TCs
    )(patches1, masks, w1, b1, w2, b2, wl, bl)
    return out.reshape(b, NCLS)


# ----------------------------------------------------------------------------
# Deterministic synthetic parameters (shapes from the PyTorch module)
# ----------------------------------------------------------------------------
def init_params(key):
    ks = jax.random.split(key, 6)
    return {
        "w1": jax.random.normal(ks[0], (C1, 1, KH, KW), jnp.float32) * 0.1,
        "b1": jax.random.normal(ks[1], (C1,), jnp.float32) * 0.1,
        "w2": jax.random.normal(ks[2], (C2, C1, KH, KW), jnp.float32) * 0.05,
        "b2": jax.random.normal(ks[3], (C2,), jnp.float32) * 0.05,
        "wl": jax.random.normal(ks[4], (NCLS, C2 * H3 * W), jnp.float32) * 0.01,
        "bl": jax.random.normal(ks[5], (NCLS,), jnp.float32) * 0.01,
    }


# Pure-JAX reference (forward semantics of the PyTorch module)
def reference_forward(x, p):
    def block(y, w, bias):
        y = jax.lax.conv_general_dilated(
            y, w, window_strides=(1, 1),
            padding=((PAD_H, PAD_H), (PAD_W, PAD_W)),
            dimension_numbers=("NCHW", "OIHW", "NCHW"))
        y = y + bias.reshape(1, -1, 1, 1)
        y = jnp.where(y > 0, y, NEG * y)
        y = jax.lax.reduce_window(y, -jnp.inf, jax.lax.max,
                                  (1, 1, 2, 1), (1, 1, 2, 1), "VALID")
        return y

    y = block(x, p["w1"], p["b1"])
    y = block(y, p["w2"], p["b2"])
    y = y.reshape(y.shape[0], -1)
    logits = jnp.dot(y, p["wl"].T, precision=jax.lax.Precision.HIGHEST) + p["bl"]
    return jax.nn.softmax(logits, axis=-1)


if __name__ == "__main__":
    key = jax.random.PRNGKey(0)
    kx, kp = jax.random.split(key)
    # module docstring: input is batchsize * 1 * 32 * 15 (required by Linear(15360, 2))
    x = jax.random.normal(kx, (2, 1, H_IN, W), jnp.float32)
    params = init_params(kp)

    out = jax.block_until_ready(cnn_5d_forward(x, params))
    ref = jax.block_until_ready(reference_forward(x, params))

    assert out.shape == (2, NCLS), out.shape
    assert jnp.allclose(jnp.sum(out, axis=-1), 1.0, atol=1e-5)
    assert jnp.allclose(out, ref, atol=1e-4, rtol=1e-3), (out, ref)
    print("KERNEL_OK")
</pallas_src>

<mosaic_0001>
module attributes {stable_mosaic.version = 11 : i64} {
  func.func @_cnn5d_kernel(%arg0: i32, %arg1: memref<1x480x15xf32, #tpu.memory_space<vmem>>, %arg2: memref<15x240x1xf32, #tpu.memory_space<vmem>>, %arg3: memref<15x64xf32, #tpu.memory_space<vmem>>, %arg4: memref<1x64xf32, #tpu.memory_space<vmem>>, %arg5: memref<5x3x64x128xf32, #tpu.memory_space<vmem>>, %arg6: memref<1x128xf32, #tpu.memory_space<vmem>>, %arg7: memref<2x240x128xf32, #tpu.memory_space<vmem>>, %arg8: memref<1x2xf32, #tpu.memory_space<vmem>>, %arg9: memref<1x1x2xf32, #tpu.memory_space<vmem>>) attributes {dimension_semantics = [#tpu.dimension_semantics<parallel>], iteration_bounds = array<i64: 2>, scalar_prefetch = 0 : i64, scratch_operands = 0 : i64, tpu.core_type = #tpu.core_type<tc>, window_params = [{transform_indices = @transform_0, window_bounds = array<i64: 1, 480, 15>}, {pipeline_mode = #tpu.pipeline_mode<synchronous>, transform_indices = @transform_1, window_bounds = array<i64: 15, 240, 1>}, {pipeline_mode = #tpu.pipeline_mode<synchronous>, transform_indices = @transform_2, window_bounds = array<i64: 15, 64>}, {pipeline_mode = #tpu.pipeline_mode<synchronous>, transform_indices = @transform_3, window_bounds = array<i64: 1, 64>}, {pipeline_mode = #tpu.pipeline_mode<synchronous>, transform_indices = @transform_4, window_bounds = array<i64: 5, 3, 64, 128>}, {pipeline_mode = #tpu.pipeline_mode<synchronous>, transform_indices = @transform_5, window_bounds = array<i64: 1, 128>}, {pipeline_mode = #tpu.pipeline_mode<synchronous>, transform_indices = @transform_6, window_bounds = array<i64: 2, 240, 128>}, {pipeline_mode = #tpu.pipeline_mode<synchronous>, transform_indices = @transform_7, window_bounds = array<i64: 1, 2>}, {transform_indices = @transform_8, window_bounds = array<i64: 1, 1, 2>}]} {
    %c0 = arith.constant 0 : index
    %c0_0 = arith.constant 0 : index
    %c0_1 = arith.constant 0 : index
    %0 = vector.load %arg1[%c0, %c0_0, %c0_1] : memref<1x480x15xf32, #tpu.memory_space<vmem>>, vector<1x480x15xf32>
    %1 = vector.shape_cast %0 : vector<1x480x15xf32> to vector<480x15xf32>
    %c0_2 = arith.constant 0 : index
    %c0_3 = arith.constant 0 : index
    %2 = vector.load %arg3[%c0_2, %c0_3] : memref<15x64xf32, #tpu.memory_space<vmem>>, vector<15x64xf32>
    %cst = arith.constant dense<0.000000e+00> : vector<480x64xf32>
    %3 = tpu.matmul %1, %2, %cst {dimension_numbers = #tpu.dot_dimension_numbers<[1], [0], [0], [1], [0, 0, 1, 1], [], []>} : vector<480x15xf32>, vector<15x64xf32>, vector<480x64xf32> -> vector<480x64xf32>
    %c0_4 = arith.constant 0 : index
    %c0_5 = arith.constant 0 : index
    %4 = vector.load %arg4[%c0_4, %c0_5] : memref<1x64xf32, #tpu.memory_space<vmem>>, vector<1x64xf32>
    %5 = vector.broadcast %4 : vector<1x64xf32> to vector<480x64xf32>
    %6 = arith.addf %3, %5 : vector<480x64xf32>
    %cst_6 = arith.constant 0.00999999977 : f32
    %7 = vector.broadcast %cst_6 : f32 to vector<480x64xf32>
    %8 = arith.mulf %7, %6 : vector<480x64xf32>
    %9 = arith.maximumf %6, %8 : vector<480x64xf32>
    %10 = vector.extract_strided_slice %9 {offsets = [0, 0], sizes = [240, 64], strides = [1, 1]} : vector<480x64xf32> to vector<240x64xf32>
    %11 = vector.extract_strided_slice %9 {offsets = [240, 0], sizes = [240, 64], strides = [1, 1]} : vector<480x64xf32> to vector<240x64xf32>
    %12 = arith.maximumf %10, %11 : vector<240x64xf32>
    %cst_7 = arith.constant 0.000000e+00 : f32
    %13 = vector.broadcast %cst_7 : f32 to vector<32x64xf32>
    %14 = tpu.concatenate %13, %12, %13 in 0 : vector<32x64xf32>, vector<240x64xf32>, vector<32x64xf32> -> vector<304x64xf32>
    %cst_8 = arith.constant 0.000000e+00 : f32
    %15 = vector.broadcast %cst_8 : f32 to vector<240x128xf32>
    %16 = vector.extract_strided_slice %14 {offsets = [1, 0], sizes = [240, 64], strides = [1, 1]} : vector<304x64xf32> to vector<240x64xf32>
    %c0_9 = arith.constant 0 : index
    %c0_10 = arith.constant 0 : index
    %c0_11 = arith.constant 0 : index
    %17 = vector.load %arg2[%c0_9, %c0_10, %c0_11] : memref<15x240x1xf32, #tpu.memory_space<vmem>>, vector<1x240x1xf32>
    %18 = vector.shape_cast %17 : vector<1x240x1xf32> to vector<240x1xf32>
    %19 = vector.broadcast %18 : vector<240x1xf32> to vector<240x64xf32>
    %20 = arith.mulf %16, %19 : vector<240x64xf32>
    %c0_12 = arith.constant 0 : index
    %c0_13 = arith.constant 0 : index
    %c0_14 = arith.constant 0 : index
    %c0_15 = arith.constant 0 : index
    %21 = vector.load %arg5[%c0_12, %c0_13, %c0_14, %c0_15] : memref<5x3x64x128xf32, #tpu.memory_space<vmem>>, vector<1x1x64x128xf32>
    %22 = vector.shape_cast %21 : vector<1x1x64x128xf32> to vector<64x128xf32>
    %cst_16 = arith.constant dense<0.000000e+00> : vector<240x128xf32>
    %23 = tpu.matmul %20, %22, %cst_16 {dimension_numbers = #tpu.dot_dimension_numbers<[1], [0], [0], [1], [0, 0, 1, 1], [], []>} : vector<240x64xf32>, vector<64x128xf32>, vector<240x128xf32> -> vector<240x128xf32>
    %24 = arith.addf %15, %23 : vector<240x128xf32>
    %25 = vector.extract_strided_slice %14 {offsets = [2, 0], sizes = [240, 64], strides = [1, 1]} : vector<304x64xf32> to vector<240x64xf32>
    %c1 = arith.constant 1 : index
    %c0_17 = arith.constant 0 : index
    %c0_18 = arith.constant 0 : index
    %26 = vector.load %arg2[%c1, %c0_17, %c0_18] : memref<15x240x1xf32, #tpu.memory_space<vmem>>, vector<1x240x1xf32>
    %27 = vector.shape_cast %26 : vector<1x240x1xf32> to vector<240x1xf32>
    %28 = vector.broadcast %27 : vector<240x1xf32> to vector<240x64xf32>
    %29 = arith.mulf %25, %28 : vector<240x64xf32>
    %c0_19 = arith.constant 0 : index
    %c1_20 = arith.constant 1 : index
    %c0_21 = arith.constant 0 : index
    %c0_22 = arith.constant 0 : index
    %30 = vector.load %arg5[%c0_19, %c1_20, %c0_21, %c0_22] : memref<5x3x64x128xf32, #tpu.memory_space<vmem>>, vector<1x1x64x128xf32>
    %31 = vector.shape_cast %30 : vector<1x1x64x128xf32> to vector<64x128xf32>
    %cst_23 = arith.constant dense<0.000000e+00> : vector<240x128xf32>
    %32 = tpu.matmul %29, %31, %cst_23 {dimension_numbers = #tpu.dot_dimension_numbers<[1], [0], [0], [1], [0, 0, 1, 1], [], []>} : vector<240x64xf32>, vector<64x128xf32>, vector<240x128xf32> -> vector<240x128xf32>
    %33 = arith.addf %24, %32 : vector<240x128xf32>
    %34 = vector.extract_strided_slice %14 {offsets = [3, 0], sizes = [240, 64], strides = [1, 1]} : vector<304x64xf32> to vector<240x64xf32>
    %c2 = arith.constant 2 : index
    %c0_24 = arith.constant 0 : index
    %c0_25 = arith.constant 0 : index
    %35 = vector.load %arg2[%c2, %c0_24, %c0_25] : memref<15x240x1xf32, #tpu.memory_space<vmem>>, vector<1x240x1xf32>
    %36 = vector.shape_cast %35 : vector<1x240x1xf32> to vector<240x1xf32>
    %37 = vector.broadcast %36 : vector<240x1xf32> to vector<240x64xf32>
    %38 = arith.mulf %34, %37 : vector<240x64xf32>
    %c0_26 = arith.constant 0 : index
    %c2_27 = arith.constant 2 : index
    %c0_28 = arith.constant 0 : index
    %c0_29 = arith.constant 0 : index
    %39 = vector.load %arg5[%c0_26, %c2_27, %c0_28, %c0_29] : memref<5x3x64x128xf32, #tpu.memory_space<vmem>>, vector<1x1x64x128xf32>
    %40 = vector.shape_cast %39 : vector<1x1x64x128xf32> to vector<64x128xf32>
    %cst_30 = arith.constant dense<0.000000e+00> : vector<240x128xf32>
    %41 = tpu.matmul %38, %40, %cst_30 {dimension_numbers = #tpu.dot_dimension_numbers<[1], [0], [0], [1], [0, 0, 1, 1], [], []>} : vector<240x64xf32>, vector<64x128xf32>, vector<240x128xf32> -> vector<240x128xf32>
    %42 = arith.addf %33, %41 : vector<240x128xf32>
    %43 = vector.extract_strided_slice %14 {offsets = [16, 0], sizes = [240, 64], strides = [1, 1]} : vector<304x64xf32> to vector<240x64xf32>
    %c3 = arith.constant 3 : index
    %c0_31 = arith.constant 0 : index
    %c0_32 = arith.constant 0 : index
    %44 = vector.load %arg2[%c3, %c0_31, %c0_32] : memref<15x240x1xf32, #tpu.memory_space<vmem>>, vector<1x240x1xf32>
    %45 = vector.shape_cast %44 : vector<1x240x1xf32> to vector<240x1xf32>
    %46 = vector.broadcast %45 : vector<240x1xf32> to vector<240x64xf32>
    %47 = arith.mulf %43, %46 : vector<240x64xf32>
    %c1_33 = arith.constant 1 : index
    %c0_34 = arith.constant 0 : index
    %c0_35 = arith.constant 0 : index
    %c0_36 = arith.constant 0 : index
    %48 = vector.load %arg5[%c1_33, %c0_34, %c0_35, %c0_36] : memref<5x3x64x128xf32, #tpu.memory_space<vmem>>, vector<1x1x64x128xf32>
    %49 = vector.shape_cast %48 : vector<1x1x64x128xf32> to vector<64x128xf32>
    %cst_37 = arith.constant dense<0.000000e+00> : vector<240x128xf32>
    %50 = tpu.matmul %47, %49, %cst_37 {dimension_numbers = #tpu.dot_dimension_numbers<[1], [0], [0], [1], [0, 0, 1, 1], [], []>} : vector<240x64xf32>, vector<64x128xf32>, vector<240x128xf32> -> vector<240x128xf32>
    %51 = arith.addf %42, %50 : vector<240x128xf32>
    %52 = vector.extract_strided_slice %14 {offsets = [17, 0], sizes = [240, 64], strides = [1, 1]} : vector<304x64xf32> to vector<240x64xf32>
    %c4 = arith.constant 4 : index
    %c0_38 = arith.constant 0 : index
    %c0_39 = arith.constant 0 : index
    %53 = vector.load %arg2[%c4, %c0_38, %c0_39] : memref<15x240x1xf32, #tpu.memory_space<vmem>>, vector<1x240x1xf32>
    %54 = vector.shape_cast %53 : vector<1x240x1xf32> to vector<240x1xf32>
    %55 = vector.broadcast %54 : vector<240x1xf32> to vector<240x64xf32>
    %56 = arith.mulf %52, %55 : vector<240x64xf32>
    %c1_40 = arith.constant 1 : index
    %c1_41 = arith.constant 1 : index
    %c0_42 = arith.constant 0 : index
    %c0_43 = arith.constant 0 : index
    %57 = vector.load %arg5[%c1_40, %c1_41, %c0_42, %c0_43] : memref<5x3x64x128xf32, #tpu.memory_space<vmem>>, vector<1x1x64x128xf32>
    %58 = vector.shape_cast %57 : vector<1x1x64x128xf32> to vector<64x128xf32>
    %cst_44 = arith.constant dense<0.000000e+00> : vector<240x128xf32>
    %59 = tpu.matmul %56, %58, %cst_44 {dimension_numbers = #tpu.dot_dimension_numbers<[1], [0], [0], [1], [0, 0, 1, 1], [], []>} : vector<240x64xf32>, vector<64x128xf32>, vector<240x128xf32> -> vector<240x128xf32>
    %60 = arith.addf %51, %59 : vector<240x128xf32>
    %61 = vector.extract_strided_slice %14 {offsets = [18, 0], sizes = [240, 64], strides = [1, 1]} : vector<304x64xf32> to vector<240x64xf32>
    %c5 = arith.constant 5 : index
    %c0_45 = arith.constant 0 : index
    %c0_46 = arith.constant 0 : index
    %62 = vector.load %arg2[%c5, %c0_45, %c0_46] : memref<15x240x1xf32, #tpu.memory_space<vmem>>, vector<1x240x1xf32>
    %63 = vector.shape_cast %62 : vector<1x240x1xf32> to vector<240x1xf32>
    %64 = vector.broadcast %63 : vector<240x1xf32> to vector<240x64xf32>
    %65 = arith.mulf %61, %64 : vector<240x64xf32>
    %c1_47 = arith.constant 1 : index
    %c2_48 = arith.constant 2 : index
    %c0_49 = arith.constant 0 : index
    %c0_50 = arith.constant 0 : index
    %66 = vector.load %arg5[%c1_47, %c2_48, %c0_49, %c0_50] : memref<5x3x64x128xf32, #tpu.memory_space<vmem>>, vector<1x1x64x128xf32>
    %67 = vector.shape_cast %66 : vector<1x1x64x128xf32> to vector<64x128xf32>
    %cst_51 = arith.constant dense<0.000000e+00> : vector<240x128xf32>
    %68 = tpu.matmul %65, %67, %cst_51 {dimension_numbers = #tpu.dot_dimension_numbers<[1], [0], [0], [1], [0, 0, 1, 1], [], []>} : vector<240x64xf32>, vector<64x128xf32>, vector<240x128xf32> -> vector<240x128xf32>
    %69 = arith.addf %60, %68 : vector<240x128xf32>
    %70 = vector.extract_strided_slice %14 {offsets = [31, 0], sizes = [240, 64], strides = [1, 1]} : vector<304x64xf32> to vector<240x64xf32>
    %c6 = arith.constant 6 : index
    %c0_52 = arith.constant 0 : index
    %c0_53 = arith.constant 0 : index
    %71 = vector.load %arg2[%c6, %c0_52, %c0_53] : memref<15x240x1xf32, #tpu.memory_space<vmem>>, vector<1x240x1xf32>
    %72 = vector.shape_cast %71 : vector<1x240x1xf32> to vector<240x1xf32>
    %73 = vector.broadcast %72 : vector<240x1xf32> to vector<240x64xf32>
    %74 = arith.mulf %70, %73 : vector<240x64xf32>
    %c2_54 = arith.constant 2 : index
    %c0_55 = arith.constant 0 : index
    %c0_56 = arith.constant 0 : index
    %c0_57 = arith.constant 0 : index
    %75 = vector.load %arg5[%c2_54, %c0_55, %c0_56, %c0_57] : memref<5x3x64x128xf32, #tpu.memory_space<vmem>>, vector<1x1x64x128xf32>
    %76 = vector.shape_cast %75 : vector<1x1x64x128xf32> to vector<64x128xf32>
    %cst_58 = arith.constant dense<0.000000e+00> : vector<240x128xf32>
    %77 = tpu.matmul %74, %76, %cst_58 {dimension_numbers = #tpu.dot_dimension_numbers<[1], [0], [0], [1], [0, 0, 1, 1], [], []>} : vector<240x64xf32>, vector<64x128xf32>, vector<240x128xf32> -> vector<240x128xf32>
    %78 = arith.addf %69, %77 : vector<240x128xf32>
    %79 = vector.extract_strided_slice %14 {offsets = [32, 0], sizes = [240, 64], strides = [1, 1]} : vector<304x64xf32> to vector<240x64xf32>
    %c7 = arith.constant 7 : index
    %c0_59 = arith.constant 0 : index
    %c0_60 = arith.constant 0 : index
    %80 = vector.load %arg2[%c7, %c0_59, %c0_60] : memref<15x240x1xf32, #tpu.memory_space<vmem>>, vector<1x240x1xf32>
    %81 = vector.shape_cast %80 : vector<1x240x1xf32> to vector<240x1xf32>
    %82 = vector.broadcast %81 : vector<240x1xf32> to vector<240x64xf32>
    %83 = arith.mulf %79, %82 : vector<240x64xf32>
    %c2_61 = arith.constant 2 : index
    %c1_62 = arith.constant 1 : index
    %c0_63 = arith.constant 0 : index
    %c0_64 = arith.constant 0 : index
    %84 = vector.load %arg5[%c2_61, %c1_62, %c0_63, %c0_64] : memref<5x3x64x128xf32, #tpu.memory_space<vmem>>, vector<1x1x64x128xf32>
    %85 = vector.shape_cast %84 : vector<1x1x64x128xf32> to vector<64x128xf32>
    %cst_65 = arith.constant dense<0.000000e+00> : vector<240x128xf32>
    %86 = tpu.matmul %83, %85, %cst_65 {dimension_numbers = #tpu.dot_dimension_numbers<[1], [0], [0], [1], [0, 0, 1, 1], [], []>} : vector<240x64xf32>, vector<64x128xf32>, vector<240x128xf32> -> vector<240x128xf32>
    %87 = arith.addf %78, %86 : vector<240x128xf32>
    %88 = vector.extract_strided_slice %14 {offsets = [33, 0], sizes = [240, 64], strides = [1, 1]} : vector<304x64xf32> to vector<240x64xf32>
    %c8 = arith.constant 8 : index
    %c0_66 = arith.constant 0 : index
    %c0_67 = arith.constant 0 : index
    %89 = vector.load %arg2[%c8, %c0_66, %c0_67] : memref<15x240x1xf32, #tpu.memory_space<vmem>>, vector<1x240x1xf32>
    %90 = vector.shape_cast %89 : vector<1x240x1xf32> to vector<240x1xf32>
    %91 = vector.broadcast %90 : vector<240x1xf32> to vector<240x64xf32>
    %92 = arith.mulf %88, %91 : vector<240x64xf32>
    %c2_68 = arith.constant 2 : index
    %c2_69 = arith.constant 2 : index
    %c0_70 = arith.constant 0 : index
    %c0_71 = arith.constant 0 : index
    %93 = vector.load %arg5[%c2_68, %c2_69, %c0_70, %c0_71] : memref<5x3x64x128xf32, #tpu.memory_space<vmem>>, vector<1x1x64x128xf32>
    %94 = vector.shape_cast %93 : vector<1x1x64x128xf32> to vector<64x128xf32>
    %cst_72 = arith.constant dense<0.000000e+00> : vector<240x128xf32>
    %95 = tpu.matmul %92, %94, %cst_72 {dimension_numbers = #tpu.dot_dimension_numbers<[1], [0], [0], [1], [0, 0, 1, 1], [], []>} : vector<240x64xf32>, vector<64x128xf32>, vector<240x128xf32> -> vector<240x128xf32>
    %96 = arith.addf %87, %95 : vector<240x128xf32>
    %97 = vector.extract_strided_slice %14 {offsets = [46, 0], sizes = [240, 64], strides = [1, 1]} : vector<304x64xf32> to vector<240x64xf32>
    %c9 = arith.constant 9 : index
    %c0_73 = arith.constant 0 : index
    %c0_74 = arith.constant 0 : index
    %98 = vector.load %arg2[%c9, %c0_73, %c0_74] : memref<15x240x1xf32, #tpu.memory_space<vmem>>, vector<1x240x1xf32>
    %99 = vector.shape_cast %98 : vector<1x240x1xf32> to vector<240x1xf32>
    %100 = vector.broadcast %99 : vector<240x1xf32> to vector<240x64xf32>
    %101 = arith.mulf %97, %100 : vector<240x64xf32>
    %c3_75 = arith.constant 3 : index
    %c0_76 = arith.constant 0 : index
    %c0_77 = arith.constant 0 : index
    %c0_78 = arith.constant 0 : index
    %102 = vector.load %arg5[%c3_75, %c0_76, %c0_77, %c0_78] : memref<5x3x64x128xf32, #tpu.memory_space<vmem>>, vector<1x1x64x128xf32>
    %103 = vector.shape_cast %102 : vector<1x1x64x128xf32> to vector<64x128xf32>
    %cst_79 = arith.constant dense<0.000000e+00> : vector<240x128xf32>
    %104 = tpu.matmul %101, %103, %cst_79 {dimension_numbers = #tpu.dot_dimension_numbers<[1], [0], [0], [1], [0, 0, 1, 1], [], []>} : vector<240x64xf32>, vector<64x128xf32>, vector<240x128xf32> -> vector<240x128xf32>
    %105 = arith.addf %96, %104 : vector<240x128xf32>
    %106 = vector.extract_strided_slice %14 {offsets = [47, 0], sizes = [240, 64], strides = [1, 1]} : vector<304x64xf32> to vector<240x64xf32>
    %c10 = arith.constant 10 : index
    %c0_80 = arith.constant 0 : index
    %c0_81 = arith.constant 0 : index
    %107 = vector.load %arg2[%c10, %c0_80, %c0_81] : memref<15x240x1xf32, #tpu.memory_space<vmem>>, vector<1x240x1xf32>
    %108 = vector.shape_cast %107 : vector<1x240x1xf32> to vector<240x1xf32>
    %109 = vector.broadcast %108 : vector<240x1xf32> to vector<240x64xf32>
    %110 = arith.mulf %106, %109 : vector<240x64xf32>
    %c3_82 = arith.constant 3 : index
    %c1_83 = arith.constant 1 : index
    %c0_84 = arith.constant 0 : index
    %c0_85 = arith.constant 0 : index
    %111 = vector.load %arg5[%c3_82, %c1_83, %c0_84, %c0_85] : memref<5x3x64x128xf32, #tpu.memory_space<vmem>>, vector<1x1x64x128xf32>
    %112 = vector.shape_cast %111 : vector<1x1x64x128xf32> to vector<64x128xf32>
    %cst_86 = arith.constant dense<0.000000e+00> : vector<240x128xf32>
    %113 = tpu.matmul %110, %112, %cst_86 {dimension_numbers = #tpu.dot_dimension_numbers<[1], [0], [0], [1], [0, 0, 1, 1], [], []>} : vector<240x64xf32>, vector<64x128xf32>, vector<240x128xf32> -> vector<240x128xf32>
    %114 = arith.addf %105, %113 : vector<240x128xf32>
    %115 = vector.extract_strided_slice %14 {offsets = [48, 0], sizes = [240, 64], strides = [1, 1]} : vector<304x64xf32> to vector<240x64xf32>
    %c11 = arith.constant 11 : index
    %c0_87 = arith.constant 0 : index
    %c0_88 = arith.constant 0 : index
    %116 = vector.load %arg2[%c11, %c0_87, %c0_88] : memref<15x240x1xf32, #tpu.memory_space<vmem>>, vector<1x240x1xf32>
    %117 = vector.shape_cast %116 : vector<1x240x1xf32> to vector<240x1xf32>
    %118 = vector.broadcast %117 : vector<240x1xf32> to vector<240x64xf32>
    %119 = arith.mulf %115, %118 : vector<240x64xf32>
    %c3_89 = arith.constant 3 : index
    %c2_90 = arith.constant 2 : index
    %c0_91 = arith.constant 0 : index
    %c0_92 = arith.constant 0 : index
    %120 = vector.load %arg5[%c3_89, %c2_90, %c0_91, %c0_92] : memref<5x3x64x128xf32, #tpu.memory_space<vmem>>, vector<1x1x64x128xf32>
    %121 = vector.shape_cast %120 : vector<1x1x64x128xf32> to vector<64x128xf32>
    %cst_93 = arith.constant dense<0.000000e+00> : vector<240x128xf32>
    %122 = tpu.matmul %119, %121, %cst_93 {dimension_numbers = #tpu.dot_dimension_numbers<[1], [0], [0], [1], [0, 0, 1, 1], [], []>} : vector<240x64xf32>, vector<64x128xf32>, vector<240x128xf32> -> vector<240x128xf32>
    %123 = arith.addf %114, %122 : vector<240x128xf32>
    %124 = vector.extract_strided_slice %14 {offsets = [61, 0], sizes = [240, 64], strides = [1, 1]} : vector<304x64xf32> to vector<240x64xf32>
    %c12 = arith.constant 12 : index
    %c0_94 = arith.constant 0 : index
    %c0_95 = arith.constant 0 : index
    %125 = vector.load %arg2[%c12, %c0_94, %c0_95] : memref<15x240x1xf32, #tpu.memory_space<vmem>>, vector<1x240x1xf32>
    %126 = vector.shape_cast %125 : vector<1x240x1xf32> to vector<240x1xf32>
    %127 = vector.broadcast %126 : vector<240x1xf32> to vector<240x64xf32>
    %128 = arith.mulf %124, %127 : vector<240x64xf32>
    %c4_96 = arith.constant 4 : index
    %c0_97 = arith.constant 0 : index
    %c0_98 = arith.constant 0 : index
    %c0_99 = arith.constant 0 : index
    %129 = vector.load %arg5[%c4_96, %c0_97, %c0_98, %c0_99] : memref<5x3x64x128xf32, #tpu.memory_space<vmem>>, vector<1x1x64x128xf32>
    %130 = vector.shape_cast %129 : vector<1x1x64x128xf32> to vector<64x128xf32>
    %cst_100 = arith.constant dense<0.000000e+00> : vector<240x128xf32>
    %131 = tpu.matmul %128, %130, %cst_100 {dimension_numbers = #tpu.dot_dimension_numbers<[1], [0], [0], [1], [0, 0, 1, 1], [], []>} : vector<240x64xf32>, vector<64x128xf32>, vector<240x128xf32> -> vector<240x128xf32>
    %132 = arith.addf %123, %131 : vector<240x128xf32>
    %133 = vector.extract_strided_slice %14 {offsets = [62, 0], sizes = [240, 64], strides = [1, 1]} : vector<304x64xf32> to vector<240x64xf32>
    %c13 = arith.constant 13 : index
    %c0_101 = arith.constant 0 : index
    %c0_102 = arith.constant 0 : index
    %134 = vector.load %arg2[%c13, %c0_101, %c0_102] : memref<15x240x1xf32, #tpu.memory_space<vmem>>, vector<1x240x1xf32>
    %135 = vector.shape_cast %134 : vector<1x240x1xf32> to vector<240x1xf32>
    %136 = vector.broadcast %135 : vector<240x1xf32> to vector<240x64xf32>
    %137 = arith.mulf %133, %136 : vector<240x64xf32>
    %c4_103 = arith.constant 4 : index
    %c1_104 = arith.constant 1 : index
    %c0_105 = arith.constant 0 : index
    %c0_106 = arith.constant 0 : index
    %138 = vector.load %arg5[%c4_103, %c1_104, %c0_105, %c0_106] : memref<5x3x64x128xf32, #tpu.memory_space<vmem>>, vector<1x1x64x128xf32>
    %139 = vector.shape_cast %138 : vector<1x1x64x128xf32> to vector<64x128xf32>
    %cst_107 = arith.constant dense<0.000000e+00> : vector<240x128xf32>
    %140 = tpu.matmul %137, %139, %cst_107 {dimension_numbers = #tpu.dot_dimension_numbers<[1], [0], [0], [1], [0, 0, 1, 1], [], []>} : vector<240x64xf32>, vector<64x128xf32>, vector<240x128xf32> -> vector<240x128xf32>
    %141 = arith.addf %132, %140 : vector<240x128xf32>
    %142 = vector.extract_strided_slice %14 {offsets = [63, 0], sizes = [240, 64], strides = [1, 1]} : vector<304x64xf32> to vector<240x64xf32>
    %c14 = arith.constant 14 : index
    %c0_108 = arith.constant 0 : index
    %c0_109 = arith.constant 0 : index
    %143 = vector.load %arg2[%c14, %c0_108, %c0_109] : memref<15x240x1xf32, #tpu.memory_space<vmem>>, vector<1x240x1xf32>
    %144 = vector.shape_cast %143 : vector<1x240x1xf32> to vector<240x1xf32>
    %145 = vector.broadcast %144 : vector<240x1xf32> to vector<240x64xf32>
    %146 = arith.mulf %142, %145 : vector<240x64xf32>
    %c4_110 = arith.constant 4 : index
    %c2_111 = arith.constant 2 : index
    %c0_112 = arith.constant 0 : index
    %c0_113 = arith.constant 0 : index
    %147 = vector.load %arg5[%c4_110, %c2_111, %c0_112, %c0_113] : memref<5x3x64x128xf32, #tpu.memory_space<vmem>>, vector<1x1x64x128xf32>
    %148 = vector.shape_cast %147 : vector<1x1x64x128xf32> to vector<64x128xf32>
    %cst_114 = arith.constant dense<0.000000e+00> : vector<240x128xf32>
    %149 = tpu.matmul %146, %148, %cst_114 {dimension_numbers = #tpu.dot_dimension_numbers<[1], [0], [0], [1], [0, 0, 1, 1], [], []>} : vector<240x64xf32>, vector<64x128xf32>, vector<240x128xf32> -> vector<240x128xf32>
    %150 = arith.addf %141, %149 : vector<240x128xf32>
    %c0_115 = arith.constant 0 : index
    %c0_116 = arith.constant 0 : index
    %151 = vector.load %arg6[%c0_115, %c0_116] : memref<1x128xf32, #tpu.memory_space<vmem>>, vector<1x128xf32>
    %152 = vector.broadcast %151 : vector<1x128xf32> to vector<240x128xf32>
    %153 = arith.addf %150, %152 : vector<240x128xf32>
    %cst_117 = arith.constant 0.00999999977 : f32
    %154 = vector.broadcast %cst_117 : f32 to vector<240x128xf32>
    %155 = arith.mulf %154, %153 : vector<240x128xf32>
    %156 = arith.maximumf %153, %155 : vector<240x128xf32>
    %cst_118 = arith.constant 0.000000e+00 : f32
    %157 = vector.broadcast %cst_118 : f32 to vector<16x128xf32>
    %158 = tpu.concatenate %156, %157 in 0 : vector<240x128xf32>, vector<16x128xf32> -> vector<256x128xf32>
    %159 = vector.extract_strided_slice %158 {offsets = [15, 0], sizes = [240, 128], strides = [1, 1]} : vector<256x128xf32> to vector<240x128xf32>
    %160 = arith.maximumf %156, %159 : vector<240x128xf32>
    %c0_119 = arith.constant 0 : index
    %c0_120 = arith.constant 0 : index
    %c0_121 = arith.constant 0 : index
    %161 = vector.load %arg7[%c0_119, %c0_120, %c0_121] : memref<2x240x128xf32, #tpu.memory_space<vmem>>, vector<1x240x128xf32>
    %162 = vector.shape_cast %161 : vector<1x240x128xf32> to vector<240x128xf32>
    %163 = arith.mulf %160, %162 : vector<240x128xf32>
    %cst_122 = arith.constant dense<0.000000e+00> : vector<128xf32>
    %164 = vector.multi_reduction <add>, %163, %cst_122 [0] : vector<240x128xf32> to vector<128xf32>
    %165 = vector.shape_cast %164 : vector<128xf32> to vector<1x128xf32>
    %cst_123 = arith.constant dense<0.000000e+00> : vector<1xf32>
    %166 = vector.multi_reduction <add>, %165, %cst_123 [1] : vector<1x128xf32> to vector<1xf32>
    %167 = vector.shape_cast %166 : vector<1xf32> to vector<1x1xf32>
    %c1_124 = arith.constant 1 : index
    %c0_125 = arith.constant 0 : index
    %c0_126 = arith.constant 0 : index
    %168 = vector.load %arg7[%c1_124, %c0_125, %c0_126] : memref<2x240x128xf32, #tpu.memory_space<vmem>>, vector<1x240x128xf32>
    %169 = vector.shape_cast %168 : vector<1x240x128xf32> to vector<240x128xf32>
    %170 = arith.mulf %160, %169 : vector<240x128xf32>
    %cst_127 = arith.constant dense<0.000000e+00> : vector<128xf32>
    %171 = vector.multi_reduction <add>, %170, %cst_127 [0] : vector<240x128xf32> to vector<128xf32>
    %172 = vector.shape_cast %171 : vector<128xf32> to vector<1x128xf32>
    %cst_128 = arith.constant dense<0.000000e+00> : vector<1xf32>
    %173 = vector.multi_reduction <add>, %172, %cst_128 [1] : vector<1x128xf32> to vector<1xf32>
    %174 = vector.shape_cast %173 : vector<1xf32> to vector<1x1xf32>
    %175 = tpu.concatenate %167, %174 in 1 : vector<1x1xf32>, vector<1x1xf32> -> vector<1x2xf32>
    %c0_129 = arith.constant 0 : index
    %c0_130 = arith.constant 0 : index
    %176 = vector.load %arg8[%c0_129, %c0_130] : memref<1x2xf32, #tpu.memory_space<vmem>>, vector<1x2xf32>
    %177 = arith.addf %175, %176 : vector<1x2xf32>
    %cst_131 = arith.constant dense<0xFF800000> : vector<1xf32>
    %178 = vector.multi_reduction <maximumf>, %177, %cst_131 [1] : vector<1x2xf32> to vector<1xf32>
    %179 = vector.shape_cast %178 : vector<1xf32> to vector<1x1xf32>
    %180 = vector.broadcast %179 : vector<1x1xf32> to vector<1x2xf32>
    %181 = arith.subf %177, %180 : vector<1x2xf32>
    %182 = math.exp %181 : vector<1x2xf32>
    %cst_132 = arith.constant dense<0.000000e+00> : vector<1xf32>
    %183 = vector.multi_reduction <add>, %182, %cst_132 [1] : vector<1x2xf32> to vector<1xf32>
    %184 = vector.shape_cast %183 : vector<1xf32> to vector<1x1xf32>
    %185 = vector.broadcast %184 : vector<1x1xf32> to vector<1x2xf32>
    %186 = arith.divf %182, %185 : vector<1x2xf32>
    %c0_133 = arith.constant 0 : index
    %c0_134 = arith.constant 0 : index
    %c0_135 = arith.constant 0 : index
    %187 = vector.load %arg9[%c0_133, %c0_134, %c0_135] : memref<1x1x2xf32, #tpu.memory_space<vmem>>, vector<1x1x2xf32>
    %188 = vector.shape_cast %187 : vector<1x1x2xf32> to vector<1x2xf32>
    %189 = vector.shape_cast %186 : vector<1x2xf32> to vector<1x1x2xf32>
    tpu.vector_store %arg9[%c0_133, %c0_134, %c0_135], %189 {strides = array<i32>} : memref<1x1x2xf32, #tpu.memory_space<vmem>>, vector<1x1x2xf32>,
    return
  }
  func.func @transform_0(%arg0: i32) -> (i32, i32, i32) {
    %c0_i32 = arith.constant 0 : i32
    %c0_i32_0 = arith.constant 0 : i32
    %c0_i32_1 = arith.constant 0 : i32
    return %arg0, %c0_i32, %c0_i32_0 : i32, i32, i32
  }
  func.func @transform_1(%arg0: i32) -> (i32, i32, i32) {
    %c0_i32 = arith.constant 0 : i32
    %c0_i32_0 = arith.constant 0 : i32
    %c0_i32_1 = arith.constant 0 : i32
    %c0_i32_2 = arith.constant 0 : i32
    return %c0_i32, %c0_i32_0, %c0_i32_1 : i32, i32, i32
  }
  func.func @transform_2(%arg0: i32) -> (i32, i32) {
    %c0_i32 = arith.constant 0 : i32
    %c0_i32_0 = arith.constant 0 : i32
    %c0_i32_1 = arith.constant 0 : i32
    return %c0_i32, %c0_i32_0 : i32, i32
  }
  func.func @transform_3(%arg0: i32) -> (i32, i32) {
    %c0_i32 = arith.constant 0 : i32
    %c0_i32_0 = arith.constant 0 : i32
    %c0_i32_1 = arith.constant 0 : i32
    return %c0_i32, %c0_i32_0 : i32, i32
  }
  func.func @transform_4(%arg0: i32) -> (i32, i32, i32, i32) {
    %c0_i32 = arith.constant 0 : i32
    %c0_i32_0 = arith.constant 0 : i32
    %c0_i32_1 = arith.constant 0 : i32
    %c0_i32_2 = arith.constant 0 : i32
    %c0_i32_3 = arith.constant 0 : i32
    return %c0_i32, %c0_i32_0, %c0_i32_1, %c0_i32_2 : i32, i32, i32, i32
  }
  func.func @transform_5(%arg0: i32) -> (i32, i32) {
    %c0_i32 = arith.constant 0 : i32
    %c0_i32_0 = arith.constant 0 : i32
    %c0_i32_1 = arith.constant 0 : i32
    return %c0_i32, %c0_i32_0 : i32, i32
  }
  func.func @transform_6(%arg0: i32) -> (i32, i32, i32) {
    %c0_i32 = arith.constant 0 : i32
    %c0_i32_0 = arith.constant 0 : i32
    %c0_i32_1 = arith.constant 0 : i32
    %c0_i32_2 = arith.constant 0 : i32
    return %c0_i32, %c0_i32_0, %c0_i32_1 : i32, i32, i32
  }
  func.func @transform_7(%arg0: i32) -> (i32, i32) {
    %c0_i32 = arith.constant 0 : i32
    %c0_i32_0 = arith.constant 0 : i32
    %c0_i32_1 = arith.constant 0 : i32
    return %c0_i32, %c0_i32_0 : i32, i32
  }
  func.func @transform_8(%arg0: i32) -> (i32, i32, i32) {
    %c0_i32 = arith.constant 0 : i32
    %c0_i32_0 = arith.constant 0 : i32
    %c0_i32_1 = arith.constant 0 : i32
    return %arg0, %c0_i32, %c0_i32_0 : i32, i32, i32
  }
}

</mosaic_0001>

<llo_original>
// kernel: cnn_5d_forward.1
$region0: #{cnn_5d_forward.1}
  #allocation0 [shape = 'u32[]', space=smem, size = 0x4, offset = 0x4, fixed_abs, tag = 'smem constant byte address 0x4 - core index']
  #allocation1 [shape = 'u32[144,128]{1,0:T(1,128)}', space=vmem, size = 0x12000, scoped, tag = 'internal scratch']
  %s0 = inlined_call_operand.vmem [shape: f32[2,480,15], index: 0, kind: input, shape index: {}]
  %s1 = inlined_call_operand.vmem [shape: f32[15,240,1], index: 1, kind: input, shape index: {}]
  %s2 = inlined_call_operand.vmem [shape: f32[15,64], index: 2, kind: input, shape index: {}]
  %s3 = inlined_call_operand.vmem [shape: f32[1,64], index: 3, kind: input, shape index: {}]
  %s4 = inlined_call_operand.vmem [shape: f32[5,3,64,128], index: 4, kind: input, shape index: {}]
  %s5 = inlined_call_operand.vmem [shape: f32[1,128], index: 5, kind: input, shape index: {}]
  %s6 = inlined_call_operand.vmem [shape: f32[2,240,128], index: 6, kind: input, shape index: {}]
  %s7 = inlined_call_operand.vmem [shape: f32[1,2], index: 7, kind: input, shape index: {}]
  %s8 = inlined_call_operand.hbm [shape: f32[2,1,2], index: 8, kind: output, shape index: {}]
  %s9 = sld [smem:[#allocation0]]
  $region65: #{cnn_5d_forward.1} parent=0
    _
  %s11 = ssub.s32 1, %s9
  %s12 = scalar_select 0, %s11, %s9
  $region1: #{cnn_5d_forward.1} parent=0
    #allocation2 [shape = 'u8[1024]{0}', space=vmem, size = 0x400, scoped, tag = 'output window, operand 0']
    #allocation3 [shape = 's32[2]{0}', space=sflag, size = 0x8, scoped, tag = 'scoped memory for cnn_5d_forward.1']
    %13 = vsyncpa [#allocation3], 0
    %s14 = scalar_lea.sflag [#allocation3], 1
    %15 = vsyncpa %s14, 0
    loop: start=0, step=1, limit=4
    $region2: #{cnn_5d_forward.1} parent=1 // loop_pre_header
      _
    $region3: #{cnn_5d_forward.1} parent=1 // loop_header
      %s17 = sphi 0, %s21
      %p18 = scmp.ge.s32.totalorder %s17, 4
      %s27 = sphi 0, %s29
      %s30 = sphi 0, %s27
      %s31 = sphi 0, %s30
      %s47 = sphi 0, %s31
      %s51 = sphi 0, %s51
      %s53 = sphi 0, %s51
      %s54 = sphi 0, %s53
      %s68 = sphi 0, %s54
      %s72 = sphi 0, %s72
      %s74 = sphi 0, %s72
      %s75 = sphi 0, %s74
      %s89 = sphi 0, %s75
      %s93 = sphi 0, %s93
      %s95 = sphi 0, %s93
      %s96 = sphi 0, %s95
      %s110 = sphi 0, %s96
      %s114 = sphi 0, %s114
      %s116 = sphi 0, %s114
      %s117 = sphi 0, %s116
      %s131 = sphi 0, %s117
      %s135 = sphi 0, %s135
      %s137 = sphi 0, %s135
      %s138 = sphi 0, %s137
      %s152 = sphi 0, %s138
      %s156 = sphi 0, %s156
      %s158 = sphi 0, %s156
      %s159 = sphi 0, %s158
      %s173 = sphi 0, %s159
      %s177 = sphi 0, %s177
      %s179 = sphi 0, %s177
      %s180 = sphi 0, %s179
      %s194 = sphi 0, %s180
      %s200 = sphi 0, %s202
      %s203 = sphi 0, %s200
      %s204 = sphi 0, %s203
      %s220 = sphi 0, %s204
    $region4: #{cnn_5d_forward.1} parent=1 // loop_header_branch
      %20 = sbr.rel (%p18) target = $region8
    $region5: #{cnn_5d_forward.1} parent=1 // loop_body
      %s22 = ssub.s32 %s17, 1
      %s23 = ssub.s32 %s17, 2
      %s24 = sadd.s32 %s17, 1
      %s25 = ssub.s32 %s17, %s24
      %p26 = scmp.eq.s32.totalorder %s25, 0
      %s28 = sadd.s32 %s27, 1
      %s29 = scalar_select %p26, %s27, %s28
      %p32 = pneg %p26
      %p33 = scmp.eq.s32.totalorder %s17, 1
      %p34 = por %p32, %p33
      %p35 = scmp.ne.s32.totalorder %s27, %s30
      %p36 = scmp.eq.s32.totalorder %s17, 0
      %p37 = por %p35, %p36
      %p38 = scmp.ne.s32.totalorder %s27, %s30
      %p39 = scmp.eq.s32.totalorder %s22, 1
      %p40 = por %p38, %p39
      %p41 = scmp.ne.s32.totalorder %s30, %s31
      %p42 = scmp.eq.s32.totalorder %s22, 0
      %p43 = por %p41, %p42
      %p44 = scmp.ne.s32.totalorder %s30, %s31
      %p45 = scmp.eq.s32.totalorder %s23, 1
      %p46 = por %p44, %p45
      %p48 = scmp.ne.s32.totalorder %s31, %s47
      %p49 = scmp.eq.s32.totalorder %s23, 0
      %p50 = por %p48, %p49
      %s52 = sadd.s32 %s51, 1
      %p55 = scmp.eq.s32.totalorder %s17, 1
      %p56 = scmp.ne.s32.totalorder %s51, %s53
      %p57 = scmp.eq.s32.totalorder %s17, 0
      %p58 = por %p56, %p57
      %p59 = scmp.ne.s32.totalorder %s51, %s53
      %p60 = scmp.eq.s32.totalorder %s22, 1
      %p61 = por %p59, %p60
      %p62 = scmp.ne.s32.totalorder %s53, %s54
      %p63 = scmp.eq.s32.totalorder %s22, 0
      %p64 = por %p62, %p63
      %p65 = scmp.ne.s32.totalorder %s53, %s54
      %p66 = scmp.eq.s32.totalorder %s23, 1
      %p67 = por %p65, %p66
      %p69 = scmp.ne.s32.totalorder %s54, %s68
      %p70 = scmp.eq.s32.totalorder %s23, 0
      %p71 = por %p69, %p70
      %s73 = sadd.s32 %s72, 1
      %p76 = scmp.eq.s32.totalorder %s17, 1
      %p77 = scmp.ne.s32.totalorder %s72, %s74
      %p78 = scmp.eq.s32.totalorder %s17, 0
      %p79 = por %p77, %p78
      %p80 = scmp.ne.s32.totalorder %s72, %s74
      %p81 = scmp.eq.s32.totalorder %s22, 1
      %p82 = por %p80, %p81
      %p83 = scmp.ne.s32.totalorder %s74, %s75
      %p84 = scmp.eq.s32.totalorder %s22, 0
      %p85 = por %p83, %p84
      %p86 = scmp.ne.s32.totalorder %s74, %s75
      %p87 = scmp.eq.s32.totalorder %s23, 1
      %p88 = por %p86, %p87
      %p90 = scmp.ne.s32.totalorder %s75, %s89
      %p91 = scmp.eq.s32.totalorder %s23, 0
      %p92 = por %p90, %p91
      %s94 = sadd.s32 %s93, 1
      %p97 = scmp.eq.s32.totalorder %s17, 1
      %p98 = scmp.ne.s32.totalorder %s93, %s95
      %p99 = scmp.eq.s32.totalorder %s17, 0
      %p100 = por %p98, %p99
      %p101 = scmp.ne.s32.totalorder %s93, %s95
      %p102 = scmp.eq.s32.totalorder %s22, 1
      %p103 = por %p101, %p102
      %p104 = scmp.ne.s32.totalorder %s95, %s96
      %p105 = scmp.eq.s32.totalorder %s22, 0
      %p106 = por %p104, %p105
      %p107 = scmp.ne.s32.totalorder %s95, %s96
      %p108 = scmp.eq.s32.totalorder %s23, 1
      %p109 = por %p107, %p108
      %p111 = scmp.ne.s32.totalorder %s96, %s110
      %p112 = scmp.eq.s32.totalorder %s23, 0
      %p113 = por %p111, %p112
      %s115 = sadd.s32 %s114, 1
      %p118 = scmp.eq.s32.totalorder %s17, 1
      %p119 = scmp.ne.s32.totalorder %s114, %s116
      %p120 = scmp.eq.s32.totalorder %s17, 0
      %p121 = por %p119, %p120
      %p122 = scmp.ne.s32.totalorder %s114, %s116
      %p123 = scmp.eq.s32.totalorder %s22, 1
      %p124 = por %p122, %p123
      %p125 = scmp.ne.s32.totalorder %s116, %s117
      %p126 = scmp.eq.s32.totalorder %s22, 0
      %p127 = por %p125, %p126
      %p128 = scmp.ne.s32.totalorder %s116, %s117
      %p129 = scmp.eq.s32.totalorder %s23, 1
      %p130 = por %p128, %p129
      %p132 = scmp.ne.s32.totalorder %s117, %s131
      %p133 = scmp.eq.s32.totalorder %s23, 0
      %p134 = por %p132, %p133
      %s136 = sadd.s32 %s135, 1
      %p139 = scmp.eq.s32.totalorder %s17, 1
      %p140 = scmp.ne.s32.totalorder %s135, %s137
      %p141 = scmp.eq.s32.totalorder %s17, 0
      %p142 = por %p140, %p141
      %p143 = scmp.ne.s32.totalorder %s135, %s137
      %p144 = scmp.eq.s32.totalorder %s22, 1
      %p145 = por %p143, %p144
      %p146 = scmp.ne.s32.totalorder %s137, %s138
      %p147 = scmp.eq.s32.totalorder %s22, 0
      %p148 = por %p146, %p147
      %p149 = scmp.ne.s32.totalorder %s137, %s138
      %p150 = scmp.eq.s32.totalorder %s23, 1
      %p151 = por %p149, %p150
      %p153 = scmp.ne.s32.totalorder %s138, %s152
      %p154 = scmp.eq.s32.totalorder %s23, 0
      %p155 = por %p153, %p154
      %s157 = sadd.s32 %s156, 1
      %p160 = scmp.eq.s32.totalorder %s17, 1
      %p161 = scmp.ne.s32.totalorder %s156, %s158
      %p162 = scmp.eq.s32.totalorder %s17, 0
      %p163 = por %p161, %p162
      %p164 = scmp.ne.s32.totalorder %s156, %s158
      %p165 = scmp.eq.s32.totalorder %s22, 1
      %p166 = por %p164, %p165
      %p167 = scmp.ne.s32.totalorder %s158, %s159
      %p168 = scmp.eq.s32.totalorder %s22, 0
      %p169 = por %p167, %p168
      %p170 = scmp.ne.s32.totalorder %s158, %s159
      %p171 = scmp.eq.s32.totalorder %s23, 1
      %p172 = por %p170, %p171
      %p174 = scmp.ne.s32.totalorder %s159, %s173
      %p175 = scmp.eq.s32.totalorder %s23, 0
      %p176 = por %p174, %p175
      %s178 = sadd.s32 %s177, 1
      %p181 = scmp.eq.s32.totalorder %s17, 1
      %p182 = scmp.ne.s32.totalorder %s177, %s179
      %p183 = scmp.eq.s32.totalorder %s17, 0
      %p184 = por %p182, %p183
      %p185 = scmp.ne.s32.totalorder %s177, %s179
      %p186 = scmp.eq.s32.totalorder %s22, 1
      %p187 = por %p185, %p186
      %p188 = scmp.ne.s32.totalorder %s179, %s180
      %p189 = scmp.eq.s32.totalorder %s22, 0
      %p190 = por %p188, %p189
      %p191 = scmp.ne.s32.totalorder %s179, %s180
      %p192 = scmp.eq.s32.totalorder %s23, 1
      %p193 = por %p191, %p192
      %p195 = scmp.ne.s32.totalorder %s180, %s194
      %p196 = scmp.eq.s32.totalorder %s23, 0
      %p197 = por %p195, %p196
      %s198 = ssub.s32 %s17, %s24
      %p199 = scmp.eq.s32.totalorder %s198, 0
      %s201 = sadd.s32 %s200, 1
      %s202 = scalar_select %p199, %s200, %s201
      %p205 = pneg %p199
      %p206 = scmp.eq.s32.totalorder %s17, 1
      %p207 = por %p205, %p206
      %p208 = scmp.ne.s32.totalorder %s200, %s203
      %p209 = scmp.eq.s32.totalorder %s17, 0
      %p210 = por %p208, %p209
      %p211 = scmp.ne.s32.totalorder %s200, %s203
      %p212 = scmp.eq.s32.totalorder %s22, 1
      %p213 = por %p211, %p212
      %p214 = scmp.ne.s32.totalorder %s203, %s204
      %p215 = scmp.eq.s32.totalorder %s22, 0
      %p216 = por %p214, %p215
      %p217 = scmp.ne.s32.totalorder %s203, %s204
      %p218 = scmp.eq.s32.totalorder %s23, 1
      %p219 = por %p217, %p218
      %p221 = scmp.ne.s32.totalorder %s204, %s220
      %p222 = scmp.eq.s32.totalorder %s23, 0
      %p223 = por %p221, %p222
      %p224 = scmp.le.s32.totalorder 1, %s17
      %p225 = scmp.lt.s32.totalorder %s17, 3
      %p226 = pnand %p224, %p225
      %p227 = pneg %p226
      // Predicated region
      $region9: #{cnn_5d_forward.1} parent=5 // pred_check
        _
      $region10: #{cnn_5d_forward.1} parent=5 // pred_check_branch
        %229 = sbr.rel (%p226) target = $region12
      $region11: #{cnn_5d_forward.1} parent=5 // pred_region
        %s230 = ssub.s32 %s17, 1
        // Predicated region
        $region13: #{cnn_5d_forward.1} parent=11 // pred_check
          %p231 = pneg %p64
        $region14: #{cnn_5d_forward.1} parent=11 // pred_check_branch
          %233 = sbr.rel (%p231) target = $region16
        $region15: #{cnn_5d_forward.1} parent=11 // pred_region
          _
        $region16: #{cnn_5d_forward.1} parent=11 // pred_fallthru
          _
        // Predicated region
        $region17: #{cnn_5d_forward.1} parent=11 // pred_check
          %p234 = pneg %p85
        $region18: #{cnn_5d_forward.1} parent=11 // pred_check_branch
          %236 = sbr.rel (%p234) target = $region20
        $region19: #{cnn_5d_forward.1} parent=11 // pred_region
          _
        $region20: #{cnn_5d_forward.1} parent=11 // pred_fallthru
          _
        // Predicated region
        $region21: #{cnn_5d_forward.1} parent=11 // pred_check
          %p237 = pneg %p106
        $region22: #{cnn_5d_forward.1} parent=11 // pred_check_branch
          %239 = sbr.rel (%p237) target = $region24
        $region23: #{cnn_5d_forward.1} parent=11 // pred_region
          _
        $region24: #{cnn_5d_forward.1} parent=11 // pred_fallthru
          _
        // Predicated region
        $region25: #{cnn_5d_forward.1} parent=11 // pred_check
          %p240 = pneg %p127
        $region26: #{cnn_5d_forward.1} parent=11 // pred_check_branch
          %242 = sbr.rel (%p240) target = $region28
        $region27: #{cnn_5d_forward.1} parent=11 // pred_region
          _
        $region28: #{cnn_5d_forward.1} parent=11 // pred_fallthru
          _
        // Predicated region
        $region29: #{cnn_5d_forward.1} parent=11 // pred_check
          %p243 = pneg %p148
        $region30: #{cnn_5d_forward.1} parent=11 // pred_check_branch
          %245 = sbr.rel (%p243) target = $region32
        $region31: #{cnn_5d_forward.1} parent=11 // pred_region
          _
        $region32: #{cnn_5d_forward.1} parent=11 // pred_fallthru
          _
        // Predicated region
        $region33: #{cnn_5d_forward.1} parent=11 // pred_check
          %p246 = pneg %p169
        $region34: #{cnn_5d_forward.1} parent=11 // pred_check_branch
          %248 = sbr.rel (%p246) target = $region36
        $region35: #{cnn_5d_forward.1} parent=11 // pred_region
          _
        $region36: #{cnn_5d_forward.1} parent=11 // pred_fallthru
          _
        // Predicated region
        $region37: #{cnn_5d_forward.1} parent=11 // pred_check
          %p249 = pneg %p190
        $region38: #{cnn_5d_forward.1} parent=11 // pred_check_branch
          %251 = sbr.rel (%p249) target = $region40
        $region39: #{cnn_5d_forward.1} parent=11 // pred_region
          _
        $region40: #{cnn_5d_forward.1} parent=11 // pred_fallthru
          _
      $region12: #{cnn_5d_forward.1} parent=5 // pred_fallthru
        _
      %p252 = scmp.lt.s32.totalorder %s17, 2
      // Predicated region
      $region41: #{cnn_5d_forward.1} parent=5 // pred_check
        %p253 = pneg %p252
      $region42: #{cnn_5d_forward.1} parent=5 // pred_check_branch
        %255 = sbr.rel (%p253) target = $region44
      $region43: #{cnn_5d_forward.1} parent=5 // pred_region
        // Predicated region
        $region45: #{cnn_5d_forward.1} parent=43 // pred_check
          %p256 = pneg %p37
        $region46: #{cnn_5d_forward.1} parent=43 // pred_check_branch
          %258 = sbr.rel (%p256) target = $region48
        $region47: #{cnn_5d_forward.1} parent=43 // pred_region
          %p259 = scmp.lt.s32.totalorder %s17, 1
          %s260 = scalar_select %p259, %s17, 1
          %s261 = smul.addr %s260, 60
          %s262 = smul.addr %s261, 8
          %s263 = scalar_lea.vmem %s0, %s262
        $region48: #{cnn_5d_forward.1} parent=43 // pred_fallthru
          _
      $region44: #{cnn_5d_forward.1} parent=5 // pred_fallthru
        _
      %p264 = scmp.le.s32.totalorder 1, %s17
      %p265 = scmp.lt.s32.totalorder %s17, 3
      %p266 = pnand %p264, %p265
      %p267 = pneg %p266
      // Predicated region
      $region49: #{cnn_5d_forward.1} parent=5 // pred_check
        _
      $region50: #{cnn_5d_forward.1} parent=5 // pred_check_branch
        %269 = sbr.rel (%p266) target = $region52
      $region51: #{cnn_5d_forward.1} parent=5 // pred_region
        %s270 = ssub.s32 %s17, 1
        %p271 = scmp.lt.s32.totalorder %s22, 1
        %s272 = scalar_select %p271, %s22, 1
        %s273 = smul.addr %s272, 60
        %s274 = smul.addr %s273, 8
        %s275 = scalar_lea.vmem %s0, %s274
        %p276 = pneg %p43
        %p277 = pneg %p40
        %p278 = pneg %p64
        %p279 = pneg %p61
        %p280 = pneg %p85
        %p281 = pneg %p82
        %p282 = pneg %p106
        %p283 = pneg %p103
        %p284 = pneg %p127
        %p285 = pneg %p124
        %p286 = pneg %p148
        %p287 = pneg %p145
        %p288 = pneg %p169
        %p289 = pneg %p166
        %p290 = pneg %p190
        %p291 = pneg %p187
        %p292 = pneg %p216
        %p293 = pneg %p213
        %s294 = sand.u32 %s203, 1
        %s295 = scalar_lea.sflag [#allocation3], %s294
        %s296 = sand.u32 %s203, 1
        %s297 = scalar_lea.vmem [#allocation2], %s296
        %p298 = scmp.lt.s32.totalorder %s22, 1
        %s299 = scalar_select %p298, %s22, 1
        %s300 = smul.addr %s299, 60
        %s301 = smul.addr %s300, 8
        %s302 = scalar_lea.vmem %s0, %s301
        %v303 = vld [vmem:[%s302] sm:$0xff]
        %v304 = vld [vmem:[%s302 + $0x8] sm:$0xff]
        %v305 = vld [vmem:[%s302 + $0x10] sm:$0xff]
        %v306 = vld [vmem:[%s302 + $0x18] sm:$0xff]
        %v307 = vld [vmem:[%s302 + $0x20] sm:$0xff]
        %v308 = vld [vmem:[%s302 + $0x28] sm:$0xff]
        %v309 = vld [vmem:[%s302 + $0x30] sm:$0xff]
        %v310 = vld [vmem:[%s302 + $0x38] sm:$0xff]
        %v311 = vld [vmem:[%s302 + $0x40] sm:$0xff]
        %v312 = vld [vmem:[%s302 + $0x48] sm:$0xff]
        %v313 = vld [vmem:[%s302 + $0x50] sm:$0xff]
        %v314 = vld [vmem:[%s302 + $0x58] sm:$0xff]
        %v315 = vld [vmem:[%s302 + $0x60] sm:$0xff]
        %v316 = vld [vmem:[%s302 + $0x68] sm:$0xff]
        %v317 = vld [vmem:[%s302 + $0x70] sm:$0xff]
        %v318 = vld [vmem:[%s302 + $0x78] sm:$0xff]
        %v319 = vld [vmem:[%s302 + $0x80] sm:$0xff]
        %v320 = vld [vmem:[%s302 + $0x88] sm:$0xff]
        %v321 = vld [vmem:[%s302 + $0x90] sm:$0xff]
        %v322 = vld [vmem:[%s302 + $0x98] sm:$0xff]
        %v323 = vld [vmem:[%s302 + $0xa0] sm:$0xff]
        %v324 = vld [vmem:[%s302 + $0xa8] sm:$0xff]
        %v325 = vld [vmem:[%s302 + $0xb0] sm:$0xff]
        %v326 = vld [vmem:[%s302 + $0xb8] sm:$0xff]
        %v327 = vld [vmem:[%s302 + $0xc0] sm:$0xff]
        %v328 = vld [vmem:[%s302 + $0xc8] sm:$0xff]
        %v329 = vld [vmem:[%s302 + $0xd0] sm:$0xff]
        %v330 = vld [vmem:[%s302 + $0xd8] sm:$0xff]
        %v331 = vld [vmem:[%s302 + $0xe0] sm:$0xff]
        %v332 = vld [vmem:[%s302 + $0xe8] sm:$0xff]
        %v333 = vld [vmem:[%s302 + $0xf0] sm:$0xff]
        %v334 = vld [vmem:[%s302 + $0xf8] sm:$0xff]
        %v335 = vld [vmem:[%s302 + $0x100] sm:$0xff]
        %v336 = vld [vmem:[%s302 + $0x108] sm:$0xff]
        %v337 = vld [vmem:[%s302 + $0x110] sm:$0xff]
        %v338 = vld [vmem:[%s302 + $0x118] sm:$0xff]
        %v339 = vld [vmem:[%s302 + $0x120] sm:$0xff]
        %v340 = vld [vmem:[%s302 + $0x128] sm:$0xff]
        %v341 = vld [vmem:[%s302 + $0x130] sm:$0xff]
        %v342 = vld [vmem:[%s302 + $0x138] sm:$0xff]
        %v343 = vld [vmem:[%s302 + $0x140] sm:$0xff]
        %v344 = vld [vmem:[%s302 + $0x148] sm:$0xff]
        %v345 = vld [vmem:[%s302 + $0x150] sm:$0xff]
        %v346 = vld [vmem:[%s302 + $0x158] sm:$0xff]
        %v347 = vld [vmem:[%s302 + $0x160] sm:$0xff]
        %v348 = vld [vmem:[%s302 + $0x168] sm:$0xff]
        %v349 = vld [vmem:[%s302 + $0x170] sm:$0xff]
        %v350 = vld [vmem:[%s302 + $0x178] sm:$0xff]
        %v351 = vld [vmem:[%s302 + $0x180] sm:$0xff]
        %v352 = vld [vmem:[%s302 + $0x188] sm:$0xff]
        %v353 = vld [vmem:[%s302 + $0x190] sm:$0xff]
        %v354 = vld [vmem:[%s302 + $0x198] sm:$0xff]
        %v355 = vld [vmem:[%s302 + $0x1a0] sm:$0xff]
        %v356 = vld [vmem:[%s302 + $0x1a8] sm:$0xff]
        %v357 = vld [vmem:[%s302 + $0x1b0] sm:$0xff]
        %v358 = vld [vmem:[%s302 + $0x1b8] sm:$0xff]
        %v359 = vld [vmem:[%s302 + $0x1c0] sm:$0xff]
        %v360 = vld [vmem:[%s302 + $0x1c8] sm:$0xff]
        %v361 = vld [vmem:[%s302 + $0x1d0] sm:$0xff]
        %v362 = vld [vmem:[%s302 + $0x1d8] sm:$0xff]
        %v363 = vld [vmem:[%s2] sm:$0xff]
        %v364 = vld [vmem:[%s2 + $0x8] sm:$0x7f]
        %v365 = vld [vmem:[%s3] sm:$0x1]
        %v367 = vlaneseq
        %v368 = vshrl.u32 %v367, 7
        %v369 = vsub.s32 0, %v368
        %v370 = vrot.slane %v365, %v369
        %vm372 = vcmask 121856
        %v374 = vsel %vm372, %v303, 0
        %v377 = vsel %vm372, %v304, 0
        %v380 = vsel %vm372, %v305, 0
        %v383 = vsel %vm372, %v306, 0
        %v386 = vsel %vm372, %v307, 0
        %v389 = vsel %vm372, %v308, 0
        %v392 = vsel %vm372, %v309, 0
        %v395 = vsel %vm372, %v310, 0
        %v398 = vsel %vm372, %v311, 0
        %v401 = vsel %vm372, %v312, 0
        %v404 = vsel %vm372, %v313, 0
        %v407 = vsel %vm372, %v314, 0
        %v410 = vsel %vm372, %v315, 0
        %v413 = vsel %vm372, %v316, 0
        %v416 = vsel %vm372, %v317, 0
        %v419 = vsel %vm372, %v318, 0
        %v422 = vsel %vm372, %v319, 0
        %v425 = vsel %vm372, %v320, 0
        %v428 = vsel %vm372, %v321, 0
        %v431 = vsel %vm372, %v322, 0
        %v434 = vsel %vm372, %v323, 0
        %v437 = vsel %vm372, %v324, 0
        %v440 = vsel %vm372, %v325, 0
        %v443 = vsel %vm372, %v326, 0
        %v446 = vsel %vm372, %v327, 0
        %v449 = vsel %vm372, %v328, 0
        %v452 = vsel %vm372, %v329, 0
        %v455 = vsel %vm372, %v330, 0
        %v458 = vsel %vm372, %v331, 0
        %v461 = vsel %vm372, %v332, 0
        %v464 = vsel %vm372, %v333, 0
        %v467 = vsel %vm372, %v334, 0
        %v470 = vsel %vm372, %v335, 0
        %v473 = vsel %vm372, %v336, 0
        %v476 = vsel %vm372, %v337, 0
        %v479 = vsel %vm372, %v338, 0
        %v482 = vsel %vm372, %v339, 0
        %v485 = vsel %vm372, %v340, 0
        %v488 = vsel %vm372, %v341, 0
        %v491 = vsel %vm372, %v342, 0
        %v494 = vsel %vm372, %v343, 0
        %v497 = vsel %vm372, %v344, 0
        %v500 = vsel %vm372, %v345, 0
        %v503 = vsel %vm372, %v346, 0
        %v506 = vsel %vm372, %v347, 0
        %v509 = vsel %vm372, %v348, 0
        %v512 = vsel %vm372, %v349, 0
        %v515 = vsel %vm372, %v350, 0
        %v518 = vsel %vm372, %v351, 0
        %v521 = vsel %vm372, %v352, 0
        %v524 = vsel %vm372, %v353, 0
        %v527 = vsel %vm372, %v354, 0
        %v530 = vsel %vm372, %v355, 0
        %v533 = vsel %vm372, %v356, 0
        %v536 = vsel %vm372, %v357, 0
        %v539 = vsel %vm372, %v358, 0
        %v542 = vsel %vm372, %v359, 0
        %v545 = vsel %vm372, %v360, 0
        %v548 = vsel %vm372, %v361, 0
        %v551 = vsel %vm372, %v362, 0
        %vm553 = vcmask 1046528
        %v555 = vsel %vm553, %v364, 0
        %557 = vmatprep.subr.mxu0 0.0
        %558 = vmatpush1.msra.mxu0 0.0
        %559 = vmatprep.subr.mxu0 0.0
        %560 = vmatpush1.msra.mxu0 0.0
        %561 = vmatprep.subr.mxu0 0.0
        %562 = vmatpush1.msra.mxu0 0.0
        %563 = vmatprep.subr.mxu0 0.0
        %564 = vmatpush1.msra.mxu0 0.0
        %565 = vmatprep.subr.mxu0 0.0
        %566 = vmatpush1.msra.mxu0 0.0
        %567 = vmatprep.subr.mxu0 0.0
        %568 = vmatpush1.msra.mxu0 0.0
        %569 = vmatprep.subr.mxu0 0.0
        %570 = vmatpush1.msra.mxu0 0.0
        %571 = vmatprep.subr.mxu0 0.0
        %572 = vmatpush1.msra.mxu0 0.0
        %573 = vmatprep.subr.mxu0 0.0
        %574 = vmatpush1.msra.mxu0 0.0
        %575 = vmatprep.subr.mxu0 0.0
        %576 = vmatpush1.msra.mxu0 0.0
        %577 = vmatprep.subr.mxu0 0.0
        %578 = vmatpush1.msra.mxu0 0.0
        %579 = vmatprep.subr.mxu0 0.0
        %580 = vmatpush1.msra.mxu0 0.0
        %581 = vmatprep.subr.mxu0 0.0
        %582 = vmatpush1.msra.mxu0 0.0
        %583 = vmatprep.subr.mxu0 0.0
        %584 = vmatpush1.msra.mxu0 0.0
        %585 = vmatprep.subr.mxu0 0.0
        %586 = vmatpush1.msra.mxu0 %v555
        %587 = vmatprep.subr.mxu0 0.0
        %588 = vmatpush1.msra.mxu0 %v363
        %589 = vmatprep.subr.mxu0 0.0
        %590 = vmatpush2.msra.mxu0 0.0
        %591 = vmatprep.subr.mxu0 0.0
        %592 = vmatpush2.msra.mxu0 0.0
        %593 = vmatprep.subr.mxu0 0.0
        %594 = vmatpush2.msra.mxu0 0.0
        %595 = vmatprep.subr.mxu0 0.0
        %596 = vmatpush2.msra.mxu0 0.0
        %597 = vmatprep.subr.mxu0 0.0
        %598 = vmatpush2.msra.mxu0 0.0
        %599 = vmatprep.subr.mxu0 0.0
        %600 = vmatpush2.msra.mxu0 0.0
        %601 = vmatprep.subr.mxu0 0.0
        %602 = vmatpush2.msra.mxu0 0.0
        %603 = vmatprep.subr.mxu0 0.0
        %604 = vmatpush2.msra.mxu0 0.0
        %605 = vmatprep.subr.mxu0 0.0
        %606 = vmatpush2.msra.mxu0 0.0
        %607 = vmatprep.subr.mxu0 0.0
        %608 = vmatpush2.msra.mxu0 0.0
        %609 = vmatprep.subr.mxu0 0.0
        %610 = vmatpush2.msra.mxu0 0.0
        %611 = vmatprep.subr.mxu0 0.0
        %612 = vmatpush2.msra.mxu0 0.0
        %613 = vmatprep.subr.mxu0 0.0
        %614 = vmatpush2.msra.mxu0 0.0
        %615 = vmatprep.subr.mxu0 0.0
        %616 = vmatpush2.msra.mxu0 0.0
        %617 = vmatprep.subr.mxu0 0.0
        %618 = vmatpush2.msra.mxu0 0.0
        %619 = vmatprep.subr.mxu0 0.0
        %620 = vmatpush2.msra.mxu0 0.0
        %621 = vmatprep.mubr.f32.mxu0 0.0
        %622 = vmatmul.mubr.f32.gmra.mxu0 %v374
        %v623 = vpop.f32.mrf.mxu0
        %v624 = vadd.f32 %v370, %v623
        %v625 = vpop.f32.mrf.mxu0
        %626 = vmatprep.mubr.f32.mxu0 0.0
        %627 = vmatmul.mubr.f32.gmra.mxu0 %v377
        %v628 = vpop.f32.mrf.mxu0
        %v629 = vadd.f32 %v370, %v628
        %v630 = vpop.f32.mrf.mxu0
        %631 = vmatprep.mubr.f32.mxu0 0.0
        %632 = vmatmul.mubr.f32.gmra.mxu0 %v380
        %v633 = vpop.f32.mrf.mxu0
        %v634 = vadd.f32 %v370, %v633
        %v635 = vpop.f32.mrf.mxu0
        %636 = vmatprep.mubr.f32.mxu0 0.0
        %637 = vmatmul.mubr.f32.gmra.mxu0 %v383
        %v638 = vpop.f32.mrf.mxu0
        %v639 = vadd.f32 %v370, %v638
        %v640 = vpop.f32.mrf.mxu0
        %641 = vmatprep.mubr.f32.mxu0 0.0
        %642 = vmatmul.mubr.f32.gmra.mxu0 %v386
        %v643 = vpop.f32.mrf.mxu0
        %v644 = vadd.f32 %v370, %v643
        %v645 = vpop.f32.mrf.mxu0
        %646 = vmatprep.mubr.f32.mxu0 0.0
        %647 = vmatmul.mubr.f32.gmra.mxu0 %v389
        %v648 = vpop.f32.mrf.mxu0
        %v649 = vadd.f32 %v370, %v648
        %v650 = vpop.f32.mrf.mxu0
        %651 = vmatprep.mubr.f32.mxu0 0.0
        %652 = vmatmul.mubr.f32.gmra.mxu0 %v392
        %v653 = vpop.f32.mrf.mxu0
        %v654 = vadd.f32 %v370, %v653
        %v655 = vpop.f32.mrf.mxu0
        %656 = vmatprep.mubr.f32.mxu0 0.0
        %657 = vmatmul.mubr.f32.gmra.mxu0 %v395
        %v658 = vpop.f32.mrf.mxu0
        %v659 = vadd.f32 %v370, %v658
        %v660 = vpop.f32.mrf.mxu0
        %661 = vmatprep.mubr.f32.mxu0 0.0
        %662 = vmatmul.mubr.f32.gmra.mxu0 %v398
        %v663 = vpop.f32.mrf.mxu0
        %v664 = vadd.f32 %v370, %v663
        %v665 = vpop.f32.mrf.mxu0
        %666 = vmatprep.mubr.f32.mxu0 0.0
        %667 = vmatmul.mubr.f32.gmra.mxu0 %v401
        %v668 = vpop.f32.mrf.mxu0
        %v669 = vadd.f32 %v370, %v668
        %v670 = vpop.f32.mrf.mxu0
        %671 = vmatprep.mubr.f32.mxu0 0.0
        %672 = vmatmul.mubr.f32.gmra.mxu0 %v404
        %v673 = vpop.f32.mrf.mxu0
        %v674 = vadd.f32 %v370, %v673
        %v675 = vpop.f32.mrf.mxu0
        %676 = vmatprep.mubr.f32.mxu0 0.0
        %677 = vmatmul.mubr.f32.gmra.mxu0 %v407
        %v678 = vpop.f32.mrf.mxu0
        %v679 = vadd.f32 %v370, %v678
        %v680 = vpop.f32.mrf.mxu0
        %681 = vmatprep.mubr.f32.mxu0 0.0
        %682 = vmatmul.mubr.f32.gmra.mxu0 %v410
        %v683 = vpop.f32.mrf.mxu0
        %v684 = vadd.f32 %v370, %v683
        %v685 = vpop.f32.mrf.mxu0
        %686 = vmatprep.mubr.f32.mxu0 0.0
        %687 = vmatmul.mubr.f32.gmra.mxu0 %v413
        %v688 = vpop.f32.mrf.mxu0
        %v689 = vadd.f32 %v370, %v688
        %v690 = vpop.f32.mrf.mxu0
        %691 = vmatprep.mubr.f32.mxu0 0.0
        %692 = vmatmul.mubr.f32.gmra.mxu0 %v416
        %v693 = vpop.f32.mrf.mxu0
        %v694 = vadd.f32 %v370, %v693
        %v695 = vpop.f32.mrf.mxu0
        %696 = vmatprep.mubr.f32.mxu0 0.0
        %697 = vmatmul.mubr.f32.gmra.mxu0 %v419
        %v698 = vpop.f32.mrf.mxu0
        %v699 = vadd.f32 %v370, %v698
        %v700 = vpop.f32.mrf.mxu0
        %701 = vmatprep.mubr.f32.mxu0 0.0
        %702 = vmatmul.mubr.f32.gmra.mxu0 %v422
        %v703 = vpop.f32.mrf.mxu0
        %v704 = vadd.f32 %v370, %v703
        %v705 = vpop.f32.mrf.mxu0
        %706 = vmatprep.mubr.f32.mxu0 0.0
        %707 = vmatmul.mubr.f32.gmra.mxu0 %v425
        %v708 = vpop.f32.mrf.mxu0
        %v709 = vadd.f32 %v370, %v708
        %v710 = vpop.f32.mrf.mxu0
        %711 = vmatprep.mubr.f32.mxu0 0.0
        %712 = vmatmul.mubr.f32.gmra.mxu0 %v428
        %v713 = vpop.f32.mrf.mxu0
        %v714 = vadd.f32 %v370, %v713
        %v715 = vpop.f32.mrf.mxu0
        %716 = vmatprep.mubr.f32.mxu0 0.0
        %717 = vmatmul.mubr.f32.gmra.mxu0 %v431
        %v718 = vpop.f32.mrf.mxu0
        %v719 = vadd.f32 %v370, %v718
        %v720 = vpop.f32.mrf.mxu0
        %721 = vmatprep.mubr.f32.mxu0 0.0
        %722 = vmatmul.mubr.f32.gmra.mxu0 %v434
        %v723 = vpop.f32.mrf.mxu0
        %v724 = vadd.f32 %v370, %v723
        %v725 = vpop.f32.mrf.mxu0
        %726 = vmatprep.mubr.f32.mxu0 0.0
        %727 = vmatmul.mubr.f32.gmra.mxu0 %v437
        %v728 = vpop.f32.mrf.mxu0
        %v729 = vadd.f32 %v370, %v728
        %v730 = vpop.f32.mrf.mxu0
        %731 = vmatprep.mubr.f32.mxu0 0.0
        %732 = vmatmul.mubr.f32.gmra.mxu0 %v440
        %v733 = vpop.f32.mrf.mxu0
        %v734 = vadd.f32 %v370, %v733
        %v735 = vpop.f32.mrf.mxu0
        %736 = vmatprep.mubr.f32.mxu0 0.0
        %737 = vmatmul.mubr.f32.gmra.mxu0 %v443
        %v738 = vpop.f32.mrf.mxu0
        %v739 = vadd.f32 %v370, %v738
        %v740 = vpop.f32.mrf.mxu0
        %741 = vmatprep.mubr.f32.mxu0 0.0
        %742 = vmatmul.mubr.f32.gmra.mxu0 %v446
        %v743 = vpop.f32.mrf.mxu0
        %v744 = vadd.f32 %v370, %v743
        %v745 = vpop.f32.mrf.mxu0
        %746 = vmatprep.mubr.f32.mxu0 0.0
        %747 = vmatmul.mubr.f32.gmra.mxu0 %v449
        %v748 = vpop.f32.mrf.mxu0
        %v749 = vadd.f32 %v370, %v748
        %v750 = vpop.f32.mrf.mxu0
        %751 = vmatprep.mubr.f32.mxu0 0.0
        %752 = vmatmul.mubr.f32.gmra.mxu0 %v452
        %v753 = vpop.f32.mrf.mxu0
        %v754 = vadd.f32 %v370, %v753
        %v755 = vpop.f32.mrf.mxu0
        %756 = vmatprep.mubr.f32.mxu0 0.0
        %757 = vmatmul.mubr.f32.gmra.mxu0 %v455
        %v758 = vpop.f32.mrf.mxu0
        %v759 = vadd.f32 %v370, %v758
        %v760 = vpop.f32.mrf.mxu0
        %761 = vmatprep.mubr.f32.mxu0 0.0
        %762 = vmatmul.mubr.f32.gmra.mxu0 %v458
        %v763 = vpop.f32.mrf.mxu0
        %v764 = vadd.f32 %v370, %v763
        %v765 = vpop.f32.mrf.mxu0
        %766 = vmatprep.mubr.f32.mxu0 0.0
        %767 = vmatmul.mubr.f32.gmra.mxu0 %v461
        %v768 = vpop.f32.mrf.mxu0
        %v769 = vadd.f32 %v370, %v768
        %v770 = vpop.f32.mrf.mxu0
        %771 = vmatprep.mubr.f32.mxu0 0.0
        %772 = vmatmul.mubr.f32.gmra.mxu0 %v464
        %v773 = vpop.f32.mrf.mxu0
        %v774 = vadd.f32 %v370, %v773
        %v775 = vpop.f32.mrf.mxu0
        %776 = vmatprep.mubr.f32.mxu0 0.0
        %777 = vmatmul.mubr.f32.gmra.mxu0 %v467
        %v778 = vpop.f32.mrf.mxu0
        %v779 = vadd.f32 %v370, %v778
        %v780 = vpop.f32.mrf.mxu0
        %781 = vmatprep.mubr.f32.mxu0 0.0
        %782 = vmatmul.mubr.f32.gmra.mxu0 %v470
        %v783 = vpop.f32.mrf.mxu0
        %v784 = vadd.f32 %v370, %v783
        %v785 = vpop.f32.mrf.mxu0
        %786 = vmatprep.mubr.f32.mxu0 0.0
        %787 = vmatmul.mubr.f32.gmra.mxu0 %v473
        %v788 = vpop.f32.mrf.mxu0
        %v789 = vadd.f32 %v370, %v788
        %v790 = vpop.f32.mrf.mxu0
        %791 = vmatprep.mubr.f32.mxu0 0.0
        %792 = vmatmul.mubr.f32.gmra.mxu0 %v476
        %v793 = vpop.f32.mrf.mxu0
        %v794 = vadd.f32 %v370, %v793
        %v795 = vpop.f32.mrf.mxu0
        %796 = vmatprep.mubr.f32.mxu0 0.0
        %797 = vmatmul.mubr.f32.gmra.mxu0 %v479
        %v798 = vpop.f32.mrf.mxu0
        %v799 = vadd.f32 %v370, %v798
        %v800 = vpop.f32.mrf.mxu0
        %801 = vmatprep.mubr.f32.mxu0 0.0
        %802 = vmatmul.mubr.f32.gmra.mxu0 %v482
        %v803 = vpop.f32.mrf.mxu0
        %v804 = vadd.f32 %v370, %v803
        %v805 = vpop.f32.mrf.mxu0
        %806 = vmatprep.mubr.f32.mxu0 0.0
        %807 = vmatmul.mubr.f32.gmra.mxu0 %v485
        %v808 = vpop.f32.mrf.mxu0
        %v809 = vadd.f32 %v370, %v808
        %v810 = vpop.f32.mrf.mxu0
        %811 = vmatprep.mubr.f32.mxu0 0.0
        %812 = vmatmul.mubr.f32.gmra.mxu0 %v488
        %v813 = vpop.f32.mrf.mxu0
        %v814 = vadd.f32 %v370, %v813
        %v815 = vpop.f32.mrf.mxu0
        %816 = vmatprep.mubr.f32.mxu0 0.0
        %817 = vmatmul.mubr.f32.gmra.mxu0 %v491
        %v818 = vpop.f32.mrf.mxu0
        %v819 = vadd.f32 %v370, %v818
        %v820 = vpop.f32.mrf.mxu0
        %821 = vmatprep.mubr.f32.mxu0 0.0
        %822 = vmatmul.mubr.f32.gmra.mxu0 %v494
        %v823 = vpop.f32.mrf.mxu0
        %v824 = vadd.f32 %v370, %v823
        %v825 = vpop.f32.mrf.mxu0
        %826 = vmatprep.mubr.f32.mxu0 0.0
        %827 = vmatmul.mubr.f32.gmra.mxu0 %v497
        %v828 = vpop.f32.mrf.mxu0
        %v829 = vadd.f32 %v370, %v828
        %v830 = vpop.f32.mrf.mxu0
        %831 = vmatprep.mubr.f32.mxu0 0.0
        %832 = vmatmul.mubr.f32.gmra.mxu0 %v500
        %v833 = vpop.f32.mrf.mxu0
        %v834 = vadd.f32 %v370, %v833
        %v835 = vpop.f32.mrf.mxu0
        %836 = vmatprep.mubr.f32.mxu0 0.0
        %837 = vmatmul.mubr.f32.gmra.mxu0 %v503
        %v838 = vpop.f32.mrf.mxu0
        %v839 = vadd.f32 %v370, %v838
        %v840 = vpop.f32.mrf.mxu0
        %841 = vmatprep.mubr.f32.mxu0 0.0
        %842 = vmatmul.mubr.f32.gmra.mxu0 %v506
        %v843 = vpop.f32.mrf.mxu0
        %v844 = vadd.f32 %v370, %v843
        %v845 = vpop.f32.mrf.mxu0
        %846 = vmatprep.mubr.f32.mxu0 0.0
        %847 = vmatmul.mubr.f32.gmra.mxu0 %v509
        %v848 = vpop.f32.mrf.mxu0
        %v849 = vadd.f32 %v370, %v848
        %v850 = vpop.f32.mrf.mxu0
        %851 = vmatprep.mubr.f32.mxu0 0.0
        %852 = vmatmul.mubr.f32.gmra.mxu0 %v512
        %v853 = vpop.f32.mrf.mxu0
        %v854 = vadd.f32 %v370, %v853
        %v855 = vpop.f32.mrf.mxu0
        %856 = vmatprep.mubr.f32.mxu0 0.0
        %857 = vmatmul.mubr.f32.gmra.mxu0 %v515
        %v858 = vpop.f32.mrf.mxu0
        %v859 = vadd.f32 %v370, %v858
        %v860 = vpop.f32.mrf.mxu0
        %861 = vmatprep.mubr.f32.mxu0 0.0
        %862 = vmatmul.mubr.f32.gmra.mxu0 %v518
        %v863 = vpop.f32.mrf.mxu0
        %v864 = vadd.f32 %v370, %v863
        %v865 = vpop.f32.mrf.mxu0
        %866 = vmatprep.mubr.f32.mxu0 0.0
        %867 = vmatmul.mubr.f32.gmra.mxu0 %v521
        %v868 = vpop.f32.mrf.mxu0
        %v869 = vadd.f32 %v370, %v868
        %v870 = vpop.f32.mrf.mxu0
        %871 = vmatprep.mubr.f32.mxu0 0.0
        %872 = vmatmul.mubr.f32.gmra.mxu0 %v524
        %v873 = vpop.f32.mrf.mxu0
        %v874 = vadd.f32 %v370, %v873
        %v875 = vpop.f32.mrf.mxu0
        %876 = vmatprep.mubr.f32.mxu0 0.0
        %877 = vmatmul.mubr.f32.gmra.mxu0 %v527
        %v878 = vpop.f32.mrf.mxu0
        %v879 = vadd.f32 %v370, %v878
        %v880 = vpop.f32.mrf.mxu0
        %881 = vmatprep.mubr.f32.mxu0 0.0
        %882 = vmatmul.mubr.f32.gmra.mxu0 %v530
        %v883 = vpop.f32.mrf.mxu0
        %v884 = vadd.f32 %v370, %v883
        %v885 = vpop.f32.mrf.mxu0
        %886 = vmatprep.mubr.f32.mxu0 0.0
        %887 = vmatmul.mubr.f32.gmra.mxu0 %v533
        %v888 = vpop.f32.mrf.mxu0
        %v889 = vadd.f32 %v370, %v888
        %v890 = vpop.f32.mrf.mxu0
        %891 = vmatprep.mubr.f32.mxu0 0.0
        %892 = vmatmul.mubr.f32.gmra.mxu0 %v536
        %v893 = vpop.f32.mrf.mxu0
        %v894 = vadd.f32 %v370, %v893
        %v895 = vpop.f32.mrf.mxu0
        %896 = vmatprep.mubr.f32.mxu0 0.0
        %897 = vmatmul.mubr.f32.gmra.mxu0 %v539
        %v898 = vpop.f32.mrf.mxu0
        %v899 = vadd.f32 %v370, %v898
        %v900 = vpop.f32.mrf.mxu0
        %901 = vmatprep.mubr.f32.mxu0 0.0
        %902 = vmatmul.mubr.f32.gmra.mxu0 %v542
        %v903 = vpop.f32.mrf.mxu0
        %v904 = vadd.f32 %v370, %v903
        %v905 = vpop.f32.mrf.mxu0
        %906 = vmatprep.mubr.f32.mxu0 0.0
        %907 = vmatmul.mubr.f32.gmra.mxu0 %v545
        %v908 = vpop.f32.mrf.mxu0
        %v909 = vadd.f32 %v370, %v908
        %v910 = vpop.f32.mrf.mxu0
        %911 = vmatprep.mubr.f32.mxu0 0.0
        %912 = vmatmul.mubr.f32.gmra.mxu0 %v548
        %v913 = vpop.f32.mrf.mxu0
        %v914 = vadd.f32 %v370, %v913
        %v915 = vpop.f32.mrf.mxu0
        %916 = vmatprep.mubr.f32.mxu0 0.0
        %917 = vmatmul.mubr.f32.gmra.mxu0 %v551
        %v918 = vpop.f32.mrf.mxu0
        %v919 = vadd.f32 %v370, %v918
        %v920 = vpop.f32.mrf.mxu0
        %921 = vdwg.mxu0
        %v922 = vmul.f32 %v624, 0.01
        %v923 = vmul.f32 %v629, 0.01
        %v924 = vmul.f32 %v634, 0.01
        %v925 = vmul.f32 %v639, 0.01
        %v926 = vmul.f32 %v644, 0.01
        %v927 = vmul.f32 %v649, 0.01
        %v928 = vmul.f32 %v654, 0.01
        %v929 = vmul.f32 %v659, 0.01
        %v930 = vmul.f32 %v664, 0.01
        %v931 = vmul.f32 %v669, 0.01
        %v932 = vmul.f32 %v674, 0.01
        %v933 = vmul.f32 %v679, 0.01
        %v934 = vmul.f32 %v684, 0.01
        %v935 = vmul.f32 %v689, 0.01
        %v936 = vmul.f32 %v694, 0.01
        %v937 = vmul.f32 %v699, 0.01
        %v938 = vmul.f32 %v704, 0.01
        %v939 = vmul.f32 %v709, 0.01
        %v940 = vmul.f32 %v714, 0.01
        %v941 = vmul.f32 %v719, 0.01
        %v942 = vmul.f32 %v724, 0.01
        %v943 = vmul.f32 %v729, 0.01
        %v944 = vmul.f32 %v734, 0.01
        %v945 = vmul.f32 %v739, 0.01
        %v946 = vmul.f32 %v744, 0.01
        %v947 = vmul.f32 %v749, 0.01
        %v948 = vmul.f32 %v754, 0.01
        %v949 = vmul.f32 %v759, 0.01
        %v950 = vmul.f32 %v764, 0.01
        %v951 = vmul.f32 %v769, 0.01
        %v952 = vmul.f32 %v774, 0.01
        %v953 = vmul.f32 %v779, 0.01
        %v954 = vmul.f32 %v784, 0.01
        %v955 = vmul.f32 %v789, 0.01
        %v956 = vmul.f32 %v794, 0.01
        %v957 = vmul.f32 %v799, 0.01
        %v958 = vmul.f32 %v804, 0.01
        %v959 = vmul.f32 %v809, 0.01
        %v960 = vmul.f32 %v814, 0.01
        %v961 = vmul.f32 %v819, 0.01
        %v962 = vmul.f32 %v824, 0.01
        %v963 = vmul.f32 %v829, 0.01
        %v964 = vmul.f32 %v834, 0.01
        %v965 = vmul.f32 %v839, 0.01
        %v966 = vmul.f32 %v844, 0.01
        %v967 = vmul.f32 %v849, 0.01
        %v968 = vmul.f32 %v854, 0.01
        %v969 = vmul.f32 %v859, 0.01
        %v970 = vmul.f32 %v864, 0.01
        %v971 = vmul.f32 %v869, 0.01
        %v972 = vmul.f32 %v874, 0.01
        %v973 = vmul.f32 %v879, 0.01
        %v974 = vmul.f32 %v884, 0.01
        %v975 = vmul.f32 %v889, 0.01
        %v976 = vmul.f32 %v894, 0.01
        %v977 = vmul.f32 %v899, 0.01
        %v978 = vmul.f32 %v904, 0.01
        %v979 = vmul.f32 %v909, 0.01
        %v980 = vmul.f32 %v914, 0.01
        %v981 = vmul.f32 %v919, 0.01
        %v982 = vmax.f32 %v624, %v922
        %v983 = vmax.f32 %v629, %v923
        %v984 = vmax.f32 %v634, %v924
        %v985 = vmax.f32 %v639, %v925
        %v986 = vmax.f32 %v644, %v926
        %v987 = vmax.f32 %v649, %v927
        %v988 = vmax.f32 %v654, %v928
        %v989 = vmax.f32 %v659, %v929
        %v990 = vmax.f32 %v664, %v930
        %v991 = vmax.f32 %v669, %v931
        %v992 = vmax.f32 %v674, %v932
        %v993 = vmax.f32 %v679, %v933
        %v994 = vmax.f32 %v684, %v934
        %v995 = vmax.f32 %v689, %v935
        %v996 = vmax.f32 %v694, %v936
        %v997 = vmax.f32 %v699, %v937
        %v998 = vmax.f32 %v704, %v938
        %v999 = vmax.f32 %v709, %v939
        %v1000 = vmax.f32 %v714, %v940
        %v1001 = vmax.f32 %v719, %v941
        %v1002 = vmax.f32 %v724, %v942
        %v1003 = vmax.f32 %v729, %v943
        %v1004 = vmax.f32 %v734, %v944
        %v1005 = vmax.f32 %v739, %v945
        %v1006 = vmax.f32 %v744, %v946
        %v1007 = vmax.f32 %v749, %v947
        %v1008 = vmax.f32 %v754, %v948
        %v1009 = vmax.f32 %v759, %v949
        %v1010 = vmax.f32 %v764, %v950
        %v1011 = vmax.f32 %v769, %v951
        %v1012 = vmax.f32 %v774, %v952
        %v1013 = vmax.f32 %v779, %v953
        %v1014 = vmax.f32 %v784, %v954
        %v1015 = vmax.f32 %v789, %v955
        %v1016 = vmax.f32 %v794, %v956
        %v1017 = vmax.f32 %v799, %v957
        %v1018 = vmax.f32 %v804, %v958
        %v1019 = vmax.f32 %v809, %v959
        %v1020 = vmax.f32 %v814, %v960
        %v1021 = vmax.f32 %v819, %v961
        %v1022 = vmax.f32 %v824, %v962
        %v1023 = vmax.f32 %v829, %v963
        %v1024 = vmax.f32 %v834, %v964
        %v1025 = vmax.f32 %v839, %v965
        %v1026 = vmax.f32 %v844, %v966
        %v1027 = vmax.f32 %v849, %v967
        %v1028 = vmax.f32 %v854, %v968
        %v1029 = vmax.f32 %v859, %v969
        %v1030 = vmax.f32 %v864, %v970
        %v1031 = vmax.f32 %v869, %v971
        %v1032 = vmax.f32 %v874, %v972
        %v1033 = vmax.f32 %v879, %v973
        %v1034 = vmax.f32 %v884, %v974
        %v1035 = vmax.f32 %v889, %v975
        %v1036 = vmax.f32 %v894, %v976
        %v1037 = vmax.f32 %v899, %v977
        %v1038 = vmax.f32 %v904, %v978
        %v1039 = vmax.f32 %v909, %v979
        %v1040 = vmax.f32 %v914, %v980
        %v1041 = vmax.f32 %v919, %v981
        %v1042 = vmax.f32 %v982, %v1012
        %v1043 = vmax.f32 %v983, %v1013
        %v1044 = vmax.f32 %v984, %v1014
        %v1045 = vmax.f32 %v985, %v1015
        %v1046 = vmax.f32 %v986, %v1016
        %v1047 = vmax.f32 %v987, %v1017
        %v1048 = vmax.f32 %v988, %v1018
        %v1049 = vmax.f32 %v989, %v1019
        %v1050 = vmax.f32 %v990, %v1020
        %v1051 = vmax.f32 %v991, %v1021
        %v1052 = vmax.f32 %v992, %v1022
        %v1053 = vmax.f32 %v993, %v1023
        %v1054 = vmax.f32 %v994, %v1024
        %v1055 = vmax.f32 %v995, %v1025
        %v1056 = vmax.f32 %v996, %v1026
        %v1057 = vmax.f32 %v997, %v1027
        %v1058 = vmax.f32 %v998, %v1028
        %v1059 = vmax.f32 %v999, %v1029
        %v1060 = vmax.f32 %v1000, %v1030
        %v1061 = vmax.f32 %v1001, %v1031
        %v1062 = vmax.f32 %v1002, %v1032
        %v1063 = vmax.f32 %v1003, %v1033
        %v1064 = vmax.f32 %v1004, %v1034
        %v1065 = vmax.f32 %v1005, %v1035
        %v1066 = vmax.f32 %v1006, %v1036
        %v1067 = vmax.f32 %v1007, %v1037
        %v1068 = vmax.f32 %v1008, %v1038
        %v1069 = vmax.f32 %v1009, %v1039
        %v1070 = vmax.f32 %v1010, %v1040
        %v1071 = vmax.f32 %v1011, %v1041
        %v1072 = vld [vmem:[%s1] sm:$0xff]
        %v1073 = vld [vmem:[%s1 + $0x8] sm:$0xff]
        %v1074 = vld [vmem:[%s1 + $0x10] sm:$0xff]
        %v1075 = vld [vmem:[%s1 + $0x18] sm:$0xff]
        %v1076 = vld [vmem:[%s1 + $0x20] sm:$0xff]
        %v1077 = vld [vmem:[%s1 + $0x28] sm:$0xff]
        %v1078 = vld [vmem:[%s1 + $0x30] sm:$0xff]
        %v1079 = vld [vmem:[%s1 + $0x38] sm:$0xff]
        %v1080 = vld [vmem:[%s1 + $0x40] sm:$0xff]
        %v1081 = vld [vmem:[%s1 + $0x48] sm:$0xff]
        %v1082 = vld [vmem:[%s1 + $0x50] sm:$0xff]
        %v1083 = vld [vmem:[%s1 + $0x58] sm:$0xff]
        %v1084 = vld [vmem:[%s1 + $0x60] sm:$0xff]
        %v1085 = vld [vmem:[%s1 + $0x68] sm:$0xff]
        %v1086 = vld [vmem:[%s1 + $0x70] sm:$0xff]
        %v1087 = vld [vmem:[%s1 + $0x78] sm:$0xff]
        %v1088 = vld [vmem:[%s1 + $0x80] sm:$0xff]
        %v1089 = vld [vmem:[%s1 + $0x88] sm:$0xff]
        %v1090 = vld [vmem:[%s1 + $0x90] sm:$0xff]
        %v1091 = vld [vmem:[%s1 + $0x98] sm:$0xff]
        %v1092 = vld [vmem:[%s1 + $0xa0] sm:$0xff]
        %v1093 = vld [vmem:[%s1 + $0xa8] sm:$0xff]
        %v1094 = vld [vmem:[%s1 + $0xb0] sm:$0xff]
        %v1095 = vld [vmem:[%s1 + $0xb8] sm:$0xff]
        %v1096 = vld [vmem:[%s1 + $0xc0] sm:$0xff]
        %v1097 = vld [vmem:[%s1 + $0xc8] sm:$0xff]
        %v1098 = vld [vmem:[%s1 + $0xd0] sm:$0xff]
        %v1099 = vld [vmem:[%s1 + $0xd8] sm:$0xff]
        %v1100 = vld [vmem:[%s1 + $0xe0] sm:$0xff]
        %v1101 = vld [vmem:[%s1 + $0xe8] sm:$0xff]
        %1103 = vset.pattern.permute.xlu0 0
        %1104 = vperm.xlu0 %1103, %v1072
        %v1105 = vpop.permute.xlu0 %1104
        %1107 = vset.pattern.permute.xlu0 0
        %1108 = vperm.xlu0 %1107, %v1073
        %v1109 = vpop.permute.xlu0 %1108
        %1111 = vset.pattern.permute.xlu0 0
        %1112 = vperm.xlu0 %1111, %v1074
        %v1113 = vpop.permute.xlu0 %1112
        %1115 = vset.pattern.permute.xlu0 0
        %1116 = vperm.xlu0 %1115, %v1075
        %v1117 = vpop.permute.xlu0 %1116
        %1119 = vset.pattern.permute.xlu0 0
        %1120 = vperm.xlu0 %1119, %v1076
        %v1121 = vpop.permute.xlu0 %1120
        %1123 = vset.pattern.permute.xlu0 0
        %1124 = vperm.xlu0 %1123, %v1077
        %v1125 = vpop.permute.xlu0 %1124
        %1127 = vset.pattern.permute.xlu0 0
        %1128 = vperm.xlu0 %1127, %v1078
        %v1129 = vpop.permute.xlu0 %1128
        %1131 = vset.pattern.permute.xlu0 0
        %1132 = vperm.xlu0 %1131, %v1079
        %v1133 = vpop.permute.xlu0 %1132
        %1135 = vset.pattern.permute.xlu0 0
        %1136 = vperm.xlu0 %1135, %v1080
        %v1137 = vpop.permute.xlu0 %1136
        %1139 = vset.pattern.permute.xlu0 0
        %1140 = vperm.xlu0 %1139, %v1081
        %v1141 = vpop.permute.xlu0 %1140
        %1143 = vset.pattern.permute.xlu0 0
        %1144 = vperm.xlu0 %1143, %v1082
        %v1145 = vpop.permute.xlu0 %1144
        %1147 = vset.pattern.permute.xlu0 0
        %1148 = vperm.xlu0 %1147, %v1083
        %v1149 = vpop.permute.xlu0 %1148
        %1151 = vset.pattern.permute.xlu0 0
        %1152 = vperm.xlu0 %1151, %v1084
        %v1153 = vpop.permute.xlu0 %1152
        %1155 = vset.pattern.permute.xlu0 0
        %1156 = vperm.xlu0 %1155, %v1085
        %v1157 = vpop.permute.xlu0 %1156
        %1159 = vset.pattern.permute.xlu0 0
        %1160 = vperm.xlu0 %1159, %v1086
        %v1161 = vpop.permute.xlu0 %1160
        %1163 = vset.pattern.permute.xlu0 0
        %1164 = vperm.xlu0 %1163, %v1087
        %v1165 = vpop.permute.xlu0 %1164
        %1167 = vset.pattern.permute.xlu0 0
        %1168 = vperm.xlu0 %1167, %v1088
        %v1169 = vpop.permute.xlu0 %1168
        %1171 = vset.pattern.permute.xlu0 0
        %1172 = vperm.xlu0 %1171, %v1089
        %v1173 = vpop.permute.xlu0 %1172
        %1175 = vset.pattern.permute.xlu0 0
        %1176 = vperm.xlu0 %1175, %v1090
        %v1177 = vpop.permute.xlu0 %1176
        %1179 = vset.pattern.permute.xlu0 0
        %1180 = vperm.xlu0 %1179, %v1091
        %v1181 = vpop.permute.xlu0 %1180
        %1183 = vset.pattern.permute.xlu0 0
        %1184 = vperm.xlu0 %1183, %v1092
        %v1185 = vpop.permute.xlu0 %1184
        %1187 = vset.pattern.permute.xlu0 0
        %1188 = vperm.xlu0 %1187, %v1093
        %v1189 = vpop.permute.xlu0 %1188
        %1191 = vset.pattern.permute.xlu0 0
        %1192 = vperm.xlu0 %1191, %v1094
        %v1193 = vpop.permute.xlu0 %1192
        %1195 = vset.pattern.permute.xlu0 0
        %1196 = vperm.xlu0 %1195, %v1095
        %v1197 = vpop.permute.xlu0 %1196
        %1199 = vset.pattern.permute.xlu0 0
        %1200 = vperm.xlu0 %1199, %v1096
        %v1201 = vpop.permute.xlu0 %1200
        %1203 = vset.pattern.permute.xlu0 0
        %1204 = vperm.xlu0 %1203, %v1097
        %v1205 = vpop.permute.xlu0 %1204
        %1207 = vset.pattern.permute.xlu0 0
        %1208 = vperm.xlu0 %1207, %v1098
        %v1209 = vpop.permute.xlu0 %1208
        %1211 = vset.pattern.permute.xlu0 0
        %1212 = vperm.xlu0 %1211, %v1099
        %v1213 = vpop.permute.xlu0 %1212
        %1215 = vset.pattern.permute.xlu0 0
        %1216 = vperm.xlu0 %1215, %v1100
        %v1217 = vpop.permute.xlu0 %1216
        %1219 = vset.pattern.permute.xlu0 0
        %1220 = vperm.xlu0 %1219, %v1101
        %v1221 = vpop.permute.xlu0 %1220
        %vm1222 = vcmask 1040384
        %v1223 = vrot.slane %v1105, 7
        %v1224 = vrot.slane %v1109, 7
        %v1225 = vsel %vm1222, %v1223, %v1224
        %v1226 = vrot.slane %v1113, 7
        %v1227 = vsel %vm1222, %v1224, %v1226
        %v1228 = vrot.slane %v1117, 7
        %v1229 = vsel %vm1222, %v1226, %v1228
        %v1230 = vrot.slane %v1121, 7
        %v1231 = vsel %vm1222, %v1228, %v1230
        %v1232 = vrot.slane %v1125, 7
        %v1233 = vsel %vm1222, %v1230, %v1232
        %v1234 = vrot.slane %v1129, 7
        %v1235 = vsel %vm1222, %v1232, %v1234
        %v1236 = vrot.slane %v1133, 7
        %v1237 = vsel %vm1222, %v1234, %v1236
        %v1238 = vrot.slane %v1137, 7
        %v1239 = vsel %vm1222, %v1236, %v1238
        %v1240 = vrot.slane %v1141, 7
        %v1241 = vsel %vm1222, %v1238, %v1240
        %v1242 = vrot.slane %v1145, 7
        %v1243 = vsel %vm1222, %v1240, %v1242
        %v1244 = vrot.slane %v1149, 7
        %v1245 = vsel %vm1222, %v1242, %v1244
        %v1246 = vrot.slane %v1153, 7
        %v1247 = vsel %vm1222, %v1244, %v1246
        %v1248 = vrot.slane %v1157, 7
        %v1249 = vsel %vm1222, %v1246, %v1248
        %v1250 = vrot.slane %v1161, 7
        %v1251 = vsel %vm1222, %v1248, %v1250
        %v1252 = vrot.slane %v1165, 7
        %v1253 = vsel %vm1222, %v1250, %v1252
        %v1254 = vrot.slane %v1169, 7
        %v1255 = vsel %vm1222, %v1252, %v1254
        %v1256 = vrot.slane %v1173, 7
        %v1257 = vsel %vm1222, %v1254, %v1256
        %v1258 = vrot.slane %v1177, 7
        %v1259 = vsel %vm1222, %v1256, %v1258
        %v1260 = vrot.slane %v1181, 7
        %v1261 = vsel %vm1222, %v1258, %v1260
        %v1262 = vrot.slane %v1185, 7
        %v1263 = vsel %vm1222, %v1260, %v1262
        %v1264 = vrot.slane %v1189, 7
        %v1265 = vsel %vm1222, %v1262, %v1264
        %v1266 = vrot.slane %v1193, 7
        %v1267 = vsel %vm1222, %v1264, %v1266
        %v1268 = vrot.slane %v1197, 7
        %v1269 = vsel %vm1222, %v1266, %v1268
        %v1270 = vrot.slane %v1201, 7
        %v1271 = vsel %vm1222, %v1268, %v1270
        %v1272 = vrot.slane %v1205, 7
        %v1273 = vsel %vm1222, %v1270, %v1272
        %v1274 = vrot.slane %v1209, 7
        %v1275 = vsel %vm1222, %v1272, %v1274
        %v1276 = vrot.slane %v1213, 7
        %v1277 = vsel %vm1222, %v1274, %v1276
        %v1278 = vrot.slane %v1217, 7
        %v1279 = vsel %vm1222, %v1276, %v1278
        %v1280 = vrot.slane %v1221, 7
        %v1281 = vsel %vm1222, %v1278, %v1280
        %v1313 = vmul.f32 %v1223, 0.0
        %v1314 = vmul.f32 %v1225, 0.0
        %v1315 = vmul.f32 %v1227, 0.0
        %v1316 = vmul.f32 %v1229, 0.0
        %v1317 = vmul.f32 %v1042, %v1231
        %v1318 = vmul.f32 %v1043, %v1233
        %v1319 = vmul.f32 %v1044, %v1235
        %v1320 = vmul.f32 %v1045, %v1237
        %v1321 = vmul.f32 %v1046, %v1239
        %v1322 = vmul.f32 %v1047, %v1241
        %v1323 = vmul.f32 %v1048, %v1243
        %v1324 = vmul.f32 %v1049, %v1245
        %v1325 = vmul.f32 %v1050, %v1247
        %v1326 = vmul.f32 %v1051, %v1249
        %v1327 = vmul.f32 %v1052, %v1251
        %v1328 = vmul.f32 %v1053, %v1253
        %v1329 = vmul.f32 %v1054, %v1255
        %v1330 = vmul.f32 %v1055, %v1257
        %v1331 = vmul.f32 %v1056, %v1259
        %v1332 = vmul.f32 %v1057, %v1261
        %v1333 = vmul.f32 %v1058, %v1263
        %v1334 = vmul.f32 %v1059, %v1265
        %v1335 = vmul.f32 %v1060, %v1267
        %v1336 = vmul.f32 %v1061, %v1269
        %v1337 = vmul.f32 %v1062, %v1271
        %v1338 = vmul.f32 %v1063, %v1273
        %v1339 = vmul.f32 %v1064, %v1275
        %v1340 = vmul.f32 %v1065, %v1277
        %v1341 = vmul.f32 %v1066, %v1279
        %v1342 = vmul.f32 %v1067, %v1281
        %v1343 = vmul.f32 %v1068, %v1280
        %v1344 = vld [vmem:[%s4] sm:$0xff]
        %v1345 = vld [vmem:[%s4 + $0x8] sm:$0xff]
        %v1346 = vld [vmem:[%s4 + $0x10] sm:$0xff]
        %v1347 = vld [vmem:[%s4 + $0x18] sm:$0xff]
        %v1348 = vld [vmem:[%s4 + $0x20] sm:$0xff]
        %v1349 = vld [vmem:[%s4 + $0x28] sm:$0xff]
        %v1350 = vld [vmem:[%s4 + $0x30] sm:$0xff]
        %v1351 = vld [vmem:[%s4 + $0x38] sm:$0xff]
        %s1352 = scalar_lea.vmem %s1, 240
        %v1353 = vld [vmem:[%s1352] sm:$0xff]
        %v1354 = vld [vmem:[%s1352 + $0x8] sm:$0xff]
        %v1355 = vld [vmem:[%s1352 + $0x10] sm:$0xff]
        %v1356 = vld [vmem:[%s1352 + $0x18] sm:$0xff]
        %v1357 = vld [vmem:[%s1352 + $0x20] sm:$0xff]
        %v1358 = vld [vmem:[%s1352 + $0x28] sm:$0xff]
        %v1359 = vld [vmem:[%s1352 + $0x30] sm:$0xff]
        %v1360 = vld [vmem:[%s1352 + $0x38] sm:$0xff]
        %v1361 = vld [vmem:[%s1352 + $0x40] sm:$0xff]
        %v1362 = vld [vmem:[%s1352 + $0x48] sm:$0xff]
        %v1363 = vld [vmem:[%s1352 + $0x50] sm:$0xff]
        %v1364 = vld [vmem:[%s1352 + $0x58] sm:$0xff]
        %v1365 = vld [vmem:[%s1352 + $0x60] sm:$0xff]
        %v1366 = vld [vmem:[%s1352 + $0x68] sm:$0xff]
        %v1367 = vld [vmem:[%s1352 + $0x70] sm:$0xff]
        %v1368 = vld [vmem:[%s1352 + $0x78] sm:$0xff]
        %v1369 = vld [vmem:[%s1352 + $0x80] sm:$0xff]
        %v1370 = vld [vmem:[%s1352 + $0x88] sm:$0xff]
        %v1371 = vld [vmem:[%s1352 + $0x90] sm:$0xff]
        %v1372 = vld [vmem:[%s1352 + $0x98] sm:$0xff]
        %v1373 = vld [vmem:[%s1352 + $0xa0] sm:$0xff]
        %v1374 = vld [vmem:[%s1352 + $0xa8] sm:$0xff]
        %v1375 = vld [vmem:[%s1352 + $0xb0] sm:$0xff]
        %v1376 = vld [vmem:[%s1352 + $0xb8] sm:$0xff]
        %v1377 = vld [vmem:[%s1352 + $0xc0] sm:$0xff]
        %v1378 = vld [vmem:[%s1352 + $0xc8] sm:$0xff]
        %v1379 = vld [vmem:[%s1352 + $0xd0] sm:$0xff]
        %v1380 = vld [vmem:[%s1352 + $0xd8] sm:$0xff]
        %v1381 = vld [vmem:[%s1352 + $0xe0] sm:$0xff]
        %v1382 = vld [vmem:[%s1352 + $0xe8] sm:$0xff]
        %1384 = vset.pattern.permute.xlu0 0
        %1385 = vperm.xlu0 %1384, %v1353
        %v1386 = vpop.permute.xlu0 %1385
        %1388 = vset.pattern.permute.xlu0 0
        %1389 = vperm.xlu0 %1388, %v1354
        %v1390 = vpop.permute.xlu0 %1389
        %1392 = vset.pattern.permute.xlu0 0
        %1393 = vperm.xlu0 %1392, %v1355
        %v1394 = vpop.permute.xlu0 %1393
        %1396 = vset.pattern.permute.xlu0 0
        %1397 = vperm.xlu0 %1396, %v1356
        %v1398 = vpop.permute.xlu0 %1397
        %1400 = vset.pattern.permute.xlu0 0
        %1401 = vperm.xlu0 %1400, %v1357
        %v1402 = vpop.permute.xlu0 %1401
        %1404 = vset.pattern.permute.xlu0 0
        %1405 = vperm.xlu0 %1404, %v1358
        %v1406 = vpop.permute.xlu0 %1405
        %1408 = vset.pattern.permute.xlu0 0
        %1409 = vperm.xlu0 %1408, %v1359
        %v1410 = vpop.permute.xlu0 %1409
        %1412 = vset.pattern.permute.xlu0 0
        %1413 = vperm.xlu0 %1412, %v1360
        %v1414 = vpop.permute.xlu0 %1413
        %1416 = vset.pattern.permute.xlu0 0
        %1417 = vperm.xlu0 %1416, %v1361
        %v1418 = vpop.permute.xlu0 %1417
        %1420 = vset.pattern.permute.xlu0 0
        %1421 = vperm.xlu0 %1420, %v1362
        %v1422 = vpop.permute.xlu0 %1421
        %1424 = vset.pattern.permute.xlu0 0
        %1425 = vperm.xlu0 %1424, %v1363
        %v1426 = vpop.permute.xlu0 %1425
        %1428 = vset.pattern.permute.xlu0 0
        %1429 = vperm.xlu0 %1428, %v1364
        %v1430 = vpop.permute.xlu0 %1429
        %1432 = vset.pattern.permute.xlu0 0
        %1433 = vperm.xlu0 %1432, %v1365
        %v1434 = vpop.permute.xlu0 %1433
        %1436 = vset.pattern.permute.xlu0 0
        %1437 = vperm.xlu0 %1436, %v1366
        %v1438 = vpop.permute.xlu0 %1437
        %1440 = vset.pattern.permute.xlu0 0
        %1441 = vperm.xlu0 %1440, %v1367
        %v1442 = vpop.permute.xlu0 %1441
        %1444 = vset.pattern.permute.xlu0 0
        %1445 = vperm.xlu0 %1444, %v1368
        %v1446 = vpop.permute.xlu0 %1445
        %1448 = vset.pattern.permute.xlu0 0
        %1449 = vperm.xlu0 %1448, %v1369
        %v1450 = vpop.permute.xlu0 %1449
        %1452 = vset.pattern.permute.xlu0 0
        %1453 = vperm.xlu0 %1452, %v1370
        %v1454 = vpop.permute.xlu0 %1453
        %1456 = vset.pattern.permute.xlu0 0
        %1457 = vperm.xlu0 %1456, %v1371
        %v1458 = vpop.permute.xlu0 %1457
        %1460 = vset.pattern.permute.xlu0 0
        %1461 = vperm.xlu0 %1460, %v1372
        %v1462 = vpop.permute.xlu0 %1461
        %1464 = vset.pattern.permute.xlu0 0
        %1465 = vperm.xlu0 %1464, %v1373
        %v1466 = vpop.permute.xlu0 %1465
        %1468 = vset.pattern.permute.xlu0 0
        %1469 = vperm.xlu0 %1468, %v1374
        %v1470 = vpop.permute.xlu0 %1469
        %1472 = vset.pattern.permute.xlu0 0
        %1473 = vperm.xlu0 %1472, %v1375
        %v1474 = vpop.permute.xlu0 %1473
        %1476 = vset.pattern.permute.xlu0 0
        %1477 = vperm.xlu0 %1476, %v1376
        %v1478 = vpop.permute.xlu0 %1477
        %1480 = vset.pattern.permute.xlu0 0
        %1481 = vperm.xlu0 %1480, %v1377
        %v1482 = vpop.permute.xlu0 %1481
        %1484 = vset.pattern.permute.xlu0 0
        %1485 = vperm.xlu0 %1484, %v1378
        %v1486 = vpop.permute.xlu0 %1485
        %1488 = vset.pattern.permute.xlu0 0
        %1489 = vperm.xlu0 %1488, %v1379
        %v1490 = vpop.permute.xlu0 %1489
        %1492 = vset.pattern.permute.xlu0 0
        %1493 = vperm.xlu0 %1492, %v1380
        %v1494 = vpop.permute.xlu0 %1493
        %1496 = vset.pattern.permute.xlu0 0
        %1497 = vperm.xlu0 %1496, %v1381
        %v1498 = vpop.permute.xlu0 %1497
        %1500 = vset.pattern.permute.xlu0 0
        %1501 = vperm.xlu0 %1500, %v1382
        %v1502 = vpop.permute.xlu0 %1501
        %vm1503 = vcmask 1041408
        %v1504 = vrot.slane %v1386, 6
        %v1505 = vrot.slane %v1390, 6
        %v1506 = vsel %vm1503, %v1504, %v1505
        %v1507 = vrot.slane %v1394, 6
        %v1508 = vsel %vm1503, %v1505, %v1507
        %v1509 = vrot.slane %v1398, 6
        %v1510 = vsel %vm1503, %v1507, %v1509
        %v1511 = vrot.slane %v1402, 6
        %v1512 = vsel %vm1503, %v1509, %v1511
        %v1513 = vrot.slane %v1406, 6
        %v1514 = vsel %vm1503, %v1511, %v1513
        %v1515 = vrot.slane %v1410, 6
        %v1516 = vsel %vm1503, %v1513, %v1515
        %v1517 = vrot.slane %v1414, 6
        %v1518 = vsel %vm1503, %v1515, %v1517
        %v1519 = vrot.slane %v1418, 6
        %v1520 = vsel %vm1503, %v1517, %v1519
        %v1521 = vrot.slane %v1422, 6
        %v1522 = vsel %vm1503, %v1519, %v1521
        %v1523 = vrot.slane %v1426, 6
        %v1524 = vsel %vm1503, %v1521, %v1523
        %v1525 = vrot.slane %v1430, 6
        %v1526 = vsel %vm1503, %v1523, %v1525
        %v1527 = vrot.slane %v1434, 6
        %v1528 = vsel %vm1503, %v1525, %v1527
        %v1529 = vrot.slane %v1438, 6
        %v1530 = vsel %vm1503, %v1527, %v1529
        %v1531 = vrot.slane %v1442, 6
        %v1532 = vsel %vm1503, %v1529, %v1531
        %v1533 = vrot.slane %v1446, 6
        %v1534 = vsel %vm1503, %v1531, %v1533
        %v1535 = vrot.slane %v1450, 6
        %v1536 = vsel %vm1503, %v1533, %v1535
        %v1537 = vrot.slane %v1454, 6
        %v1538 = vsel %vm1503, %v1535, %v1537
        %v1539 = vrot.slane %v1458, 6
        %v1540 = vsel %vm1503, %v1537, %v1539
        %v1541 = vrot.slane %v1462, 6
        %v1542 = vsel %vm1503, %v1539, %v1541
        %v1543 = vrot.slane %v1466, 6
        %v1544 = vsel %vm1503, %v1541, %v1543
        %v1545 = vrot.slane %v1470, 6
        %v1546 = vsel %vm1503, %v1543, %v1545
        %v1547 = vrot.slane %v1474, 6
        %v1548 = vsel %vm1503, %v1545, %v1547
        %v1549 = vrot.slane %v1478, 6
        %v1550 = vsel %vm1503, %v1547, %v1549
        %v1551 = vrot.slane %v1482, 6
        %v1552 = vsel %vm1503, %v1549, %v1551
        %v1553 = vrot.slane %v1486, 6
        %v1554 = vsel %vm1503, %v1551, %v1553
        %v1555 = vrot.slane %v1490, 6
        %v1556 = vsel %vm1503, %v1553, %v1555
        %v1557 = vrot.slane %v1494, 6
        %v1558 = vsel %vm1503, %v1555, %v1557
        %v1559 = vrot.slane %v1498, 6
        %v1560 = vsel %vm1503, %v1557, %v1559
        %v1561 = vrot.slane %v1502, 6
        %v1562 = vsel %vm1503, %v1559, %v1561
        %v1594 = vmul.f32 %v1504, 0.0
        %v1595 = vmul.f32 %v1506, 0.0
        %v1596 = vmul.f32 %v1508, 0.0
        %v1597 = vmul.f32 %v1510, 0.0
        %v1598 = vmul.f32 %v1042, %v1512
        %v1599 = vmul.f32 %v1043, %v1514
        %v1600 = vmul.f32 %v1044, %v1516
        %v1601 = vmul.f32 %v1045, %v1518
        %v1602 = vmul.f32 %v1046, %v1520
        %v1603 = vmul.f32 %v1047, %v1522
        %v1604 = vmul.f32 %v1048, %v1524
        %v1605 = vmul.f32 %v1049, %v1526
        %v1606 = vmul.f32 %v1050, %v1528
        %v1607 = vmul.f32 %v1051, %v1530
        %v1608 = vmul.f32 %v1052, %v1532
        %v1609 = vmul.f32 %v1053, %v1534
        %v1610 = vmul.f32 %v1054, %v1536
        %v1611 = vmul.f32 %v1055, %v1538
        %v1612 = vmul.f32 %v1056, %v1540
        %v1613 = vmul.f32 %v1057, %v1542
        %v1614 = vmul.f32 %v1058, %v1544
        %v1615 = vmul.f32 %v1059, %v1546
        %v1616 = vmul.f32 %v1060, %v1548
        %v1617 = vmul.f32 %v1061, %v1550
        %v1618 = vmul.f32 %v1062, %v1552
        %v1619 = vmul.f32 %v1063, %v1554
        %v1620 = vmul.f32 %v1064, %v1556
        %v1621 = vmul.f32 %v1065, %v1558
        %v1622 = vmul.f32 %v1066, %v1560
        %v1623 = vmul.f32 %v1067, %v1562
        %v1624 = vmul.f32 %v1068, %v1561
        %s1625 = scalar_lea.vmem %s4, 64
        %v1626 = vld [vmem:[%s1625] sm:$0xff]
        %v1627 = vld [vmem:[%s1625 + $0x8] sm:$0xff]
        %v1628 = vld [vmem:[%s1625 + $0x10] sm:$0xff]
        %v1629 = vld [vmem:[%s1625 + $0x18] sm:$0xff]
        %v1630 = vld [vmem:[%s1625 + $0x20] sm:$0xff]
        %v1631 = vld [vmem:[%s1625 + $0x28] sm:$0xff]
        %v1632 = vld [vmem:[%s1625 + $0x30] sm:$0xff]
        %v1633 = vld [vmem:[%s1625 + $0x38] sm:$0xff]
        %vm1665 = vcmask 1045504
        %v1666 = vrot.slane %v1594, 2
        %v1667 = vrot.slane %v1595, 2
        %v1668 = vsel %vm1665, %v1666, %v1667
        %v1669 = vrot.slane %v1596, 2
        %v1670 = vsel %vm1665, %v1667, %v1669
        %v1671 = vrot.slane %v1597, 2
        %v1672 = vsel %vm1665, %v1669, %v1671
        %v1673 = vrot.slane %v1598, 2
        %v1674 = vsel %vm1665, %v1671, %v1673
        %v1675 = vrot.slane %v1599, 2
        %v1676 = vsel %vm1665, %v1673, %v1675
        %v1677 = vrot.slane %v1600, 2
        %v1678 = vsel %vm1665, %v1675, %v1677
        %v1679 = vrot.slane %v1601, 2
        %v1680 = vsel %vm1665, %v1677, %v1679
        %v1681 = vrot.slane %v1602, 2
        %v1682 = vsel %vm1665, %v1679, %v1681
        %v1683 = vrot.slane %v1603, 2
        %v1684 = vsel %vm1665, %v1681, %v1683
        %v1685 = vrot.slane %v1604, 2
        %v1686 = vsel %vm1665, %v1683, %v1685
        %v1687 = vrot.slane %v1605, 2
        %v1688 = vsel %vm1665, %v1685, %v1687
        %v1689 = vrot.slane %v1606, 2
        %v1690 = vsel %vm1665, %v1687, %v1689
        %v1691 = vrot.slane %v1607, 2
        %v1692 = vsel %vm1665, %v1689, %v1691
        %v1693 = vrot.slane %v1608, 2
        %v1694 = vsel %vm1665, %v1691, %v1693
        %v1695 = vrot.slane %v1609, 2
        %v1696 = vsel %vm1665, %v1693, %v1695
        %v1697 = vrot.slane %v1610, 2
        %v1698 = vsel %vm1665, %v1695, %v1697
        %v1699 = vrot.slane %v1611, 2
        %v1700 = vsel %vm1665, %v1697, %v1699
        %v1701 = vrot.slane %v1612, 2
        %v1702 = vsel %vm1665, %v1699, %v1701
        %v1703 = vrot.slane %v1613, 2
        %v1704 = vsel %vm1665, %v1701, %v1703
        %v1705 = vrot.slane %v1614, 2
        %v1706 = vsel %vm1665, %v1703, %v1705
        %v1707 = vrot.slane %v1615, 2
        %v1708 = vsel %vm1665, %v1705, %v1707
        %v1709 = vrot.slane %v1616, 2
        %v1710 = vsel %vm1665, %v1707, %v1709
        %v1711 = vrot.slane %v1617, 2
        %v1712 = vsel %vm1665, %v1709, %v1711
        %v1713 = vrot.slane %v1618, 2
        %v1714 = vsel %vm1665, %v1711, %v1713
        %v1715 = vrot.slane %v1619, 2
        %v1716 = vsel %vm1665, %v1713, %v1715
        %v1717 = vrot.slane %v1620, 2
        %v1718 = vsel %vm1665, %v1715, %v1717
        %v1719 = vrot.slane %v1621, 2
        %v1720 = vsel %vm1665, %v1717, %v1719
        %v1721 = vrot.slane %v1622, 2
        %v1722 = vsel %vm1665, %v1719, %v1721
        %v1723 = vrot.slane %v1623, 2
        %v1724 = vsel %vm1665, %v1721, %v1723
        %v1725 = vrot.slane %v1624, 2
        %v1726 = vsel %vm1665, %v1723, %v1725
        %vm1727 = vcmask 523264
        %v1728 = vsel %vm1727, %v1668, 0
        %v1730 = vsel %vm1727, %v1670, 0
        %v1732 = vsel %vm1727, %v1672, 0
        %v1734 = vsel %vm1727, %v1674, 0
        %v1736 = vsel %vm1727, %v1676, 0
        %v1738 = vsel %vm1727, %v1678, 0
        %v1740 = vsel %vm1727, %v1680, 0
        %v1742 = vsel %vm1727, %v1682, 0
        %v1744 = vsel %vm1727, %v1684, 0
        %v1746 = vsel %vm1727, %v1686, 0
        %v1748 = vsel %vm1727, %v1688, 0
        %v1750 = vsel %vm1727, %v1690, 0
        %v1752 = vsel %vm1727, %v1692, 0
        %v1754 = vsel %vm1727, %v1694, 0
        %v1756 = vsel %vm1727, %v1696, 0
        %v1758 = vsel %vm1727, %v1698, 0
        %v1760 = vsel %vm1727, %v1700, 0
        %v1762 = vsel %vm1727, %v1702, 0
        %v1764 = vsel %vm1727, %v1704, 0
        %v1766 = vsel %vm1727, %v1706, 0
        %v1768 = vsel %vm1727, %v1708, 0
        %v1770 = vsel %vm1727, %v1710, 0
        %v1772 = vsel %vm1727, %v1712, 0
        %v1774 = vsel %vm1727, %v1714, 0
        %v1776 = vsel %vm1727, %v1716, 0
        %v1778 = vsel %vm1727, %v1718, 0
        %v1780 = vsel %vm1727, %v1720, 0
        %v1782 = vsel %vm1727, %v1722, 0
        %v1784 = vsel %vm1727, %v1724, 0
        %v1786 = vsel %vm1727, %v1726, 0
        %1788 = vmatprep.subr.mxu0 0.0
        %1789 = vmatpush1.msra.mxu0 0.0
        %1790 = vmatprep.subr.mxu0 0.0
        %1791 = vmatpush1.msra.mxu0 0.0
        %1792 = vmatprep.subr.mxu0 0.0
        %1793 = vmatpush1.msra.mxu0 0.0
        %1794 = vmatprep.subr.mxu0 0.0
        %1795 = vmatpush1.msra.mxu0 0.0
        %1796 = vmatprep.subr.mxu0 0.0
        %1797 = vmatpush1.msra.mxu0 0.0
        %1798 = vmatprep.subr.mxu0 0.0
        %1799 = vmatpush1.msra.mxu0 0.0
        %1800 = vmatprep.subr.mxu0 0.0
        %1801 = vmatpush1.msra.mxu0 0.0
        %1802 = vmatprep.subr.mxu0 0.0
        %1803 = vmatpush1.msra.mxu0 0.0
        %1804 = vmatprep.subr.mxu0 0.0
        %1805 = vmatpush1.msra.mxu0 %v1633
        %1806 = vmatprep.subr.mxu0 0.0
        %1807 = vmatpush1.msra.mxu0 %v1632
        %1808 = vmatprep.subr.mxu0 0.0
        %1809 = vmatpush1.msra.mxu0 %v1631
        %1810 = vmatprep.subr.mxu0 0.0
        %1811 = vmatpush1.msra.mxu0 %v1630
        %1812 = vmatprep.subr.mxu0 0.0
        %1813 = vmatpush1.msra.mxu0 %v1629
        %1814 = vmatprep.subr.mxu0 0.0
        %1815 = vmatpush1.msra.mxu0 %v1628
        %1816 = vmatprep.subr.mxu0 0.0
        %1817 = vmatpush1.msra.mxu0 %v1627
        %1818 = vmatprep.subr.mxu0 0.0
        %1819 = vmatpush1.msra.mxu0 %v1626
        %1820 = vmatprep.subr.mxu0 0.0
        %1821 = vmatpush2.msra.mxu0 0.0
        %1822 = vmatprep.subr.mxu0 0.0
        %1823 = vmatpush2.msra.mxu0 0.0
        %1824 = vmatprep.subr.mxu0 0.0
        %1825 = vmatpush2.msra.mxu0 0.0
        %1826 = vmatprep.subr.mxu0 0.0
        %1827 = vmatpush2.msra.mxu0 0.0
        %1828 = vmatprep.subr.mxu0 0.0
        %1829 = vmatpush2.msra.mxu0 0.0
        %1830 = vmatprep.subr.mxu0 0.0
        %1831 = vmatpush2.msra.mxu0 0.0
        %1832 = vmatprep.subr.mxu0 0.0
        %1833 = vmatpush2.msra.mxu0 0.0
        %1834 = vmatprep.subr.mxu0 0.0
        %1835 = vmatpush2.msra.mxu0 0.0
        %1836 = vmatprep.subr.mxu0 0.0
        %1837 = vmatpush2.msra.mxu0 0.0
        %1838 = vmatprep.subr.mxu0 0.0
        %1839 = vmatpush2.msra.mxu0 0.0
        %1840 = vmatprep.subr.mxu0 0.0
        %1841 = vmatpush2.msra.mxu0 0.0
        %1842 = vmatprep.subr.mxu0 0.0
        %1843 = vmatpush2.msra.mxu0 0.0
        %1844 = vmatprep.subr.mxu0 0.0
        %1845 = vmatpush2.msra.mxu0 0.0
        %1846 = vmatprep.subr.mxu0 0.0
        %1847 = vmatpush2.msra.mxu0 0.0
        %1848 = vmatprep.subr.mxu0 0.0
        %1849 = vmatpush2.msra.mxu0 0.0
        %1850 = vmatprep.subr.mxu0 0.0
        %1851 = vmatpush2.msra.mxu0 0.0
        %1852 = vmatprep.mubr.f32.mxu0 0.0
        %1853 = vmatmul.mubr.f32.gmra.mxu0 %v1728
        %v1854 = vpop.f32.mrf.mxu0
        %v1855 = vadd.f32 0.0, %v1854
        %v1856 = vpop.f32.mrf.mxu0
        %1857 = vmatprep.mubr.f32.mxu0 0.0
        %1858 = vmatmul.mubr.f32.gmra.mxu0 %v1730
        %v1859 = vpop.f32.mrf.mxu0
        %v1860 = vadd.f32 0.0, %v1859
        %v1861 = vpop.f32.mrf.mxu0
        %1862 = vmatprep.mubr.f32.mxu0 0.0
        %1863 = vmatmul.mubr.f32.gmra.mxu0 %v1732
        %v1864 = vpop.f32.mrf.mxu0
        %v1865 = vadd.f32 0.0, %v1864
        %v1866 = vpop.f32.mrf.mxu0
        %1867 = vmatprep.mubr.f32.mxu0 0.0
        %1868 = vmatmul.mubr.f32.gmra.mxu0 %v1734
        %v1869 = vpop.f32.mrf.mxu0
        %v1870 = vadd.f32 0.0, %v1869
        %v1871 = vpop.f32.mrf.mxu0
        %1872 = vmatprep.mubr.f32.mxu0 0.0
        %1873 = vmatmul.mubr.f32.gmra.mxu0 %v1736
        %v1874 = vpop.f32.mrf.mxu0
        %v1875 = vadd.f32 0.0, %v1874
        %v1876 = vpop.f32.mrf.mxu0
        %1877 = vmatprep.mubr.f32.mxu0 0.0
        %1878 = vmatmul.mubr.f32.gmra.mxu0 %v1738
        %v1879 = vpop.f32.mrf.mxu0
        %v1880 = vadd.f32 0.0, %v1879
        %v1881 = vpop.f32.mrf.mxu0
        %1882 = vmatprep.mubr.f32.mxu0 0.0
        %1883 = vmatmul.mubr.f32.gmra.mxu0 %v1740
        %v1884 = vpop.f32.mrf.mxu0
        %v1885 = vadd.f32 0.0, %v1884
        %v1886 = vpop.f32.mrf.mxu0
        %1887 = vmatprep.mubr.f32.mxu0 0.0
        %1888 = vmatmul.mubr.f32.gmra.mxu0 %v1742
        %v1889 = vpop.f32.mrf.mxu0
        %v1890 = vadd.f32 0.0, %v1889
        %v1891 = vpop.f32.mrf.mxu0
        %1892 = vmatprep.mubr.f32.mxu0 0.0
        %1893 = vmatmul.mubr.f32.gmra.mxu0 %v1744
        %v1894 = vpop.f32.mrf.mxu0
        %v1895 = vadd.f32 0.0, %v1894
        %v1896 = vpop.f32.mrf.mxu0
        %1897 = vmatprep.mubr.f32.mxu0 0.0
        %1898 = vmatmul.mubr.f32.gmra.mxu0 %v1746
        %v1899 = vpop.f32.mrf.mxu0
        %v1900 = vadd.f32 0.0, %v1899
        %v1901 = vpop.f32.mrf.mxu0
        %1902 = vmatprep.mubr.f32.mxu0 0.0
        %1903 = vmatmul.mubr.f32.gmra.mxu0 %v1748
        %v1904 = vpop.f32.mrf.mxu0
        %v1905 = vadd.f32 0.0, %v1904
        %v1906 = vpop.f32.mrf.mxu0
        %1907 = vmatprep.mubr.f32.mxu0 0.0
        %1908 = vmatmul.mubr.f32.gmra.mxu0 %v1750
        %v1909 = vpop.f32.mrf.mxu0
        %v1910 = vadd.f32 0.0, %v1909
        %v1911 = vpop.f32.mrf.mxu0
        %1912 = vmatprep.mubr.f32.mxu0 0.0
        %1913 = vmatmul.mubr.f32.gmra.mxu0 %v1752
        %v1914 = vpop.f32.mrf.mxu0
        %v1915 = vadd.f32 0.0, %v1914
        %v1916 = vpop.f32.mrf.mxu0
        %1917 = vmatprep.mubr.f32.mxu0 0.0
        %1918 = vmatmul.mubr.f32.gmra.mxu0 %v1754
        %v1919 = vpop.f32.mrf.mxu0
        %v1920 = vadd.f32 0.0, %v1919
        %v1921 = vpop.f32.mrf.mxu0
        %1922 = vmatprep.mubr.f32.mxu0 0.0
        %1923 = vmatmul.mubr.f32.gmra.mxu0 %v1756
        %v1924 = vpop.f32.mrf.mxu0
        %v1925 = vadd.f32 0.0, %v1924
        %v1926 = vpop.f32.mrf.mxu0
        %1927 = vmatprep.mubr.f32.mxu0 0.0
        %1928 = vmatmul.mubr.f32.gmra.mxu0 %v1758
        %v1929 = vpop.f32.mrf.mxu0
        %v1930 = vadd.f32 0.0, %v1929
        %v1931 = vpop.f32.mrf.mxu0
        %1932 = vmatprep.mubr.f32.mxu0 0.0
        %1933 = vmatmul.mubr.f32.gmra.mxu0 %v1760
        %v1934 = vpop.f32.mrf.mxu0
        %v1935 = vadd.f32 0.0, %v1934
        %v1936 = vpop.f32.mrf.mxu0
        %1937 = vmatprep.mubr.f32.mxu0 0.0
        %1938 = vmatmul.mubr.f32.gmra.mxu0 %v1762
        %v1939 = vpop.f32.mrf.mxu0
        %v1940 = vadd.f32 0.0, %v1939
        %v1941 = vpop.f32.mrf.mxu0
        %1942 = vmatprep.mubr.f32.mxu0 0.0
        %1943 = vmatmul.mubr.f32.gmra.mxu0 %v1764
        %v1944 = vpop.f32.mrf.mxu0
        %v1945 = vadd.f32 0.0, %v1944
        %v1946 = vpop.f32.mrf.mxu0
        %1947 = vmatprep.mubr.f32.mxu0 0.0
        %1948 = vmatmul.mubr.f32.gmra.mxu0 %v1766
        %v1949 = vpop.f32.mrf.mxu0
        %v1950 = vadd.f32 0.0, %v1949
        %v1951 = vpop.f32.mrf.mxu0
        %1952 = vmatprep.mubr.f32.mxu0 0.0
        %1953 = vmatmul.mubr.f32.gmra.mxu0 %v1768
        %v1954 = vpop.f32.mrf.mxu0
        %v1955 = vadd.f32 0.0, %v1954
        %v1956 = vpop.f32.mrf.mxu0
        %1957 = vmatprep.mubr.f32.mxu0 0.0
        %1958 = vmatmul.mubr.f32.gmra.mxu0 %v1770
        %v1959 = vpop.f32.mrf.mxu0
        %v1960 = vadd.f32 0.0, %v1959
        %v1961 = vpop.f32.mrf.mxu0
        %1962 = vmatprep.mubr.f32.mxu0 0.0
        %1963 = vmatmul.mubr.f32.gmra.mxu0 %v1772
        %v1964 = vpop.f32.mrf.mxu0
        %v1965 = vadd.f32 0.0, %v1964
        %v1966 = vpop.f32.mrf.mxu0
        %1967 = vmatprep.mubr.f32.mxu0 0.0
        %1968 = vmatmul.mubr.f32.gmra.mxu0 %v1774
        %v1969 = vpop.f32.mrf.mxu0
        %v1970 = vadd.f32 0.0, %v1969
        %v1971 = vpop.f32.mrf.mxu0
        %1972 = vmatprep.mubr.f32.mxu0 0.0
        %1973 = vmatmul.mubr.f32.gmra.mxu0 %v1776
        %v1974 = vpop.f32.mrf.mxu0
        %v1975 = vadd.f32 0.0, %v1974
        %v1976 = vpop.f32.mrf.mxu0
        %1977 = vmatprep.mubr.f32.mxu0 0.0
        %1978 = vmatmul.mubr.f32.gmra.mxu0 %v1778
        %v1979 = vpop.f32.mrf.mxu0
        %v1980 = vadd.f32 0.0, %v1979
        %v1981 = vpop.f32.mrf.mxu0
        %1982 = vmatprep.mubr.f32.mxu0 0.0
        %1983 = vmatmul.mubr.f32.gmra.mxu0 %v1780
        %v1984 = vpop.f32.mrf.mxu0
        %v1985 = vadd.f32 0.0, %v1984
        %v1986 = vpop.f32.mrf.mxu0
        %1987 = vmatprep.mubr.f32.mxu0 0.0
        %1988 = vmatmul.mubr.f32.gmra.mxu0 %v1782
        %v1989 = vpop.f32.mrf.mxu0
        %v1990 = vadd.f32 0.0, %v1989
        %v1991 = vpop.f32.mrf.mxu0
        %1992 = vmatprep.mubr.f32.mxu0 0.0
        %1993 = vmatmul.mubr.f32.gmra.mxu0 %v1784
        %v1994 = vpop.f32.mrf.mxu0
        %v1995 = vadd.f32 0.0, %v1994
        %v1996 = vpop.f32.mrf.mxu0
        %1997 = vmatprep.mubr.f32.mxu0 0.0
        %1998 = vmatmul.mubr.f32.gmra.mxu0 %v1786
        %v1999 = vpop.f32.mrf.mxu0
        %v2000 = vadd.f32 0.0, %v1999
        %v2001 = vpop.f32.mrf.mxu0
        %2002 = vdwg.mxu0
        %v2034 = vrot.slane %v1313, 1
        %v2035 = vrot.slane %v1314, 1
        %v2036 = vsel %vm553, %v2034, %v2035
        %v2037 = vrot.slane %v1315, 1
        %v2038 = vsel %vm553, %v2035, %v2037
        %v2039 = vrot.slane %v1316, 1
        %v2040 = vsel %vm553, %v2037, %v2039
        %v2041 = vrot.slane %v1317, 1
        %v2042 = vsel %vm553, %v2039, %v2041
        %v2043 = vrot.slane %v1318, 1
        %v2044 = vsel %vm553, %v2041, %v2043
        %v2045 = vrot.slane %v1319, 1
        %v2046 = vsel %vm553, %v2043, %v2045
        %v2047 = vrot.slane %v1320, 1
        %v2048 = vsel %vm553, %v2045, %v2047
        %v2049 = vrot.slane %v1321, 1
        %v2050 = vsel %vm553, %v2047, %v2049
        %v2051 = vrot.slane %v1322, 1
        %v2052 = vsel %vm553, %v2049, %v2051
        %v2053 = vrot.slane %v1323, 1
        %v2054 = vsel %vm553, %v2051, %v2053
        %v2055 = vrot.slane %v1324, 1
        %v2056 = vsel %vm553, %v2053, %v2055
        %v2057 = vrot.slane %v1325, 1
        %v2058 = vsel %vm553, %v2055, %v2057
        %v2059 = vrot.slane %v1326, 1
        %v2060 = vsel %vm553, %v2057, %v2059
        %v2061 = vrot.slane %v1327, 1
        %v2062 = vsel %vm553, %v2059, %v2061
        %v2063 = vrot.slane %v1328, 1
        %v2064 = vsel %vm553, %v2061, %v2063
        %v2065 = vrot.slane %v1329, 1
        %v2066 = vsel %vm553, %v2063, %v2065
        %v2067 = vrot.slane %v1330, 1
        %v2068 = vsel %vm553, %v2065, %v2067
        %v2069 = vrot.slane %v1331, 1
        %v2070 = vsel %vm553, %v2067, %v2069
        %v2071 = vrot.slane %v1332, 1
        %v2072 = vsel %vm553, %v2069, %v2071
        %v2073 = vrot.slane %v1333, 1
        %v2074 = vsel %vm553, %v2071, %v2073
        %v2075 = vrot.slane %v1334, 1
        %v2076 = vsel %vm553, %v2073, %v2075
        %v2077 = vrot.slane %v1335, 1
        %v2078 = vsel %vm553, %v2075, %v2077
        %v2079 = vrot.slane %v1336, 1
        %v2080 = vsel %vm553, %v2077, %v2079
        %v2081 = vrot.slane %v1337, 1
        %v2082 = vsel %vm553, %v2079, %v2081
        %v2083 = vrot.slane %v1338, 1
        %v2084 = vsel %vm553, %v2081, %v2083
        %v2085 = vrot.slane %v1339, 1
        %v2086 = vsel %vm553, %v2083, %v2085
        %v2087 = vrot.slane %v1340, 1
        %v2088 = vsel %vm553, %v2085, %v2087
        %v2089 = vrot.slane %v1341, 1
        %v2090 = vsel %vm553, %v2087, %v2089
        %v2091 = vrot.slane %v1342, 1
        %v2092 = vsel %vm553, %v2089, %v2091
        %v2093 = vrot.slane %v1343, 1
        %v2094 = vsel %vm553, %v2091, %v2093
        %v2095 = vsel %vm1727, %v2036, 0
        %v2097 = vsel %vm1727, %v2038, 0
        %v2099 = vsel %vm1727, %v2040, 0
        %v2101 = vsel %vm1727, %v2042, 0
        %v2103 = vsel %vm1727, %v2044, 0
        %v2105 = vsel %vm1727, %v2046, 0
        %v2107 = vsel %vm1727, %v2048, 0
        %v2109 = vsel %vm1727, %v2050, 0
        %v2111 = vsel %vm1727, %v2052, 0
        %v2113 = vsel %vm1727, %v2054, 0
        %v2115 = vsel %vm1727, %v2056, 0
        %v2117 = vsel %vm1727, %v2058, 0
        %v2119 = vsel %vm1727, %v2060, 0
        %v2121 = vsel %vm1727, %v2062, 0
        %v2123 = vsel %vm1727, %v2064, 0
        %v2125 = vsel %vm1727, %v2066, 0
        %v2127 = vsel %vm1727, %v2068, 0
        %v2129 = vsel %vm1727, %v2070, 0
        %v2131 = vsel %vm1727, %v2072, 0
        %v2133 = vsel %vm1727, %v2074, 0
        %v2135 = vsel %vm1727, %v2076, 0
        %v2137 = vsel %vm1727, %v2078, 0
        %v2139 = vsel %vm1727, %v2080, 0
        %v2141 = vsel %vm1727, %v2082, 0
        %v2143 = vsel %vm1727, %v2084, 0
        %v2145 = vsel %vm1727, %v2086, 0
        %v2147 = vsel %vm1727, %v2088, 0
        %v2149 = vsel %vm1727, %v2090, 0
        %v2151 = vsel %vm1727, %v2092, 0
        %v2153 = vsel %vm1727, %v2094, 0
        %2155 = vmatprep.subr.mxu0 0.0
        %2156 = vmatpush1.msra.mxu0 0.0
        %2157 = vmatprep.subr.mxu0 0.0
        %2158 = vmatpush1.msra.mxu0 0.0
        %2159 = vmatprep.subr.mxu0 0.0
        %2160 = vmatpush1.msra.mxu0 0.0
        %2161 = vmatprep.subr.mxu0 0.0
        %2162 = vmatpush1.msra.mxu0 0.0
        %2163 = vmatprep.subr.mxu0 0.0
        %2164 = vmatpush1.msra.mxu0 0.0
        %2165 = vmatprep.subr.mxu0 0.0
        %2166 = vmatpush1.msra.mxu0 0.0
        %2167 = vmatprep.subr.mxu0 0.0
        %2168 = vmatpush1.msra.mxu0 0.0
        %2169 = vmatprep.subr.mxu0 0.0
        %2170 = vmatpush1.msra.mxu0 0.0
        %2171 = vmatprep.subr.mxu0 0.0
        %2172 = vmatpush1.msra.mxu0 %v1351
        %2173 = vmatprep.subr.mxu0 0.0
        %2174 = vmatpush1.msra.mxu0 %v1350
        %2175 = vmatprep.subr.mxu0 0.0
        %2176 = vmatpush1.msra.mxu0 %v1349
        %2177 = vmatprep.subr.mxu0 0.0
        %2178 = vmatpush1.msra.mxu0 %v1348
        %2179 = vmatprep.subr.mxu0 0.0
        %2180 = vmatpush1.msra.mxu0 %v1347
        %2181 = vmatprep.subr.mxu0 0.0
        %2182 = vmatpush1.msra.mxu0 %v1346
        %2183 = vmatprep.subr.mxu0 0.0
        %2184 = vmatpush1.msra.mxu0 %v1345
        %2185 = vmatprep.subr.mxu0 0.0
        %2186 = vmatpush1.msra.mxu0 %v1344
        %2187 = vmatprep.subr.mxu0 0.0
        %2188 = vmatpush2.msra.mxu0 0.0
        %2189 = vmatprep.subr.mxu0 0.0
        %2190 = vmatpush2.msra.mxu0 0.0
        %2191 = vmatprep.subr.mxu0 0.0
        %2192 = vmatpush2.msra.mxu0 0.0
        %2193 = vmatprep.subr.mxu0 0.0
        %2194 = vmatpush2.msra.mxu0 0.0
        %2195 = vmatprep.subr.mxu0 0.0
        %2196 = vmatpush2.msra.mxu0 0.0
        %2197 = vmatprep.subr.mxu0 0.0
        %2198 = vmatpush2.msra.mxu0 0.0
        %2199 = vmatprep.subr.mxu0 0.0
        %2200 = vmatpush2.msra.mxu0 0.0
        %2201 = vmatprep.subr.mxu0 0.0
        %2202 = vmatpush2.msra.mxu0 0.0
        %2203 = vmatprep.subr.mxu0 0.0
        %2204 = vmatpush2.msra.mxu0 0.0
        %2205 = vmatprep.subr.mxu0 0.0
        %2206 = vmatpush2.msra.mxu0 0.0
        %2207 = vmatprep.subr.mxu0 0.0
        %2208 = vmatpush2.msra.mxu0 0.0
        %2209 = vmatprep.subr.mxu0 0.0
        %2210 = vmatpush2.msra.mxu0 0.0
        %2211 = vmatprep.subr.mxu0 0.0
        %2212 = vmatpush2.msra.mxu0 0.0
        %2213 = vmatprep.subr.mxu0 0.0
        %2214 = vmatpush2.msra.mxu0 0.0
        %2215 = vmatprep.subr.mxu0 0.0
        %2216 = vmatpush2.msra.mxu0 0.0
        %2217 = vmatprep.subr.mxu0 0.0
        %2218 = vmatpush2.msra.mxu0 0.0
        %2219 = vmatprep.mubr.f32.mxu0 0.0
        %2220 = vmatmul.mubr.f32.gmra.mxu0 %v2095
        %v2221 = vpop.f32.mrf.mxu0
        %v2222 = vadd.f32 %v1855, %v2221
        %v2223 = vpop.f32.mrf.mxu0
        %2224 = vmatprep.mubr.f32.mxu0 0.0
        %2225 = vmatmul.mubr.f32.gmra.mxu0 %v2097
        %v2226 = vpop.f32.mrf.mxu0
        %v2227 = vadd.f32 %v1860, %v2226
        %v2228 = vpop.f32.mrf.mxu0
        %2229 = vmatprep.mubr.f32.mxu0 0.0
        %2230 = vmatmul.mubr.f32.gmra.mxu0 %v2099
        %v2231 = vpop.f32.mrf.mxu0
        %v2232 = vadd.f32 %v1865, %v2231
        %v2233 = vpop.f32.mrf.mxu0
        %2234 = vmatprep.mubr.f32.mxu0 0.0
        %2235 = vmatmul.mubr.f32.gmra.mxu0 %v2101
        %v2236 = vpop.f32.mrf.mxu0
        %v2237 = vadd.f32 %v1870, %v2236
        %v2238 = vpop.f32.mrf.mxu0
        %2239 = vmatprep.mubr.f32.mxu0 0.0
        %2240 = vmatmul.mubr.f32.gmra.mxu0 %v2103
        %v2241 = vpop.f32.mrf.mxu0
        %v2242 = vadd.f32 %v1875, %v2241
        %v2243 = vpop.f32.mrf.mxu0
        %2244 = vmatprep.mubr.f32.mxu0 0.0
        %2245 = vmatmul.mubr.f32.gmra.mxu0 %v2105
        %v2246 = vpop.f32.mrf.mxu0
        %v2247 = vadd.f32 %v1880, %v2246
        %v2248 = vpop.f32.mrf.mxu0
        %2249 = vmatprep.mubr.f32.mxu0 0.0
        %2250 = vmatmul.mubr.f32.gmra.mxu0 %v2107
        %v2251 = vpop.f32.mrf.mxu0
        %v2252 = vadd.f32 %v1885, %v2251
        %v2253 = vpop.f32.mrf.mxu0
        %2254 = vmatprep.mubr.f32.mxu0 0.0
        %2255 = vmatmul.mubr.f32.gmra.mxu0 %v2109
        %v2256 = vpop.f32.mrf.mxu0
        %v2257 = vadd.f32 %v1890, %v2256
        %v2258 = vpop.f32.mrf.mxu0
        %2259 = vmatprep.mubr.f32.mxu0 0.0
        %2260 = vmatmul.mubr.f32.gmra.mxu0 %v2111
        %v2261 = vpop.f32.mrf.mxu0
        %v2262 = vadd.f32 %v1895, %v2261
        %v2263 = vpop.f32.mrf.mxu0
        %2264 = vmatprep.mubr.f32.mxu0 0.0
        %2265 = vmatmul.mubr.f32.gmra.mxu0 %v2113
        %v2266 = vpop.f32.mrf.mxu0
        %v2267 = vadd.f32 %v1900, %v2266
        %v2268 = vpop.f32.mrf.mxu0
        %2269 = vmatprep.mubr.f32.mxu0 0.0
        %2270 = vmatmul.mubr.f32.gmra.mxu0 %v2115
        %v2271 = vpop.f32.mrf.mxu0
        %v2272 = vadd.f32 %v1905, %v2271
        %v2273 = vpop.f32.mrf.mxu0
        %2274 = vmatprep.mubr.f32.mxu0 0.0
        %2275 = vmatmul.mubr.f32.gmra.mxu0 %v2117
        %v2276 = vpop.f32.mrf.mxu0
        %v2277 = vadd.f32 %v1910, %v2276
        %v2278 = vpop.f32.mrf.mxu0
        %2279 = vmatprep.mubr.f32.mxu0 0.0
        %2280 = vmatmul.mubr.f32.gmra.mxu0 %v2119
        %v2281 = vpop.f32.mrf.mxu0
        %v2282 = vadd.f32 %v1915, %v2281
        %v2283 = vpop.f32.mrf.mxu0
        %2284 = vmatprep.mubr.f32.mxu0 0.0
        %2285 = vmatmul.mubr.f32.gmra.mxu0 %v2121
        %v2286 = vpop.f32.mrf.mxu0
        %v2287 = vadd.f32 %v1920, %v2286
        %v2288 = vpop.f32.mrf.mxu0
        %2289 = vmatprep.mubr.f32.mxu0 0.0
        %2290 = vmatmul.mubr.f32.gmra.mxu0 %v2123
        %v2291 = vpop.f32.mrf.mxu0
        %v2292 = vadd.f32 %v1925, %v2291
        %v2293 = vpop.f32.mrf.mxu0
        %2294 = vmatprep.mubr.f32.mxu0 0.0
        %2295 = vmatmul.mubr.f32.gmra.mxu0 %v2125
        %v2296 = vpop.f32.mrf.mxu0
        %v2297 = vadd.f32 %v1930, %v2296
        %v2298 = vpop.f32.mrf.mxu0
        %2299 = vmatprep.mubr.f32.mxu0 0.0
        %2300 = vmatmul.mubr.f32.gmra.mxu0 %v2127
        %v2301 = vpop.f32.mrf.mxu0
        %v2302 = vadd.f32 %v1935, %v2301
        %v2303 = vpop.f32.mrf.mxu0
        %2304 = vmatprep.mubr.f32.mxu0 0.0
        %2305 = vmatmul.mubr.f32.gmra.mxu0 %v2129
        %v2306 = vpop.f32.mrf.mxu0
        %v2307 = vadd.f32 %v1940, %v2306
        %v2308 = vpop.f32.mrf.mxu0
        %2309 = vmatprep.mubr.f32.mxu0 0.0
        %2310 = vmatmul.mubr.f32.gmra.mxu0 %v2131
        %v2311 = vpop.f32.mrf.mxu0
        %v2312 = vadd.f32 %v1945, %v2311
        %v2313 = vpop.f32.mrf.mxu0
        %2314 = vmatprep.mubr.f32.mxu0 0.0
        %2315 = vmatmul.mubr.f32.gmra.mxu0 %v2133
        %v2316 = vpop.f32.mrf.mxu0
        %v2317 = vadd.f32 %v1950, %v2316
        %v2318 = vpop.f32.mrf.mxu0
        %2319 = vmatprep.mubr.f32.mxu0 0.0
        %2320 = vmatmul.mubr.f32.gmra.mxu0 %v2135
        %v2321 = vpop.f32.mrf.mxu0
        %v2322 = vadd.f32 %v1955, %v2321
        %v2323 = vpop.f32.mrf.mxu0
        %2324 = vmatprep.mubr.f32.mxu0 0.0
        %2325 = vmatmul.mubr.f32.gmra.mxu0 %v2137
        %v2326 = vpop.f32.mrf.mxu0
        %v2327 = vadd.f32 %v1960, %v2326
        %v2328 = vpop.f32.mrf.mxu0
        %2329 = vmatprep.mubr.f32.mxu0 0.0
        %2330 = vmatmul.mubr.f32.gmra.mxu0 %v2139
        %v2331 = vpop.f32.mrf.mxu0
        %v2332 = vadd.f32 %v1965, %v2331
        %v2333 = vpop.f32.mrf.mxu0
        %2334 = vmatprep.mubr.f32.mxu0 0.0
        %2335 = vmatmul.mubr.f32.gmra.mxu0 %v2141
        %v2336 = vpop.f32.mrf.mxu0
        %v2337 = vadd.f32 %v1970, %v2336
        %v2338 = vpop.f32.mrf.mxu0
        %2339 = vmatprep.mubr.f32.mxu0 0.0
        %2340 = vmatmul.mubr.f32.gmra.mxu0 %v2143
        %v2341 = vpop.f32.mrf.mxu0
        %v2342 = vadd.f32 %v1975, %v2341
        %v2343 = vpop.f32.mrf.mxu0
        %2344 = vmatprep.mubr.f32.mxu0 0.0
        %2345 = vmatmul.mubr.f32.gmra.mxu0 %v2145
        %v2346 = vpop.f32.mrf.mxu0
        %v2347 = vadd.f32 %v1980, %v2346
        %v2348 = vpop.f32.mrf.mxu0
        %2349 = vmatprep.mubr.f32.mxu0 0.0
        %2350 = vmatmul.mubr.f32.gmra.mxu0 %v2147
        %v2351 = vpop.f32.mrf.mxu0
        %v2352 = vadd.f32 %v1985, %v2351
        %v2353 = vpop.f32.mrf.mxu0
        %2354 = vmatprep.mubr.f32.mxu0 0.0
        %2355 = vmatmul.mubr.f32.gmra.mxu0 %v2149
        %v2356 = vpop.f32.mrf.mxu0
        %v2357 = vadd.f32 %v1990, %v2356
        %v2358 = vpop.f32.mrf.mxu0
        %2359 = vmatprep.mubr.f32.mxu0 0.0
        %2360 = vmatmul.mubr.f32.gmra.mxu0 %v2151
        %v2361 = vpop.f32.mrf.mxu0
        %v2362 = vadd.f32 %v1995, %v2361
        %v2363 = vpop.f32.mrf.mxu0
        %2364 = vmatprep.mubr.f32.mxu0 0.0
        %2365 = vmatmul.mubr.f32.gmra.mxu0 %v2153
        %v2366 = vpop.f32.mrf.mxu0
        %v2367 = vadd.f32 %v2000, %v2366
        %v2368 = vpop.f32.mrf.mxu0
        %2369 = vdwg.mxu0
        %s2370 = scalar_lea.vmem %s1, 480
        %v2371 = vld [vmem:[%s2370] sm:$0xff]
        %v2372 = vld [vmem:[%s2370 + $0x8] sm:$0xff]
        %v2373 = vld [vmem:[%s2370 + $0x10] sm:$0xff]
        %v2374 = vld [vmem:[%s2370 + $0x18] sm:$0xff]
        %v2375 = vld [vmem:[%s2370 + $0x20] sm:$0xff]
        %v2376 = vld [vmem:[%s2370 + $0x28] sm:$0xff]
        %v2377 = vld [vmem:[%s2370 + $0x30] sm:$0xff]
        %v2378 = vld [vmem:[%s2370 + $0x38] sm:$0xff]
        %v2379 = vld [vmem:[%s2370 + $0x40] sm:$0xff]
        %v2380 = vld [vmem:[%s2370 + $0x48] sm:$0xff]
        %v2381 = vld [vmem:[%s2370 + $0x50] sm:$0xff]
        %v2382 = vld [vmem:[%s2370 + $0x58] sm:$0xff]
        %v2383 = vld [vmem:[%s2370 + $0x60] sm:$0xff]
        %v2384 = vld [vmem:[%s2370 + $0x68] sm:$0xff]
        %v2385 = vld [vmem:[%s2370 + $0x70] sm:$0xff]
        %v2386 = vld [vmem:[%s2370 + $0x78] sm:$0xff]
        %v2387 = vld [vmem:[%s2370 + $0x80] sm:$0xff]
        %v2388 = vld [vmem:[%s2370 + $0x88] sm:$0xff]
        %v2389 = vld [vmem:[%s2370 + $0x90] sm:$0xff]
        %v2390 = vld [vmem:[%s2370 + $0x98] sm:$0xff]
        %v2391 = vld [vmem:[%s2370 + $0xa0] sm:$0xff]
        %v2392 = vld [vmem:[%s2370 + $0xa8] sm:$0xff]
        %v2393 = vld [vmem:[%s2370 + $0xb0] sm:$0xff]
        %v2394 = vld [vmem:[%s2370 + $0xb8] sm:$0xff]
        %v2395 = vld [vmem:[%s2370 + $0xc0] sm:$0xff]
        %v2396 = vld [vmem:[%s2370 + $0xc8] sm:$0xff]
        %v2397 = vld [vmem:[%s2370 + $0xd0] sm:$0xff]
        %v2398 = vld [vmem:[%s2370 + $0xd8] sm:$0xff]
        %v2399 = vld [vmem:[%s2370 + $0xe0] sm:$0xff]
        %v2400 = vld [vmem:[%s2370 + $0xe8] sm:$0xff]
        %2402 = vset.pattern.permute.xlu0 0
        %2403 = vperm.xlu0 %2402, %v2371
        %v2404 = vpop.permute.xlu0 %2403
        %2406 = vset.pattern.permute.xlu0 0
        %2407 = vperm.xlu0 %2406, %v2372
        %v2408 = vpop.permute.xlu0 %2407
        %2410 = vset.pattern.permute.xlu0 0
        %2411 = vperm.xlu0 %2410, %v2373
        %v2412 = vpop.permute.xlu0 %2411
        %2414 = vset.pattern.permute.xlu0 0
        %2415 = vperm.xlu0 %2414, %v2374
        %v2416 = vpop.permute.xlu0 %2415
        %2418 = vset.pattern.permute.xlu0 0
        %2419 = vperm.xlu0 %2418, %v2375
        %v2420 = vpop.permute.xlu0 %2419
        %2422 = vset.pattern.permute.xlu0 0
        %2423 = vperm.xlu0 %2422, %v2376
        %v2424 = vpop.permute.xlu0 %2423
        %2426 = vset.pattern.permute.xlu0 0
        %2427 = vperm.xlu0 %2426, %v2377
        %v2428 = vpop.permute.xlu0 %2427
        %2430 = vset.pattern.permute.xlu0 0
        %2431 = vperm.xlu0 %2430, %v2378
        %v2432 = vpop.permute.xlu0 %2431
        %2434 = vset.pattern.permute.xlu0 0
        %2435 = vperm.xlu0 %2434, %v2379
        %v2436 = vpop.permute.xlu0 %2435
        %2438 = vset.pattern.permute.xlu0 0
        %2439 = vperm.xlu0 %2438, %v2380
        %v2440 = vpop.permute.xlu0 %2439
        %2442 = vset.pattern.permute.xlu0 0
        %2443 = vperm.xlu0 %2442, %v2381
        %v2444 = vpop.permute.xlu0 %2443
        %2446 = vset.pattern.permute.xlu0 0
        %2447 = vperm.xlu0 %2446, %v2382
        %v2448 = vpop.permute.xlu0 %2447
        %2450 = vset.pattern.permute.xlu0 0
        %2451 = vperm.xlu0 %2450, %v2383
        %v2452 = vpop.permute.xlu0 %2451
        %2454 = vset.pattern.permute.xlu0 0
        %2455 = vperm.xlu0 %2454, %v2384
        %v2456 = vpop.permute.xlu0 %2455
        %2458 = vset.pattern.permute.xlu0 0
        %2459 = vperm.xlu0 %2458, %v2385
        %v2460 = vpop.permute.xlu0 %2459
        %2462 = vset.pattern.permute.xlu0 0
        %2463 = vperm.xlu0 %2462, %v2386
        %v2464 = vpop.permute.xlu0 %2463
        %2466 = vset.pattern.permute.xlu0 0
        %2467 = vperm.xlu0 %2466, %v2387
        %v2468 = vpop.permute.xlu0 %2467
        %2470 = vset.pattern.permute.xlu0 0
        %2471 = vperm.xlu0 %2470, %v2388
        %v2472 = vpop.permute.xlu0 %2471
        %2474 = vset.pattern.permute.xlu0 0
        %2475 = vperm.xlu0 %2474, %v2389
        %v2476 = vpop.permute.xlu0 %2475
        %2478 = vset.pattern.permute.xlu0 0
        %2479 = vperm.xlu0 %2478, %v2390
        %v2480 = vpop.permute.xlu0 %2479
        %2482 = vset.pattern.permute.xlu0 0
        %2483 = vperm.xlu0 %2482, %v2391
        %v2484 = vpop.permute.xlu0 %2483
        %2486 = vset.pattern.permute.xlu0 0
        %2487 = vperm.xlu0 %2486, %v2392
        %v2488 = vpop.permute.xlu0 %2487
        %2490 = vset.pattern.permute.xlu0 0
        %2491 = vperm.xlu0 %2490, %v2393
        %v2492 = vpop.permute.xlu0 %2491
        %2494 = vset.pattern.permute.xlu0 0
        %2495 = vperm.xlu0 %2494, %v2394
        %v2496 = vpop.permute.xlu0 %2495
        %2498 = vset.pattern.permute.xlu0 0
        %2499 = vperm.xlu0 %2498, %v2395
        %v2500 = vpop.permute.xlu0 %2499
        %2502 = vset.pattern.permute.xlu0 0
        %2503 = vperm.xlu0 %2502, %v2396
        %v2504 = vpop.permute.xlu0 %2503
        %2506 = vset.pattern.permute.xlu0 0
        %2507 = vperm.xlu0 %2506, %v2397
        %v2508 = vpop.permute.xlu0 %2507
        %2510 = vset.pattern.permute.xlu0 0
        %2511 = vperm.xlu0 %2510, %v2398
        %v2512 = vpop.permute.xlu0 %2511
        %2514 = vset.pattern.permute.xlu0 0
        %2515 = vperm.xlu0 %2514, %v2399
        %v2516 = vpop.permute.xlu0 %2515
        %2518 = vset.pattern.permute.xlu0 0
        %2519 = vperm.xlu0 %2518, %v2400
        %v2520 = vpop.permute.xlu0 %2519
        %vm2521 = vcmask 1042432
        %v2522 = vrot.slane %v2404, 5
        %v2523 = vrot.slane %v2408, 5
        %v2524 = vsel %vm2521, %v2522, %v2523
        %v2525 = vrot.slane %v2412, 5
        %v2526 = vsel %vm2521, %v2523, %v2525
        %v2527 = vrot.slane %v2416, 5
        %v2528 = vsel %vm2521, %v2525, %v2527
        %v2529 = vrot.slane %v2420, 5
        %v2530 = vsel %vm2521, %v2527, %v2529
        %v2531 = vrot.slane %v2424, 5
        %v2532 = vsel %vm2521, %v2529, %v2531
        %v2533 = vrot.slane %v2428, 5
        %v2534 = vsel %vm2521, %v2531, %v2533
        %v2535 = vrot.slane %v2432, 5
        %v2536 = vsel %vm2521, %v2533, %v2535
        %v2537 = vrot.slane %v2436, 5
        %v2538 = vsel %vm2521, %v2535, %v2537
        %v2539 = vrot.slane %v2440, 5
        %v2540 = vsel %vm2521, %v2537, %v2539
        %v2541 = vrot.slane %v2444, 5
        %v2542 = vsel %vm2521, %v2539, %v2541
        %v2543 = vrot.slane %v2448, 5
        %v2544 = vsel %vm2521, %v2541, %v2543
        %v2545 = vrot.slane %v2452, 5
        %v2546 = vsel %vm2521, %v2543, %v2545
        %v2547 = vrot.slane %v2456, 5
        %v2548 = vsel %vm2521, %v2545, %v2547
        %v2549 = vrot.slane %v2460, 5
        %v2550 = vsel %vm2521, %v2547, %v2549
        %v2551 = vrot.slane %v2464, 5
        %v2552 = vsel %vm2521, %v2549, %v2551
        %v2553 = vrot.slane %v2468, 5
        %v2554 = vsel %vm2521, %v2551, %v2553
        %v2555 = vrot.slane %v2472, 5
        %v2556 = vsel %vm2521, %v2553, %v2555
        %v2557 = vrot.slane %v2476, 5
        %v2558 = vsel %vm2521, %v2555, %v2557
        %v2559 = vrot.slane %v2480, 5
        %v2560 = vsel %vm2521, %v2557, %v2559
        %v2561 = vrot.slane %v2484, 5
        %v2562 = vsel %vm2521, %v2559, %v2561
        %v2563 = vrot.slane %v2488, 5
        %v2564 = vsel %vm2521, %v2561, %v2563
        %v2565 = vrot.slane %v2492, 5
        %v2566 = vsel %vm2521, %v2563, %v2565
        %v2567 = vrot.slane %v2496, 5
        %v2568 = vsel %vm2521, %v2565, %v2567
        %v2569 = vrot.slane %v2500, 5
        %v2570 = vsel %vm2521, %v2567, %v2569
        %v2571 = vrot.slane %v2504, 5
        %v2572 = vsel %vm2521, %v2569, %v2571
        %v2573 = vrot.slane %v2508, 5
        %v2574 = vsel %vm2521, %v2571, %v2573
        %v2575 = vrot.slane %v2512, 5
        %v2576 = vsel %vm2521, %v2573, %v2575
        %v2577 = vrot.slane %v2516, 5
        %v2578 = vsel %vm2521, %v2575, %v2577
        %v2579 = vrot.slane %v2520, 5
        %v2580 = vsel %vm2521, %v2577, %v2579
        %v2612 = vmul.f32 %v2522, 0.0
        %v2613 = vmul.f32 %v2524, 0.0
        %v2614 = vmul.f32 %v2526, 0.0
        %v2615 = vmul.f32 %v2528, 0.0
        %v2616 = vmul.f32 %v1042, %v2530
        %v2617 = vmul.f32 %v1043, %v2532
        %v2618 = vmul.f32 %v1044, %v2534
        %v2619 = vmul.f32 %v1045, %v2536
        %v2620 = vmul.f32 %v1046, %v2538
        %v2621 = vmul.f32 %v1047, %v2540
        %v2622 = vmul.f32 %v1048, %v2542
        %v2623 = vmul.f32 %v1049, %v2544
        %v2624 = vmul.f32 %v1050, %v2546
        %v2625 = vmul.f32 %v1051, %v2548
        %v2626 = vmul.f32 %v1052, %v2550
        %v2627 = vmul.f32 %v1053, %v2552
        %v2628 = vmul.f32 %v1054, %v2554
        %v2629 = vmul.f32 %v1055, %v2556
        %v2630 = vmul.f32 %v1056, %v2558
        %v2631 = vmul.f32 %v1057, %v2560
        %v2632 = vmul.f32 %v1058, %v2562
        %v2633 = vmul.f32 %v1059, %v2564
        %v2634 = vmul.f32 %v1060, %v2566
        %v2635 = vmul.f32 %v1061, %v2568
        %v2636 = vmul.f32 %v1062, %v2570
        %v2637 = vmul.f32 %v1063, %v2572
        %v2638 = vmul.f32 %v1064, %v2574
        %v2639 = vmul.f32 %v1065, %v2576
        %v2640 = vmul.f32 %v1066, %v2578
        %v2641 = vmul.f32 %v1067, %v2580
        %v2642 = vmul.f32 %v1068, %v2579
        %s2643 = scalar_lea.vmem %s4, 128
        %v2644 = vld [vmem:[%s2643] sm:$0xff]
        %v2645 = vld [vmem:[%s2643 + $0x8] sm:$0xff]
        %v2646 = vld [vmem:[%s2643 + $0x10] sm:$0xff]
        %v2647 = vld [vmem:[%s2643 + $0x18] sm:$0xff]
        %v2648 = vld [vmem:[%s2643 + $0x20] sm:$0xff]
        %v2649 = vld [vmem:[%s2643 + $0x28] sm:$0xff]
        %v2650 = vld [vmem:[%s2643 + $0x30] sm:$0xff]
        %v2651 = vld [vmem:[%s2643 + $0x38] sm:$0xff]
        %vm2683 = vcmask 1044480
        %v2684 = vrot.slane %v2612, 3
        %v2685 = vrot.slane %v2613, 3
        %v2686 = vsel %vm2683, %v2684, %v2685
        %v2687 = vrot.slane %v2614, 3
        %v2688 = vsel %vm2683, %v2685, %v2687
        %v2689 = vrot.slane %v2615, 3
        %v2690 = vsel %vm2683, %v2687, %v2689
        %v2691 = vrot.slane %v2616, 3
        %v2692 = vsel %vm2683, %v2689, %v2691
        %v2693 = vrot.slane %v2617, 3
        %v2694 = vsel %vm2683, %v2691, %v2693
        %v2695 = vrot.slane %v2618, 3
        %v2696 = vsel %vm2683, %v2693, %v2695
        %v2697 = vrot.slane %v2619, 3
        %v2698 = vsel %vm2683, %v2695, %v2697
        %v2699 = vrot.slane %v2620, 3
        %v2700 = vsel %vm2683, %v2697, %v2699
        %v2701 = vrot.slane %v2621, 3
        %v2702 = vsel %vm2683, %v2699, %v2701
        %v2703 = vrot.slane %v2622, 3
        %v2704 = vsel %vm2683, %v2701, %v2703
        %v2705 = vrot.slane %v2623, 3
        %v2706 = vsel %vm2683, %v2703, %v2705
        %v2707 = vrot.slane %v2624, 3
        %v2708 = vsel %vm2683, %v2705, %v2707
        %v2709 = vrot.slane %v2625, 3
        %v2710 = vsel %vm2683, %v2707, %v2709
        %v2711 = vrot.slane %v2626, 3
        %v2712 = vsel %vm2683, %v2709, %v2711
        %v2713 = vrot.slane %v2627, 3
        %v2714 = vsel %vm2683, %v2711, %v2713
        %v2715 = vrot.slane %v2628, 3
        %v2716 = vsel %vm2683, %v2713, %v2715
        %v2717 = vrot.slane %v2629, 3
        %v2718 = vsel %vm2683, %v2715, %v2717
        %v2719 = vrot.slane %v2630, 3
        %v2720 = vsel %vm2683, %v2717, %v2719
        %v2721 = vrot.slane %v2631, 3
        %v2722 = vsel %vm2683, %v2719, %v2721
        %v2723 = vrot.slane %v2632, 3
        %v2724 = vsel %vm2683, %v2721, %v2723
        %v2725 = vrot.slane %v2633, 3
        %v2726 = vsel %vm2683, %v2723, %v2725
        %v2727 = vrot.slane %v2634, 3
        %v2728 = vsel %vm2683, %v2725, %v2727
        %v2729 = vrot.slane %v2635, 3
        %v2730 = vsel %vm2683, %v2727, %v2729
        %v2731 = vrot.slane %v2636, 3
        %v2732 = vsel %vm2683, %v2729, %v2731
        %v2733 = vrot.slane %v2637, 3
        %v2734 = vsel %vm2683, %v2731, %v2733
        %v2735 = vrot.slane %v2638, 3
        %v2736 = vsel %vm2683, %v2733, %v2735
        %v2737 = vrot.slane %v2639, 3
        %v2738 = vsel %vm2683, %v2735, %v2737
        %v2739 = vrot.slane %v2640, 3
        %v2740 = vsel %vm2683, %v2737, %v2739
        %v2741 = vrot.slane %v2641, 3
        %v2742 = vsel %vm2683, %v2739, %v2741
        %v2743 = vrot.slane %v2642, 3
        %v2744 = vsel %vm2683, %v2741, %v2743
        %v2745 = vsel %vm1727, %v2686, 0
        %v2747 = vsel %vm1727, %v2688, 0
        %v2749 = vsel %vm1727, %v2690, 0
        %v2751 = vsel %vm1727, %v2692, 0
        %v2753 = vsel %vm1727, %v2694, 0
        %v2755 = vsel %vm1727, %v2696, 0
        %v2757 = vsel %vm1727, %v2698, 0
        %v2759 = vsel %vm1727, %v2700, 0
        %v2761 = vsel %vm1727, %v2702, 0
        %v2763 = vsel %vm1727, %v2704, 0
        %v2765 = vsel %vm1727, %v2706, 0
        %v2767 = vsel %vm1727, %v2708, 0
        %v2769 = vsel %vm1727, %v2710, 0
        %v2771 = vsel %vm1727, %v2712, 0
        %v2773 = vsel %vm1727, %v2714, 0
        %v2775 = vsel %vm1727, %v2716, 0
        %v2777 = vsel %vm1727, %v2718, 0
        %v2779 = vsel %vm1727, %v2720, 0
        %v2781 = vsel %vm1727, %v2722, 0
        %v2783 = vsel %vm1727, %v2724, 0
        %v2785 = vsel %vm1727, %v2726, 0
        %v2787 = vsel %vm1727, %v2728, 0
        %v2789 = vsel %vm1727, %v2730, 0
        %v2791 = vsel %vm1727, %v2732, 0
        %v2793 = vsel %vm1727, %v2734, 0
        %v2795 = vsel %vm1727, %v2736, 0
        %v2797 = vsel %vm1727, %v2738, 0
        %v2799 = vsel %vm1727, %v2740, 0
        %v2801 = vsel %vm1727, %v2742, 0
        %v2803 = vsel %vm1727, %v2744, 0
        %2805 = vmatprep.subr.mxu0 0.0
        %2806 = vmatpush1.msra.mxu0 0.0
        %2807 = vmatprep.subr.mxu0 0.0
        %2808 = vmatpush1.msra.mxu0 0.0
        %2809 = vmatprep.subr.mxu0 0.0
        %2810 = vmatpush1.msra.mxu0 0.0
        %2811 = vmatprep.subr.mxu0 0.0
        %2812 = vmatpush1.msra.mxu0 0.0
        %2813 = vmatprep.subr.mxu0 0.0
        %2814 = vmatpush1.msra.mxu0 0.0
        %2815 = vmatprep.subr.mxu0 0.0
        %2816 = vmatpush1.msra.mxu0 0.0
        %2817 = vmatprep.subr.mxu0 0.0
        %2818 = vmatpush1.msra.mxu0 0.0
        %2819 = vmatprep.subr.mxu0 0.0
        %2820 = vmatpush1.msra.mxu0 0.0
        %2821 = vmatprep.subr.mxu0 0.0
        %2822 = vmatpush1.msra.mxu0 %v2651
        %2823 = vmatprep.subr.mxu0 0.0
        %2824 = vmatpush1.msra.mxu0 %v2650
        %2825 = vmatprep.subr.mxu0 0.0
        %2826 = vmatpush1.msra.mxu0 %v2649
        %2827 = vmatprep.subr.mxu0 0.0
        %2828 = vmatpush1.msra.mxu0 %v2648
        %2829 = vmatprep.subr.mxu0 0.0
        %2830 = vmatpush1.msra.mxu0 %v2647
        %2831 = vmatprep.subr.mxu0 0.0
        %2832 = vmatpush1.msra.mxu0 %v2646
        %2833 = vmatprep.subr.mxu0 0.0
        %2834 = vmatpush1.msra.mxu0 %v2645
        %2835 = vmatprep.subr.mxu0 0.0
        %2836 = vmatpush1.msra.mxu0 %v2644
        %2837 = vmatprep.subr.mxu0 0.0
        %2838 = vmatpush2.msra.mxu0 0.0
        %2839 = vmatprep.subr.mxu0 0.0
        %2840 = vmatpush2.msra.mxu0 0.0
        %2841 = vmatprep.subr.mxu0 0.0
        %2842 = vmatpush2.msra.mxu0 0.0
        %2843 = vmatprep.subr.mxu0 0.0
        %2844 = vmatpush2.msra.mxu0 0.0
        %2845 = vmatprep.subr.mxu0 0.0
        %2846 = vmatpush2.msra.mxu0 0.0
        %2847 = vmatprep.subr.mxu0 0.0
        %2848 = vmatpush2.msra.mxu0 0.0
        %2849 = vmatprep.subr.mxu0 0.0
        %2850 = vmatpush2.msra.mxu0 0.0
        %2851 = vmatprep.subr.mxu0 0.0
        %2852 = vmatpush2.msra.mxu0 0.0
        %2853 = vmatprep.subr.mxu0 0.0
        %2854 = vmatpush2.msra.mxu0 0.0
        %2855 = vmatprep.subr.mxu0 0.0
        %2856 = vmatpush2.msra.mxu0 0.0
        %2857 = vmatprep.subr.mxu0 0.0
        %2858 = vmatpush2.msra.mxu0 0.0
        %2859 = vmatprep.subr.mxu0 0.0
        %2860 = vmatpush2.msra.mxu0 0.0
        %2861 = vmatprep.subr.mxu0 0.0
        %2862 = vmatpush2.msra.mxu0 0.0
        %2863 = vmatprep.subr.mxu0 0.0
        %2864 = vmatpush2.msra.mxu0 0.0
        %2865 = vmatprep.subr.mxu0 0.0
        %2866 = vmatpush2.msra.mxu0 0.0
        %2867 = vmatprep.subr.mxu0 0.0
        %2868 = vmatpush2.msra.mxu0 0.0
        %2869 = vmatprep.mubr.f32.mxu0 0.0
        %2870 = vmatmul.mubr.f32.gmra.mxu0 %v2745
        %v2871 = vpop.f32.mrf.mxu0
        %v2872 = vadd.f32 0.0, %v2871
        %v2873 = vpop.f32.mrf.mxu0
        %2874 = vmatprep.mubr.f32.mxu0 0.0
        %2875 = vmatmul.mubr.f32.gmra.mxu0 %v2747
        %v2876 = vpop.f32.mrf.mxu0
        %v2877 = vadd.f32 0.0, %v2876
        %v2878 = vpop.f32.mrf.mxu0
        %2879 = vmatprep.mubr.f32.mxu0 0.0
        %2880 = vmatmul.mubr.f32.gmra.mxu0 %v2749
        %v2881 = vpop.f32.mrf.mxu0
        %v2882 = vadd.f32 0.0, %v2881
        %v2883 = vpop.f32.mrf.mxu0
        %2884 = vmatprep.mubr.f32.mxu0 0.0
        %2885 = vmatmul.mubr.f32.gmra.mxu0 %v2751
        %v2886 = vpop.f32.mrf.mxu0
        %v2887 = vadd.f32 0.0, %v2886
        %v2888 = vpop.f32.mrf.mxu0
        %2889 = vmatprep.mubr.f32.mxu0 0.0
        %2890 = vmatmul.mubr.f32.gmra.mxu0 %v2753
        %v2891 = vpop.f32.mrf.mxu0
        %v2892 = vadd.f32 0.0, %v2891
        %v2893 = vpop.f32.mrf.mxu0
        %2894 = vmatprep.mubr.f32.mxu0 0.0
        %2895 = vmatmul.mubr.f32.gmra.mxu0 %v2755
        %v2896 = vpop.f32.mrf.mxu0
        %v2897 = vadd.f32 0.0, %v2896
        %v2898 = vpop.f32.mrf.mxu0
        %2899 = vmatprep.mubr.f32.mxu0 0.0
        %2900 = vmatmul.mubr.f32.gmra.mxu0 %v2757
        %v2901 = vpop.f32.mrf.mxu0
        %v2902 = vadd.f32 0.0, %v2901
        %v2903 = vpop.f32.mrf.mxu0
        %2904 = vmatprep.mubr.f32.mxu0 0.0
        %2905 = vmatmul.mubr.f32.gmra.mxu0 %v2759
        %v2906 = vpop.f32.mrf.mxu0
        %v2907 = vadd.f32 0.0, %v2906
        %v2908 = vpop.f32.mrf.mxu0
        %2909 = vmatprep.mubr.f32.mxu0 0.0
        %2910 = vmatmul.mubr.f32.gmra.mxu0 %v2761
        %v2911 = vpop.f32.mrf.mxu0
        %v2912 = vadd.f32 0.0, %v2911
        %v2913 = vpop.f32.mrf.mxu0
        %2914 = vmatprep.mubr.f32.mxu0 0.0
        %2915 = vmatmul.mubr.f32.gmra.mxu0 %v2763
        %v2916 = vpop.f32.mrf.mxu0
        %v2917 = vadd.f32 0.0, %v2916
        %v2918 = vpop.f32.mrf.mxu0
        %2919 = vmatprep.mubr.f32.mxu0 0.0
        %2920 = vmatmul.mubr.f32.gmra.mxu0 %v2765
        %v2921 = vpop.f32.mrf.mxu0
        %v2922 = vadd.f32 0.0, %v2921
        %v2923 = vpop.f32.mrf.mxu0
        %2924 = vmatprep.mubr.f32.mxu0 0.0
        %2925 = vmatmul.mubr.f32.gmra.mxu0 %v2767
        %v2926 = vpop.f32.mrf.mxu0
        %v2927 = vadd.f32 0.0, %v2926
        %v2928 = vpop.f32.mrf.mxu0
        %2929 = vmatprep.mubr.f32.mxu0 0.0
        %2930 = vmatmul.mubr.f32.gmra.mxu0 %v2769
        %v2931 = vpop.f32.mrf.mxu0
        %v2932 = vadd.f32 0.0, %v2931
        %v2933 = vpop.f32.mrf.mxu0
        %2934 = vmatprep.mubr.f32.mxu0 0.0
        %2935 = vmatmul.mubr.f32.gmra.mxu0 %v2771
        %v2936 = vpop.f32.mrf.mxu0
        %v2937 = vadd.f32 0.0, %v2936
        %v2938 = vpop.f32.mrf.mxu0
        %2939 = vmatprep.mubr.f32.mxu0 0.0
        %2940 = vmatmul.mubr.f32.gmra.mxu0 %v2773
        %v2941 = vpop.f32.mrf.mxu0
        %v2942 = vadd.f32 0.0, %v2941
        %v2943 = vpop.f32.mrf.mxu0
        %2944 = vmatprep.mubr.f32.mxu0 0.0
        %2945 = vmatmul.mubr.f32.gmra.mxu0 %v2775
        %v2946 = vpop.f32.mrf.mxu0
        %v2947 = vadd.f32 0.0, %v2946
        %v2948 = vpop.f32.mrf.mxu0
        %2949 = vmatprep.mubr.f32.mxu0 0.0
        %2950 = vmatmul.mubr.f32.gmra.mxu0 %v2777
        %v2951 = vpop.f32.mrf.mxu0
        %v2952 = vadd.f32 0.0, %v2951
        %v2953 = vpop.f32.mrf.mxu0
        %2954 = vmatprep.mubr.f32.mxu0 0.0
        %2955 = vmatmul.mubr.f32.gmra.mxu0 %v2779
        %v2956 = vpop.f32.mrf.mxu0
        %v2957 = vadd.f32 0.0, %v2956
        %v2958 = vpop.f32.mrf.mxu0
        %2959 = vmatprep.mubr.f32.mxu0 0.0
        %2960 = vmatmul.mubr.f32.gmra.mxu0 %v2781
        %v2961 = vpop.f32.mrf.mxu0
        %v2962 = vadd.f32 0.0, %v2961
        %v2963 = vpop.f32.mrf.mxu0
        %2964 = vmatprep.mubr.f32.mxu0 0.0
        %2965 = vmatmul.mubr.f32.gmra.mxu0 %v2783
        %v2966 = vpop.f32.mrf.mxu0
        %v2967 = vadd.f32 0.0, %v2966
        %v2968 = vpop.f32.mrf.mxu0
        %2969 = vmatprep.mubr.f32.mxu0 0.0
        %2970 = vmatmul.mubr.f32.gmra.mxu0 %v2785
        %v2971 = vpop.f32.mrf.mxu0
        %v2972 = vadd.f32 0.0, %v2971
        %v2973 = vpop.f32.mrf.mxu0
        %2974 = vmatprep.mubr.f32.mxu0 0.0
        %2975 = vmatmul.mubr.f32.gmra.mxu0 %v2787
        %v2976 = vpop.f32.mrf.mxu0
        %v2977 = vadd.f32 0.0, %v2976
        %v2978 = vpop.f32.mrf.mxu0
        %2979 = vmatprep.mubr.f32.mxu0 0.0
        %2980 = vmatmul.mubr.f32.gmra.mxu0 %v2789
        %v2981 = vpop.f32.mrf.mxu0
        %v2982 = vadd.f32 0.0, %v2981
        %v2983 = vpop.f32.mrf.mxu0
        %2984 = vmatprep.mubr.f32.mxu0 0.0
        %2985 = vmatmul.mubr.f32.gmra.mxu0 %v2791
        %v2986 = vpop.f32.mrf.mxu0
        %v2987 = vadd.f32 0.0, %v2986
        %v2988 = vpop.f32.mrf.mxu0
        %2989 = vmatprep.mubr.f32.mxu0 0.0
        %2990 = vmatmul.mubr.f32.gmra.mxu0 %v2793
        %v2991 = vpop.f32.mrf.mxu0
        %v2992 = vadd.f32 0.0, %v2991
        %v2993 = vpop.f32.mrf.mxu0
        %2994 = vmatprep.mubr.f32.mxu0 0.0
        %2995 = vmatmul.mubr.f32.gmra.mxu0 %v2795
        %v2996 = vpop.f32.mrf.mxu0
        %v2997 = vadd.f32 0.0, %v2996
        %v2998 = vpop.f32.mrf.mxu0
        %2999 = vmatprep.mubr.f32.mxu0 0.0
        %3000 = vmatmul.mubr.f32.gmra.mxu0 %v2797
        %v3001 = vpop.f32.mrf.mxu0
        %v3002 = vadd.f32 0.0, %v3001
        %v3003 = vpop.f32.mrf.mxu0
        %3004 = vmatprep.mubr.f32.mxu0 0.0
        %3005 = vmatmul.mubr.f32.gmra.mxu0 %v2799
        %v3006 = vpop.f32.mrf.mxu0
        %v3007 = vadd.f32 0.0, %v3006
        %v3008 = vpop.f32.mrf.mxu0
        %3009 = vmatprep.mubr.f32.mxu0 0.0
        %3010 = vmatmul.mubr.f32.gmra.mxu0 %v2801
        %v3011 = vpop.f32.mrf.mxu0
        %v3012 = vadd.f32 0.0, %v3011
        %v3013 = vpop.f32.mrf.mxu0
        %3014 = vmatprep.mubr.f32.mxu0 0.0
        %3015 = vmatmul.mubr.f32.gmra.mxu0 %v2803
        %v3016 = vpop.f32.mrf.mxu0
        %v3017 = vadd.f32 0.0, %v3016
        %v3018 = vpop.f32.mrf.mxu0
        %3019 = vdwg.mxu0
        %v3020 = vadd.f32 %v2222, %v2872
        %v3021 = vadd.f32 %v2227, %v2877
        %v3022 = vadd.f32 %v2232, %v2882
        %v3023 = vadd.f32 %v2237, %v2887
        %v3024 = vadd.f32 %v2242, %v2892
        %v3025 = vadd.f32 %v2247, %v2897
        %v3026 = vadd.f32 %v2252, %v2902
        %v3027 = vadd.f32 %v2257, %v2907
        %v3028 = vadd.f32 %v2262, %v2912
        %v3029 = vadd.f32 %v2267, %v2917
        %v3030 = vadd.f32 %v2272, %v2922
        %v3031 = vadd.f32 %v2277, %v2927
        %v3032 = vadd.f32 %v2282, %v2932
        %v3033 = vadd.f32 %v2287, %v2937
        %v3034 = vadd.f32 %v2292, %v2942
        %v3035 = vadd.f32 %v2297, %v2947
        %v3036 = vadd.f32 %v2302, %v2952
        %v3037 = vadd.f32 %v2307, %v2957
        %v3038 = vadd.f32 %v2312, %v2962
        %v3039 = vadd.f32 %v2317, %v2967
        %v3040 = vadd.f32 %v2322, %v2972
        %v3041 = vadd.f32 %v2327, %v2977
        %v3042 = vadd.f32 %v2332, %v2982
        %v3043 = vadd.f32 %v2337, %v2987
        %v3044 = vadd.f32 %v2342, %v2992
        %v3045 = vadd.f32 %v2347, %v2997
        %v3046 = vadd.f32 %v2352, %v3002
        %v3047 = vadd.f32 %v2357, %v3007
        %v3048 = vadd.f32 %v2362, %v3012
        %v3049 = vadd.f32 %v2367, %v3017
        %s3050 = scalar_lea.vmem %s1, 720
        %v3051 = vld [vmem:[%s3050] sm:$0xff]
        %v3052 = vld [vmem:[%s3050 + $0x8] sm:$0xff]
        %v3053 = vld [vmem:[%s3050 + $0x10] sm:$0xff]
        %v3054 = vld [vmem:[%s3050 + $0x18] sm:$0xff]
        %v3055 = vld [vmem:[%s3050 + $0x20] sm:$0xff]
        %v3056 = vld [vmem:[%s3050 + $0x28] sm:$0xff]
        %v3057 = vld [vmem:[%s3050 + $0x30] sm:$0xff]
        %v3058 = vld [vmem:[%s3050 + $0x38] sm:$0xff]
        %v3059 = vld [vmem:[%s3050 + $0x40] sm:$0xff]
        %v3060 = vld [vmem:[%s3050 + $0x48] sm:$0xff]
        %v3061 = vld [vmem:[%s3050 + $0x50] sm:$0xff]
        %v3062 = vld [vmem:[%s3050 + $0x58] sm:$0xff]
        %v3063 = vld [vmem:[%s3050 + $0x60] sm:$0xff]
        %v3064 = vld [vmem:[%s3050 + $0x68] sm:$0xff]
        %v3065 = vld [vmem:[%s3050 + $0x70] sm:$0xff]
        %v3066 = vld [vmem:[%s3050 + $0x78] sm:$0xff]
        %v3067 = vld [vmem:[%s3050 + $0x80] sm:$0xff]
        %v3068 = vld [vmem:[%s3050 + $0x88] sm:$0xff]
        %v3069 = vld [vmem:[%s3050 + $0x90] sm:$0xff]
        %v3070 = vld [vmem:[%s3050 + $0x98] sm:$0xff]
        %v3071 = vld [vmem:[%s3050 + $0xa0] sm:$0xff]
        %v3072 = vld [vmem:[%s3050 + $0xa8] sm:$0xff]
        %v3073 = vld [vmem:[%s3050 + $0xb0] sm:$0xff]
        %v3074 = vld [vmem:[%s3050 + $0xb8] sm:$0xff]
        %v3075 = vld [vmem:[%s3050 + $0xc0] sm:$0xff]
        %v3076 = vld [vmem:[%s3050 + $0xc8] sm:$0xff]
        %v3077 = vld [vmem:[%s3050 + $0xd0] sm:$0xff]
        %v3078 = vld [vmem:[%s3050 + $0xd8] sm:$0xff]
        %v3079 = vld [vmem:[%s3050 + $0xe0] sm:$0xff]
        %v3080 = vld [vmem:[%s3050 + $0xe8] sm:$0xff]
        %3082 = vset.pattern.permute.xlu0 0
        %3083 = vperm.xlu0 %3082, %v3051
        %v3084 = vpop.permute.xlu0 %3083
        %3087 = vset.pattern.permute.xlu0 0
        %3088 = vperm.xlu0 %3087, %v3052
        %v3089 = vpop.permute.xlu0 %3088
        %3092 = vset.pattern.permute.xlu0 0
        %3093 = vperm.xlu0 %3092, %v3053
        %v3094 = vpop.permute.xlu0 %3093
        %3097 = vset.pattern.permute.xlu0 0
        %3098 = vperm.xlu0 %3097, %v3054
        %v3099 = vpop.permute.xlu0 %3098
        %3102 = vset.pattern.permute.xlu0 0
        %3103 = vperm.xlu0 %3102, %v3055
        %v3104 = vpop.permute.xlu0 %3103
        %3107 = vset.pattern.permute.xlu0 0
        %3108 = vperm.xlu0 %3107, %v3056
        %v3109 = vpop.permute.xlu0 %3108
        %3112 = vset.pattern.permute.xlu0 0
        %3113 = vperm.xlu0 %3112, %v3057
        %v3114 = vpop.permute.xlu0 %3113
        %3117 = vset.pattern.permute.xlu0 0
        %3118 = vperm.xlu0 %3117, %v3058
        %v3119 = vpop.permute.xlu0 %3118
        %3122 = vset.pattern.permute.xlu0 0
        %3123 = vperm.xlu0 %3122, %v3059
        %v3124 = vpop.permute.xlu0 %3123
        %3127 = vset.pattern.permute.xlu0 0
        %3128 = vperm.xlu0 %3127, %v3060
        %v3129 = vpop.permute.xlu0 %3128
        %3132 = vset.pattern.permute.xlu0 0
        %3133 = vperm.xlu0 %3132, %v3061
        %v3134 = vpop.permute.xlu0 %3133
        %3137 = vset.pattern.permute.xlu0 0
        %3138 = vperm.xlu0 %3137, %v3062
        %v3139 = vpop.permute.xlu0 %3138
        %3142 = vset.pattern.permute.xlu0 0
        %3143 = vperm.xlu0 %3142, %v3063
        %v3144 = vpop.permute.xlu0 %3143
        %3147 = vset.pattern.permute.xlu0 0
        %3148 = vperm.xlu0 %3147, %v3064
        %v3149 = vpop.permute.xlu0 %3148
        %3152 = vset.pattern.permute.xlu0 0
        %3153 = vperm.xlu0 %3152, %v3065
        %v3154 = vpop.permute.xlu0 %3153
        %3157 = vset.pattern.permute.xlu0 0
        %3158 = vperm.xlu0 %3157, %v3066
        %v3159 = vpop.permute.xlu0 %3158
        %3162 = vset.pattern.permute.xlu0 0
        %3163 = vperm.xlu0 %3162, %v3067
        %v3164 = vpop.permute.xlu0 %3163
        %3167 = vset.pattern.permute.xlu0 0
        %3168 = vperm.xlu0 %3167, %v3068
        %v3169 = vpop.permute.xlu0 %3168
        %3172 = vset.pattern.permute.xlu0 0
        %3173 = vperm.xlu0 %3172, %v3069
        %v3174 = vpop.permute.xlu0 %3173
        %3177 = vset.pattern.permute.xlu0 0
        %3178 = vperm.xlu0 %3177, %v3070
        %v3179 = vpop.permute.xlu0 %3178
        %3182 = vset.pattern.permute.xlu0 0
        %3183 = vperm.xlu0 %3182, %v3071
        %v3184 = vpop.permute.xlu0 %3183
        %3187 = vset.pattern.permute.xlu0 0
        %3188 = vperm.xlu0 %3187, %v3072
        %v3189 = vpop.permute.xlu0 %3188
        %3192 = vset.pattern.permute.xlu0 0
        %3193 = vperm.xlu0 %3192, %v3073
        %v3194 = vpop.permute.xlu0 %3193
        %3197 = vset.pattern.permute.xlu0 0
        %3198 = vperm.xlu0 %3197, %v3074
        %v3199 = vpop.permute.xlu0 %3198
        %3202 = vset.pattern.permute.xlu0 0
        %3203 = vperm.xlu0 %3202, %v3075
        %v3204 = vpop.permute.xlu0 %3203
        %3207 = vset.pattern.permute.xlu0 0
        %3208 = vperm.xlu0 %3207, %v3076
        %v3209 = vpop.permute.xlu0 %3208
        %3212 = vset.pattern.permute.xlu0 0
        %3213 = vperm.xlu0 %3212, %v3077
        %v3214 = vpop.permute.xlu0 %3213
        %3217 = vset.pattern.permute.xlu0 0
        %3218 = vperm.xlu0 %3217, %v3078
        %v3219 = vpop.permute.xlu0 %3218
        %3222 = vset.pattern.permute.xlu0 0
        %3223 = vperm.xlu0 %3222, %v3079
        %v3224 = vpop.permute.xlu0 %3223
        %3227 = vset.pattern.permute.xlu0 0
        %3228 = vperm.xlu0 %3227, %v3080
        %v3229 = vpop.permute.xlu0 %3228
        %v3231 = vmul.f32 %v3084, 0.0
        %v3232 = vmul.f32 %v3089, 0.0
        %v3233 = vmul.f32 %v1042, %v3094
        %v3234 = vmul.f32 %v1043, %v3099
        %v3235 = vmul.f32 %v1044, %v3104
        %v3236 = vmul.f32 %v1045, %v3109
        %v3237 = vmul.f32 %v1046, %v3114
        %v3238 = vmul.f32 %v1047, %v3119
        %v3239 = vmul.f32 %v1048, %v3124
        %v3240 = vmul.f32 %v1049, %v3129
        %v3241 = vmul.f32 %v1050, %v3134
        %v3242 = vmul.f32 %v1051, %v3139
        %v3243 = vmul.f32 %v1052, %v3144
        %v3244 = vmul.f32 %v1053, %v3149
        %v3245 = vmul.f32 %v1054, %v3154
        %v3246 = vmul.f32 %v1055, %v3159
        %v3247 = vmul.f32 %v1056, %v3164
        %v3248 = vmul.f32 %v1057, %v3169
        %v3249 = vmul.f32 %v1058, %v3174
        %v3250 = vmul.f32 %v1059, %v3179
        %v3251 = vmul.f32 %v1060, %v3184
        %v3252 = vmul.f32 %v1061, %v3189
        %v3253 = vmul.f32 %v1062, %v3194
        %v3254 = vmul.f32 %v1063, %v3199
        %v3255 = vmul.f32 %v1064, %v3204
        %v3256 = vmul.f32 %v1065, %v3209
        %v3257 = vmul.f32 %v1066, %v3214
        %v3258 = vmul.f32 %v1067, %v3219
        %v3259 = vmul.f32 %v1068, %v3224
        %v3260 = vmul.f32 %v1069, %v3229
        %s3261 = scalar_lea.vmem %s4, 192
        %v3262 = vld [vmem:[%s3261] sm:$0xff]
        %v3263 = vld [vmem:[%s3261 + $0x8] sm:$0xff]
        %v3264 = vld [vmem:[%s3261 + $0x10] sm:$0xff]
        %v3265 = vld [vmem:[%s3261 + $0x18] sm:$0xff]
        %v3266 = vld [vmem:[%s3261 + $0x20] sm:$0xff]
        %v3267 = vld [vmem:[%s3261 + $0x28] sm:$0xff]
        %v3268 = vld [vmem:[%s3261 + $0x30] sm:$0xff]
        %v3269 = vld [vmem:[%s3261 + $0x38] sm:$0xff]
        %v3271 = vsel %vm1727, %v3231, 0
        %v3274 = vsel %vm1727, %v3232, 0
        %v3277 = vsel %vm1727, %v3233, 0
        %v3280 = vsel %vm1727, %v3234, 0
        %v3283 = vsel %vm1727, %v3235, 0
        %v3286 = vsel %vm1727, %v3236, 0
        %v3289 = vsel %vm1727, %v3237, 0
        %v3292 = vsel %vm1727, %v3238, 0
        %v3295 = vsel %vm1727, %v3239, 0
        %v3298 = vsel %vm1727, %v3240, 0
        %v3301 = vsel %vm1727, %v3241, 0
        %v3304 = vsel %vm1727, %v3242, 0
        %v3307 = vsel %vm1727, %v3243, 0
        %v3310 = vsel %vm1727, %v3244, 0
        %v3313 = vsel %vm1727, %v3245, 0
        %v3316 = vsel %vm1727, %v3246, 0
        %v3319 = vsel %vm1727, %v3247, 0
        %v3322 = vsel %vm1727, %v3248, 0
        %v3325 = vsel %vm1727, %v3249, 0
        %v3328 = vsel %vm1727, %v3250, 0
        %v3331 = vsel %vm1727, %v3251, 0
        %v3334 = vsel %vm1727, %v3252, 0
        %v3337 = vsel %vm1727, %v3253, 0
        %v3340 = vsel %vm1727, %v3254, 0
        %v3343 = vsel %vm1727, %v3255, 0
        %v3346 = vsel %vm1727, %v3256, 0
        %v3349 = vsel %vm1727, %v3257, 0
        %v3352 = vsel %vm1727, %v3258, 0
        %v3355 = vsel %vm1727, %v3259, 0
        %v3358 = vsel %vm1727, %v3260, 0
        %3360 = vmatprep.subr.mxu0 0.0
        %3361 = vmatpush1.msra.mxu0 0.0
        %3362 = vmatprep.subr.mxu0 0.0
        %3363 = vmatpush1.msra.mxu0 0.0
        %3364 = vmatprep.subr.mxu0 0.0
        %3365 = vmatpush1.msra.mxu0 0.0
        %3366 = vmatprep.subr.mxu0 0.0
        %3367 = vmatpush1.msra.mxu0 0.0
        %3368 = vmatprep.subr.mxu0 0.0
        %3369 = vmatpush1.msra.mxu0 0.0
        %3370 = vmatprep.subr.mxu0 0.0
        %3371 = vmatpush1.msra.mxu0 0.0
        %3372 = vmatprep.subr.mxu0 0.0
        %3373 = vmatpush1.msra.mxu0 0.0
        %3374 = vmatprep.subr.mxu0 0.0
        %3375 = vmatpush1.msra.mxu0 0.0
        %3376 = vmatprep.subr.mxu0 0.0
        %3377 = vmatpush1.msra.mxu0 %v3269
        %3378 = vmatprep.subr.mxu0 0.0
        %3379 = vmatpush1.msra.mxu0 %v3268
        %3380 = vmatprep.subr.mxu0 0.0
        %3381 = vmatpush1.msra.mxu0 %v3267
        %3382 = vmatprep.subr.mxu0 0.0
        %3383 = vmatpush1.msra.mxu0 %v3266
        %3384 = vmatprep.subr.mxu0 0.0
        %3385 = vmatpush1.msra.mxu0 %v3265
        %3386 = vmatprep.subr.mxu0 0.0
        %3387 = vmatpush1.msra.mxu0 %v3264
        %3388 = vmatprep.subr.mxu0 0.0
        %3389 = vmatpush1.msra.mxu0 %v3263
        %3390 = vmatprep.subr.mxu0 0.0
        %3391 = vmatpush1.msra.mxu0 %v3262
        %3392 = vmatprep.subr.mxu0 0.0
        %3393 = vmatpush2.msra.mxu0 0.0
        %3394 = vmatprep.subr.mxu0 0.0
        %3395 = vmatpush2.msra.mxu0 0.0
        %3396 = vmatprep.subr.mxu0 0.0
        %3397 = vmatpush2.msra.mxu0 0.0
        %3398 = vmatprep.subr.mxu0 0.0
        %3399 = vmatpush2.msra.mxu0 0.0
        %3400 = vmatprep.subr.mxu0 0.0
        %3401 = vmatpush2.msra.mxu0 0.0
        %3402 = vmatprep.subr.mxu0 0.0
        %3403 = vmatpush2.msra.mxu0 0.0
        %3404 = vmatprep.subr.mxu0 0.0
        %3405 = vmatpush2.msra.mxu0 0.0
        %3406 = vmatprep.subr.mxu0 0.0
        %3407 = vmatpush2.msra.mxu0 0.0
        %3408 = vmatprep.subr.mxu0 0.0
        %3409 = vmatpush2.msra.mxu0 0.0
        %3410 = vmatprep.subr.mxu0 0.0
        %3411 = vmatpush2.msra.mxu0 0.0
        %3412 = vmatprep.subr.mxu0 0.0
        %3413 = vmatpush2.msra.mxu0 0.0
        %3414 = vmatprep.subr.mxu0 0.0
        %3415 = vmatpush2.msra.mxu0 0.0
        %3416 = vmatprep.subr.mxu0 0.0
        %3417 = vmatpush2.msra.mxu0 0.0
        %3418 = vmatprep.subr.mxu0 0.0
        %3419 = vmatpush2.msra.mxu0 0.0
        %3420 = vmatprep.subr.mxu0 0.0
        %3421 = vmatpush2.msra.mxu0 0.0
        %3422 = vmatprep.subr.mxu0 0.0
        %3423 = vmatpush2.msra.mxu0 0.0
        %3424 = vmatprep.mubr.f32.mxu0 0.0
        %3425 = vmatmul.mubr.f32.gmra.mxu0 %v3271
        %v3426 = vpop.f32.mrf.mxu0
        %v3427 = vadd.f32 0.0, %v3426
        %v3428 = vpop.f32.mrf.mxu0
        %3429 = vmatprep.mubr.f32.mxu0 0.0
        %3430 = vmatmul.mubr.f32.gmra.mxu0 %v3274
        %v3431 = vpop.f32.mrf.mxu0
        %v3432 = vadd.f32 0.0, %v3431
        %v3433 = vpop.f32.mrf.mxu0
        %3434 = vmatprep.mubr.f32.mxu0 0.0
        %3435 = vmatmul.mubr.f32.gmra.mxu0 %v3277
        %v3436 = vpop.f32.mrf.mxu0
        %v3437 = vadd.f32 0.0, %v3436
        %v3438 = vpop.f32.mrf.mxu0
        %3439 = vmatprep.mubr.f32.mxu0 0.0
        %3440 = vmatmul.mubr.f32.gmra.mxu0 %v3280
        %v3441 = vpop.f32.mrf.mxu0
        %v3442 = vadd.f32 0.0, %v3441
        %v3443 = vpop.f32.mrf.mxu0
        %3444 = vmatprep.mubr.f32.mxu0 0.0
        %3445 = vmatmul.mubr.f32.gmra.mxu0 %v3283
        %v3446 = vpop.f32.mrf.mxu0
        %v3447 = vadd.f32 0.0, %v3446
        %v3448 = vpop.f32.mrf.mxu0
        %3449 = vmatprep.mubr.f32.mxu0 0.0
        %3450 = vmatmul.mubr.f32.gmra.mxu0 %v3286
        %v3451 = vpop.f32.mrf.mxu0
        %v3452 = vadd.f32 0.0, %v3451
        %v3453 = vpop.f32.mrf.mxu0
        %3454 = vmatprep.mubr.f32.mxu0 0.0
        %3455 = vmatmul.mubr.f32.gmra.mxu0 %v3289
        %v3456 = vpop.f32.mrf.mxu0
        %v3457 = vadd.f32 0.0, %v3456
        %v3458 = vpop.f32.mrf.mxu0
        %3459 = vmatprep.mubr.f32.mxu0 0.0
        %3460 = vmatmul.mubr.f32.gmra.mxu0 %v3292
        %v3461 = vpop.f32.mrf.mxu0
        %v3462 = vadd.f32 0.0, %v3461
        %v3463 = vpop.f32.mrf.mxu0
        %3464 = vmatprep.mubr.f32.mxu0 0.0
        %3465 = vmatmul.mubr.f32.gmra.mxu0 %v3295
        %v3466 = vpop.f32.mrf.mxu0
        %v3467 = vadd.f32 0.0, %v3466
        %v3468 = vpop.f32.mrf.mxu0
        %3469 = vmatprep.mubr.f32.mxu0 0.0
        %3470 = vmatmul.mubr.f32.gmra.mxu0 %v3298
        %v3471 = vpop.f32.mrf.mxu0
        %v3472 = vadd.f32 0.0, %v3471
        %v3473 = vpop.f32.mrf.mxu0
        %3474 = vmatprep.mubr.f32.mxu0 0.0
        %3475 = vmatmul.mubr.f32.gmra.mxu0 %v3301
        %v3476 = vpop.f32.mrf.mxu0
        %v3477 = vadd.f32 0.0, %v3476
        %v3478 = vpop.f32.mrf.mxu0
        %3479 = vmatprep.mubr.f32.mxu0 0.0
        %3480 = vmatmul.mubr.f32.gmra.mxu0 %v3304
        %v3481 = vpop.f32.mrf.mxu0
        %v3482 = vadd.f32 0.0, %v3481
        %v3483 = vpop.f32.mrf.mxu0
        %3484 = vmatprep.mubr.f32.mxu0 0.0
        %3485 = vmatmul.mubr.f32.gmra.mxu0 %v3307
        %v3486 = vpop.f32.mrf.mxu0
        %v3487 = vadd.f32 0.0, %v3486
        %v3488 = vpop.f32.mrf.mxu0
        %3489 = vmatprep.mubr.f32.mxu0 0.0
        %3490 = vmatmul.mubr.f32.gmra.mxu0 %v3310
        %v3491 = vpop.f32.mrf.mxu0
        %v3492 = vadd.f32 0.0, %v3491
        %v3493 = vpop.f32.mrf.mxu0
        %3494 = vmatprep.mubr.f32.mxu0 0.0
        %3495 = vmatmul.mubr.f32.gmra.mxu0 %v3313
        %v3496 = vpop.f32.mrf.mxu0
        %v3497 = vadd.f32 0.0, %v3496
        %v3498 = vpop.f32.mrf.mxu0
        %3499 = vmatprep.mubr.f32.mxu0 0.0
        %3500 = vmatmul.mubr.f32.gmra.mxu0 %v3316
        %v3501 = vpop.f32.mrf.mxu0
        %v3502 = vadd.f32 0.0, %v3501
        %v3503 = vpop.f32.mrf.mxu0
        %3504 = vmatprep.mubr.f32.mxu0 0.0
        %3505 = vmatmul.mubr.f32.gmra.mxu0 %v3319
        %v3506 = vpop.f32.mrf.mxu0
        %v3507 = vadd.f32 0.0, %v3506
        %v3508 = vpop.f32.mrf.mxu0
        %3509 = vmatprep.mubr.f32.mxu0 0.0
        %3510 = vmatmul.mubr.f32.gmra.mxu0 %v3322
        %v3511 = vpop.f32.mrf.mxu0
        %v3512 = vadd.f32 0.0, %v3511
        %v3513 = vpop.f32.mrf.mxu0
        %3514 = vmatprep.mubr.f32.mxu0 0.0
        %3515 = vmatmul.mubr.f32.gmra.mxu0 %v3325
        %v3516 = vpop.f32.mrf.mxu0
        %v3517 = vadd.f32 0.0, %v3516
        %v3518 = vpop.f32.mrf.mxu0
        %3519 = vmatprep.mubr.f32.mxu0 0.0
        %3520 = vmatmul.mubr.f32.gmra.mxu0 %v3328
        %v3521 = vpop.f32.mrf.mxu0
        %v3522 = vadd.f32 0.0, %v3521
        %v3523 = vpop.f32.mrf.mxu0
        %3524 = vmatprep.mubr.f32.mxu0 0.0
        %3525 = vmatmul.mubr.f32.gmra.mxu0 %v3331
        %v3526 = vpop.f32.mrf.mxu0
        %v3527 = vadd.f32 0.0, %v3526
        %v3528 = vpop.f32.mrf.mxu0
        %3529 = vmatprep.mubr.f32.mxu0 0.0
        %3530 = vmatmul.mubr.f32.gmra.mxu0 %v3334
        %v3531 = vpop.f32.mrf.mxu0
        %v3532 = vadd.f32 0.0, %v3531
        %v3533 = vpop.f32.mrf.mxu0
        %3534 = vmatprep.mubr.f32.mxu0 0.0
        %3535 = vmatmul.mubr.f32.gmra.mxu0 %v3337
        %v3536 = vpop.f32.mrf.mxu0
        %v3537 = vadd.f32 0.0, %v3536
        %v3538 = vpop.f32.mrf.mxu0
        %3539 = vmatprep.mubr.f32.mxu0 0.0
        %3540 = vmatmul.mubr.f32.gmra.mxu0 %v3340
        %v3541 = vpop.f32.mrf.mxu0
        %v3542 = vadd.f32 0.0, %v3541
        %v3543 = vpop.f32.mrf.mxu0
        %3544 = vmatprep.mubr.f32.mxu0 0.0
        %3545 = vmatmul.mubr.f32.gmra.mxu0 %v3343
        %v3546 = vpop.f32.mrf.mxu0
        %v3547 = vadd.f32 0.0, %v3546
        %v3548 = vpop.f32.mrf.mxu0
        %3549 = vmatprep.mubr.f32.mxu0 0.0
        %3550 = vmatmul.mubr.f32.gmra.mxu0 %v3346
        %v3551 = vpop.f32.mrf.mxu0
        %v3552 = vadd.f32 0.0, %v3551
        %v3553 = vpop.f32.mrf.mxu0
        %3554 = vmatprep.mubr.f32.mxu0 0.0
        %3555 = vmatmul.mubr.f32.gmra.mxu0 %v3349
        %v3556 = vpop.f32.mrf.mxu0
        %v3557 = vadd.f32 0.0, %v3556
        %v3558 = vpop.f32.mrf.mxu0
        %3559 = vmatprep.mubr.f32.mxu0 0.0
        %3560 = vmatmul.mubr.f32.gmra.mxu0 %v3352
        %v3561 = vpop.f32.mrf.mxu0
        %v3562 = vadd.f32 0.0, %v3561
        %v3563 = vpop.f32.mrf.mxu0
        %3564 = vmatprep.mubr.f32.mxu0 0.0
        %3565 = vmatmul.mubr.f32.gmra.mxu0 %v3355
        %v3566 = vpop.f32.mrf.mxu0
        %v3567 = vadd.f32 0.0, %v3566
        %v3568 = vpop.f32.mrf.mxu0
        %3569 = vmatprep.mubr.f32.mxu0 0.0
        %3570 = vmatmul.mubr.f32.gmra.mxu0 %v3358
        %v3571 = vpop.f32.mrf.mxu0
        %v3572 = vadd.f32 0.0, %v3571
        %v3573 = vpop.f32.mrf.mxu0
        %3574 = vdwg.mxu0
        %v3575 = vadd.f32 %v3020, %v3427
        %v3576 = vadd.f32 %v3021, %v3432
        %v3577 = vadd.f32 %v3022, %v3437
        %v3578 = vadd.f32 %v3023, %v3442
        %v3579 = vadd.f32 %v3024, %v3447
        %v3580 = vadd.f32 %v3025, %v3452
        %v3581 = vadd.f32 %v3026, %v3457
        %v3582 = vadd.f32 %v3027, %v3462
        %v3583 = vadd.f32 %v3028, %v3467
        %v3584 = vadd.f32 %v3029, %v3472
        %v3585 = vadd.f32 %v3030, %v3477
        %v3586 = vadd.f32 %v3031, %v3482
        %v3587 = vadd.f32 %v3032, %v3487
        %v3588 = vadd.f32 %v3033, %v3492
        %v3589 = vadd.f32 %v3034, %v3497
        %v3590 = vadd.f32 %v3035, %v3502
        %v3591 = vadd.f32 %v3036, %v3507
        %v3592 = vadd.f32 %v3037, %v3512
        %v3593 = vadd.f32 %v3038, %v3517
        %v3594 = vadd.f32 %v3039, %v3522
        %v3595 = vadd.f32 %v3040, %v3527
        %v3596 = vadd.f32 %v3041, %v3532
        %v3597 = vadd.f32 %v3042, %v3537
        %v3598 = vadd.f32 %v3043, %v3542
        %v3599 = vadd.f32 %v3044, %v3547
        %v3600 = vadd.f32 %v3045, %v3552
        %v3601 = vadd.f32 %v3046, %v3557
        %v3602 = vadd.f32 %v3047, %v3562
        %v3603 = vadd.f32 %v3048, %v3567
        %v3604 = vadd.f32 %v3049, %v3572
        %s3605 = scalar_lea.vmem %s1, 960
        %v3606 = vld [vmem:[%s3605] sm:$0xff]
        %v3607 = vld [vmem:[%s3605 + $0x8] sm:$0xff]
        %v3608 = vld [vmem:[%s3605 + $0x10] sm:$0xff]
        %v3609 = vld [vmem:[%s3605 + $0x18] sm:$0xff]
        %v3610 = vld [vmem:[%s3605 + $0x20] sm:$0xff]
        %v3611 = vld [vmem:[%s3605 + $0x28] sm:$0xff]
        %v3612 = vld [vmem:[%s3605 + $0x30] sm:$0xff]
        %v3613 = vld [vmem:[%s3605 + $0x38] sm:$0xff]
        %v3614 = vld [vmem:[%s3605 + $0x40] sm:$0xff]
        %v3615 = vld [vmem:[%s3605 + $0x48] sm:$0xff]
        %v3616 = vld [vmem:[%s3605 + $0x50] sm:$0xff]
        %v3617 = vld [vmem:[%s3605 + $0x58] sm:$0xff]
        %v3618 = vld [vmem:[%s3605 + $0x60] sm:$0xff]
        %v3619 = vld [vmem:[%s3605 + $0x68] sm:$0xff]
        %v3620 = vld [vmem:[%s3605 + $0x70] sm:$0xff]
        %v3621 = vld [vmem:[%s3605 + $0x78] sm:$0xff]
        %v3622 = vld [vmem:[%s3605 + $0x80] sm:$0xff]
        %v3623 = vld [vmem:[%s3605 + $0x88] sm:$0xff]
        %v3624 = vld [vmem:[%s3605 + $0x90] sm:$0xff]
        %v3625 = vld [vmem:[%s3605 + $0x98] sm:$0xff]
        %v3626 = vld [vmem:[%s3605 + $0xa0] sm:$0xff]
        %v3627 = vld [vmem:[%s3605 + $0xa8] sm:$0xff]
        %v3628 = vld [vmem:[%s3605 + $0xb0] sm:$0xff]
        %v3629 = vld [vmem:[%s3605 + $0xb8] sm:$0xff]
        %v3630 = vld [vmem:[%s3605 + $0xc0] sm:$0xff]
        %v3631 = vld [vmem:[%s3605 + $0xc8] sm:$0xff]
        %v3632 = vld [vmem:[%s3605 + $0xd0] sm:$0xff]
        %v3633 = vld [vmem:[%s3605 + $0xd8] sm:$0xff]
        %v3634 = vld [vmem:[%s3605 + $0xe0] sm:$0xff]
        %v3635 = vld [vmem:[%s3605 + $0xe8] sm:$0xff]
        %3637 = vset.pattern.permute.xlu0 0
        %3638 = vperm.xlu0 %3637, %v3606
        %v3639 = vpop.permute.xlu0 %3638
        %3641 = vset.pattern.permute.xlu0 0
        %3642 = vperm.xlu0 %3641, %v3607
        %v3643 = vpop.permute.xlu0 %3642
        %3645 = vset.pattern.permute.xlu0 0
        %3646 = vperm.xlu0 %3645, %v3608
        %v3647 = vpop.permute.xlu0 %3646
        %3649 = vset.pattern.permute.xlu0 0
        %3650 = vperm.xlu0 %3649, %v3609
        %v3651 = vpop.permute.xlu0 %3650
        %3653 = vset.pattern.permute.xlu0 0
        %3654 = vperm.xlu0 %3653, %v3610
        %v3655 = vpop.permute.xlu0 %3654
        %3657 = vset.pattern.permute.xlu0 0
        %3658 = vperm.xlu0 %3657, %v3611
        %v3659 = vpop.permute.xlu0 %3658
        %3661 = vset.pattern.permute.xlu0 0
        %3662 = vperm.xlu0 %3661, %v3612
        %v3663 = vpop.permute.xlu0 %3662
        %3665 = vset.pattern.permute.xlu0 0
        %3666 = vperm.xlu0 %3665, %v3613
        %v3667 = vpop.permute.xlu0 %3666
        %3669 = vset.pattern.permute.xlu0 0
        %3670 = vperm.xlu0 %3669, %v3614
        %v3671 = vpop.permute.xlu0 %3670
        %3673 = vset.pattern.permute.xlu0 0
        %3674 = vperm.xlu0 %3673, %v3615
        %v3675 = vpop.permute.xlu0 %3674
        %3677 = vset.pattern.permute.xlu0 0
        %3678 = vperm.xlu0 %3677, %v3616
        %v3679 = vpop.permute.xlu0 %3678
        %3681 = vset.pattern.permute.xlu0 0
        %3682 = vperm.xlu0 %3681, %v3617
        %v3683 = vpop.permute.xlu0 %3682
        %3685 = vset.pattern.permute.xlu0 0
        %3686 = vperm.xlu0 %3685, %v3618
        %v3687 = vpop.permute.xlu0 %3686
        %3689 = vset.pattern.permute.xlu0 0
        %3690 = vperm.xlu0 %3689, %v3619
        %v3691 = vpop.permute.xlu0 %3690
        %3693 = vset.pattern.permute.xlu0 0
        %3694 = vperm.xlu0 %3693, %v3620
        %v3695 = vpop.permute.xlu0 %3694
        %3697 = vset.pattern.permute.xlu0 0
        %3698 = vperm.xlu0 %3697, %v3621
        %v3699 = vpop.permute.xlu0 %3698
        %3701 = vset.pattern.permute.xlu0 0
        %3702 = vperm.xlu0 %3701, %v3622
        %v3703 = vpop.permute.xlu0 %3702
        %3705 = vset.pattern.permute.xlu0 0
        %3706 = vperm.xlu0 %3705, %v3623
        %v3707 = vpop.permute.xlu0 %3706
        %3709 = vset.pattern.permute.xlu0 0
        %3710 = vperm.xlu0 %3709, %v3624
        %v3711 = vpop.permute.xlu0 %3710
        %3713 = vset.pattern.permute.xlu0 0
        %3714 = vperm.xlu0 %3713, %v3625
        %v3715 = vpop.permute.xlu0 %3714
        %3717 = vset.pattern.permute.xlu0 0
        %3718 = vperm.xlu0 %3717, %v3626
        %v3719 = vpop.permute.xlu0 %3718
        %3721 = vset.pattern.permute.xlu0 0
        %3722 = vperm.xlu0 %3721, %v3627
        %v3723 = vpop.permute.xlu0 %3722
        %3725 = vset.pattern.permute.xlu0 0
        %3726 = vperm.xlu0 %3725, %v3628
        %v3727 = vpop.permute.xlu0 %3726
        %3729 = vset.pattern.permute.xlu0 0
        %3730 = vperm.xlu0 %3729, %v3629
        %v3731 = vpop.permute.xlu0 %3730
        %3733 = vset.pattern.permute.xlu0 0
        %3734 = vperm.xlu0 %3733, %v3630
        %v3735 = vpop.permute.xlu0 %3734
        %3737 = vset.pattern.permute.xlu0 0
        %3738 = vperm.xlu0 %3737, %v3631
        %v3739 = vpop.permute.xlu0 %3738
        %3741 = vset.pattern.permute.xlu0 0
        %3742 = vperm.xlu0 %3741, %v3632
        %v3743 = vpop.permute.xlu0 %3742
        %3745 = vset.pattern.permute.xlu0 0
        %3746 = vperm.xlu0 %3745, %v3633
        %v3747 = vpop.permute.xlu0 %3746
        %3749 = vset.pattern.permute.xlu0 0
        %3750 = vperm.xlu0 %3749, %v3634
        %v3751 = vpop.permute.xlu0 %3750
        %3753 = vset.pattern.permute.xlu0 0
        %3754 = vperm.xlu0 %3753, %v3635
        %v3755 = vpop.permute.xlu0 %3754
        %v3756 = vrot.slane %v3639, 7
        %v3757 = vrot.slane %v3643, 7
        %v3758 = vsel %vm1222, %v3756, %v3757
        %v3759 = vrot.slane %v3647, 7
        %v3760 = vsel %vm1222, %v3757, %v3759
        %v3761 = vrot.slane %v3651, 7
        %v3762 = vsel %vm1222, %v3759, %v3761
        %v3763 = vrot.slane %v3655, 7
        %v3764 = vsel %vm1222, %v3761, %v3763
        %v3765 = vrot.slane %v3659, 7
        %v3766 = vsel %vm1222, %v3763, %v3765
        %v3767 = vrot.slane %v3663, 7
        %v3768 = vsel %vm1222, %v3765, %v3767
        %v3769 = vrot.slane %v3667, 7
        %v3770 = vsel %vm1222, %v3767, %v3769
        %v3771 = vrot.slane %v3671, 7
        %v3772 = vsel %vm1222, %v3769, %v3771
        %v3773 = vrot.slane %v3675, 7
        %v3774 = vsel %vm1222, %v3771, %v3773
        %v3775 = vrot.slane %v3679, 7
        %v3776 = vsel %vm1222, %v3773, %v3775
        %v3777 = vrot.slane %v3683, 7
        %v3778 = vsel %vm1222, %v3775, %v3777
        %v3779 = vrot.slane %v3687, 7
        %v3780 = vsel %vm1222, %v3777, %v3779
        %v3781 = vrot.slane %v3691, 7
        %v3782 = vsel %vm1222, %v3779, %v3781
        %v3783 = vrot.slane %v3695, 7
        %v3784 = vsel %vm1222, %v3781, %v3783
        %v3785 = vrot.slane %v3699, 7
        %v3786 = vsel %vm1222, %v3783, %v3785
        %v3787 = vrot.slane %v3703, 7
        %v3788 = vsel %vm1222, %v3785, %v3787
        %v3789 = vrot.slane %v3707, 7
        %v3790 = vsel %vm1222, %v3787, %v3789
        %v3791 = vrot.slane %v3711, 7
        %v3792 = vsel %vm1222, %v3789, %v3791
        %v3793 = vrot.slane %v3715, 7
        %v3794 = vsel %vm1222, %v3791, %v3793
        %v3795 = vrot.slane %v3719, 7
        %v3796 = vsel %vm1222, %v3793, %v3795
        %v3797 = vrot.slane %v3723, 7
        %v3798 = vsel %vm1222, %v3795, %v3797
        %v3799 = vrot.slane %v3727, 7
        %v3800 = vsel %vm1222, %v3797, %v3799
        %v3801 = vrot.slane %v3731, 7
        %v3802 = vsel %vm1222, %v3799, %v3801
        %v3803 = vrot.slane %v3735, 7
        %v3804 = vsel %vm1222, %v3801, %v3803
        %v3805 = vrot.slane %v3739, 7
        %v3806 = vsel %vm1222, %v3803, %v3805
        %v3807 = vrot.slane %v3743, 7
        %v3808 = vsel %vm1222, %v3805, %v3807
        %v3809 = vrot.slane %v3747, 7
        %v3810 = vsel %vm1222, %v3807, %v3809
        %v3811 = vrot.slane %v3751, 7
        %v3812 = vsel %vm1222, %v3809, %v3811
        %v3813 = vrot.slane %v3755, 7
        %v3814 = vsel %vm1222, %v3811, %v3813
        %v3846 = vmul.f32 %v3756, 0.0
        %v3847 = vmul.f32 %v3758, 0.0
        %v3848 = vmul.f32 %v1042, %v3760
        %v3849 = vmul.f32 %v1043, %v3762
        %v3850 = vmul.f32 %v1044, %v3764
        %v3851 = vmul.f32 %v1045, %v3766
        %v3852 = vmul.f32 %v1046, %v3768
        %v3853 = vmul.f32 %v1047, %v3770
        %v3854 = vmul.f32 %v1048, %v3772
        %v3855 = vmul.f32 %v1049, %v3774
        %v3856 = vmul.f32 %v1050, %v3776
        %v3857 = vmul.f32 %v1051, %v3778
        %v3858 = vmul.f32 %v1052, %v3780
        %v3859 = vmul.f32 %v1053, %v3782
        %v3860 = vmul.f32 %v1054, %v3784
        %v3861 = vmul.f32 %v1055, %v3786
        %v3862 = vmul.f32 %v1056, %v3788
        %v3863 = vmul.f32 %v1057, %v3790
        %v3864 = vmul.f32 %v1058, %v3792
        %v3865 = vmul.f32 %v1059, %v3794
        %v3866 = vmul.f32 %v1060, %v3796
        %v3867 = vmul.f32 %v1061, %v3798
        %v3868 = vmul.f32 %v1062, %v3800
        %v3869 = vmul.f32 %v1063, %v3802
        %v3870 = vmul.f32 %v1064, %v3804
        %v3871 = vmul.f32 %v1065, %v3806
        %v3872 = vmul.f32 %v1066, %v3808
        %v3873 = vmul.f32 %v1067, %v3810
        %v3874 = vmul.f32 %v1068, %v3812
        %v3875 = vmul.f32 %v1069, %v3814
        %v3876 = vmul.f32 %v1070, %v3813
        %s3877 = scalar_lea.vmem %s4, 256
        %v3878 = vld [vmem:[%s3877] sm:$0xff]
        %v3879 = vld [vmem:[%s3877 + $0x8] sm:$0xff]
        %v3880 = vld [vmem:[%s3877 + $0x10] sm:$0xff]
        %v3881 = vld [vmem:[%s3877 + $0x18] sm:$0xff]
        %v3882 = vld [vmem:[%s3877 + $0x20] sm:$0xff]
        %v3883 = vld [vmem:[%s3877 + $0x28] sm:$0xff]
        %v3884 = vld [vmem:[%s3877 + $0x30] sm:$0xff]
        %v3885 = vld [vmem:[%s3877 + $0x38] sm:$0xff]
        %v3917 = vrot.slane %v3846, 1
        %v3918 = vrot.slane %v3847, 1
        %v3919 = vsel %vm553, %v3917, %v3918
        %v3920 = vrot.slane %v3848, 1
        %v3921 = vsel %vm553, %v3918, %v3920
        %v3922 = vrot.slane %v3849, 1
        %v3923 = vsel %vm553, %v3920, %v3922
        %v3924 = vrot.slane %v3850, 1
        %v3925 = vsel %vm553, %v3922, %v3924
        %v3926 = vrot.slane %v3851, 1
        %v3927 = vsel %vm553, %v3924, %v3926
        %v3928 = vrot.slane %v3852, 1
        %v3929 = vsel %vm553, %v3926, %v3928
        %v3930 = vrot.slane %v3853, 1
        %v3931 = vsel %vm553, %v3928, %v3930
        %v3932 = vrot.slane %v3854, 1
        %v3933 = vsel %vm553, %v3930, %v3932
        %v3934 = vrot.slane %v3855, 1
        %v3935 = vsel %vm553, %v3932, %v3934
        %v3936 = vrot.slane %v3856, 1
        %v3937 = vsel %vm553, %v3934, %v3936
        %v3938 = vrot.slane %v3857, 1
        %v3939 = vsel %vm553, %v3936, %v3938
        %v3940 = vrot.slane %v3858, 1
        %v3941 = vsel %vm553, %v3938, %v3940
        %v3942 = vrot.slane %v3859, 1
        %v3943 = vsel %vm553, %v3940, %v3942
        %v3944 = vrot.slane %v3860, 1
        %v3945 = vsel %vm553, %v3942, %v3944
        %v3946 = vrot.slane %v3861, 1
        %v3947 = vsel %vm553, %v3944, %v3946
        %v3948 = vrot.slane %v3862, 1
        %v3949 = vsel %vm553, %v3946, %v3948
        %v3950 = vrot.slane %v3863, 1
        %v3951 = vsel %vm553, %v3948, %v3950
        %v3952 = vrot.slane %v3864, 1
        %v3953 = vsel %vm553, %v3950, %v3952
        %v3954 = vrot.slane %v3865, 1
        %v3955 = vsel %vm553, %v3952, %v3954
        %v3956 = vrot.slane %v3866, 1
        %v3957 = vsel %vm553, %v3954, %v3956
        %v3958 = vrot.slane %v3867, 1
        %v3959 = vsel %vm553, %v3956, %v3958
        %v3960 = vrot.slane %v3868, 1
        %v3961 = vsel %vm553, %v3958, %v3960
        %v3962 = vrot.slane %v3869, 1
        %v3963 = vsel %vm553, %v3960, %v3962
        %v3964 = vrot.slane %v3870, 1
        %v3965 = vsel %vm553, %v3962, %v3964
        %v3966 = vrot.slane %v3871, 1
        %v3967 = vsel %vm553, %v3964, %v3966
        %v3968 = vrot.slane %v3872, 1
        %v3969 = vsel %vm553, %v3966, %v3968
        %v3970 = vrot.slane %v3873, 1
        %v3971 = vsel %vm553, %v3968, %v3970
        %v3972 = vrot.slane %v3874, 1
        %v3973 = vsel %vm553, %v3970, %v3972
        %v3974 = vrot.slane %v3875, 1
        %v3975 = vsel %vm553, %v3972, %v3974
        %v3976 = vrot.slane %v3876, 1
        %v3977 = vsel %vm553, %v3974, %v3976
        %v3978 = vsel %vm1727, %v3919, 0
        %v3980 = vsel %vm1727, %v3921, 0
        %v3982 = vsel %vm1727, %v3923, 0
        %v3984 = vsel %vm1727, %v3925, 0
        %v3986 = vsel %vm1727, %v3927, 0
        %v3988 = vsel %vm1727, %v3929, 0
        %v3990 = vsel %vm1727, %v3931, 0
        %v3992 = vsel %vm1727, %v3933, 0
        %v3994 = vsel %vm1727, %v3935, 0
        %v3996 = vsel %vm1727, %v3937, 0
        %v3998 = vsel %vm1727, %v3939, 0
        %v4000 = vsel %vm1727, %v3941, 0
        %v4002 = vsel %vm1727, %v3943, 0
        %v4004 = vsel %vm1727, %v3945, 0
        %v4006 = vsel %vm1727, %v3947, 0
        %v4008 = vsel %vm1727, %v3949, 0
        %v4010 = vsel %vm1727, %v3951, 0
        %v4012 = vsel %vm1727, %v3953, 0
        %v4014 = vsel %vm1727, %v3955, 0
        %v4016 = vsel %vm1727, %v3957, 0
        %v4018 = vsel %vm1727, %v3959, 0
        %v4020 = vsel %vm1727, %v3961, 0
        %v4022 = vsel %vm1727, %v3963, 0
        %v4024 = vsel %vm1727, %v3965, 0
        %v4026 = vsel %vm1727, %v3967, 0
        %v4028 = vsel %vm1727, %v3969, 0
        %v4030 = vsel %vm1727, %v3971, 0
        %v4032 = vsel %vm1727, %v3973, 0
        %v4034 = vsel %vm1727, %v3975, 0
        %v4036 = vsel %vm1727, %v3977, 0
        %4038 = vmatprep.subr.mxu0 0.0
        %4039 = vmatpush1.msra.mxu0 0.0
        %4040 = vmatprep.subr.mxu0 0.0
        %4041 = vmatpush1.msra.mxu0 0.0
        %4042 = vmatprep.subr.mxu0 0.0
        %4043 = vmatpush1.msra.mxu0 0.0
        %4044 = vmatprep.subr.mxu0 0.0
        %4045 = vmatpush1.msra.mxu0 0.0
        %4046 = vmatprep.subr.mxu0 0.0
        %4047 = vmatpush1.msra.mxu0 0.0
        %4048 = vmatprep.subr.mxu0 0.0
        %4049 = vmatpush1.msra.mxu0 0.0
        %4050 = vmatprep.subr.mxu0 0.0
        %4051 = vmatpush1.msra.mxu0 0.0
        %4052 = vmatprep.subr.mxu0 0.0
        %4053 = vmatpush1.msra.mxu0 0.0
        %4054 = vmatprep.subr.mxu0 0.0
        %4055 = vmatpush1.msra.mxu0 %v3885
        %4056 = vmatprep.subr.mxu0 0.0
        %4057 = vmatpush1.msra.mxu0 %v3884
        %4058 = vmatprep.subr.mxu0 0.0
        %4059 = vmatpush1.msra.mxu0 %v3883
        %4060 = vmatprep.subr.mxu0 0.0
        %4061 = vmatpush1.msra.mxu0 %v3882
        %4062 = vmatprep.subr.mxu0 0.0
        %4063 = vmatpush1.msra.mxu0 %v3881
        %4064 = vmatprep.subr.mxu0 0.0
        %4065 = vmatpush1.msra.mxu0 %v3880
        %4066 = vmatprep.subr.mxu0 0.0
        %4067 = vmatpush1.msra.mxu0 %v3879
        %4068 = vmatprep.subr.mxu0 0.0
        %4069 = vmatpush1.msra.mxu0 %v3878
        %4070 = vmatprep.subr.mxu0 0.0
        %4071 = vmatpush2.msra.mxu0 0.0
        %4072 = vmatprep.subr.mxu0 0.0
        %4073 = vmatpush2.msra.mxu0 0.0
        %4074 = vmatprep.subr.mxu0 0.0
        %4075 = vmatpush2.msra.mxu0 0.0
        %4076 = vmatprep.subr.mxu0 0.0
        %4077 = vmatpush2.msra.mxu0 0.0
        %4078 = vmatprep.subr.mxu0 0.0
        %4079 = vmatpush2.msra.mxu0 0.0
        %4080 = vmatprep.subr.mxu0 0.0
        %4081 = vmatpush2.msra.mxu0 0.0
        %4082 = vmatprep.subr.mxu0 0.0
        %4083 = vmatpush2.msra.mxu0 0.0
        %4084 = vmatprep.subr.mxu0 0.0
        %4085 = vmatpush2.msra.mxu0 0.0
        %4086 = vmatprep.subr.mxu0 0.0
        %4087 = vmatpush2.msra.mxu0 0.0
        %4088 = vmatprep.subr.mxu0 0.0
        %4089 = vmatpush2.msra.mxu0 0.0
        %4090 = vmatprep.subr.mxu0 0.0
        %4091 = vmatpush2.msra.mxu0 0.0
        %4092 = vmatprep.subr.mxu0 0.0
        %4093 = vmatpush2.msra.mxu0 0.0
        %4094 = vmatprep.subr.mxu0 0.0
        %4095 = vmatpush2.msra.mxu0 0.0
        %4096 = vmatprep.subr.mxu0 0.0
        %4097 = vmatpush2.msra.mxu0 0.0
        %4098 = vmatprep.subr.mxu0 0.0
        %4099 = vmatpush2.msra.mxu0 0.0
        %4100 = vmatprep.subr.mxu0 0.0
        %4101 = vmatpush2.msra.mxu0 0.0
        %4102 = vmatprep.mubr.f32.mxu0 0.0
        %4103 = vmatmul.mubr.f32.gmra.mxu0 %v3978
        %v4104 = vpop.f32.mrf.mxu0
        %v4105 = vadd.f32 0.0, %v4104
        %v4106 = vpop.f32.mrf.mxu0
        %4107 = vmatprep.mubr.f32.mxu0 0.0
        %4108 = vmatmul.mubr.f32.gmra.mxu0 %v3980
        %v4109 = vpop.f32.mrf.mxu0
        %v4110 = vadd.f32 0.0, %v4109
        %v4111 = vpop.f32.mrf.mxu0
        %4112 = vmatprep.mubr.f32.mxu0 0.0
        %4113 = vmatmul.mubr.f32.gmra.mxu0 %v3982
        %v4114 = vpop.f32.mrf.mxu0
        %v4115 = vadd.f32 0.0, %v4114
        %v4116 = vpop.f32.mrf.mxu0
        %4117 = vmatprep.mubr.f32.mxu0 0.0
        %4118 = vmatmul.mubr.f32.gmra.mxu0 %v3984
        %v4119 = vpop.f32.mrf.mxu0
        %v4120 = vadd.f32 0.0, %v4119
        %v4121 = vpop.f32.mrf.mxu0
        %4122 = vmatprep.mubr.f32.mxu0 0.0
        %4123 = vmatmul.mubr.f32.gmra.mxu0 %v3986
        %v4124 = vpop.f32.mrf.mxu0
        %v4125 = vadd.f32 0.0, %v4124
        %v4126 = vpop.f32.mrf.mxu0
        %4127 = vmatprep.mubr.f32.mxu0 0.0
        %4128 = vmatmul.mubr.f32.gmra.mxu0 %v3988
        %v4129 = vpop.f32.mrf.mxu0
        %v4130 = vadd.f32 0.0, %v4129
        %v4131 = vpop.f32.mrf.mxu0
        %4132 = vmatprep.mubr.f32.mxu0 0.0
        %4133 = vmatmul.mubr.f32.gmra.mxu0 %v3990
        %v4134 = vpop.f32.mrf.mxu0
        %v4135 = vadd.f32 0.0, %v4134
        %v4136 = vpop.f32.mrf.mxu0
        %4137 = vmatprep.mubr.f32.mxu0 0.0
        %4138 = vmatmul.mubr.f32.gmra.mxu0 %v3992
        %v4139 = vpop.f32.mrf.mxu0
        %v4140 = vadd.f32 0.0, %v4139
        %v4141 = vpop.f32.mrf.mxu0
        %4142 = vmatprep.mubr.f32.mxu0 0.0
        %4143 = vmatmul.mubr.f32.gmra.mxu0 %v3994
        %v4144 = vpop.f32.mrf.mxu0
        %v4145 = vadd.f32 0.0, %v4144
        %v4146 = vpop.f32.mrf.mxu0
        %4147 = vmatprep.mubr.f32.mxu0 0.0
        %4148 = vmatmul.mubr.f32.gmra.mxu0 %v3996
        %v4149 = vpop.f32.mrf.mxu0
        %v4150 = vadd.f32 0.0, %v4149
        %v4151 = vpop.f32.mrf.mxu0
        %4152 = vmatprep.mubr.f32.mxu0 0.0
        %4153 = vmatmul.mubr.f32.gmra.mxu0 %v3998
        %v4154 = vpop.f32.mrf.mxu0
        %v4155 = vadd.f32 0.0, %v4154
        %v4156 = vpop.f32.mrf.mxu0
        %4157 = vmatprep.mubr.f32.mxu0 0.0
        %4158 = vmatmul.mubr.f32.gmra.mxu0 %v4000
        %v4159 = vpop.f32.mrf.mxu0
        %v4160 = vadd.f32 0.0, %v4159
        %v4161 = vpop.f32.mrf.mxu0
        %4162 = vmatprep.mubr.f32.mxu0 0.0
        %4163 = vmatmul.mubr.f32.gmra.mxu0 %v4002
        %v4164 = vpop.f32.mrf.mxu0
        %v4165 = vadd.f32 0.0, %v4164
        %v4166 = vpop.f32.mrf.mxu0
        %4167 = vmatprep.mubr.f32.mxu0 0.0
        %4168 = vmatmul.mubr.f32.gmra.mxu0 %v4004
        %v4169 = vpop.f32.mrf.mxu0
        %v4170 = vadd.f32 0.0, %v4169
        %v4171 = vpop.f32.mrf.mxu0
        %4172 = vmatprep.mubr.f32.mxu0 0.0
        %4173 = vmatmul.mubr.f32.gmra.mxu0 %v4006
        %v4174 = vpop.f32.mrf.mxu0
        %v4175 = vadd.f32 0.0, %v4174
        %v4176 = vpop.f32.mrf.mxu0
        %4177 = vmatprep.mubr.f32.mxu0 0.0
        %4178 = vmatmul.mubr.f32.gmra.mxu0 %v4008
        %v4179 = vpop.f32.mrf.mxu0
        %v4180 = vadd.f32 0.0, %v4179
        %v4181 = vpop.f32.mrf.mxu0
        %4182 = vmatprep.mubr.f32.mxu0 0.0
        %4183 = vmatmul.mubr.f32.gmra.mxu0 %v4010
        %v4184 = vpop.f32.mrf.mxu0
        %v4185 = vadd.f32 0.0, %v4184
        %v4186 = vpop.f32.mrf.mxu0
        %4187 = vmatprep.mubr.f32.mxu0 0.0
        %4188 = vmatmul.mubr.f32.gmra.mxu0 %v4012
        %v4189 = vpop.f32.mrf.mxu0
        %v4190 = vadd.f32 0.0, %v4189
        %v4191 = vpop.f32.mrf.mxu0
        %4192 = vmatprep.mubr.f32.mxu0 0.0
        %4193 = vmatmul.mubr.f32.gmra.mxu0 %v4014
        %v4194 = vpop.f32.mrf.mxu0
        %v4195 = vadd.f32 0.0, %v4194
        %v4196 = vpop.f32.mrf.mxu0
        %4197 = vmatprep.mubr.f32.mxu0 0.0
        %4198 = vmatmul.mubr.f32.gmra.mxu0 %v4016
        %v4199 = vpop.f32.mrf.mxu0
        %v4200 = vadd.f32 0.0, %v4199
        %v4201 = vpop.f32.mrf.mxu0
        %4202 = vmatprep.mubr.f32.mxu0 0.0
        %4203 = vmatmul.mubr.f32.gmra.mxu0 %v4018
        %v4204 = vpop.f32.mrf.mxu0
        %v4205 = vadd.f32 0.0, %v4204
        %v4206 = vpop.f32.mrf.mxu0
        %4207 = vmatprep.mubr.f32.mxu0 0.0
        %4208 = vmatmul.mubr.f32.gmra.mxu0 %v4020
        %v4209 = vpop.f32.mrf.mxu0
        %v4210 = vadd.f32 0.0, %v4209
        %v4211 = vpop.f32.mrf.mxu0
        %4212 = vmatprep.mubr.f32.mxu0 0.0
        %4213 = vmatmul.mubr.f32.gmra.mxu0 %v4022
        %v4214 = vpop.f32.mrf.mxu0
        %v4215 = vadd.f32 0.0, %v4214
        %v4216 = vpop.f32.mrf.mxu0
        %4217 = vmatprep.mubr.f32.mxu0 0.0
        %4218 = vmatmul.mubr.f32.gmra.mxu0 %v4024
        %v4219 = vpop.f32.mrf.mxu0
        %v4220 = vadd.f32 0.0, %v4219
        %v4221 = vpop.f32.mrf.mxu0
        %4222 = vmatprep.mubr.f32.mxu0 0.0
        %4223 = vmatmul.mubr.f32.gmra.mxu0 %v4026
        %v4224 = vpop.f32.mrf.mxu0
        %v4225 = vadd.f32 0.0, %v4224
        %v4226 = vpop.f32.mrf.mxu0
        %4227 = vmatprep.mubr.f32.mxu0 0.0
        %4228 = vmatmul.mubr.f32.gmra.mxu0 %v4028
        %v4229 = vpop.f32.mrf.mxu0
        %v4230 = vadd.f32 0.0, %v4229
        %v4231 = vpop.f32.mrf.mxu0
        %4232 = vmatprep.mubr.f32.mxu0 0.0
        %4233 = vmatmul.mubr.f32.gmra.mxu0 %v4030
        %v4234 = vpop.f32.mrf.mxu0
        %v4235 = vadd.f32 0.0, %v4234
        %v4236 = vpop.f32.mrf.mxu0
        %4237 = vmatprep.mubr.f32.mxu0 0.0
        %4238 = vmatmul.mubr.f32.gmra.mxu0 %v4032
        %v4239 = vpop.f32.mrf.mxu0
        %v4240 = vadd.f32 0.0, %v4239
        %v4241 = vpop.f32.mrf.mxu0
        %4242 = vmatprep.mubr.f32.mxu0 0.0
        %4243 = vmatmul.mubr.f32.gmra.mxu0 %v4034
        %v4244 = vpop.f32.mrf.mxu0
        %v4245 = vadd.f32 0.0, %v4244
        %v4246 = vpop.f32.mrf.mxu0
        %4247 = vmatprep.mubr.f32.mxu0 0.0
        %4248 = vmatmul.mubr.f32.gmra.mxu0 %v4036
        %v4249 = vpop.f32.mrf.mxu0
        %v4250 = vadd.f32 0.0, %v4249
        %v4251 = vpop.f32.mrf.mxu0
        %4252 = vdwg.mxu0
        %v4253 = vadd.f32 %v3575, %v4105
        %v4254 = vadd.f32 %v3576, %v4110
        %v4255 = vadd.f32 %v3577, %v4115
        %v4256 = vadd.f32 %v3578, %v4120
        %v4257 = vadd.f32 %v3579, %v4125
        %v4258 = vadd.f32 %v3580, %v4130
        %v4259 = vadd.f32 %v3581, %v4135
        %v4260 = vadd.f32 %v3582, %v4140
        %v4261 = vadd.f32 %v3583, %v4145
        %v4262 = vadd.f32 %v3584, %v4150
        %v4263 = vadd.f32 %v3585, %v4155
        %v4264 = vadd.f32 %v3586, %v4160
        %v4265 = vadd.f32 %v3587, %v4165
        %v4266 = vadd.f32 %v3588, %v4170
        %v4267 = vadd.f32 %v3589, %v4175
        %v4268 = vadd.f32 %v3590, %v4180
        %v4269 = vadd.f32 %v3591, %v4185
        %v4270 = vadd.f32 %v3592, %v4190
        %v4271 = vadd.f32 %v3593, %v4195
        %v4272 = vadd.f32 %v3594, %v4200
        %v4273 = vadd.f32 %v3595, %v4205
        %v4274 = vadd.f32 %v3596, %v4210
        %v4275 = vadd.f32 %v3597, %v4215
        %v4276 = vadd.f32 %v3598, %v4220
        %v4277 = vadd.f32 %v3599, %v4225
        %v4278 = vadd.f32 %v3600, %v4230
        %v4279 = vadd.f32 %v3601, %v4235
        %v4280 = vadd.f32 %v3602, %v4240
        %v4281 = vadd.f32 %v3603, %v4245
        %v4282 = vadd.f32 %v3604, %v4250
        %s4283 = scalar_lea.vmem %s1, 1200
        %v4284 = vld [vmem:[%s4283] sm:$0xff]
        %v4285 = vld [vmem:[%s4283 + $0x8] sm:$0xff]
        %v4286 = vld [vmem:[%s4283 + $0x10] sm:$0xff]
        %v4287 = vld [vmem:[%s4283 + $0x18] sm:$0xff]
        %v4288 = vld [vmem:[%s4283 + $0x20] sm:$0xff]
        %v4289 = vld [vmem:[%s4283 + $0x28] sm:$0xff]
        %v4290 = vld [vmem:[%s4283 + $0x30] sm:$0xff]
        %v4291 = vld [vmem:[%s4283 + $0x38] sm:$0xff]
        %v4292 = vld [vmem:[%s4283 + $0x40] sm:$0xff]
        %v4293 = vld [vmem:[%s4283 + $0x48] sm:$0xff]
        %v4294 = vld [vmem:[%s4283 + $0x50] sm:$0xff]
        %v4295 = vld [vmem:[%s4283 + $0x58] sm:$0xff]
        %v4296 = vld [vmem:[%s4283 + $0x60] sm:$0xff]
        %v4297 = vld [vmem:[%s4283 + $0x68] sm:$0xff]
        %v4298 = vld [vmem:[%s4283 + $0x70] sm:$0xff]
        %v4299 = vld [vmem:[%s4283 + $0x78] sm:$0xff]
        %v4300 = vld [vmem:[%s4283 + $0x80] sm:$0xff]
        %v4301 = vld [vmem:[%s4283 + $0x88] sm:$0xff]
        %v4302 = vld [vmem:[%s4283 + $0x90] sm:$0xff]
        %v4303 = vld [vmem:[%s4283 + $0x98] sm:$0xff]
        %v4304 = vld [vmem:[%s4283 + $0xa0] sm:$0xff]
        %v4305 = vld [vmem:[%s4283 + $0xa8] sm:$0xff]
        %v4306 = vld [vmem:[%s4283 + $0xb0] sm:$0xff]
        %v4307 = vld [vmem:[%s4283 + $0xb8] sm:$0xff]
        %v4308 = vld [vmem:[%s4283 + $0xc0] sm:$0xff]
        %v4309 = vld [vmem:[%s4283 + $0xc8] sm:$0xff]
        %v4310 = vld [vmem:[%s4283 + $0xd0] sm:$0xff]
        %v4311 = vld [vmem:[%s4283 + $0xd8] sm:$0xff]
        %v4312 = vld [vmem:[%s4283 + $0xe0] sm:$0xff]
        %v4313 = vld [vmem:[%s4283 + $0xe8] sm:$0xff]
        %4315 = vset.pattern.permute.xlu0 0
        %4316 = vperm.xlu0 %4315, %v4284
        %v4317 = vpop.permute.xlu0 %4316
        %4319 = vset.pattern.permute.xlu0 0
        %4320 = vperm.xlu0 %4319, %v4285
        %v4321 = vpop.permute.xlu0 %4320
        %4323 = vset.pattern.permute.xlu0 0
        %4324 = vperm.xlu0 %4323, %v4286
        %v4325 = vpop.permute.xlu0 %4324
        %4327 = vset.pattern.permute.xlu0 0
        %4328 = vperm.xlu0 %4327, %v4287
        %v4329 = vpop.permute.xlu0 %4328
        %4331 = vset.pattern.permute.xlu0 0
        %4332 = vperm.xlu0 %4331, %v4288
        %v4333 = vpop.permute.xlu0 %4332
        %4335 = vset.pattern.permute.xlu0 0
        %4336 = vperm.xlu0 %4335, %v4289
        %v4337 = vpop.permute.xlu0 %4336
        %4339 = vset.pattern.permute.xlu0 0
        %4340 = vperm.xlu0 %4339, %v4290
        %v4341 = vpop.permute.xlu0 %4340
        %4343 = vset.pattern.permute.xlu0 0
        %4344 = vperm.xlu0 %4343, %v4291
        %v4345 = vpop.permute.xlu0 %4344
        %4347 = vset.pattern.permute.xlu0 0
        %4348 = vperm.xlu0 %4347, %v4292
        %v4349 = vpop.permute.xlu0 %4348
        %4351 = vset.pattern.permute.xlu0 0
        %4352 = vperm.xlu0 %4351, %v4293
        %v4353 = vpop.permute.xlu0 %4352
        %4355 = vset.pattern.permute.xlu0 0
        %4356 = vperm.xlu0 %4355, %v4294
        %v4357 = vpop.permute.xlu0 %4356
        %4359 = vset.pattern.permute.xlu0 0
        %4360 = vperm.xlu0 %4359, %v4295
        %v4361 = vpop.permute.xlu0 %4360
        %4363 = vset.pattern.permute.xlu0 0
        %4364 = vperm.xlu0 %4363, %v4296
        %v4365 = vpop.permute.xlu0 %4364
        %4367 = vset.pattern.permute.xlu0 0
        %4368 = vperm.xlu0 %4367, %v4297
        %v4369 = vpop.permute.xlu0 %4368
        %4371 = vset.pattern.permute.xlu0 0
        %4372 = vperm.xlu0 %4371, %v4298
        %v4373 = vpop.permute.xlu0 %4372
        %4375 = vset.pattern.permute.xlu0 0
        %4376 = vperm.xlu0 %4375, %v4299
        %v4377 = vpop.permute.xlu0 %4376
        %4379 = vset.pattern.permute.xlu0 0
        %4380 = vperm.xlu0 %4379, %v4300
        %v4381 = vpop.permute.xlu0 %4380
        %4383 = vset.pattern.permute.xlu0 0
        %4384 = vperm.xlu0 %4383, %v4301
        %v4385 = vpop.permute.xlu0 %4384
        %4387 = vset.pattern.permute.xlu0 0
        %4388 = vperm.xlu0 %4387, %v4302
        %v4389 = vpop.permute.xlu0 %4388
        %4391 = vset.pattern.permute.xlu0 0
        %4392 = vperm.xlu0 %4391, %v4303
        %v4393 = vpop.permute.xlu0 %4392
        %4395 = vset.pattern.permute.xlu0 0
        %4396 = vperm.xlu0 %4395, %v4304
        %v4397 = vpop.permute.xlu0 %4396
        %4399 = vset.pattern.permute.xlu0 0
        %4400 = vperm.xlu0 %4399, %v4305
        %v4401 = vpop.permute.xlu0 %4400
        %4403 = vset.pattern.permute.xlu0 0
        %4404 = vperm.xlu0 %4403, %v4306
        %v4405 = vpop.permute.xlu0 %4404
        %4407 = vset.pattern.permute.xlu0 0
        %4408 = vperm.xlu0 %4407, %v4307
        %v4409 = vpop.permute.xlu0 %4408
        %4411 = vset.pattern.permute.xlu0 0
        %4412 = vperm.xlu0 %4411, %v4308
        %v4413 = vpop.permute.xlu0 %4412
        %4415 = vset.pattern.permute.xlu0 0
        %4416 = vperm.xlu0 %4415, %v4309
        %v4417 = vpop.permute.xlu0 %4416
        %4419 = vset.pattern.permute.xlu0 0
        %4420 = vperm.xlu0 %4419, %v4310
        %v4421 = vpop.permute.xlu0 %4420
        %4423 = vset.pattern.permute.xlu0 0
        %4424 = vperm.xlu0 %4423, %v4311
        %v4425 = vpop.permute.xlu0 %4424
        %4427 = vset.pattern.permute.xlu0 0
        %4428 = vperm.xlu0 %4427, %v4312
        %v4429 = vpop.permute.xlu0 %4428
        %4431 = vset.pattern.permute.xlu0 0
        %4432 = vperm.xlu0 %4431, %v4313
        %v4433 = vpop.permute.xlu0 %4432
        %v4434 = vrot.slane %v4317, 6
        %v4435 = vrot.slane %v4321, 6
        %v4436 = vsel %vm1503, %v4434, %v4435
        %v4437 = vrot.slane %v4325, 6
        %v4438 = vsel %vm1503, %v4435, %v4437
        %v4439 = vrot.slane %v4329, 6
        %v4440 = vsel %vm1503, %v4437, %v4439
        %v4441 = vrot.slane %v4333, 6
        %v4442 = vsel %vm1503, %v4439, %v4441
        %v4443 = vrot.slane %v4337, 6
        %v4444 = vsel %vm1503, %v4441, %v4443
        %v4445 = vrot.slane %v4341, 6
        %v4446 = vsel %vm1503, %v4443, %v4445
        %v4447 = vrot.slane %v4345, 6
        %v4448 = vsel %vm1503, %v4445, %v4447
        %v4449 = vrot.slane %v4349, 6
        %v4450 = vsel %vm1503, %v4447, %v4449
        %v4451 = vrot.slane %v4353, 6
        %v4452 = vsel %vm1503, %v4449, %v4451
        %v4453 = vrot.slane %v4357, 6
        %v4454 = vsel %vm1503, %v4451, %v4453
        %v4455 = vrot.slane %v4361, 6
        %v4456 = vsel %vm1503, %v4453, %v4455
        %v4457 = vrot.slane %v4365, 6
        %v4458 = vsel %vm1503, %v4455, %v4457
        %v4459 = vrot.slane %v4369, 6
        %v4460 = vsel %vm1503, %v4457, %v4459
        %v4461 = vrot.slane %v4373, 6
        %v4462 = vsel %vm1503, %v4459, %v4461
        %v4463 = vrot.slane %v4377, 6
        %v4464 = vsel %vm1503, %v4461, %v4463
        %v4465 = vrot.slane %v4381, 6
        %v4466 = vsel %vm1503, %v4463, %v4465
        %v4467 = vrot.slane %v4385, 6
        %v4468 = vsel %vm1503, %v4465, %v4467
        %v4469 = vrot.slane %v4389, 6
        %v4470 = vsel %vm1503, %v4467, %v4469
        %v4471 = vrot.slane %v4393, 6
        %v4472 = vsel %vm1503, %v4469, %v4471
        %v4473 = vrot.slane %v4397, 6
        %v4474 = vsel %vm1503, %v4471, %v4473
        %v4475 = vrot.slane %v4401, 6
        %v4476 = vsel %vm1503, %v4473, %v4475
        %v4477 = vrot.slane %v4405, 6
        %v4478 = vsel %vm1503, %v4475, %v4477
        %v4479 = vrot.slane %v4409, 6
        %v4480 = vsel %vm1503, %v4477, %v4479
        %v4481 = vrot.slane %v4413, 6
        %v4482 = vsel %vm1503, %v4479, %v4481
        %v4483 = vrot.slane %v4417, 6
        %v4484 = vsel %vm1503, %v4481, %v4483
        %v4485 = vrot.slane %v4421, 6
        %v4486 = vsel %vm1503, %v4483, %v4485
        %v4487 = vrot.slane %v4425, 6
        %v4488 = vsel %vm1503, %v4485, %v4487
        %v4489 = vrot.slane %v4429, 6
        %v4490 = vsel %vm1503, %v4487, %v4489
        %v4491 = vrot.slane %v4433, 6
        %v4492 = vsel %vm1503, %v4489, %v4491
        %v4524 = vmul.f32 %v4434, 0.0
        %v4525 = vmul.f32 %v4436, 0.0
        %v4526 = vmul.f32 %v1042, %v4438
        %v4527 = vmul.f32 %v1043, %v4440
        %v4528 = vmul.f32 %v1044, %v4442
        %v4529 = vmul.f32 %v1045, %v4444
        %v4530 = vmul.f32 %v1046, %v4446
        %v4531 = vmul.f32 %v1047, %v4448
        %v4532 = vmul.f32 %v1048, %v4450
        %v4533 = vmul.f32 %v1049, %v4452
        %v4534 = vmul.f32 %v1050, %v4454
        %v4535 = vmul.f32 %v1051, %v4456
        %v4536 = vmul.f32 %v1052, %v4458
        %v4537 = vmul.f32 %v1053, %v4460
        %v4538 = vmul.f32 %v1054, %v4462
        %v4539 = vmul.f32 %v1055, %v4464
        %v4540 = vmul.f32 %v1056, %v4466
        %v4541 = vmul.f32 %v1057, %v4468
        %v4542 = vmul.f32 %v1058, %v4470
        %v4543 = vmul.f32 %v1059, %v4472
        %v4544 = vmul.f32 %v1060, %v4474
        %v4545 = vmul.f32 %v1061, %v4476
        %v4546 = vmul.f32 %v1062, %v4478
        %v4547 = vmul.f32 %v1063, %v4480
        %v4548 = vmul.f32 %v1064, %v4482
        %v4549 = vmul.f32 %v1065, %v4484
        %v4550 = vmul.f32 %v1066, %v4486
        %v4551 = vmul.f32 %v1067, %v4488
        %v4552 = vmul.f32 %v1068, %v4490
        %v4553 = vmul.f32 %v1069, %v4492
        %v4554 = vmul.f32 %v1070, %v4491
        %s4555 = scalar_lea.vmem %s4, 320
        %v4556 = vld [vmem:[%s4555] sm:$0xff]
        %v4557 = vld [vmem:[%s4555 + $0x8] sm:$0xff]
        %v4558 = vld [vmem:[%s4555 + $0x10] sm:$0xff]
        %v4559 = vld [vmem:[%s4555 + $0x18] sm:$0xff]
        %v4560 = vld [vmem:[%s4555 + $0x20] sm:$0xff]
        %v4561 = vld [vmem:[%s4555 + $0x28] sm:$0xff]
        %v4562 = vld [vmem:[%s4555 + $0x30] sm:$0xff]
        %v4563 = vld [vmem:[%s4555 + $0x38] sm:$0xff]
        %v4595 = vrot.slane %v4524, 2
        %v4596 = vrot.slane %v4525, 2
        %v4597 = vsel %vm1665, %v4595, %v4596
        %v4598 = vrot.slane %v4526, 2
        %v4599 = vsel %vm1665, %v4596, %v4598
        %v4600 = vrot.slane %v4527, 2
        %v4601 = vsel %vm1665, %v4598, %v4600
        %v4602 = vrot.slane %v4528, 2
        %v4603 = vsel %vm1665, %v4600, %v4602
        %v4604 = vrot.slane %v4529, 2
        %v4605 = vsel %vm1665, %v4602, %v4604
        %v4606 = vrot.slane %v4530, 2
        %v4607 = vsel %vm1665, %v4604, %v4606
        %v4608 = vrot.slane %v4531, 2
        %v4609 = vsel %vm1665, %v4606, %v4608
        %v4610 = vrot.slane %v4532, 2
        %v4611 = vsel %vm1665, %v4608, %v4610
        %v4612 = vrot.slane %v4533, 2
        %v4613 = vsel %vm1665, %v4610, %v4612
        %v4614 = vrot.slane %v4534, 2
        %v4615 = vsel %vm1665, %v4612, %v4614
        %v4616 = vrot.slane %v4535, 2
        %v4617 = vsel %vm1665, %v4614, %v4616
        %v4618 = vrot.slane %v4536, 2
        %v4619 = vsel %vm1665, %v4616, %v4618
        %v4620 = vrot.slane %v4537, 2
        %v4621 = vsel %vm1665, %v4618, %v4620
        %v4622 = vrot.slane %v4538, 2
        %v4623 = vsel %vm1665, %v4620, %v4622
        %v4624 = vrot.slane %v4539, 2
        %v4625 = vsel %vm1665, %v4622, %v4624
        %v4626 = vrot.slane %v4540, 2
        %v4627 = vsel %vm1665, %v4624, %v4626
        %v4628 = vrot.slane %v4541, 2
        %v4629 = vsel %vm1665, %v4626, %v4628
        %v4630 = vrot.slane %v4542, 2
        %v4631 = vsel %vm1665, %v4628, %v4630
        %v4632 = vrot.slane %v4543, 2
        %v4633 = vsel %vm1665, %v4630, %v4632
        %v4634 = vrot.slane %v4544, 2
        %v4635 = vsel %vm1665, %v4632, %v4634
        %v4636 = vrot.slane %v4545, 2
        %v4637 = vsel %vm1665, %v4634, %v4636
        %v4638 = vrot.slane %v4546, 2
        %v4639 = vsel %vm1665, %v4636, %v4638
        %v4640 = vrot.slane %v4547, 2
        %v4641 = vsel %vm1665, %v4638, %v4640
        %v4642 = vrot.slane %v4548, 2
        %v4643 = vsel %vm1665, %v4640, %v4642
        %v4644 = vrot.slane %v4549, 2
        %v4645 = vsel %vm1665, %v4642, %v4644
        %v4646 = vrot.slane %v4550, 2
        %v4647 = vsel %vm1665, %v4644, %v4646
        %v4648 = vrot.slane %v4551, 2
        %v4649 = vsel %vm1665, %v4646, %v4648
        %v4650 = vrot.slane %v4552, 2
        %v4651 = vsel %vm1665, %v4648, %v4650
        %v4652 = vrot.slane %v4553, 2
        %v4653 = vsel %vm1665, %v4650, %v4652
        %v4654 = vrot.slane %v4554, 2
        %v4655 = vsel %vm1665, %v4652, %v4654
        %v4656 = vsel %vm1727, %v4597, 0
        %v4658 = vsel %vm1727, %v4599, 0
        %v4660 = vsel %vm1727, %v4601, 0
        %v4662 = vsel %vm1727, %v4603, 0
        %v4664 = vsel %vm1727, %v4605, 0
        %v4666 = vsel %vm1727, %v4607, 0
        %v4668 = vsel %vm1727, %v4609, 0
        %v4670 = vsel %vm1727, %v4611, 0
        %v4672 = vsel %vm1727, %v4613, 0
        %v4674 = vsel %vm1727, %v4615, 0
        %v4676 = vsel %vm1727, %v4617, 0
        %v4678 = vsel %vm1727, %v4619, 0
        %v4680 = vsel %vm1727, %v4621, 0
        %v4682 = vsel %vm1727, %v4623, 0
        %v4684 = vsel %vm1727, %v4625, 0
        %v4686 = vsel %vm1727, %v4627, 0
        %v4688 = vsel %vm1727, %v4629, 0
        %v4690 = vsel %vm1727, %v4631, 0
        %v4692 = vsel %vm1727, %v4633, 0
        %v4694 = vsel %vm1727, %v4635, 0
        %v4696 = vsel %vm1727, %v4637, 0
        %v4698 = vsel %vm1727, %v4639, 0
        %v4700 = vsel %vm1727, %v4641, 0
        %v4702 = vsel %vm1727, %v4643, 0
        %v4704 = vsel %vm1727, %v4645, 0
        %v4706 = vsel %vm1727, %v4647, 0
        %v4708 = vsel %vm1727, %v4649, 0
        %v4710 = vsel %vm1727, %v4651, 0
        %v4712 = vsel %vm1727, %v4653, 0
        %v4714 = vsel %vm1727, %v4655, 0
        %4716 = vmatprep.subr.mxu0 0.0
        %4717 = vmatpush1.msra.mxu0 0.0
        %4718 = vmatprep.subr.mxu0 0.0
        %4719 = vmatpush1.msra.mxu0 0.0
        %4720 = vmatprep.subr.mxu0 0.0
        %4721 = vmatpush1.msra.mxu0 0.0
        %4722 = vmatprep.subr.mxu0 0.0
        %4723 = vmatpush1.msra.mxu0 0.0
        %4724 = vmatprep.subr.mxu0 0.0
        %4725 = vmatpush1.msra.mxu0 0.0
        %4726 = vmatprep.subr.mxu0 0.0
        %4727 = vmatpush1.msra.mxu0 0.0
        %4728 = vmatprep.subr.mxu0 0.0
        %4729 = vmatpush1.msra.mxu0 0.0
        %4730 = vmatprep.subr.mxu0 0.0
        %4731 = vmatpush1.msra.mxu0 0.0
        %4732 = vmatprep.subr.mxu0 0.0
        %4733 = vmatpush1.msra.mxu0 %v4563
        %4734 = vmatprep.subr.mxu0 0.0
        %4735 = vmatpush1.msra.mxu0 %v4562
        %4736 = vmatprep.subr.mxu0 0.0
        %4737 = vmatpush1.msra.mxu0 %v4561
        %4738 = vmatprep.subr.mxu0 0.0
        %4739 = vmatpush1.msra.mxu0 %v4560
        %4740 = vmatprep.subr.mxu0 0.0
        %4741 = vmatpush1.msra.mxu0 %v4559
        %4742 = vmatprep.subr.mxu0 0.0
        %4743 = vmatpush1.msra.mxu0 %v4558
        %4744 = vmatprep.subr.mxu0 0.0
        %4745 = vmatpush1.msra.mxu0 %v4557
        %4746 = vmatprep.subr.mxu0 0.0
        %4747 = vmatpush1.msra.mxu0 %v4556
        %4748 = vmatprep.subr.mxu0 0.0
        %4749 = vmatpush2.msra.mxu0 0.0
        %4750 = vmatprep.subr.mxu0 0.0
        %4751 = vmatpush2.msra.mxu0 0.0
        %4752 = vmatprep.subr.mxu0 0.0
        %4753 = vmatpush2.msra.mxu0 0.0
        %4754 = vmatprep.subr.mxu0 0.0
        %4755 = vmatpush2.msra.mxu0 0.0
        %4756 = vmatprep.subr.mxu0 0.0
        %4757 = vmatpush2.msra.mxu0 0.0
        %4758 = vmatprep.subr.mxu0 0.0
        %4759 = vmatpush2.msra.mxu0 0.0
        %4760 = vmatprep.subr.mxu0 0.0
        %4761 = vmatpush2.msra.mxu0 0.0
        %4762 = vmatprep.subr.mxu0 0.0
        %4763 = vmatpush2.msra.mxu0 0.0
        %4764 = vmatprep.subr.mxu0 0.0
        %4765 = vmatpush2.msra.mxu0 0.0
        %4766 = vmatprep.subr.mxu0 0.0
        %4767 = vmatpush2.msra.mxu0 0.0
        %4768 = vmatprep.subr.mxu0 0.0
        %4769 = vmatpush2.msra.mxu0 0.0
        %4770 = vmatprep.subr.mxu0 0.0
        %4771 = vmatpush2.msra.mxu0 0.0
        %4772 = vmatprep.subr.mxu0 0.0
        %4773 = vmatpush2.msra.mxu0 0.0
        %4774 = vmatprep.subr.mxu0 0.0
        %4775 = vmatpush2.msra.mxu0 0.0
        %4776 = vmatprep.subr.mxu0 0.0
        %4777 = vmatpush2.msra.mxu0 0.0
        %4778 = vmatprep.subr.mxu0 0.0
        %4779 = vmatpush2.msra.mxu0 0.0
        %4780 = vmatprep.mubr.f32.mxu0 0.0
        %4781 = vmatmul.mubr.f32.gmra.mxu0 %v4656
        %v4782 = vpop.f32.mrf.mxu0
        %v4783 = vadd.f32 0.0, %v4782
        %v4784 = vpop.f32.mrf.mxu0
        %4785 = vmatprep.mubr.f32.mxu0 0.0
        %4786 = vmatmul.mubr.f32.gmra.mxu0 %v4658
        %v4787 = vpop.f32.mrf.mxu0
        %v4788 = vadd.f32 0.0, %v4787
        %v4789 = vpop.f32.mrf.mxu0
        %4790 = vmatprep.mubr.f32.mxu0 0.0
        %4791 = vmatmul.mubr.f32.gmra.mxu0 %v4660
        %v4792 = vpop.f32.mrf.mxu0
        %v4793 = vadd.f32 0.0, %v4792
        %v4794 = vpop.f32.mrf.mxu0
        %4795 = vmatprep.mubr.f32.mxu0 0.0
        %4796 = vmatmul.mubr.f32.gmra.mxu0 %v4662
        %v4797 = vpop.f32.mrf.mxu0
        %v4798 = vadd.f32 0.0, %v4797
        %v4799 = vpop.f32.mrf.mxu0
        %4800 = vmatprep.mubr.f32.mxu0 0.0
        %4801 = vmatmul.mubr.f32.gmra.mxu0 %v4664
        %v4802 = vpop.f32.mrf.mxu0
        %v4803 = vadd.f32 0.0, %v4802
        %v4804 = vpop.f32.mrf.mxu0
        %4805 = vmatprep.mubr.f32.mxu0 0.0
        %4806 = vmatmul.mubr.f32.gmra.mxu0 %v4666
        %v4807 = vpop.f32.mrf.mxu0
        %v4808 = vadd.f32 0.0, %v4807
        %v4809 = vpop.f32.mrf.mxu0
        %4810 = vmatprep.mubr.f32.mxu0 0.0
        %4811 = vmatmul.mubr.f32.gmra.mxu0 %v4668
        %v4812 = vpop.f32.mrf.mxu0
        %v4813 = vadd.f32 0.0, %v4812
        %v4814 = vpop.f32.mrf.mxu0
        %4815 = vmatprep.mubr.f32.mxu0 0.0
        %4816 = vmatmul.mubr.f32.gmra.mxu0 %v4670
        %v4817 = vpop.f32.mrf.mxu0
        %v4818 = vadd.f32 0.0, %v4817
        %v4819 = vpop.f32.mrf.mxu0
        %4820 = vmatprep.mubr.f32.mxu0 0.0
        %4821 = vmatmul.mubr.f32.gmra.mxu0 %v4672
        %v4822 = vpop.f32.mrf.mxu0
        %v4823 = vadd.f32 0.0, %v4822
        %v4824 = vpop.f32.mrf.mxu0
        %4825 = vmatprep.mubr.f32.mxu0 0.0
        %4826 = vmatmul.mubr.f32.gmra.mxu0 %v4674
        %v4827 = vpop.f32.mrf.mxu0
        %v4828 = vadd.f32 0.0, %v4827
        %v4829 = vpop.f32.mrf.mxu0
        %4830 = vmatprep.mubr.f32.mxu0 0.0
        %4831 = vmatmul.mubr.f32.gmra.mxu0 %v4676
        %v4832 = vpop.f32.mrf.mxu0
        %v4833 = vadd.f32 0.0, %v4832
        %v4834 = vpop.f32.mrf.mxu0
        %4835 = vmatprep.mubr.f32.mxu0 0.0
        %4836 = vmatmul.mubr.f32.gmra.mxu0 %v4678
        %v4837 = vpop.f32.mrf.mxu0
        %v4838 = vadd.f32 0.0, %v4837
        %v4839 = vpop.f32.mrf.mxu0
        %4840 = vmatprep.mubr.f32.mxu0 0.0
        %4841 = vmatmul.mubr.f32.gmra.mxu0 %v4680
        %v4842 = vpop.f32.mrf.mxu0
        %v4843 = vadd.f32 0.0, %v4842
        %v4844 = vpop.f32.mrf.mxu0
        %4845 = vmatprep.mubr.f32.mxu0 0.0
        %4846 = vmatmul.mubr.f32.gmra.mxu0 %v4682
        %v4847 = vpop.f32.mrf.mxu0
        %v4848 = vadd.f32 0.0, %v4847
        %v4849 = vpop.f32.mrf.mxu0
        %4850 = vmatprep.mubr.f32.mxu0 0.0
        %4851 = vmatmul.mubr.f32.gmra.mxu0 %v4684
        %v4852 = vpop.f32.mrf.mxu0
        %v4853 = vadd.f32 0.0, %v4852
        %v4854 = vpop.f32.mrf.mxu0
        %4855 = vmatprep.mubr.f32.mxu0 0.0
        %4856 = vmatmul.mubr.f32.gmra.mxu0 %v4686
        %v4857 = vpop.f32.mrf.mxu0
        %v4858 = vadd.f32 0.0, %v4857
        %v4859 = vpop.f32.mrf.mxu0
        %4860 = vmatprep.mubr.f32.mxu0 0.0
        %4861 = vmatmul.mubr.f32.gmra.mxu0 %v4688
        %v4862 = vpop.f32.mrf.mxu0
        %v4863 = vadd.f32 0.0, %v4862
        %v4864 = vpop.f32.mrf.mxu0
        %4865 = vmatprep.mubr.f32.mxu0 0.0
        %4866 = vmatmul.mubr.f32.gmra.mxu0 %v4690
        %v4867 = vpop.f32.mrf.mxu0
        %v4868 = vadd.f32 0.0, %v4867
        %v4869 = vpop.f32.mrf.mxu0
        %4870 = vmatprep.mubr.f32.mxu0 0.0
        %4871 = vmatmul.mubr.f32.gmra.mxu0 %v4692
        %v4872 = vpop.f32.mrf.mxu0
        %v4873 = vadd.f32 0.0, %v4872
        %v4874 = vpop.f32.mrf.mxu0
        %4875 = vmatprep.mubr.f32.mxu0 0.0
        %4876 = vmatmul.mubr.f32.gmra.mxu0 %v4694
        %v4877 = vpop.f32.mrf.mxu0
        %v4878 = vadd.f32 0.0, %v4877
        %v4879 = vpop.f32.mrf.mxu0
        %4880 = vmatprep.mubr.f32.mxu0 0.0
        %4881 = vmatmul.mubr.f32.gmra.mxu0 %v4696
        %v4882 = vpop.f32.mrf.mxu0
        %v4883 = vadd.f32 0.0, %v4882
        %v4884 = vpop.f32.mrf.mxu0
        %4885 = vmatprep.mubr.f32.mxu0 0.0
        %4886 = vmatmul.mubr.f32.gmra.mxu0 %v4698
        %v4887 = vpop.f32.mrf.mxu0
        %v4888 = vadd.f32 0.0, %v4887
        %v4889 = vpop.f32.mrf.mxu0
        %4890 = vmatprep.mubr.f32.mxu0 0.0
        %4891 = vmatmul.mubr.f32.gmra.mxu0 %v4700
        %v4892 = vpop.f32.mrf.mxu0
        %v4893 = vadd.f32 0.0, %v4892
        %v4894 = vpop.f32.mrf.mxu0
        %4895 = vmatprep.mubr.f32.mxu0 0.0
        %4896 = vmatmul.mubr.f32.gmra.mxu0 %v4702
        %v4897 = vpop.f32.mrf.mxu0
        %v4898 = vadd.f32 0.0, %v4897
        %v4899 = vpop.f32.mrf.mxu0
        %4900 = vmatprep.mubr.f32.mxu0 0.0
        %4901 = vmatmul.mubr.f32.gmra.mxu0 %v4704
        %v4902 = vpop.f32.mrf.mxu0
        %v4903 = vadd.f32 0.0, %v4902
        %v4904 = vpop.f32.mrf.mxu0
        %4905 = vmatprep.mubr.f32.mxu0 0.0
        %4906 = vmatmul.mubr.f32.gmra.mxu0 %v4706
        %v4907 = vpop.f32.mrf.mxu0
        %v4908 = vadd.f32 0.0, %v4907
        %v4909 = vpop.f32.mrf.mxu0
        %4910 = vmatprep.mubr.f32.mxu0 0.0
        %4911 = vmatmul.mubr.f32.gmra.mxu0 %v4708
        %v4912 = vpop.f32.mrf.mxu0
        %v4913 = vadd.f32 0.0, %v4912
        %v4914 = vpop.f32.mrf.mxu0
        %4915 = vmatprep.mubr.f32.mxu0 0.0
        %4916 = vmatmul.mubr.f32.gmra.mxu0 %v4710
        %v4917 = vpop.f32.mrf.mxu0
        %v4918 = vadd.f32 0.0, %v4917
        %v4919 = vpop.f32.mrf.mxu0
        %4920 = vmatprep.mubr.f32.mxu0 0.0
        %4921 = vmatmul.mubr.f32.gmra.mxu0 %v4712
        %v4922 = vpop.f32.mrf.mxu0
        %v4923 = vadd.f32 0.0, %v4922
        %v4924 = vpop.f32.mrf.mxu0
        %4925 = vmatprep.mubr.f32.mxu0 0.0
        %4926 = vmatmul.mubr.f32.gmra.mxu0 %v4714
        %v4927 = vpop.f32.mrf.mxu0
        %v4928 = vadd.f32 0.0, %v4927
        %v4929 = vpop.f32.mrf.mxu0
        %4930 = vdwg.mxu0
        %v4931 = vadd.f32 %v4253, %v4783
        %v4932 = vadd.f32 %v4254, %v4788
        %v4933 = vadd.f32 %v4255, %v4793
        %v4934 = vadd.f32 %v4256, %v4798
        %v4935 = vadd.f32 %v4257, %v4803
        %v4936 = vadd.f32 %v4258, %v4808
        %v4937 = vadd.f32 %v4259, %v4813
        %v4938 = vadd.f32 %v4260, %v4818
        %v4939 = vadd.f32 %v4261, %v4823
        %v4940 = vadd.f32 %v4262, %v4828
        %v4941 = vadd.f32 %v4263, %v4833
        %v4942 = vadd.f32 %v4264, %v4838
        %v4943 = vadd.f32 %v4265, %v4843
        %v4944 = vadd.f32 %v4266, %v4848
        %v4945 = vadd.f32 %v4267, %v4853
        %v4946 = vadd.f32 %v4268, %v4858
        %v4947 = vadd.f32 %v4269, %v4863
        %v4948 = vadd.f32 %v4270, %v4868
        %v4949 = vadd.f32 %v4271, %v4873
        %v4950 = vadd.f32 %v4272, %v4878
        %v4951 = vadd.f32 %v4273, %v4883
        %v4952 = vadd.f32 %v4274, %v4888
        %v4953 = vadd.f32 %v4275, %v4893
        %v4954 = vadd.f32 %v4276, %v4898
        %v4955 = vadd.f32 %v4277, %v4903
        %v4956 = vadd.f32 %v4278, %v4908
        %v4957 = vadd.f32 %v4279, %v4913
        %v4958 = vadd.f32 %v4280, %v4918
        %v4959 = vadd.f32 %v4281, %v4923
        %v4960 = vadd.f32 %v4282, %v4928
        %s4961 = scalar_lea.vmem %s1, 1440
        %v4962 = vld [vmem:[%s4961] sm:$0xff]
        %v4963 = vld [vmem:[%s4961 + $0x8] sm:$0xff]
        %v4964 = vld [vmem:[%s4961 + $0x10] sm:$0xff]
        %v4965 = vld [vmem:[%s4961 + $0x18] sm:$0xff]
        %v4966 = vld [vmem:[%s4961 + $0x20] sm:$0xff]
        %v4967 = vld [vmem:[%s4961 + $0x28] sm:$0xff]
        %v4968 = vld [vmem:[%s4961 + $0x30] sm:$0xff]
        %v4969 = vld [vmem:[%s4961 + $0x38] sm:$0xff]
        %v4970 = vld [vmem:[%s4961 + $0x40] sm:$0xff]
        %v4971 = vld [vmem:[%s4961 + $0x48] sm:$0xff]
        %v4972 = vld [vmem:[%s4961 + $0x50] sm:$0xff]
        %v4973 = vld [vmem:[%s4961 + $0x58] sm:$0xff]
        %v4974 = vld [vmem:[%s4961 + $0x60] sm:$0xff]
        %v4975 = vld [vmem:[%s4961 + $0x68] sm:$0xff]
        %v4976 = vld [vmem:[%s4961 + $0x70] sm:$0xff]
        %v4977 = vld [vmem:[%s4961 + $0x78] sm:$0xff]
        %v4978 = vld [vmem:[%s4961 + $0x80] sm:$0xff]
        %v4979 = vld [vmem:[%s4961 + $0x88] sm:$0xff]
        %v4980 = vld [vmem:[%s4961 + $0x90] sm:$0xff]
        %v4981 = vld [vmem:[%s4961 + $0x98] sm:$0xff]
        %v4982 = vld [vmem:[%s4961 + $0xa0] sm:$0xff]
        %v4983 = vld [vmem:[%s4961 + $0xa8] sm:$0xff]
        %v4984 = vld [vmem:[%s4961 + $0xb0] sm:$0xff]
        %v4985 = vld [vmem:[%s4961 + $0xb8] sm:$0xff]
        %v4986 = vld [vmem:[%s4961 + $0xc0] sm:$0xff]
        %v4987 = vld [vmem:[%s4961 + $0xc8] sm:$0xff]
        %v4988 = vld [vmem:[%s4961 + $0xd0] sm:$0xff]
        %v4989 = vld [vmem:[%s4961 + $0xd8] sm:$0xff]
        %v4990 = vld [vmem:[%s4961 + $0xe0] sm:$0xff]
        %v4991 = vld [vmem:[%s4961 + $0xe8] sm:$0xff]
        %4993 = vset.pattern.permute.xlu0 0
        %4994 = vperm.xlu0 %4993, %v4962
        %v4995 = vpop.permute.xlu0 %4994
        %4997 = vset.pattern.permute.xlu0 0
        %4998 = vperm.xlu0 %4997, %v4963
        %v4999 = vpop.permute.xlu0 %4998
        %5001 = vset.pattern.permute.xlu0 0
        %5002 = vperm.xlu0 %5001, %v4964
        %v5003 = vpop.permute.xlu0 %5002
        %5005 = vset.pattern.permute.xlu0 0
        %5006 = vperm.xlu0 %5005, %v4965
        %v5007 = vpop.permute.xlu0 %5006
        %5009 = vset.pattern.permute.xlu0 0
        %5010 = vperm.xlu0 %5009, %v4966
        %v5011 = vpop.permute.xlu0 %5010
        %5013 = vset.pattern.permute.xlu0 0
        %5014 = vperm.xlu0 %5013, %v4967
        %v5015 = vpop.permute.xlu0 %5014
        %5017 = vset.pattern.permute.xlu0 0
        %5018 = vperm.xlu0 %5017, %v4968
        %v5019 = vpop.permute.xlu0 %5018
        %5021 = vset.pattern.permute.xlu0 0
        %5022 = vperm.xlu0 %5021, %v4969
        %v5023 = vpop.permute.xlu0 %5022
        %5025 = vset.pattern.permute.xlu0 0
        %5026 = vperm.xlu0 %5025, %v4970
        %v5027 = vpop.permute.xlu0 %5026
        %5029 = vset.pattern.permute.xlu0 0
        %5030 = vperm.xlu0 %5029, %v4971
        %v5031 = vpop.permute.xlu0 %5030
        %5033 = vset.pattern.permute.xlu0 0
        %5034 = vperm.xlu0 %5033, %v4972
        %v5035 = vpop.permute.xlu0 %5034
        %5037 = vset.pattern.permute.xlu0 0
        %5038 = vperm.xlu0 %5037, %v4973
        %v5039 = vpop.permute.xlu0 %5038
        %5041 = vset.pattern.permute.xlu0 0
        %5042 = vperm.xlu0 %5041, %v4974
        %v5043 = vpop.permute.xlu0 %5042
        %5045 = vset.pattern.permute.xlu0 0
        %5046 = vperm.xlu0 %5045, %v4975
        %v5047 = vpop.permute.xlu0 %5046
        %5049 = vset.pattern.permute.xlu0 0
        %5050 = vperm.xlu0 %5049, %v4976
        %v5051 = vpop.permute.xlu0 %5050
        %5053 = vset.pattern.permute.xlu0 0
        %5054 = vperm.xlu0 %5053, %v4977
        %v5055 = vpop.permute.xlu0 %5054
        %5057 = vset.pattern.permute.xlu0 0
        %5058 = vperm.xlu0 %5057, %v4978
        %v5059 = vpop.permute.xlu0 %5058
        %5061 = vset.pattern.permute.xlu0 0
        %5062 = vperm.xlu0 %5061, %v4979
        %v5063 = vpop.permute.xlu0 %5062
        %5065 = vset.pattern.permute.xlu0 0
        %5066 = vperm.xlu0 %5065, %v4980
        %v5067 = vpop.permute.xlu0 %5066
        %5069 = vset.pattern.permute.xlu0 0
        %5070 = vperm.xlu0 %5069, %v4981
        %v5071 = vpop.permute.xlu0 %5070
        %5073 = vset.pattern.permute.xlu0 0
        %5074 = vperm.xlu0 %5073, %v4982
        %v5075 = vpop.permute.xlu0 %5074
        %5077 = vset.pattern.permute.xlu0 0
        %5078 = vperm.xlu0 %5077, %v4983
        %v5079 = vpop.permute.xlu0 %5078
        %5081 = vset.pattern.permute.xlu0 0
        %5082 = vperm.xlu0 %5081, %v4984
        %v5083 = vpop.permute.xlu0 %5082
        %5085 = vset.pattern.permute.xlu0 0
        %5086 = vperm.xlu0 %5085, %v4985
        %v5087 = vpop.permute.xlu0 %5086
        %5089 = vset.pattern.permute.xlu0 0
        %5090 = vperm.xlu0 %5089, %v4986
        %v5091 = vpop.permute.xlu0 %5090
        %5093 = vset.pattern.permute.xlu0 0
        %5094 = vperm.xlu0 %5093, %v4987
        %v5095 = vpop.permute.xlu0 %5094
        %5097 = vset.pattern.permute.xlu0 0
        %5098 = vperm.xlu0 %5097, %v4988
        %v5099 = vpop.permute.xlu0 %5098
        %5101 = vset.pattern.permute.xlu0 0
        %5102 = vperm.xlu0 %5101, %v4989
        %v5103 = vpop.permute.xlu0 %5102
        %5105 = vset.pattern.permute.xlu0 0
        %5106 = vperm.xlu0 %5105, %v4990
        %v5107 = vpop.permute.xlu0 %5106
        %5109 = vset.pattern.permute.xlu0 0
        %5110 = vperm.xlu0 %5109, %v4991
        %v5111 = vpop.permute.xlu0 %5110
        %v5112 = vrot.slane %v4995, 1
        %v5113 = vrot.slane %v4999, 1
        %v5114 = vsel %vm553, %v5112, %v5113
        %v5115 = vrot.slane %v5003, 1
        %v5116 = vsel %vm553, %v5113, %v5115
        %v5117 = vrot.slane %v5007, 1
        %v5118 = vsel %vm553, %v5115, %v5117
        %v5119 = vrot.slane %v5011, 1
        %v5120 = vsel %vm553, %v5117, %v5119
        %v5121 = vrot.slane %v5015, 1
        %v5122 = vsel %vm553, %v5119, %v5121
        %v5123 = vrot.slane %v5019, 1
        %v5124 = vsel %vm553, %v5121, %v5123
        %v5125 = vrot.slane %v5023, 1
        %v5126 = vsel %vm553, %v5123, %v5125
        %v5127 = vrot.slane %v5027, 1
        %v5128 = vsel %vm553, %v5125, %v5127
        %v5129 = vrot.slane %v5031, 1
        %v5130 = vsel %vm553, %v5127, %v5129
        %v5131 = vrot.slane %v5035, 1
        %v5132 = vsel %vm553, %v5129, %v5131
        %v5133 = vrot.slane %v5039, 1
        %v5134 = vsel %vm553, %v5131, %v5133
        %v5135 = vrot.slane %v5043, 1
        %v5136 = vsel %vm553, %v5133, %v5135
        %v5137 = vrot.slane %v5047, 1
        %v5138 = vsel %vm553, %v5135, %v5137
        %v5139 = vrot.slane %v5051, 1
        %v5140 = vsel %vm553, %v5137, %v5139
        %v5141 = vrot.slane %v5055, 1
        %v5142 = vsel %vm553, %v5139, %v5141
        %v5143 = vrot.slane %v5059, 1
        %v5144 = vsel %vm553, %v5141, %v5143
        %v5145 = vrot.slane %v5063, 1
        %v5146 = vsel %vm553, %v5143, %v5145
        %v5147 = vrot.slane %v5067, 1
        %v5148 = vsel %vm553, %v5145, %v5147
        %v5149 = vrot.slane %v5071, 1
        %v5150 = vsel %vm553, %v5147, %v5149
        %v5151 = vrot.slane %v5075, 1
        %v5152 = vsel %vm553, %v5149, %v5151
        %v5153 = vrot.slane %v5079, 1
        %v5154 = vsel %vm553, %v5151, %v5153
        %v5155 = vrot.slane %v5083, 1
        %v5156 = vsel %vm553, %v5153, %v5155
        %v5157 = vrot.slane %v5087, 1
        %v5158 = vsel %vm553, %v5155, %v5157
        %v5159 = vrot.slane %v5091, 1
        %v5160 = vsel %vm553, %v5157, %v5159
        %v5161 = vrot.slane %v5095, 1
        %v5162 = vsel %vm553, %v5159, %v5161
        %v5163 = vrot.slane %v5099, 1
        %v5164 = vsel %vm553, %v5161, %v5163
        %v5165 = vrot.slane %v5103, 1
        %v5166 = vsel %vm553, %v5163, %v5165
        %v5167 = vrot.slane %v5107, 1
        %v5168 = vsel %vm553, %v5165, %v5167
        %v5169 = vrot.slane %v5111, 1
        %v5170 = vsel %vm553, %v5167, %v5169
        %v5202 = vmul.f32 %v5112, 0.0
        %v5203 = vmul.f32 %v1042, %v5114
        %v5204 = vmul.f32 %v1043, %v5116
        %v5205 = vmul.f32 %v1044, %v5118
        %v5206 = vmul.f32 %v1045, %v5120
        %v5207 = vmul.f32 %v1046, %v5122
        %v5208 = vmul.f32 %v1047, %v5124
        %v5209 = vmul.f32 %v1048, %v5126
        %v5210 = vmul.f32 %v1049, %v5128
        %v5211 = vmul.f32 %v1050, %v5130
        %v5212 = vmul.f32 %v1051, %v5132
        %v5213 = vmul.f32 %v1052, %v5134
        %v5214 = vmul.f32 %v1053, %v5136
        %v5215 = vmul.f32 %v1054, %v5138
        %v5216 = vmul.f32 %v1055, %v5140
        %v5217 = vmul.f32 %v1056, %v5142
        %v5218 = vmul.f32 %v1057, %v5144
        %v5219 = vmul.f32 %v1058, %v5146
        %v5220 = vmul.f32 %v1059, %v5148
        %v5221 = vmul.f32 %v1060, %v5150
        %v5222 = vmul.f32 %v1061, %v5152
        %v5223 = vmul.f32 %v1062, %v5154
        %v5224 = vmul.f32 %v1063, %v5156
        %v5225 = vmul.f32 %v1064, %v5158
        %v5226 = vmul.f32 %v1065, %v5160
        %v5227 = vmul.f32 %v1066, %v5162
        %v5228 = vmul.f32 %v1067, %v5164
        %v5229 = vmul.f32 %v1068, %v5166
        %v5230 = vmul.f32 %v1069, %v5168
        %v5231 = vmul.f32 %v1070, %v5170
        %v5232 = vmul.f32 %v1071, %v5169
        %s5233 = scalar_lea.vmem %s4, 384
        %v5234 = vld [vmem:[%s5233] sm:$0xff]
        %v5235 = vld [vmem:[%s5233 + $0x8] sm:$0xff]
        %v5236 = vld [vmem:[%s5233 + $0x10] sm:$0xff]
        %v5237 = vld [vmem:[%s5233 + $0x18] sm:$0xff]
        %v5238 = vld [vmem:[%s5233 + $0x20] sm:$0xff]
        %v5239 = vld [vmem:[%s5233 + $0x28] sm:$0xff]
        %v5240 = vld [vmem:[%s5233 + $0x30] sm:$0xff]
        %v5241 = vld [vmem:[%s5233 + $0x38] sm:$0xff]
        %v5273 = vrot.slane %v5202, 7
        %v5274 = vrot.slane %v5203, 7
        %v5275 = vsel %vm1222, %v5273, %v5274
        %v5276 = vrot.slane %v5204, 7
        %v5277 = vsel %vm1222, %v5274, %v5276
        %v5278 = vrot.slane %v5205, 7
        %v5279 = vsel %vm1222, %v5276, %v5278
        %v5280 = vrot.slane %v5206, 7
        %v5281 = vsel %vm1222, %v5278, %v5280
        %v5282 = vrot.slane %v5207, 7
        %v5283 = vsel %vm1222, %v5280, %v5282
        %v5284 = vrot.slane %v5208, 7
        %v5285 = vsel %vm1222, %v5282, %v5284
        %v5286 = vrot.slane %v5209, 7
        %v5287 = vsel %vm1222, %v5284, %v5286
        %v5288 = vrot.slane %v5210, 7
        %v5289 = vsel %vm1222, %v5286, %v5288
        %v5290 = vrot.slane %v5211, 7
        %v5291 = vsel %vm1222, %v5288, %v5290
        %v5292 = vrot.slane %v5212, 7
        %v5293 = vsel %vm1222, %v5290, %v5292
        %v5294 = vrot.slane %v5213, 7
        %v5295 = vsel %vm1222, %v5292, %v5294
        %v5296 = vrot.slane %v5214, 7
        %v5297 = vsel %vm1222, %v5294, %v5296
        %v5298 = vrot.slane %v5215, 7
        %v5299 = vsel %vm1222, %v5296, %v5298
        %v5300 = vrot.slane %v5216, 7
        %v5301 = vsel %vm1222, %v5298, %v5300
        %v5302 = vrot.slane %v5217, 7
        %v5303 = vsel %vm1222, %v5300, %v5302
        %v5304 = vrot.slane %v5218, 7
        %v5305 = vsel %vm1222, %v5302, %v5304
        %v5306 = vrot.slane %v5219, 7
        %v5307 = vsel %vm1222, %v5304, %v5306
        %v5308 = vrot.slane %v5220, 7
        %v5309 = vsel %vm1222, %v5306, %v5308
        %v5310 = vrot.slane %v5221, 7
        %v5311 = vsel %vm1222, %v5308, %v5310
        %v5312 = vrot.slane %v5222, 7
        %v5313 = vsel %vm1222, %v5310, %v5312
        %v5314 = vrot.slane %v5223, 7
        %v5315 = vsel %vm1222, %v5312, %v5314
        %v5316 = vrot.slane %v5224, 7
        %v5317 = vsel %vm1222, %v5314, %v5316
        %v5318 = vrot.slane %v5225, 7
        %v5319 = vsel %vm1222, %v5316, %v5318
        %v5320 = vrot.slane %v5226, 7
        %v5321 = vsel %vm1222, %v5318, %v5320
        %v5322 = vrot.slane %v5227, 7
        %v5323 = vsel %vm1222, %v5320, %v5322
        %v5324 = vrot.slane %v5228, 7
        %v5325 = vsel %vm1222, %v5322, %v5324
        %v5326 = vrot.slane %v5229, 7
        %v5327 = vsel %vm1222, %v5324, %v5326
        %v5328 = vrot.slane %v5230, 7
        %v5329 = vsel %vm1222, %v5326, %v5328
        %v5330 = vrot.slane %v5231, 7
        %v5331 = vsel %vm1222, %v5328, %v5330
        %v5332 = vrot.slane %v5232, 7
        %v5333 = vsel %vm1222, %v5330, %v5332
        %v5334 = vsel %vm1727, %v5275, 0
        %v5336 = vsel %vm1727, %v5277, 0
        %v5338 = vsel %vm1727, %v5279, 0
        %v5340 = vsel %vm1727, %v5281, 0
        %v5342 = vsel %vm1727, %v5283, 0
        %v5344 = vsel %vm1727, %v5285, 0
        %v5346 = vsel %vm1727, %v5287, 0
        %v5348 = vsel %vm1727, %v5289, 0
        %v5350 = vsel %vm1727, %v5291, 0
        %v5352 = vsel %vm1727, %v5293, 0
        %v5354 = vsel %vm1727, %v5295, 0
        %v5356 = vsel %vm1727, %v5297, 0
        %v5358 = vsel %vm1727, %v5299, 0
        %v5360 = vsel %vm1727, %v5301, 0
        %v5362 = vsel %vm1727, %v5303, 0
        %v5364 = vsel %vm1727, %v5305, 0
        %v5366 = vsel %vm1727, %v5307, 0
        %v5368 = vsel %vm1727, %v5309, 0
        %v5370 = vsel %vm1727, %v5311, 0
        %v5372 = vsel %vm1727, %v5313, 0
        %v5374 = vsel %vm1727, %v5315, 0
        %v5376 = vsel %vm1727, %v5317, 0
        %v5378 = vsel %vm1727, %v5319, 0
        %v5380 = vsel %vm1727, %v5321, 0
        %v5382 = vsel %vm1727, %v5323, 0
        %v5384 = vsel %vm1727, %v5325, 0
        %v5386 = vsel %vm1727, %v5327, 0
        %v5388 = vsel %vm1727, %v5329, 0
        %v5390 = vsel %vm1727, %v5331, 0
        %v5392 = vsel %vm1727, %v5333, 0
        %5394 = vmatprep.subr.mxu0 0.0
        %5395 = vmatpush1.msra.mxu0 0.0
        %5396 = vmatprep.subr.mxu0 0.0
        %5397 = vmatpush1.msra.mxu0 0.0
        %5398 = vmatprep.subr.mxu0 0.0
        %5399 = vmatpush1.msra.mxu0 0.0
        %5400 = vmatprep.subr.mxu0 0.0
        %5401 = vmatpush1.msra.mxu0 0.0
        %5402 = vmatprep.subr.mxu0 0.0
        %5403 = vmatpush1.msra.mxu0 0.0
        %5404 = vmatprep.subr.mxu0 0.0
        %5405 = vmatpush1.msra.mxu0 0.0
        %5406 = vmatprep.subr.mxu0 0.0
        %5407 = vmatpush1.msra.mxu0 0.0
        %5408 = vmatprep.subr.mxu0 0.0
        %5409 = vmatpush1.msra.mxu0 0.0
        %5410 = vmatprep.subr.mxu0 0.0
        %5411 = vmatpush1.msra.mxu0 %v5241
        %5412 = vmatprep.subr.mxu0 0.0
        %5413 = vmatpush1.msra.mxu0 %v5240
        %5414 = vmatprep.subr.mxu0 0.0
        %5415 = vmatpush1.msra.mxu0 %v5239
        %5416 = vmatprep.subr.mxu0 0.0
        %5417 = vmatpush1.msra.mxu0 %v5238
        %5418 = vmatprep.subr.mxu0 0.0
        %5419 = vmatpush1.msra.mxu0 %v5237
        %5420 = vmatprep.subr.mxu0 0.0
        %5421 = vmatpush1.msra.mxu0 %v5236
        %5422 = vmatprep.subr.mxu0 0.0
        %5423 = vmatpush1.msra.mxu0 %v5235
        %5424 = vmatprep.subr.mxu0 0.0
        %5425 = vmatpush1.msra.mxu0 %v5234
        %5426 = vmatprep.subr.mxu0 0.0
        %5427 = vmatpush2.msra.mxu0 0.0
        %5428 = vmatprep.subr.mxu0 0.0
        %5429 = vmatpush2.msra.mxu0 0.0
        %5430 = vmatprep.subr.mxu0 0.0
        %5431 = vmatpush2.msra.mxu0 0.0
        %5432 = vmatprep.subr.mxu0 0.0
        %5433 = vmatpush2.msra.mxu0 0.0
        %5434 = vmatprep.subr.mxu0 0.0
        %5435 = vmatpush2.msra.mxu0 0.0
        %5436 = vmatprep.subr.mxu0 0.0
        %5437 = vmatpush2.msra.mxu0 0.0
        %5438 = vmatprep.subr.mxu0 0.0
        %5439 = vmatpush2.msra.mxu0 0.0
        %5440 = vmatprep.subr.mxu0 0.0
        %5441 = vmatpush2.msra.mxu0 0.0
        %5442 = vmatprep.subr.mxu0 0.0
        %5443 = vmatpush2.msra.mxu0 0.0
        %5444 = vmatprep.subr.mxu0 0.0
        %5445 = vmatpush2.msra.mxu0 0.0
        %5446 = vmatprep.subr.mxu0 0.0
        %5447 = vmatpush2.msra.mxu0 0.0
        %5448 = vmatprep.subr.mxu0 0.0
        %5449 = vmatpush2.msra.mxu0 0.0
        %5450 = vmatprep.subr.mxu0 0.0
        %5451 = vmatpush2.msra.mxu0 0.0
        %5452 = vmatprep.subr.mxu0 0.0
        %5453 = vmatpush2.msra.mxu0 0.0
        %5454 = vmatprep.subr.mxu0 0.0
        %5455 = vmatpush2.msra.mxu0 0.0
        %5456 = vmatprep.subr.mxu0 0.0
        %5457 = vmatpush2.msra.mxu0 0.0
        %5458 = vmatprep.mubr.f32.mxu0 0.0
        %5459 = vmatmul.mubr.f32.gmra.mxu0 %v5334
        %v5460 = vpop.f32.mrf.mxu0
        %v5461 = vadd.f32 0.0, %v5460
        %v5462 = vpop.f32.mrf.mxu0
        %5463 = vmatprep.mubr.f32.mxu0 0.0
        %5464 = vmatmul.mubr.f32.gmra.mxu0 %v5336
        %v5465 = vpop.f32.mrf.mxu0
        %v5466 = vadd.f32 0.0, %v5465
        %v5467 = vpop.f32.mrf.mxu0
        %5468 = vmatprep.mubr.f32.mxu0 0.0
        %5469 = vmatmul.mubr.f32.gmra.mxu0 %v5338
        %v5470 = vpop.f32.mrf.mxu0
        %v5471 = vadd.f32 0.0, %v5470
        %v5472 = vpop.f32.mrf.mxu0
        %5473 = vmatprep.mubr.f32.mxu0 0.0
        %5474 = vmatmul.mubr.f32.gmra.mxu0 %v5340
        %v5475 = vpop.f32.mrf.mxu0
        %v5476 = vadd.f32 0.0, %v5475
        %v5477 = vpop.f32.mrf.mxu0
        %5478 = vmatprep.mubr.f32.mxu0 0.0
        %5479 = vmatmul.mubr.f32.gmra.mxu0 %v5342
        %v5480 = vpop.f32.mrf.mxu0
        %v5481 = vadd.f32 0.0, %v5480
        %v5482 = vpop.f32.mrf.mxu0
        %5483 = vmatprep.mubr.f32.mxu0 0.0
        %5484 = vmatmul.mubr.f32.gmra.mxu0 %v5344
        %v5485 = vpop.f32.mrf.mxu0
        %v5486 = vadd.f32 0.0, %v5485
        %v5487 = vpop.f32.mrf.mxu0
        %5488 = vmatprep.mubr.f32.mxu0 0.0
        %5489 = vmatmul.mubr.f32.gmra.mxu0 %v5346
        %v5490 = vpop.f32.mrf.mxu0
        %v5491 = vadd.f32 0.0, %v5490
        %v5492 = vpop.f32.mrf.mxu0
        %5493 = vmatprep.mubr.f32.mxu0 0.0
        %5494 = vmatmul.mubr.f32.gmra.mxu0 %v5348
        %v5495 = vpop.f32.mrf.mxu0
        %v5496 = vadd.f32 0.0, %v5495
        %v5497 = vpop.f32.mrf.mxu0
        %5498 = vmatprep.mubr.f32.mxu0 0.0
        %5499 = vmatmul.mubr.f32.gmra.mxu0 %v5350
        %v5500 = vpop.f32.mrf.mxu0
        %v5501 = vadd.f32 0.0, %v5500
        %v5502 = vpop.f32.mrf.mxu0
        %5503 = vmatprep.mubr.f32.mxu0 0.0
        %5504 = vmatmul.mubr.f32.gmra.mxu0 %v5352
        %v5505 = vpop.f32.mrf.mxu0
        %v5506 = vadd.f32 0.0, %v5505
        %v5507 = vpop.f32.mrf.mxu0
        %5508 = vmatprep.mubr.f32.mxu0 0.0
        %5509 = vmatmul.mubr.f32.gmra.mxu0 %v5354
        %v5510 = vpop.f32.mrf.mxu0
        %v5511 = vadd.f32 0.0, %v5510
        %v5512 = vpop.f32.mrf.mxu0
        %5513 = vmatprep.mubr.f32.mxu0 0.0
        %5514 = vmatmul.mubr.f32.gmra.mxu0 %v5356
        %v5515 = vpop.f32.mrf.mxu0
        %v5516 = vadd.f32 0.0, %v5515
        %v5517 = vpop.f32.mrf.mxu0
        %5518 = vmatprep.mubr.f32.mxu0 0.0
        %5519 = vmatmul.mubr.f32.gmra.mxu0 %v5358
        %v5520 = vpop.f32.mrf.mxu0
        %v5521 = vadd.f32 0.0, %v5520
        %v5522 = vpop.f32.mrf.mxu0
        %5523 = vmatprep.mubr.f32.mxu0 0.0
        %5524 = vmatmul.mubr.f32.gmra.mxu0 %v5360
        %v5525 = vpop.f32.mrf.mxu0
        %v5526 = vadd.f32 0.0, %v5525
        %v5527 = vpop.f32.mrf.mxu0
        %5528 = vmatprep.mubr.f32.mxu0 0.0
        %5529 = vmatmul.mubr.f32.gmra.mxu0 %v5362
        %v5530 = vpop.f32.mrf.mxu0
        %v5531 = vadd.f32 0.0, %v5530
        %v5532 = vpop.f32.mrf.mxu0
        %5533 = vmatprep.mubr.f32.mxu0 0.0
        %5534 = vmatmul.mubr.f32.gmra.mxu0 %v5364
        %v5535 = vpop.f32.mrf.mxu0
        %v5536 = vadd.f32 0.0, %v5535
        %v5537 = vpop.f32.mrf.mxu0
        %5538 = vmatprep.mubr.f32.mxu0 0.0
        %5539 = vmatmul.mubr.f32.gmra.mxu0 %v5366
        %v5540 = vpop.f32.mrf.mxu0
        %v5541 = vadd.f32 0.0, %v5540
        %v5542 = vpop.f32.mrf.mxu0
        %5543 = vmatprep.mubr.f32.mxu0 0.0
        %5544 = vmatmul.mubr.f32.gmra.mxu0 %v5368
        %v5545 = vpop.f32.mrf.mxu0
        %v5546 = vadd.f32 0.0, %v5545
        %v5547 = vpop.f32.mrf.mxu0
        %5548 = vmatprep.mubr.f32.mxu0 0.0
        %5549 = vmatmul.mubr.f32.gmra.mxu0 %v5370
        %v5550 = vpop.f32.mrf.mxu0
        %v5551 = vadd.f32 0.0, %v5550
        %v5552 = vpop.f32.mrf.mxu0
        %5553 = vmatprep.mubr.f32.mxu0 0.0
        %5554 = vmatmul.mubr.f32.gmra.mxu0 %v5372
        %v5555 = vpop.f32.mrf.mxu0
        %v5556 = vadd.f32 0.0, %v5555
        %v5557 = vpop.f32.mrf.mxu0
        %5558 = vmatprep.mubr.f32.mxu0 0.0
        %5559 = vmatmul.mubr.f32.gmra.mxu0 %v5374
        %v5560 = vpop.f32.mrf.mxu0
        %v5561 = vadd.f32 0.0, %v5560
        %v5562 = vpop.f32.mrf.mxu0
        %5563 = vmatprep.mubr.f32.mxu0 0.0
        %5564 = vmatmul.mubr.f32.gmra.mxu0 %v5376
        %v5565 = vpop.f32.mrf.mxu0
        %v5566 = vadd.f32 0.0, %v5565
        %v5567 = vpop.f32.mrf.mxu0
        %5568 = vmatprep.mubr.f32.mxu0 0.0
        %5569 = vmatmul.mubr.f32.gmra.mxu0 %v5378
        %v5570 = vpop.f32.mrf.mxu0
        %v5571 = vadd.f32 0.0, %v5570
        %v5572 = vpop.f32.mrf.mxu0
        %5573 = vmatprep.mubr.f32.mxu0 0.0
        %5574 = vmatmul.mubr.f32.gmra.mxu0 %v5380
        %v5575 = vpop.f32.mrf.mxu0
        %v5576 = vadd.f32 0.0, %v5575
        %v5577 = vpop.f32.mrf.mxu0
        %5578 = vmatprep.mubr.f32.mxu0 0.0
        %5579 = vmatmul.mubr.f32.gmra.mxu0 %v5382
        %v5580 = vpop.f32.mrf.mxu0
        %v5581 = vadd.f32 0.0, %v5580
        %v5582 = vpop.f32.mrf.mxu0
        %5583 = vmatprep.mubr.f32.mxu0 0.0
        %5584 = vmatmul.mubr.f32.gmra.mxu0 %v5384
        %v5585 = vpop.f32.mrf.mxu0
        %v5586 = vadd.f32 0.0, %v5585
        %v5587 = vpop.f32.mrf.mxu0
        %5588 = vmatprep.mubr.f32.mxu0 0.0
        %5589 = vmatmul.mubr.f32.gmra.mxu0 %v5386
        %v5590 = vpop.f32.mrf.mxu0
        %v5591 = vadd.f32 0.0, %v5590
        %v5592 = vpop.f32.mrf.mxu0
        %5593 = vmatprep.mubr.f32.mxu0 0.0
        %5594 = vmatmul.mubr.f32.gmra.mxu0 %v5388
        %v5595 = vpop.f32.mrf.mxu0
        %v5596 = vadd.f32 0.0, %v5595
        %v5597 = vpop.f32.mrf.mxu0
        %5598 = vmatprep.mubr.f32.mxu0 0.0
        %5599 = vmatmul.mubr.f32.gmra.mxu0 %v5390
        %v5600 = vpop.f32.mrf.mxu0
        %v5601 = vadd.f32 0.0, %v5600
        %v5602 = vpop.f32.mrf.mxu0
        %5603 = vmatprep.mubr.f32.mxu0 0.0
        %5604 = vmatmul.mubr.f32.gmra.mxu0 %v5392
        %v5605 = vpop.f32.mrf.mxu0
        %v5606 = vadd.f32 0.0, %v5605
        %v5607 = vpop.f32.mrf.mxu0
        %5608 = vdwg.mxu0
        %v5609 = vadd.f32 %v4931, %v5461
        %v5610 = vadd.f32 %v4932, %v5466
        %v5611 = vadd.f32 %v4933, %v5471
        %v5612 = vadd.f32 %v4934, %v5476
        %v5613 = vadd.f32 %v4935, %v5481
        %v5614 = vadd.f32 %v4936, %v5486
        %v5615 = vadd.f32 %v4937, %v5491
        %v5616 = vadd.f32 %v4938, %v5496
        %v5617 = vadd.f32 %v4939, %v5501
        %v5618 = vadd.f32 %v4940, %v5506
        %v5619 = vadd.f32 %v4941, %v5511
        %v5620 = vadd.f32 %v4942, %v5516
        %v5621 = vadd.f32 %v4943, %v5521
        %v5622 = vadd.f32 %v4944, %v5526
        %v5623 = vadd.f32 %v4945, %v5531
        %v5624 = vadd.f32 %v4946, %v5536
        %v5625 = vadd.f32 %v4947, %v5541
        %v5626 = vadd.f32 %v4948, %v5546
        %v5627 = vadd.f32 %v4949, %v5551
        %v5628 = vadd.f32 %v4950, %v5556
        %v5629 = vadd.f32 %v4951, %v5561
        %v5630 = vadd.f32 %v4952, %v5566
        %v5631 = vadd.f32 %v4953, %v5571
        %v5632 = vadd.f32 %v4954, %v5576
        %v5633 = vadd.f32 %v4955, %v5581
        %v5634 = vadd.f32 %v4956, %v5586
        %v5635 = vadd.f32 %v4957, %v5591
        %v5636 = vadd.f32 %v4958, %v5596
        %v5637 = vadd.f32 %v4959, %v5601
        %v5638 = vadd.f32 %v4960, %v5606
        %s5639 = scalar_lea.vmem %s1, 1680
        %v5640 = vld [vmem:[%s5639] sm:$0xff]
        %v5641 = vld [vmem:[%s5639 + $0x8] sm:$0xff]
        %v5642 = vld [vmem:[%s5639 + $0x10] sm:$0xff]
        %v5643 = vld [vmem:[%s5639 + $0x18] sm:$0xff]
        %v5644 = vld [vmem:[%s5639 + $0x20] sm:$0xff]
        %v5645 = vld [vmem:[%s5639 + $0x28] sm:$0xff]
        %v5646 = vld [vmem:[%s5639 + $0x30] sm:$0xff]
        %v5647 = vld [vmem:[%s5639 + $0x38] sm:$0xff]
        %v5648 = vld [vmem:[%s5639 + $0x40] sm:$0xff]
        %v5649 = vld [vmem:[%s5639 + $0x48] sm:$0xff]
        %v5650 = vld [vmem:[%s5639 + $0x50] sm:$0xff]
        %v5651 = vld [vmem:[%s5639 + $0x58] sm:$0xff]
        %v5652 = vld [vmem:[%s5639 + $0x60] sm:$0xff]
        %v5653 = vld [vmem:[%s5639 + $0x68] sm:$0xff]
        %v5654 = vld [vmem:[%s5639 + $0x70] sm:$0xff]
        %v5655 = vld [vmem:[%s5639 + $0x78] sm:$0xff]
        %v5656 = vld [vmem:[%s5639 + $0x80] sm:$0xff]
        %v5657 = vld [vmem:[%s5639 + $0x88] sm:$0xff]
        %v5658 = vld [vmem:[%s5639 + $0x90] sm:$0xff]
        %v5659 = vld [vmem:[%s5639 + $0x98] sm:$0xff]
        %v5660 = vld [vmem:[%s5639 + $0xa0] sm:$0xff]
        %v5661 = vld [vmem:[%s5639 + $0xa8] sm:$0xff]
        %v5662 = vld [vmem:[%s5639 + $0xb0] sm:$0xff]
        %v5663 = vld [vmem:[%s5639 + $0xb8] sm:$0xff]
        %v5664 = vld [vmem:[%s5639 + $0xc0] sm:$0xff]
        %v5665 = vld [vmem:[%s5639 + $0xc8] sm:$0xff]
        %v5666 = vld [vmem:[%s5639 + $0xd0] sm:$0xff]
        %v5667 = vld [vmem:[%s5639 + $0xd8] sm:$0xff]
        %v5668 = vld [vmem:[%s5639 + $0xe0] sm:$0xff]
        %v5669 = vld [vmem:[%s5639 + $0xe8] sm:$0xff]
        %5671 = vset.pattern.permute.xlu0 0
        %5672 = vperm.xlu0 %5671, %v5640
        %v5673 = vpop.permute.xlu0 %5672
        %5676 = vset.pattern.permute.xlu0 0
        %5677 = vperm.xlu0 %5676, %v5641
        %v5678 = vpop.permute.xlu0 %5677
        %5681 = vset.pattern.permute.xlu0 0
        %5682 = vperm.xlu0 %5681, %v5642
        %v5683 = vpop.permute.xlu0 %5682
        %5686 = vset.pattern.permute.xlu0 0
        %5687 = vperm.xlu0 %5686, %v5643
        %v5688 = vpop.permute.xlu0 %5687
        %5691 = vset.pattern.permute.xlu0 0
        %5692 = vperm.xlu0 %5691, %v5644
        %v5693 = vpop.permute.xlu0 %5692
        %5696 = vset.pattern.permute.xlu0 0
        %5697 = vperm.xlu0 %5696, %v5645
        %v5698 = vpop.permute.xlu0 %5697
        %5701 = vset.pattern.permute.xlu0 0
        %5702 = vperm.xlu0 %5701, %v5646
        %v5703 = vpop.permute.xlu0 %5702
        %5706 = vset.pattern.permute.xlu0 0
        %5707 = vperm.xlu0 %5706, %v5647
        %v5708 = vpop.permute.xlu0 %5707
        %5711 = vset.pattern.permute.xlu0 0
        %5712 = vperm.xlu0 %5711, %v5648
        %v5713 = vpop.permute.xlu0 %5712
        %5716 = vset.pattern.permute.xlu0 0
        %5717 = vperm.xlu0 %5716, %v5649
        %v5718 = vpop.permute.xlu0 %5717
        %5721 = vset.pattern.permute.xlu0 0
        %5722 = vperm.xlu0 %5721, %v5650
        %v5723 = vpop.permute.xlu0 %5722
        %5726 = vset.pattern.permute.xlu0 0
        %5727 = vperm.xlu0 %5726, %v5651
        %v5728 = vpop.permute.xlu0 %5727
        %5731 = vset.pattern.permute.xlu0 0
        %5732 = vperm.xlu0 %5731, %v5652
        %v5733 = vpop.permute.xlu0 %5732
        %5736 = vset.pattern.permute.xlu0 0
        %5737 = vperm.xlu0 %5736, %v5653
        %v5738 = vpop.permute.xlu0 %5737
        %5741 = vset.pattern.permute.xlu0 0
        %5742 = vperm.xlu0 %5741, %v5654
        %v5743 = vpop.permute.xlu0 %5742
        %5746 = vset.pattern.permute.xlu0 0
        %5747 = vperm.xlu0 %5746, %v5655
        %v5748 = vpop.permute.xlu0 %5747
        %5751 = vset.pattern.permute.xlu0 0
        %5752 = vperm.xlu0 %5751, %v5656
        %v5753 = vpop.permute.xlu0 %5752
        %5756 = vset.pattern.permute.xlu0 0
        %5757 = vperm.xlu0 %5756, %v5657
        %v5758 = vpop.permute.xlu0 %5757
        %5761 = vset.pattern.permute.xlu0 0
        %5762 = vperm.xlu0 %5761, %v5658
        %v5763 = vpop.permute.xlu0 %5762
        %5766 = vset.pattern.permute.xlu0 0
        %5767 = vperm.xlu0 %5766, %v5659
        %v5768 = vpop.permute.xlu0 %5767
        %5771 = vset.pattern.permute.xlu0 0
        %5772 = vperm.xlu0 %5771, %v5660
        %v5773 = vpop.permute.xlu0 %5772
        %5776 = vset.pattern.permute.xlu0 0
        %5777 = vperm.xlu0 %5776, %v5661
        %v5778 = vpop.permute.xlu0 %5777
        %5781 = vset.pattern.permute.xlu0 0
        %5782 = vperm.xlu0 %5781, %v5662
        %v5783 = vpop.permute.xlu0 %5782
        %5786 = vset.pattern.permute.xlu0 0
        %5787 = vperm.xlu0 %5786, %v5663
        %v5788 = vpop.permute.xlu0 %5787
        %5791 = vset.pattern.permute.xlu0 0
        %5792 = vperm.xlu0 %5791, %v5664
        %v5793 = vpop.permute.xlu0 %5792
        %5796 = vset.pattern.permute.xlu0 0
        %5797 = vperm.xlu0 %5796, %v5665
        %v5798 = vpop.permute.xlu0 %5797
        %5801 = vset.pattern.permute.xlu0 0
        %5802 = vperm.xlu0 %5801, %v5666
        %v5803 = vpop.permute.xlu0 %5802
        %5806 = vset.pattern.permute.xlu0 0
        %5807 = vperm.xlu0 %5806, %v5667
        %v5808 = vpop.permute.xlu0 %5807
        %5811 = vset.pattern.permute.xlu0 0
        %5812 = vperm.xlu0 %5811, %v5668
        %v5813 = vpop.permute.xlu0 %5812
        %5816 = vset.pattern.permute.xlu0 0
        %5817 = vperm.xlu0 %5816, %v5669
        %v5818 = vpop.permute.xlu0 %5817
        %v5820 = vmul.f32 %v1042, %v5673
        %v5821 = vmul.f32 %v1043, %v5678
        %v5822 = vmul.f32 %v1044, %v5683
        %v5823 = vmul.f32 %v1045, %v5688
        %v5824 = vmul.f32 %v1046, %v5693
        %v5825 = vmul.f32 %v1047, %v5698
        %v5826 = vmul.f32 %v1048, %v5703
        %v5827 = vmul.f32 %v1049, %v5708
        %v5828 = vmul.f32 %v1050, %v5713
        %v5829 = vmul.f32 %v1051, %v5718
        %v5830 = vmul.f32 %v1052, %v5723
        %v5831 = vmul.f32 %v1053, %v5728
        %v5832 = vmul.f32 %v1054, %v5733
        %v5833 = vmul.f32 %v1055, %v5738
        %v5834 = vmul.f32 %v1056, %v5743
        %v5835 = vmul.f32 %v1057, %v5748
        %v5836 = vmul.f32 %v1058, %v5753
        %v5837 = vmul.f32 %v1059, %v5758
        %v5838 = vmul.f32 %v1060, %v5763
        %v5839 = vmul.f32 %v1061, %v5768
        %v5840 = vmul.f32 %v1062, %v5773
        %v5841 = vmul.f32 %v1063, %v5778
        %v5842 = vmul.f32 %v1064, %v5783
        %v5843 = vmul.f32 %v1065, %v5788
        %v5844 = vmul.f32 %v1066, %v5793
        %v5845 = vmul.f32 %v1067, %v5798
        %v5846 = vmul.f32 %v1068, %v5803
        %v5847 = vmul.f32 %v1069, %v5808
        %v5848 = vmul.f32 %v1070, %v5813
        %v5849 = vmul.f32 %v1071, %v5818
        %s5850 = scalar_lea.vmem %s4, 448
        %v5851 = vld [vmem:[%s5850] sm:$0xff]
        %v5852 = vld [vmem:[%s5850 + $0x8] sm:$0xff]
        %v5853 = vld [vmem:[%s5850 + $0x10] sm:$0xff]
        %v5854 = vld [vmem:[%s5850 + $0x18] sm:$0xff]
        %v5855 = vld [vmem:[%s5850 + $0x20] sm:$0xff]
        %v5856 = vld [vmem:[%s5850 + $0x28] sm:$0xff]
        %v5857 = vld [vmem:[%s5850 + $0x30] sm:$0xff]
        %v5858 = vld [vmem:[%s5850 + $0x38] sm:$0xff]
        %v5860 = vsel %vm1727, %v5820, 0
        %v5863 = vsel %vm1727, %v5821, 0
        %v5866 = vsel %vm1727, %v5822, 0
        %v5869 = vsel %vm1727, %v5823, 0
        %v5872 = vsel %vm1727, %v5824, 0
        %v5875 = vsel %vm1727, %v5825, 0
        %v5878 = vsel %vm1727, %v5826, 0
        %v5881 = vsel %vm1727, %v5827, 0
        %v5884 = vsel %vm1727, %v5828, 0
        %v5887 = vsel %vm1727, %v5829, 0
        %v5890 = vsel %vm1727, %v5830, 0
        %v5893 = vsel %vm1727, %v5831, 0
        %v5896 = vsel %vm1727, %v5832, 0
        %v5899 = vsel %vm1727, %v5833, 0
        %v5902 = vsel %vm1727, %v5834, 0
        %v5905 = vsel %vm1727, %v5835, 0
        %v5908 = vsel %vm1727, %v5836, 0
        %v5911 = vsel %vm1727, %v5837, 0
        %v5914 = vsel %vm1727, %v5838, 0
        %v5917 = vsel %vm1727, %v5839, 0
        %v5920 = vsel %vm1727, %v5840, 0
        %v5923 = vsel %vm1727, %v5841, 0
        %v5926 = vsel %vm1727, %v5842, 0
        %v5929 = vsel %vm1727, %v5843, 0
        %v5932 = vsel %vm1727, %v5844, 0
        %v5935 = vsel %vm1727, %v5845, 0
        %v5938 = vsel %vm1727, %v5846, 0
        %v5941 = vsel %vm1727, %v5847, 0
        %v5944 = vsel %vm1727, %v5848, 0
        %v5947 = vsel %vm1727, %v5849, 0
        %5949 = vmatprep.subr.mxu0 0.0
        %5950 = vmatpush1.msra.mxu0 0.0
        %5951 = vmatprep.subr.mxu0 0.0
        %5952 = vmatpush1.msra.mxu0 0.0
        %5953 = vmatprep.subr.mxu0 0.0
        %5954 = vmatpush1.msra.mxu0 0.0
        %5955 = vmatprep.subr.mxu0 0.0
        %5956 = vmatpush1.msra.mxu0 0.0
        %5957 = vmatprep.subr.mxu0 0.0
        %5958 = vmatpush1.msra.mxu0 0.0
        %5959 = vmatprep.subr.mxu0 0.0
        %5960 = vmatpush1.msra.mxu0 0.0
        %5961 = vmatprep.subr.mxu0 0.0
        %5962 = vmatpush1.msra.mxu0 0.0
        %5963 = vmatprep.subr.mxu0 0.0
        %5964 = vmatpush1.msra.mxu0 0.0
        %5965 = vmatprep.subr.mxu0 0.0
        %5966 = vmatpush1.msra.mxu0 %v5858
        %5967 = vmatprep.subr.mxu0 0.0
        %5968 = vmatpush1.msra.mxu0 %v5857
        %5969 = vmatprep.subr.mxu0 0.0
        %5970 = vmatpush1.msra.mxu0 %v5856
        %5971 = vmatprep.subr.mxu0 0.0
        %5972 = vmatpush1.msra.mxu0 %v5855
        %5973 = vmatprep.subr.mxu0 0.0
        %5974 = vmatpush1.msra.mxu0 %v5854
        %5975 = vmatprep.subr.mxu0 0.0
        %5976 = vmatpush1.msra.mxu0 %v5853
        %5977 = vmatprep.subr.mxu0 0.0
        %5978 = vmatpush1.msra.mxu0 %v5852
        %5979 = vmatprep.subr.mxu0 0.0
        %5980 = vmatpush1.msra.mxu0 %v5851
        %5981 = vmatprep.subr.mxu0 0.0
        %5982 = vmatpush2.msra.mxu0 0.0
        %5983 = vmatprep.subr.mxu0 0.0
        %5984 = vmatpush2.msra.mxu0 0.0
        %5985 = vmatprep.subr.mxu0 0.0
        %5986 = vmatpush2.msra.mxu0 0.0
        %5987 = vmatprep.subr.mxu0 0.0
        %5988 = vmatpush2.msra.mxu0 0.0
        %5989 = vmatprep.subr.mxu0 0.0
        %5990 = vmatpush2.msra.mxu0 0.0
        %5991 = vmatprep.subr.mxu0 0.0
        %5992 = vmatpush2.msra.mxu0 0.0
        %5993 = vmatprep.subr.mxu0 0.0
        %5994 = vmatpush2.msra.mxu0 0.0
        %5995 = vmatprep.subr.mxu0 0.0
        %5996 = vmatpush2.msra.mxu0 0.0
        %5997 = vmatprep.subr.mxu0 0.0
        %5998 = vmatpush2.msra.mxu0 0.0
        %5999 = vmatprep.subr.mxu0 0.0
        %6000 = vmatpush2.msra.mxu0 0.0
        %6001 = vmatprep.subr.mxu0 0.0
        %6002 = vmatpush2.msra.mxu0 0.0
        %6003 = vmatprep.subr.mxu0 0.0
        %6004 = vmatpush2.msra.mxu0 0.0
        %6005 = vmatprep.subr.mxu0 0.0
        %6006 = vmatpush2.msra.mxu0 0.0
        %6007 = vmatprep.subr.mxu0 0.0
        %6008 = vmatpush2.msra.mxu0 0.0
        %6009 = vmatprep.subr.mxu0 0.0
        %6010 = vmatpush2.msra.mxu0 0.0
        %6011 = vmatprep.subr.mxu0 0.0
        %6012 = vmatpush2.msra.mxu0 0.0
        %6013 = vmatprep.mubr.f32.mxu0 0.0
        %6014 = vmatmul.mubr.f32.gmra.mxu0 %v5860
        %v6015 = vpop.f32.mrf.mxu0
        %v6016 = vadd.f32 0.0, %v6015
        %v6017 = vpop.f32.mrf.mxu0
        %6018 = vmatprep.mubr.f32.mxu0 0.0
        %6019 = vmatmul.mubr.f32.gmra.mxu0 %v5863
        %v6020 = vpop.f32.mrf.mxu0
        %v6021 = vadd.f32 0.0, %v6020
        %v6022 = vpop.f32.mrf.mxu0
        %6023 = vmatprep.mubr.f32.mxu0 0.0
        %6024 = vmatmul.mubr.f32.gmra.mxu0 %v5866
        %v6025 = vpop.f32.mrf.mxu0
        %v6026 = vadd.f32 0.0, %v6025
        %v6027 = vpop.f32.mrf.mxu0
        %6028 = vmatprep.mubr.f32.mxu0 0.0
        %6029 = vmatmul.mubr.f32.gmra.mxu0 %v5869
        %v6030 = vpop.f32.mrf.mxu0
        %v6031 = vadd.f32 0.0, %v6030
        %v6032 = vpop.f32.mrf.mxu0
        %6033 = vmatprep.mubr.f32.mxu0 0.0
        %6034 = vmatmul.mubr.f32.gmra.mxu0 %v5872
        %v6035 = vpop.f32.mrf.mxu0
        %v6036 = vadd.f32 0.0, %v6035
        %v6037 = vpop.f32.mrf.mxu0
        %6038 = vmatprep.mubr.f32.mxu0 0.0
        %6039 = vmatmul.mubr.f32.gmra.mxu0 %v5875
        %v6040 = vpop.f32.mrf.mxu0
        %v6041 = vadd.f32 0.0, %v6040
        %v6042 = vpop.f32.mrf.mxu0
        %6043 = vmatprep.mubr.f32.mxu0 0.0
        %6044 = vmatmul.mubr.f32.gmra.mxu0 %v5878
        %v6045 = vpop.f32.mrf.mxu0
        %v6046 = vadd.f32 0.0, %v6045
        %v6047 = vpop.f32.mrf.mxu0
        %6048 = vmatprep.mubr.f32.mxu0 0.0
        %6049 = vmatmul.mubr.f32.gmra.mxu0 %v5881
        %v6050 = vpop.f32.mrf.mxu0
        %v6051 = vadd.f32 0.0, %v6050
        %v6052 = vpop.f32.mrf.mxu0
        %6053 = vmatprep.mubr.f32.mxu0 0.0
        %6054 = vmatmul.mubr.f32.gmra.mxu0 %v5884
        %v6055 = vpop.f32.mrf.mxu0
        %v6056 = vadd.f32 0.0, %v6055
        %v6057 = vpop.f32.mrf.mxu0
        %6058 = vmatprep.mubr.f32.mxu0 0.0
        %6059 = vmatmul.mubr.f32.gmra.mxu0 %v5887
        %v6060 = vpop.f32.mrf.mxu0
        %v6061 = vadd.f32 0.0, %v6060
        %v6062 = vpop.f32.mrf.mxu0
        %6063 = vmatprep.mubr.f32.mxu0 0.0
        %6064 = vmatmul.mubr.f32.gmra.mxu0 %v5890
        %v6065 = vpop.f32.mrf.mxu0
        %v6066 = vadd.f32 0.0, %v6065
        %v6067 = vpop.f32.mrf.mxu0
        %6068 = vmatprep.mubr.f32.mxu0 0.0
        %6069 = vmatmul.mubr.f32.gmra.mxu0 %v5893
        %v6070 = vpop.f32.mrf.mxu0
        %v6071 = vadd.f32 0.0, %v6070
        %v6072 = vpop.f32.mrf.mxu0
        %6073 = vmatprep.mubr.f32.mxu0 0.0
        %6074 = vmatmul.mubr.f32.gmra.mxu0 %v5896
        %v6075 = vpop.f32.mrf.mxu0
        %v6076 = vadd.f32 0.0, %v6075
        %v6077 = vpop.f32.mrf.mxu0
        %6078 = vmatprep.mubr.f32.mxu0 0.0
        %6079 = vmatmul.mubr.f32.gmra.mxu0 %v5899
        %v6080 = vpop.f32.mrf.mxu0
        %v6081 = vadd.f32 0.0, %v6080
        %v6082 = vpop.f32.mrf.mxu0
        %6083 = vmatprep.mubr.f32.mxu0 0.0
        %6084 = vmatmul.mubr.f32.gmra.mxu0 %v5902
        %v6085 = vpop.f32.mrf.mxu0
        %v6086 = vadd.f32 0.0, %v6085
        %v6087 = vpop.f32.mrf.mxu0
        %6088 = vmatprep.mubr.f32.mxu0 0.0
        %6089 = vmatmul.mubr.f32.gmra.mxu0 %v5905
        %v6090 = vpop.f32.mrf.mxu0
        %v6091 = vadd.f32 0.0, %v6090
        %v6092 = vpop.f32.mrf.mxu0
        %6093 = vmatprep.mubr.f32.mxu0 0.0
        %6094 = vmatmul.mubr.f32.gmra.mxu0 %v5908
        %v6095 = vpop.f32.mrf.mxu0
        %v6096 = vadd.f32 0.0, %v6095
        %v6097 = vpop.f32.mrf.mxu0
        %6098 = vmatprep.mubr.f32.mxu0 0.0
        %6099 = vmatmul.mubr.f32.gmra.mxu0 %v5911
        %v6100 = vpop.f32.mrf.mxu0
        %v6101 = vadd.f32 0.0, %v6100
        %v6102 = vpop.f32.mrf.mxu0
        %6103 = vmatprep.mubr.f32.mxu0 0.0
        %6104 = vmatmul.mubr.f32.gmra.mxu0 %v5914
        %v6105 = vpop.f32.mrf.mxu0
        %v6106 = vadd.f32 0.0, %v6105
        %v6107 = vpop.f32.mrf.mxu0
        %6108 = vmatprep.mubr.f32.mxu0 0.0
        %6109 = vmatmul.mubr.f32.gmra.mxu0 %v5917
        %v6110 = vpop.f32.mrf.mxu0
        %v6111 = vadd.f32 0.0, %v6110
        %v6112 = vpop.f32.mrf.mxu0
        %6113 = vmatprep.mubr.f32.mxu0 0.0
        %6114 = vmatmul.mubr.f32.gmra.mxu0 %v5920
        %v6115 = vpop.f32.mrf.mxu0
        %v6116 = vadd.f32 0.0, %v6115
        %v6117 = vpop.f32.mrf.mxu0
        %6118 = vmatprep.mubr.f32.mxu0 0.0
        %6119 = vmatmul.mubr.f32.gmra.mxu0 %v5923
        %v6120 = vpop.f32.mrf.mxu0
        %v6121 = vadd.f32 0.0, %v6120
        %v6122 = vpop.f32.mrf.mxu0
        %6123 = vmatprep.mubr.f32.mxu0 0.0
        %6124 = vmatmul.mubr.f32.gmra.mxu0 %v5926
        %v6125 = vpop.f32.mrf.mxu0
        %v6126 = vadd.f32 0.0, %v6125
        %v6127 = vpop.f32.mrf.mxu0
        %6128 = vmatprep.mubr.f32.mxu0 0.0
        %6129 = vmatmul.mubr.f32.gmra.mxu0 %v5929
        %v6130 = vpop.f32.mrf.mxu0
        %v6131 = vadd.f32 0.0, %v6130
        %v6132 = vpop.f32.mrf.mxu0
        %6133 = vmatprep.mubr.f32.mxu0 0.0
        %6134 = vmatmul.mubr.f32.gmra.mxu0 %v5932
        %v6135 = vpop.f32.mrf.mxu0
        %v6136 = vadd.f32 0.0, %v6135
        %v6137 = vpop.f32.mrf.mxu0
        %6138 = vmatprep.mubr.f32.mxu0 0.0
        %6139 = vmatmul.mubr.f32.gmra.mxu0 %v5935
        %v6140 = vpop.f32.mrf.mxu0
        %v6141 = vadd.f32 0.0, %v6140
        %v6142 = vpop.f32.mrf.mxu0
        %6143 = vmatprep.mubr.f32.mxu0 0.0
        %6144 = vmatmul.mubr.f32.gmra.mxu0 %v5938
        %v6145 = vpop.f32.mrf.mxu0
        %v6146 = vadd.f32 0.0, %v6145
        %v6147 = vpop.f32.mrf.mxu0
        %6148 = vmatprep.mubr.f32.mxu0 0.0
        %6149 = vmatmul.mubr.f32.gmra.mxu0 %v5941
        %v6150 = vpop.f32.mrf.mxu0
        %v6151 = vadd.f32 0.0, %v6150
        %v6152 = vpop.f32.mrf.mxu0
        %6153 = vmatprep.mubr.f32.mxu0 0.0
        %6154 = vmatmul.mubr.f32.gmra.mxu0 %v5944
        %v6155 = vpop.f32.mrf.mxu0
        %v6156 = vadd.f32 0.0, %v6155
        %v6157 = vpop.f32.mrf.mxu0
        %6158 = vmatprep.mubr.f32.mxu0 0.0
        %6159 = vmatmul.mubr.f32.gmra.mxu0 %v5947
        %v6160 = vpop.f32.mrf.mxu0
        %v6161 = vadd.f32 0.0, %v6160
        %v6162 = vpop.f32.mrf.mxu0
        %6163 = vdwg.mxu0
        %v6164 = vadd.f32 %v5609, %v6016
        %v6165 = vadd.f32 %v5610, %v6021
        %v6166 = vadd.f32 %v5611, %v6026
        %v6167 = vadd.f32 %v5612, %v6031
        %v6168 = vadd.f32 %v5613, %v6036
        %v6169 = vadd.f32 %v5614, %v6041
        %v6170 = vadd.f32 %v5615, %v6046
        %v6171 = vadd.f32 %v5616, %v6051
        %v6172 = vadd.f32 %v5617, %v6056
        %v6173 = vadd.f32 %v5618, %v6061
        %v6174 = vadd.f32 %v5619, %v6066
        %v6175 = vadd.f32 %v5620, %v6071
        %v6176 = vadd.f32 %v5621, %v6076
        %v6177 = vadd.f32 %v5622, %v6081
        %v6178 = vadd.f32 %v5623, %v6086
        %v6179 = vadd.f32 %v5624, %v6091
        %v6180 = vadd.f32 %v5625, %v6096
        %v6181 = vadd.f32 %v5626, %v6101
        %v6182 = vadd.f32 %v5627, %v6106
        %v6183 = vadd.f32 %v5628, %v6111
        %v6184 = vadd.f32 %v5629, %v6116
        %v6185 = vadd.f32 %v5630, %v6121
        %v6186 = vadd.f32 %v5631, %v6126
        %v6187 = vadd.f32 %v5632, %v6131
        %v6188 = vadd.f32 %v5633, %v6136
        %v6189 = vadd.f32 %v5634, %v6141
        %v6190 = vadd.f32 %v5635, %v6146
        %v6191 = vadd.f32 %v5636, %v6151
        %v6192 = vadd.f32 %v5637, %v6156
        %v6193 = vadd.f32 %v5638, %v6161
        %s6194 = scalar_lea.vmem %s1, 1920
        %v6195 = vld [vmem:[%s6194] sm:$0xff]
        %v6196 = vld [vmem:[%s6194 + $0x8] sm:$0xff]
        %v6197 = vld [vmem:[%s6194 + $0x10] sm:$0xff]
        %v6198 = vld [vmem:[%s6194 + $0x18] sm:$0xff]
        %v6199 = vld [vmem:[%s6194 + $0x20] sm:$0xff]
        %v6200 = vld [vmem:[%s6194 + $0x28] sm:$0xff]
        %v6201 = vld [vmem:[%s6194 + $0x30] sm:$0xff]
        %v6202 = vld [vmem:[%s6194 + $0x38] sm:$0xff]
        %v6203 = vld [vmem:[%s6194 + $0x40] sm:$0xff]
        %v6204 = vld [vmem:[%s6194 + $0x48] sm:$0xff]
        %v6205 = vld [vmem:[%s6194 + $0x50] sm:$0xff]
        %v6206 = vld [vmem:[%s6194 + $0x58] sm:$0xff]
        %v6207 = vld [vmem:[%s6194 + $0x60] sm:$0xff]
        %v6208 = vld [vmem:[%s6194 + $0x68] sm:$0xff]
        %v6209 = vld [vmem:[%s6194 + $0x70] sm:$0xff]
        %v6210 = vld [vmem:[%s6194 + $0x78] sm:$0xff]
        %v6211 = vld [vmem:[%s6194 + $0x80] sm:$0xff]
        %v6212 = vld [vmem:[%s6194 + $0x88] sm:$0xff]
        %v6213 = vld [vmem:[%s6194 + $0x90] sm:$0xff]
        %v6214 = vld [vmem:[%s6194 + $0x98] sm:$0xff]
        %v6215 = vld [vmem:[%s6194 + $0xa0] sm:$0xff]
        %v6216 = vld [vmem:[%s6194 + $0xa8] sm:$0xff]
        %v6217 = vld [vmem:[%s6194 + $0xb0] sm:$0xff]
        %v6218 = vld [vmem:[%s6194 + $0xb8] sm:$0xff]
        %v6219 = vld [vmem:[%s6194 + $0xc0] sm:$0xff]
        %v6220 = vld [vmem:[%s6194 + $0xc8] sm:$0xff]
        %v6221 = vld [vmem:[%s6194 + $0xd0] sm:$0xff]
        %v6222 = vld [vmem:[%s6194 + $0xd8] sm:$0xff]
        %v6223 = vld [vmem:[%s6194 + $0xe0] sm:$0xff]
        %v6224 = vld [vmem:[%s6194 + $0xe8] sm:$0xff]
        %6226 = vset.pattern.permute.xlu0 0
        %6227 = vperm.xlu0 %6226, %v6195
        %v6228 = vpop.permute.xlu0 %6227
        %6230 = vset.pattern.permute.xlu0 0
        %6231 = vperm.xlu0 %6230, %v6196
        %v6232 = vpop.permute.xlu0 %6231
        %6234 = vset.pattern.permute.xlu0 0
        %6235 = vperm.xlu0 %6234, %v6197
        %v6236 = vpop.permute.xlu0 %6235
        %6238 = vset.pattern.permute.xlu0 0
        %6239 = vperm.xlu0 %6238, %v6198
        %v6240 = vpop.permute.xlu0 %6239
        %6242 = vset.pattern.permute.xlu0 0
        %6243 = vperm.xlu0 %6242, %v6199
        %v6244 = vpop.permute.xlu0 %6243
        %6246 = vset.pattern.permute.xlu0 0
        %6247 = vperm.xlu0 %6246, %v6200
        %v6248 = vpop.permute.xlu0 %6247
        %6250 = vset.pattern.permute.xlu0 0
        %6251 = vperm.xlu0 %6250, %v6201
        %v6252 = vpop.permute.xlu0 %6251
        %6254 = vset.pattern.permute.xlu0 0
        %6255 = vperm.xlu0 %6254, %v6202
        %v6256 = vpop.permute.xlu0 %6255
        %6258 = vset.pattern.permute.xlu0 0
        %6259 = vperm.xlu0 %6258, %v6203
        %v6260 = vpop.permute.xlu0 %6259
        %6262 = vset.pattern.permute.xlu0 0
        %6263 = vperm.xlu0 %6262, %v6204
        %v6264 = vpop.permute.xlu0 %6263
        %6266 = vset.pattern.permute.xlu0 0
        %6267 = vperm.xlu0 %6266, %v6205
        %v6268 = vpop.permute.xlu0 %6267
        %6270 = vset.pattern.permute.xlu0 0
        %6271 = vperm.xlu0 %6270, %v6206
        %v6272 = vpop.permute.xlu0 %6271
        %6274 = vset.pattern.permute.xlu0 0
        %6275 = vperm.xlu0 %6274, %v6207
        %v6276 = vpop.permute.xlu0 %6275
        %6278 = vset.pattern.permute.xlu0 0
        %6279 = vperm.xlu0 %6278, %v6208
        %v6280 = vpop.permute.xlu0 %6279
        %6282 = vset.pattern.permute.xlu0 0
        %6283 = vperm.xlu0 %6282, %v6209
        %v6284 = vpop.permute.xlu0 %6283
        %6286 = vset.pattern.permute.xlu0 0
        %6287 = vperm.xlu0 %6286, %v6210
        %v6288 = vpop.permute.xlu0 %6287
        %6290 = vset.pattern.permute.xlu0 0
        %6291 = vperm.xlu0 %6290, %v6211
        %v6292 = vpop.permute.xlu0 %6291
        %6294 = vset.pattern.permute.xlu0 0
        %6295 = vperm.xlu0 %6294, %v6212
        %v6296 = vpop.permute.xlu0 %6295
        %6298 = vset.pattern.permute.xlu0 0
        %6299 = vperm.xlu0 %6298, %v6213
        %v6300 = vpop.permute.xlu0 %6299
        %6302 = vset.pattern.permute.xlu0 0
        %6303 = vperm.xlu0 %6302, %v6214
        %v6304 = vpop.permute.xlu0 %6303
        %6306 = vset.pattern.permute.xlu0 0
        %6307 = vperm.xlu0 %6306, %v6215
        %v6308 = vpop.permute.xlu0 %6307
        %6310 = vset.pattern.permute.xlu0 0
        %6311 = vperm.xlu0 %6310, %v6216
        %v6312 = vpop.permute.xlu0 %6311
        %6314 = vset.pattern.permute.xlu0 0
        %6315 = vperm.xlu0 %6314, %v6217
        %v6316 = vpop.permute.xlu0 %6315
        %6318 = vset.pattern.permute.xlu0 0
        %6319 = vperm.xlu0 %6318, %v6218
        %v6320 = vpop.permute.xlu0 %6319
        %6322 = vset.pattern.permute.xlu0 0
        %6323 = vperm.xlu0 %6322, %v6219
        %v6324 = vpop.permute.xlu0 %6323
        %6326 = vset.pattern.permute.xlu0 0
        %6327 = vperm.xlu0 %6326, %v6220
        %v6328 = vpop.permute.xlu0 %6327
        %6330 = vset.pattern.permute.xlu0 0
        %6331 = vperm.xlu0 %6330, %v6221
        %v6332 = vpop.permute.xlu0 %6331
        %6334 = vset.pattern.permute.xlu0 0
        %6335 = vperm.xlu0 %6334, %v6222
        %v6336 = vpop.permute.xlu0 %6335
        %6338 = vset.pattern.permute.xlu0 0
        %6339 = vperm.xlu0 %6338, %v6223
        %v6340 = vpop.permute.xlu0 %6339
        %6342 = vset.pattern.permute.xlu0 0
        %6343 = vperm.xlu0 %6342, %v6224
        %v6344 = vpop.permute.xlu0 %6343
        %v6345 = vrot.slane %v6228, 7
        %v6346 = vrot.slane %v6232, 7
        %v6347 = vsel %vm1222, %v6345, %v6346
        %v6348 = vrot.slane %v6236, 7
        %v6349 = vsel %vm1222, %v6346, %v6348
        %v6350 = vrot.slane %v6240, 7
        %v6351 = vsel %vm1222, %v6348, %v6350
        %v6352 = vrot.slane %v6244, 7
        %v6353 = vsel %vm1222, %v6350, %v6352
        %v6354 = vrot.slane %v6248, 7
        %v6355 = vsel %vm1222, %v6352, %v6354
        %v6356 = vrot.slane %v6252, 7
        %v6357 = vsel %vm1222, %v6354, %v6356
        %v6358 = vrot.slane %v6256, 7
        %v6359 = vsel %vm1222, %v6356, %v6358
        %v6360 = vrot.slane %v6260, 7
        %v6361 = vsel %vm1222, %v6358, %v6360
        %v6362 = vrot.slane %v6264, 7
        %v6363 = vsel %vm1222, %v6360, %v6362
        %v6364 = vrot.slane %v6268, 7
        %v6365 = vsel %vm1222, %v6362, %v6364
        %v6366 = vrot.slane %v6272, 7
        %v6367 = vsel %vm1222, %v6364, %v6366
        %v6368 = vrot.slane %v6276, 7
        %v6369 = vsel %vm1222, %v6366, %v6368
        %v6370 = vrot.slane %v6280, 7
        %v6371 = vsel %vm1222, %v6368, %v6370
        %v6372 = vrot.slane %v6284, 7
        %v6373 = vsel %vm1222, %v6370, %v6372
        %v6374 = vrot.slane %v6288, 7
        %v6375 = vsel %vm1222, %v6372, %v6374
        %v6376 = vrot.slane %v6292, 7
        %v6377 = vsel %vm1222, %v6374, %v6376
        %v6378 = vrot.slane %v6296, 7
        %v6379 = vsel %vm1222, %v6376, %v6378
        %v6380 = vrot.slane %v6300, 7
        %v6381 = vsel %vm1222, %v6378, %v6380
        %v6382 = vrot.slane %v6304, 7
        %v6383 = vsel %vm1222, %v6380, %v6382
        %v6384 = vrot.slane %v6308, 7
        %v6385 = vsel %vm1222, %v6382, %v6384
        %v6386 = vrot.slane %v6312, 7
        %v6387 = vsel %vm1222, %v6384, %v6386
        %v6388 = vrot.slane %v6316, 7
        %v6389 = vsel %vm1222, %v6386, %v6388
        %v6390 = vrot.slane %v6320, 7
        %v6391 = vsel %vm1222, %v6388, %v6390
        %v6392 = vrot.slane %v6324, 7
        %v6393 = vsel %vm1222, %v6390, %v6392
        %v6394 = vrot.slane %v6328, 7
        %v6395 = vsel %vm1222, %v6392, %v6394
        %v6396 = vrot.slane %v6332, 7
        %v6397 = vsel %vm1222, %v6394, %v6396
        %v6398 = vrot.slane %v6336, 7
        %v6399 = vsel %vm1222, %v6396, %v6398
        %v6400 = vrot.slane %v6340, 7
        %v6401 = vsel %vm1222, %v6398, %v6400
        %v6402 = vrot.slane %v6344, 7
        %v6403 = vsel %vm1222, %v6400, %v6402
        %v6435 = vmul.f32 %v1042, %v6345
        %v6436 = vmul.f32 %v1043, %v6347
        %v6437 = vmul.f32 %v1044, %v6349
        %v6438 = vmul.f32 %v1045, %v6351
        %v6439 = vmul.f32 %v1046, %v6353
        %v6440 = vmul.f32 %v1047, %v6355
        %v6441 = vmul.f32 %v1048, %v6357
        %v6442 = vmul.f32 %v1049, %v6359
        %v6443 = vmul.f32 %v1050, %v6361
        %v6444 = vmul.f32 %v1051, %v6363
        %v6445 = vmul.f32 %v1052, %v6365
        %v6446 = vmul.f32 %v1053, %v6367
        %v6447 = vmul.f32 %v1054, %v6369
        %v6448 = vmul.f32 %v1055, %v6371
        %v6449 = vmul.f32 %v1056, %v6373
        %v6450 = vmul.f32 %v1057, %v6375
        %v6451 = vmul.f32 %v1058, %v6377
        %v6452 = vmul.f32 %v1059, %v6379
        %v6453 = vmul.f32 %v1060, %v6381
        %v6454 = vmul.f32 %v1061, %v6383
        %v6455 = vmul.f32 %v1062, %v6385
        %v6456 = vmul.f32 %v1063, %v6387
        %v6457 = vmul.f32 %v1064, %v6389
        %v6458 = vmul.f32 %v1065, %v6391
        %v6459 = vmul.f32 %v1066, %v6393
        %v6460 = vmul.f32 %v1067, %v6395
        %v6461 = vmul.f32 %v1068, %v6397
        %v6462 = vmul.f32 %v1069, %v6399
        %v6463 = vmul.f32 %v1070, %v6401
        %v6464 = vmul.f32 %v1071, %v6403
        %v6465 = vmul.f32 %v6402, 0.0
        %s6466 = scalar_lea.vmem %s4, 512
        %v6467 = vld [vmem:[%s6466] sm:$0xff]
        %v6468 = vld [vmem:[%s6466 + $0x8] sm:$0xff]
        %v6469 = vld [vmem:[%s6466 + $0x10] sm:$0xff]
        %v6470 = vld [vmem:[%s6466 + $0x18] sm:$0xff]
        %v6471 = vld [vmem:[%s6466 + $0x20] sm:$0xff]
        %v6472 = vld [vmem:[%s6466 + $0x28] sm:$0xff]
        %v6473 = vld [vmem:[%s6466 + $0x30] sm:$0xff]
        %v6474 = vld [vmem:[%s6466 + $0x38] sm:$0xff]
        %v6506 = vrot.slane %v6435, 1
        %v6507 = vrot.slane %v6436, 1
        %v6508 = vsel %vm553, %v6506, %v6507
        %v6509 = vrot.slane %v6437, 1
        %v6510 = vsel %vm553, %v6507, %v6509
        %v6511 = vrot.slane %v6438, 1
        %v6512 = vsel %vm553, %v6509, %v6511
        %v6513 = vrot.slane %v6439, 1
        %v6514 = vsel %vm553, %v6511, %v6513
        %v6515 = vrot.slane %v6440, 1
        %v6516 = vsel %vm553, %v6513, %v6515
        %v6517 = vrot.slane %v6441, 1
        %v6518 = vsel %vm553, %v6515, %v6517
        %v6519 = vrot.slane %v6442, 1
        %v6520 = vsel %vm553, %v6517, %v6519
        %v6521 = vrot.slane %v6443, 1
        %v6522 = vsel %vm553, %v6519, %v6521
        %v6523 = vrot.slane %v6444, 1
        %v6524 = vsel %vm553, %v6521, %v6523
        %v6525 = vrot.slane %v6445, 1
        %v6526 = vsel %vm553, %v6523, %v6525
        %v6527 = vrot.slane %v6446, 1
        %v6528 = vsel %vm553, %v6525, %v6527
        %v6529 = vrot.slane %v6447, 1
        %v6530 = vsel %vm553, %v6527, %v6529
        %v6531 = vrot.slane %v6448, 1
        %v6532 = vsel %vm553, %v6529, %v6531
        %v6533 = vrot.slane %v6449, 1
        %v6534 = vsel %vm553, %v6531, %v6533
        %v6535 = vrot.slane %v6450, 1
        %v6536 = vsel %vm553, %v6533, %v6535
        %v6537 = vrot.slane %v6451, 1
        %v6538 = vsel %vm553, %v6535, %v6537
        %v6539 = vrot.slane %v6452, 1
        %v6540 = vsel %vm553, %v6537, %v6539
        %v6541 = vrot.slane %v6453, 1
        %v6542 = vsel %vm553, %v6539, %v6541
        %v6543 = vrot.slane %v6454, 1
        %v6544 = vsel %vm553, %v6541, %v6543
        %v6545 = vrot.slane %v6455, 1
        %v6546 = vsel %vm553, %v6543, %v6545
        %v6547 = vrot.slane %v6456, 1
        %v6548 = vsel %vm553, %v6545, %v6547
        %v6549 = vrot.slane %v6457, 1
        %v6550 = vsel %vm553, %v6547, %v6549
        %v6551 = vrot.slane %v6458, 1
        %v6552 = vsel %vm553, %v6549, %v6551
        %v6553 = vrot.slane %v6459, 1
        %v6554 = vsel %vm553, %v6551, %v6553
        %v6555 = vrot.slane %v6460, 1
        %v6556 = vsel %vm553, %v6553, %v6555
        %v6557 = vrot.slane %v6461, 1
        %v6558 = vsel %vm553, %v6555, %v6557
        %v6559 = vrot.slane %v6462, 1
        %v6560 = vsel %vm553, %v6557, %v6559
        %v6561 = vrot.slane %v6463, 1
        %v6562 = vsel %vm553, %v6559, %v6561
        %v6563 = vrot.slane %v6464, 1
        %v6564 = vsel %vm553, %v6561, %v6563
        %v6565 = vrot.slane %v6465, 1
        %v6566 = vsel %vm553, %v6563, %v6565
        %v6567 = vsel %vm1727, %v6508, 0
        %v6569 = vsel %vm1727, %v6510, 0
        %v6571 = vsel %vm1727, %v6512, 0
        %v6573 = vsel %vm1727, %v6514, 0
        %v6575 = vsel %vm1727, %v6516, 0
        %v6577 = vsel %vm1727, %v6518, 0
        %v6579 = vsel %vm1727, %v6520, 0
        %v6581 = vsel %vm1727, %v6522, 0
        %v6583 = vsel %vm1727, %v6524, 0
        %v6585 = vsel %vm1727, %v6526, 0
        %v6587 = vsel %vm1727, %v6528, 0
        %v6589 = vsel %vm1727, %v6530, 0
        %v6591 = vsel %vm1727, %v6532, 0
        %v6593 = vsel %vm1727, %v6534, 0
        %v6595 = vsel %vm1727, %v6536, 0
        %v6597 = vsel %vm1727, %v6538, 0
        %v6599 = vsel %vm1727, %v6540, 0
        %v6601 = vsel %vm1727, %v6542, 0
        %v6603 = vsel %vm1727, %v6544, 0
        %v6605 = vsel %vm1727, %v6546, 0
        %v6607 = vsel %vm1727, %v6548, 0
        %v6609 = vsel %vm1727, %v6550, 0
        %v6611 = vsel %vm1727, %v6552, 0
        %v6613 = vsel %vm1727, %v6554, 0
        %v6615 = vsel %vm1727, %v6556, 0
        %v6617 = vsel %vm1727, %v6558, 0
        %v6619 = vsel %vm1727, %v6560, 0
        %v6621 = vsel %vm1727, %v6562, 0
        %v6623 = vsel %vm1727, %v6564, 0
        %v6625 = vsel %vm1727, %v6566, 0
        %6627 = vmatprep.subr.mxu0 0.0
        %6628 = vmatpush1.msra.mxu0 0.0
        %6629 = vmatprep.subr.mxu0 0.0
        %6630 = vmatpush1.msra.mxu0 0.0
        %6631 = vmatprep.subr.mxu0 0.0
        %6632 = vmatpush1.msra.mxu0 0.0
        %6633 = vmatprep.subr.mxu0 0.0
        %6634 = vmatpush1.msra.mxu0 0.0
        %6635 = vmatprep.subr.mxu0 0.0
        %6636 = vmatpush1.msra.mxu0 0.0
        %6637 = vmatprep.subr.mxu0 0.0
        %6638 = vmatpush1.msra.mxu0 0.0
        %6639 = vmatprep.subr.mxu0 0.0
        %6640 = vmatpush1.msra.mxu0 0.0
        %6641 = vmatprep.subr.mxu0 0.0
        %6642 = vmatpush1.msra.mxu0 0.0
        %6643 = vmatprep.subr.mxu0 0.0
        %6644 = vmatpush1.msra.mxu0 %v6474
        %6645 = vmatprep.subr.mxu0 0.0
        %6646 = vmatpush1.msra.mxu0 %v6473
        %6647 = vmatprep.subr.mxu0 0.0
        %6648 = vmatpush1.msra.mxu0 %v6472
        %6649 = vmatprep.subr.mxu0 0.0
        %6650 = vmatpush1.msra.mxu0 %v6471
        %6651 = vmatprep.subr.mxu0 0.0
        %6652 = vmatpush1.msra.mxu0 %v6470
        %6653 = vmatprep.subr.mxu0 0.0
        %6654 = vmatpush1.msra.mxu0 %v6469
        %6655 = vmatprep.subr.mxu0 0.0
        %6656 = vmatpush1.msra.mxu0 %v6468
        %6657 = vmatprep.subr.mxu0 0.0
        %6658 = vmatpush1.msra.mxu0 %v6467
        %6659 = vmatprep.subr.mxu0 0.0
        %6660 = vmatpush2.msra.mxu0 0.0
        %6661 = vmatprep.subr.mxu0 0.0
        %6662 = vmatpush2.msra.mxu0 0.0
        %6663 = vmatprep.subr.mxu0 0.0
        %6664 = vmatpush2.msra.mxu0 0.0
        %6665 = vmatprep.subr.mxu0 0.0
        %6666 = vmatpush2.msra.mxu0 0.0
        %6667 = vmatprep.subr.mxu0 0.0
        %6668 = vmatpush2.msra.mxu0 0.0
        %6669 = vmatprep.subr.mxu0 0.0
        %6670 = vmatpush2.msra.mxu0 0.0
        %6671 = vmatprep.subr.mxu0 0.0
        %6672 = vmatpush2.msra.mxu0 0.0
        %6673 = vmatprep.subr.mxu0 0.0
        %6674 = vmatpush2.msra.mxu0 0.0
        %6675 = vmatprep.subr.mxu0 0.0
        %6676 = vmatpush2.msra.mxu0 0.0
        %6677 = vmatprep.subr.mxu0 0.0
        %6678 = vmatpush2.msra.mxu0 0.0
        %6679 = vmatprep.subr.mxu0 0.0
        %6680 = vmatpush2.msra.mxu0 0.0
        %6681 = vmatprep.subr.mxu0 0.0
        %6682 = vmatpush2.msra.mxu0 0.0
        %6683 = vmatprep.subr.mxu0 0.0
        %6684 = vmatpush2.msra.mxu0 0.0
        %6685 = vmatprep.subr.mxu0 0.0
        %6686 = vmatpush2.msra.mxu0 0.0
        %6687 = vmatprep.subr.mxu0 0.0
        %6688 = vmatpush2.msra.mxu0 0.0
        %6689 = vmatprep.subr.mxu0 0.0
        %6690 = vmatpush2.msra.mxu0 0.0
        %6691 = vmatprep.mubr.f32.mxu0 0.0
        %6692 = vmatmul.mubr.f32.gmra.mxu0 %v6567
        %v6693 = vpop.f32.mrf.mxu0
        %v6694 = vadd.f32 0.0, %v6693
        %v6695 = vpop.f32.mrf.mxu0
        %6696 = vmatprep.mubr.f32.mxu0 0.0
        %6697 = vmatmul.mubr.f32.gmra.mxu0 %v6569
        %v6698 = vpop.f32.mrf.mxu0
        %v6699 = vadd.f32 0.0, %v6698
        %v6700 = vpop.f32.mrf.mxu0
        %6701 = vmatprep.mubr.f32.mxu0 0.0
        %6702 = vmatmul.mubr.f32.gmra.mxu0 %v6571
        %v6703 = vpop.f32.mrf.mxu0
        %v6704 = vadd.f32 0.0, %v6703
        %v6705 = vpop.f32.mrf.mxu0
        %6706 = vmatprep.mubr.f32.mxu0 0.0
        %6707 = vmatmul.mubr.f32.gmra.mxu0 %v6573
        %v6708 = vpop.f32.mrf.mxu0
        %v6709 = vadd.f32 0.0, %v6708
        %v6710 = vpop.f32.mrf.mxu0
        %6711 = vmatprep.mubr.f32.mxu0 0.0
        %6712 = vmatmul.mubr.f32.gmra.mxu0 %v6575
        %v6713 = vpop.f32.mrf.mxu0
        %v6714 = vadd.f32 0.0, %v6713
        %v6715 = vpop.f32.mrf.mxu0
        %6716 = vmatprep.mubr.f32.mxu0 0.0
        %6717 = vmatmul.mubr.f32.gmra.mxu0 %v6577
        %v6718 = vpop.f32.mrf.mxu0
        %v6719 = vadd.f32 0.0, %v6718
        %v6720 = vpop.f32.mrf.mxu0
        %6721 = vmatprep.mubr.f32.mxu0 0.0
        %6722 = vmatmul.mubr.f32.gmra.mxu0 %v6579
        %v6723 = vpop.f32.mrf.mxu0
        %v6724 = vadd.f32 0.0, %v6723
        %v6725 = vpop.f32.mrf.mxu0
        %6726 = vmatprep.mubr.f32.mxu0 0.0
        %6727 = vmatmul.mubr.f32.gmra.mxu0 %v6581
        %v6728 = vpop.f32.mrf.mxu0
        %v6729 = vadd.f32 0.0, %v6728
        %v6730 = vpop.f32.mrf.mxu0
        %6731 = vmatprep.mubr.f32.mxu0 0.0
        %6732 = vmatmul.mubr.f32.gmra.mxu0 %v6583
        %v6733 = vpop.f32.mrf.mxu0
        %v6734 = vadd.f32 0.0, %v6733
        %v6735 = vpop.f32.mrf.mxu0
        %6736 = vmatprep.mubr.f32.mxu0 0.0
        %6737 = vmatmul.mubr.f32.gmra.mxu0 %v6585
        %v6738 = vpop.f32.mrf.mxu0
        %v6739 = vadd.f32 0.0, %v6738
        %v6740 = vpop.f32.mrf.mxu0
        %6741 = vmatprep.mubr.f32.mxu0 0.0
        %6742 = vmatmul.mubr.f32.gmra.mxu0 %v6587
        %v6743 = vpop.f32.mrf.mxu0
        %v6744 = vadd.f32 0.0, %v6743
        %v6745 = vpop.f32.mrf.mxu0
        %6746 = vmatprep.mubr.f32.mxu0 0.0
        %6747 = vmatmul.mubr.f32.gmra.mxu0 %v6589
        %v6748 = vpop.f32.mrf.mxu0
        %v6749 = vadd.f32 0.0, %v6748
        %v6750 = vpop.f32.mrf.mxu0
        %6751 = vmatprep.mubr.f32.mxu0 0.0
        %6752 = vmatmul.mubr.f32.gmra.mxu0 %v6591
        %v6753 = vpop.f32.mrf.mxu0
        %v6754 = vadd.f32 0.0, %v6753
        %v6755 = vpop.f32.mrf.mxu0
        %6756 = vmatprep.mubr.f32.mxu0 0.0
        %6757 = vmatmul.mubr.f32.gmra.mxu0 %v6593
        %v6758 = vpop.f32.mrf.mxu0
        %v6759 = vadd.f32 0.0, %v6758
        %v6760 = vpop.f32.mrf.mxu0
        %6761 = vmatprep.mubr.f32.mxu0 0.0
        %6762 = vmatmul.mubr.f32.gmra.mxu0 %v6595
        %v6763 = vpop.f32.mrf.mxu0
        %v6764 = vadd.f32 0.0, %v6763
        %v6765 = vpop.f32.mrf.mxu0
        %6766 = vmatprep.mubr.f32.mxu0 0.0
        %6767 = vmatmul.mubr.f32.gmra.mxu0 %v6597
        %v6768 = vpop.f32.mrf.mxu0
        %v6769 = vadd.f32 0.0, %v6768
        %v6770 = vpop.f32.mrf.mxu0
        %6771 = vmatprep.mubr.f32.mxu0 0.0
        %6772 = vmatmul.mubr.f32.gmra.mxu0 %v6599
        %v6773 = vpop.f32.mrf.mxu0
        %v6774 = vadd.f32 0.0, %v6773
        %v6775 = vpop.f32.mrf.mxu0
        %6776 = vmatprep.mubr.f32.mxu0 0.0
        %6777 = vmatmul.mubr.f32.gmra.mxu0 %v6601
        %v6778 = vpop.f32.mrf.mxu0
        %v6779 = vadd.f32 0.0, %v6778
        %v6780 = vpop.f32.mrf.mxu0
        %6781 = vmatprep.mubr.f32.mxu0 0.0
        %6782 = vmatmul.mubr.f32.gmra.mxu0 %v6603
        %v6783 = vpop.f32.mrf.mxu0
        %v6784 = vadd.f32 0.0, %v6783
        %v6785 = vpop.f32.mrf.mxu0
        %6786 = vmatprep.mubr.f32.mxu0 0.0
        %6787 = vmatmul.mubr.f32.gmra.mxu0 %v6605
        %v6788 = vpop.f32.mrf.mxu0
        %v6789 = vadd.f32 0.0, %v6788
        %v6790 = vpop.f32.mrf.mxu0
        %6791 = vmatprep.mubr.f32.mxu0 0.0
        %6792 = vmatmul.mubr.f32.gmra.mxu0 %v6607
        %v6793 = vpop.f32.mrf.mxu0
        %v6794 = vadd.f32 0.0, %v6793
        %v6795 = vpop.f32.mrf.mxu0
        %6796 = vmatprep.mubr.f32.mxu0 0.0
        %6797 = vmatmul.mubr.f32.gmra.mxu0 %v6609
        %v6798 = vpop.f32.mrf.mxu0
        %v6799 = vadd.f32 0.0, %v6798
        %v6800 = vpop.f32.mrf.mxu0
        %6801 = vmatprep.mubr.f32.mxu0 0.0
        %6802 = vmatmul.mubr.f32.gmra.mxu0 %v6611
        %v6803 = vpop.f32.mrf.mxu0
        %v6804 = vadd.f32 0.0, %v6803
        %v6805 = vpop.f32.mrf.mxu0
        %6806 = vmatprep.mubr.f32.mxu0 0.0
        %6807 = vmatmul.mubr.f32.gmra.mxu0 %v6613
        %v6808 = vpop.f32.mrf.mxu0
        %v6809 = vadd.f32 0.0, %v6808
        %v6810 = vpop.f32.mrf.mxu0
        %6811 = vmatprep.mubr.f32.mxu0 0.0
        %6812 = vmatmul.mubr.f32.gmra.mxu0 %v6615
        %v6813 = vpop.f32.mrf.mxu0
        %v6814 = vadd.f32 0.0, %v6813
        %v6815 = vpop.f32.mrf.mxu0
        %6816 = vmatprep.mubr.f32.mxu0 0.0
        %6817 = vmatmul.mubr.f32.gmra.mxu0 %v6617
        %v6818 = vpop.f32.mrf.mxu0
        %v6819 = vadd.f32 0.0, %v6818
        %v6820 = vpop.f32.mrf.mxu0
        %6821 = vmatprep.mubr.f32.mxu0 0.0
        %6822 = vmatmul.mubr.f32.gmra.mxu0 %v6619
        %v6823 = vpop.f32.mrf.mxu0
        %v6824 = vadd.f32 0.0, %v6823
        %v6825 = vpop.f32.mrf.mxu0
        %6826 = vmatprep.mubr.f32.mxu0 0.0
        %6827 = vmatmul.mubr.f32.gmra.mxu0 %v6621
        %v6828 = vpop.f32.mrf.mxu0
        %v6829 = vadd.f32 0.0, %v6828
        %v6830 = vpop.f32.mrf.mxu0
        %6831 = vmatprep.mubr.f32.mxu0 0.0
        %6832 = vmatmul.mubr.f32.gmra.mxu0 %v6623
        %v6833 = vpop.f32.mrf.mxu0
        %v6834 = vadd.f32 0.0, %v6833
        %v6835 = vpop.f32.mrf.mxu0
        %6836 = vmatprep.mubr.f32.mxu0 0.0
        %6837 = vmatmul.mubr.f32.gmra.mxu0 %v6625
        %v6838 = vpop.f32.mrf.mxu0
        %v6839 = vadd.f32 0.0, %v6838
        %v6840 = vpop.f32.mrf.mxu0
        %6841 = vdwg.mxu0
        %v6842 = vadd.f32 %v6164, %v6694
        %v6843 = vadd.f32 %v6165, %v6699
        %v6844 = vadd.f32 %v6166, %v6704
        %v6845 = vadd.f32 %v6167, %v6709
        %v6846 = vadd.f32 %v6168, %v6714
        %v6847 = vadd.f32 %v6169, %v6719
        %v6848 = vadd.f32 %v6170, %v6724
        %v6849 = vadd.f32 %v6171, %v6729
        %v6850 = vadd.f32 %v6172, %v6734
        %v6851 = vadd.f32 %v6173, %v6739
        %v6852 = vadd.f32 %v6174, %v6744
        %v6853 = vadd.f32 %v6175, %v6749
        %v6854 = vadd.f32 %v6176, %v6754
        %v6855 = vadd.f32 %v6177, %v6759
        %v6856 = vadd.f32 %v6178, %v6764
        %v6857 = vadd.f32 %v6179, %v6769
        %v6858 = vadd.f32 %v6180, %v6774
        %v6859 = vadd.f32 %v6181, %v6779
        %v6860 = vadd.f32 %v6182, %v6784
        %v6861 = vadd.f32 %v6183, %v6789
        %v6862 = vadd.f32 %v6184, %v6794
        %v6863 = vadd.f32 %v6185, %v6799
        %v6864 = vadd.f32 %v6186, %v6804
        %v6865 = vadd.f32 %v6187, %v6809
        %v6866 = vadd.f32 %v6188, %v6814
        %v6867 = vadd.f32 %v6189, %v6819
        %v6868 = vadd.f32 %v6190, %v6824
        %v6869 = vadd.f32 %v6191, %v6829
        %v6870 = vadd.f32 %v6192, %v6834
        %v6871 = vadd.f32 %v6193, %v6839
        %s6872 = scalar_lea.vmem %s1, 2160
        %v6873 = vld [vmem:[%s6872] sm:$0xff]
        %v6874 = vld [vmem:[%s6872 + $0x8] sm:$0xff]
        %v6875 = vld [vmem:[%s6872 + $0x10] sm:$0xff]
        %v6876 = vld [vmem:[%s6872 + $0x18] sm:$0xff]
        %v6877 = vld [vmem:[%s6872 + $0x20] sm:$0xff]
        %v6878 = vld [vmem:[%s6872 + $0x28] sm:$0xff]
        %v6879 = vld [vmem:[%s6872 + $0x30] sm:$0xff]
        %v6880 = vld [vmem:[%s6872 + $0x38] sm:$0xff]
        %v6881 = vld [vmem:[%s6872 + $0x40] sm:$0xff]
        %v6882 = vld [vmem:[%s6872 + $0x48] sm:$0xff]
        %v6883 = vld [vmem:[%s6872 + $0x50] sm:$0xff]
        %v6884 = vld [vmem:[%s6872 + $0x58] sm:$0xff]
        %v6885 = vld [vmem:[%s6872 + $0x60] sm:$0xff]
        %v6886 = vld [vmem:[%s6872 + $0x68] sm:$0xff]
        %v6887 = vld [vmem:[%s6872 + $0x70] sm:$0xff]
        %v6888 = vld [vmem:[%s6872 + $0x78] sm:$0xff]
        %v6889 = vld [vmem:[%s6872 + $0x80] sm:$0xff]
        %v6890 = vld [vmem:[%s6872 + $0x88] sm:$0xff]
        %v6891 = vld [vmem:[%s6872 + $0x90] sm:$0xff]
        %v6892 = vld [vmem:[%s6872 + $0x98] sm:$0xff]
        %v6893 = vld [vmem:[%s6872 + $0xa0] sm:$0xff]
        %v6894 = vld [vmem:[%s6872 + $0xa8] sm:$0xff]
        %v6895 = vld [vmem:[%s6872 + $0xb0] sm:$0xff]
        %v6896 = vld [vmem:[%s6872 + $0xb8] sm:$0xff]
        %v6897 = vld [vmem:[%s6872 + $0xc0] sm:$0xff]
        %v6898 = vld [vmem:[%s6872 + $0xc8] sm:$0xff]
        %v6899 = vld [vmem:[%s6872 + $0xd0] sm:$0xff]
        %v6900 = vld [vmem:[%s6872 + $0xd8] sm:$0xff]
        %v6901 = vld [vmem:[%s6872 + $0xe0] sm:$0xff]
        %v6902 = vld [vmem:[%s6872 + $0xe8] sm:$0xff]
        %6904 = vset.pattern.permute.xlu0 0
        %6905 = vperm.xlu0 %6904, %v6873
        %v6906 = vpop.permute.xlu0 %6905
        %6908 = vset.pattern.permute.xlu0 0
        %6909 = vperm.xlu0 %6908, %v6874
        %v6910 = vpop.permute.xlu0 %6909
        %6912 = vset.pattern.permute.xlu0 0
        %6913 = vperm.xlu0 %6912, %v6875
        %v6914 = vpop.permute.xlu0 %6913
        %6916 = vset.pattern.permute.xlu0 0
        %6917 = vperm.xlu0 %6916, %v6876
        %v6918 = vpop.permute.xlu0 %6917
        %6920 = vset.pattern.permute.xlu0 0
        %6921 = vperm.xlu0 %6920, %v6877
        %v6922 = vpop.permute.xlu0 %6921
        %6924 = vset.pattern.permute.xlu0 0
        %6925 = vperm.xlu0 %6924, %v6878
        %v6926 = vpop.permute.xlu0 %6925
        %6928 = vset.pattern.permute.xlu0 0
        %6929 = vperm.xlu0 %6928, %v6879
        %v6930 = vpop.permute.xlu0 %6929
        %6932 = vset.pattern.permute.xlu0 0
        %6933 = vperm.xlu0 %6932, %v6880
        %v6934 = vpop.permute.xlu0 %6933
        %6936 = vset.pattern.permute.xlu0 0
        %6937 = vperm.xlu0 %6936, %v6881
        %v6938 = vpop.permute.xlu0 %6937
        %6940 = vset.pattern.permute.xlu0 0
        %6941 = vperm.xlu0 %6940, %v6882
        %v6942 = vpop.permute.xlu0 %6941
        %6944 = vset.pattern.permute.xlu0 0
        %6945 = vperm.xlu0 %6944, %v6883
        %v6946 = vpop.permute.xlu0 %6945
        %6948 = vset.pattern.permute.xlu0 0
        %6949 = vperm.xlu0 %6948, %v6884
        %v6950 = vpop.permute.xlu0 %6949
        %6952 = vset.pattern.permute.xlu0 0
        %6953 = vperm.xlu0 %6952, %v6885
        %v6954 = vpop.permute.xlu0 %6953
        %6956 = vset.pattern.permute.xlu0 0
        %6957 = vperm.xlu0 %6956, %v6886
        %v6958 = vpop.permute.xlu0 %6957
        %6960 = vset.pattern.permute.xlu0 0
        %6961 = vperm.xlu0 %6960, %v6887
        %v6962 = vpop.permute.xlu0 %6961
        %6964 = vset.pattern.permute.xlu0 0
        %6965 = vperm.xlu0 %6964, %v6888
        %v6966 = vpop.permute.xlu0 %6965
        %6968 = vset.pattern.permute.xlu0 0
        %6969 = vperm.xlu0 %6968, %v6889
        %v6970 = vpop.permute.xlu0 %6969
        %6972 = vset.pattern.permute.xlu0 0
        %6973 = vperm.xlu0 %6972, %v6890
        %v6974 = vpop.permute.xlu0 %6973
        %6976 = vset.pattern.permute.xlu0 0
        %6977 = vperm.xlu0 %6976, %v6891
        %v6978 = vpop.permute.xlu0 %6977
        %6980 = vset.pattern.permute.xlu0 0
        %6981 = vperm.xlu0 %6980, %v6892
        %v6982 = vpop.permute.xlu0 %6981
        %6984 = vset.pattern.permute.xlu0 0
        %6985 = vperm.xlu0 %6984, %v6893
        %v6986 = vpop.permute.xlu0 %6985
        %6988 = vset.pattern.permute.xlu0 0
        %6989 = vperm.xlu0 %6988, %v6894
        %v6990 = vpop.permute.xlu0 %6989
        %6992 = vset.pattern.permute.xlu0 0
        %6993 = vperm.xlu0 %6992, %v6895
        %v6994 = vpop.permute.xlu0 %6993
        %6996 = vset.pattern.permute.xlu0 0
        %6997 = vperm.xlu0 %6996, %v6896
        %v6998 = vpop.permute.xlu0 %6997
        %7000 = vset.pattern.permute.xlu0 0
        %7001 = vperm.xlu0 %7000, %v6897
        %v7002 = vpop.permute.xlu0 %7001
        %7004 = vset.pattern.permute.xlu0 0
        %7005 = vperm.xlu0 %7004, %v6898
        %v7006 = vpop.permute.xlu0 %7005
        %7008 = vset.pattern.permute.xlu0 0
        %7009 = vperm.xlu0 %7008, %v6899
        %v7010 = vpop.permute.xlu0 %7009
        %7012 = vset.pattern.permute.xlu0 0
        %7013 = vperm.xlu0 %7012, %v6900
        %v7014 = vpop.permute.xlu0 %7013
        %7016 = vset.pattern.permute.xlu0 0
        %7017 = vperm.xlu0 %7016, %v6901
        %v7018 = vpop.permute.xlu0 %7017
        %7020 = vset.pattern.permute.xlu0 0
        %7021 = vperm.xlu0 %7020, %v6902
        %v7022 = vpop.permute.xlu0 %7021
        %v7023 = vrot.slane %v6906, 2
        %v7024 = vrot.slane %v6910, 2
        %v7025 = vsel %vm1665, %v7023, %v7024
        %v7026 = vrot.slane %v6914, 2
        %v7027 = vsel %vm1665, %v7024, %v7026
        %v7028 = vrot.slane %v6918, 2
        %v7029 = vsel %vm1665, %v7026, %v7028
        %v7030 = vrot.slane %v6922, 2
        %v7031 = vsel %vm1665, %v7028, %v7030
        %v7032 = vrot.slane %v6926, 2
        %v7033 = vsel %vm1665, %v7030, %v7032
        %v7034 = vrot.slane %v6930, 2
        %v7035 = vsel %vm1665, %v7032, %v7034
        %v7036 = vrot.slane %v6934, 2
        %v7037 = vsel %vm1665, %v7034, %v7036
        %v7038 = vrot.slane %v6938, 2
        %v7039 = vsel %vm1665, %v7036, %v7038
        %v7040 = vrot.slane %v6942, 2
        %v7041 = vsel %vm1665, %v7038, %v7040
        %v7042 = vrot.slane %v6946, 2
        %v7043 = vsel %vm1665, %v7040, %v7042
        %v7044 = vrot.slane %v6950, 2
        %v7045 = vsel %vm1665, %v7042, %v7044
        %v7046 = vrot.slane %v6954, 2
        %v7047 = vsel %vm1665, %v7044, %v7046
        %v7048 = vrot.slane %v6958, 2
        %v7049 = vsel %vm1665, %v7046, %v7048
        %v7050 = vrot.slane %v6962, 2
        %v7051 = vsel %vm1665, %v7048, %v7050
        %v7052 = vrot.slane %v6966, 2
        %v7053 = vsel %vm1665, %v7050, %v7052
        %v7054 = vrot.slane %v6970, 2
        %v7055 = vsel %vm1665, %v7052, %v7054
        %v7056 = vrot.slane %v6974, 2
        %v7057 = vsel %vm1665, %v7054, %v7056
        %v7058 = vrot.slane %v6978, 2
        %v7059 = vsel %vm1665, %v7056, %v7058
        %v7060 = vrot.slane %v6982, 2
        %v7061 = vsel %vm1665, %v7058, %v7060
        %v7062 = vrot.slane %v6986, 2
        %v7063 = vsel %vm1665, %v7060, %v7062
        %v7064 = vrot.slane %v6990, 2
        %v7065 = vsel %vm1665, %v7062, %v7064
        %v7066 = vrot.slane %v6994, 2
        %v7067 = vsel %vm1665, %v7064, %v7066
        %v7068 = vrot.slane %v6998, 2
        %v7069 = vsel %vm1665, %v7066, %v7068
        %v7070 = vrot.slane %v7002, 2
        %v7071 = vsel %vm1665, %v7068, %v7070
        %v7072 = vrot.slane %v7006, 2
        %v7073 = vsel %vm1665, %v7070, %v7072
        %v7074 = vrot.slane %v7010, 2
        %v7075 = vsel %vm1665, %v7072, %v7074
        %v7076 = vrot.slane %v7014, 2
        %v7077 = vsel %vm1665, %v7074, %v7076
        %v7078 = vrot.slane %v7018, 2
        %v7079 = vsel %vm1665, %v7076, %v7078
        %v7080 = vrot.slane %v7022, 2
        %v7081 = vsel %vm1665, %v7078, %v7080
        %v7113 = vmul.f32 %v1043, %v7023
        %v7114 = vmul.f32 %v1044, %v7025
        %v7115 = vmul.f32 %v1045, %v7027
        %v7116 = vmul.f32 %v1046, %v7029
        %v7117 = vmul.f32 %v1047, %v7031
        %v7118 = vmul.f32 %v1048, %v7033
        %v7119 = vmul.f32 %v1049, %v7035
        %v7120 = vmul.f32 %v1050, %v7037
        %v7121 = vmul.f32 %v1051, %v7039
        %v7122 = vmul.f32 %v1052, %v7041
        %v7123 = vmul.f32 %v1053, %v7043
        %v7124 = vmul.f32 %v1054, %v7045
        %v7125 = vmul.f32 %v1055, %v7047
        %v7126 = vmul.f32 %v1056, %v7049
        %v7127 = vmul.f32 %v1057, %v7051
        %v7128 = vmul.f32 %v1058, %v7053
        %v7129 = vmul.f32 %v1059, %v7055
        %v7130 = vmul.f32 %v1060, %v7057
        %v7131 = vmul.f32 %v1061, %v7059
        %v7132 = vmul.f32 %v1062, %v7061
        %v7133 = vmul.f32 %v1063, %v7063
        %v7134 = vmul.f32 %v1064, %v7065
        %v7135 = vmul.f32 %v1065, %v7067
        %v7136 = vmul.f32 %v1066, %v7069
        %v7137 = vmul.f32 %v1067, %v7071
        %v7138 = vmul.f32 %v1068, %v7073
        %v7139 = vmul.f32 %v1069, %v7075
        %v7140 = vmul.f32 %v1070, %v7077
        %v7141 = vmul.f32 %v1071, %v7079
        %v7142 = vmul.f32 %v7081, 0.0
        %v7143 = vmul.f32 %v7080, 0.0
        %s7144 = scalar_lea.vmem %s4, 576
        %v7145 = vld [vmem:[%s7144] sm:$0xff]
        %v7146 = vld [vmem:[%s7144 + $0x8] sm:$0xff]
        %v7147 = vld [vmem:[%s7144 + $0x10] sm:$0xff]
        %v7148 = vld [vmem:[%s7144 + $0x18] sm:$0xff]
        %v7149 = vld [vmem:[%s7144 + $0x20] sm:$0xff]
        %v7150 = vld [vmem:[%s7144 + $0x28] sm:$0xff]
        %v7151 = vld [vmem:[%s7144 + $0x30] sm:$0xff]
        %v7152 = vld [vmem:[%s7144 + $0x38] sm:$0xff]
        %v7184 = vrot.slane %v7113, 6
        %v7185 = vrot.slane %v7114, 6
        %v7186 = vsel %vm1503, %v7184, %v7185
        %v7187 = vrot.slane %v7115, 6
        %v7188 = vsel %vm1503, %v7185, %v7187
        %v7189 = vrot.slane %v7116, 6
        %v7190 = vsel %vm1503, %v7187, %v7189
        %v7191 = vrot.slane %v7117, 6
        %v7192 = vsel %vm1503, %v7189, %v7191
        %v7193 = vrot.slane %v7118, 6
        %v7194 = vsel %vm1503, %v7191, %v7193
        %v7195 = vrot.slane %v7119, 6
        %v7196 = vsel %vm1503, %v7193, %v7195
        %v7197 = vrot.slane %v7120, 6
        %v7198 = vsel %vm1503, %v7195, %v7197
        %v7199 = vrot.slane %v7121, 6
        %v7200 = vsel %vm1503, %v7197, %v7199
        %v7201 = vrot.slane %v7122, 6
        %v7202 = vsel %vm1503, %v7199, %v7201
        %v7203 = vrot.slane %v7123, 6
        %v7204 = vsel %vm1503, %v7201, %v7203
        %v7205 = vrot.slane %v7124, 6
        %v7206 = vsel %vm1503, %v7203, %v7205
        %v7207 = vrot.slane %v7125, 6
        %v7208 = vsel %vm1503, %v7205, %v7207
        %v7209 = vrot.slane %v7126, 6
        %v7210 = vsel %vm1503, %v7207, %v7209
        %v7211 = vrot.slane %v7127, 6
        %v7212 = vsel %vm1503, %v7209, %v7211
        %v7213 = vrot.slane %v7128, 6
        %v7214 = vsel %vm1503, %v7211, %v7213
        %v7215 = vrot.slane %v7129, 6
        %v7216 = vsel %vm1503, %v7213, %v7215
        %v7217 = vrot.slane %v7130, 6
        %v7218 = vsel %vm1503, %v7215, %v7217
        %v7219 = vrot.slane %v7131, 6
        %v7220 = vsel %vm1503, %v7217, %v7219
        %v7221 = vrot.slane %v7132, 6
        %v7222 = vsel %vm1503, %v7219, %v7221
        %v7223 = vrot.slane %v7133, 6
        %v7224 = vsel %vm1503, %v7221, %v7223
        %v7225 = vrot.slane %v7134, 6
        %v7226 = vsel %vm1503, %v7223, %v7225
        %v7227 = vrot.slane %v7135, 6
        %v7228 = vsel %vm1503, %v7225, %v7227
        %v7229 = vrot.slane %v7136, 6
        %v7230 = vsel %vm1503, %v7227, %v7229
        %v7231 = vrot.slane %v7137, 6
        %v7232 = vsel %vm1503, %v7229, %v7231
        %v7233 = vrot.slane %v7138, 6
        %v7234 = vsel %vm1503, %v7231, %v7233
        %v7235 = vrot.slane %v7139, 6
        %v7236 = vsel %vm1503, %v7233, %v7235
        %v7237 = vrot.slane %v7140, 6
        %v7238 = vsel %vm1503, %v7235, %v7237
        %v7239 = vrot.slane %v7141, 6
        %v7240 = vsel %vm1503, %v7237, %v7239
        %v7241 = vrot.slane %v7142, 6
        %v7242 = vsel %vm1503, %v7239, %v7241
        %v7243 = vrot.slane %v7143, 6
        %v7244 = vsel %vm1503, %v7241, %v7243
        %v7245 = vsel %vm1727, %v7186, 0
        %v7247 = vsel %vm1727, %v7188, 0
        %v7249 = vsel %vm1727, %v7190, 0
        %v7251 = vsel %vm1727, %v7192, 0
        %v7253 = vsel %vm1727, %v7194, 0
        %v7255 = vsel %vm1727, %v7196, 0
        %v7257 = vsel %vm1727, %v7198, 0
        %v7259 = vsel %vm1727, %v7200, 0
        %v7261 = vsel %vm1727, %v7202, 0
        %v7263 = vsel %vm1727, %v7204, 0
        %v7265 = vsel %vm1727, %v7206, 0
        %v7267 = vsel %vm1727, %v7208, 0
        %v7269 = vsel %vm1727, %v7210, 0
        %v7271 = vsel %vm1727, %v7212, 0
        %v7273 = vsel %vm1727, %v7214, 0
        %v7275 = vsel %vm1727, %v7216, 0
        %v7277 = vsel %vm1727, %v7218, 0
        %v7279 = vsel %vm1727, %v7220, 0
        %v7281 = vsel %vm1727, %v7222, 0
        %v7283 = vsel %vm1727, %v7224, 0
        %v7285 = vsel %vm1727, %v7226, 0
        %v7287 = vsel %vm1727, %v7228, 0
        %v7289 = vsel %vm1727, %v7230, 0
        %v7291 = vsel %vm1727, %v7232, 0
        %v7293 = vsel %vm1727, %v7234, 0
        %v7295 = vsel %vm1727, %v7236, 0
        %v7297 = vsel %vm1727, %v7238, 0
        %v7299 = vsel %vm1727, %v7240, 0
        %v7301 = vsel %vm1727, %v7242, 0
        %v7303 = vsel %vm1727, %v7244, 0
        %7305 = vmatprep.subr.mxu0 0.0
        %7306 = vmatpush1.msra.mxu0 0.0
        %7307 = vmatprep.subr.mxu0 0.0
        %7308 = vmatpush1.msra.mxu0 0.0
        %7309 = vmatprep.subr.mxu0 0.0
        %7310 = vmatpush1.msra.mxu0 0.0
        %7311 = vmatprep.subr.mxu0 0.0
        %7312 = vmatpush1.msra.mxu0 0.0
        %7313 = vmatprep.subr.mxu0 0.0
        %7314 = vmatpush1.msra.mxu0 0.0
        %7315 = vmatprep.subr.mxu0 0.0
        %7316 = vmatpush1.msra.mxu0 0.0
        %7317 = vmatprep.subr.mxu0 0.0
        %7318 = vmatpush1.msra.mxu0 0.0
        %7319 = vmatprep.subr.mxu0 0.0
        %7320 = vmatpush1.msra.mxu0 0.0
        %7321 = vmatprep.subr.mxu0 0.0
        %7322 = vmatpush1.msra.mxu0 %v7152
        %7323 = vmatprep.subr.mxu0 0.0
        %7324 = vmatpush1.msra.mxu0 %v7151
        %7325 = vmatprep.subr.mxu0 0.0
        %7326 = vmatpush1.msra.mxu0 %v7150
        %7327 = vmatprep.subr.mxu0 0.0
        %7328 = vmatpush1.msra.mxu0 %v7149
        %7329 = vmatprep.subr.mxu0 0.0
        %7330 = vmatpush1.msra.mxu0 %v7148
        %7331 = vmatprep.subr.mxu0 0.0
        %7332 = vmatpush1.msra.mxu0 %v7147
        %7333 = vmatprep.subr.mxu0 0.0
        %7334 = vmatpush1.msra.mxu0 %v7146
        %7335 = vmatprep.subr.mxu0 0.0
        %7336 = vmatpush1.msra.mxu0 %v7145
        %7337 = vmatprep.subr.mxu0 0.0
        %7338 = vmatpush2.msra.mxu0 0.0
        %7339 = vmatprep.subr.mxu0 0.0
        %7340 = vmatpush2.msra.mxu0 0.0
        %7341 = vmatprep.subr.mxu0 0.0
        %7342 = vmatpush2.msra.mxu0 0.0
        %7343 = vmatprep.subr.mxu0 0.0
        %7344 = vmatpush2.msra.mxu0 0.0
        %7345 = vmatprep.subr.mxu0 0.0
        %7346 = vmatpush2.msra.mxu0 0.0
        %7347 = vmatprep.subr.mxu0 0.0
        %7348 = vmatpush2.msra.mxu0 0.0
        %7349 = vmatprep.subr.mxu0 0.0
        %7350 = vmatpush2.msra.mxu0 0.0
        %7351 = vmatprep.subr.mxu0 0.0
        %7352 = vmatpush2.msra.mxu0 0.0
        %7353 = vmatprep.subr.mxu0 0.0
        %7354 = vmatpush2.msra.mxu0 0.0
        %7355 = vmatprep.subr.mxu0 0.0
        %7356 = vmatpush2.msra.mxu0 0.0
        %7357 = vmatprep.subr.mxu0 0.0
        %7358 = vmatpush2.msra.mxu0 0.0
        %7359 = vmatprep.subr.mxu0 0.0
        %7360 = vmatpush2.msra.mxu0 0.0
        %7361 = vmatprep.subr.mxu0 0.0
        %7362 = vmatpush2.msra.mxu0 0.0
        %7363 = vmatprep.subr.mxu0 0.0
        %7364 = vmatpush2.msra.mxu0 0.0
        %7365 = vmatprep.subr.mxu0 0.0
        %7366 = vmatpush2.msra.mxu0 0.0
        %7367 = vmatprep.subr.mxu0 0.0
        %7368 = vmatpush2.msra.mxu0 0.0
        %7369 = vmatprep.mubr.f32.mxu0 0.0
        %7370 = vmatmul.mubr.f32.gmra.mxu0 %v7245
        %v7371 = vpop.f32.mrf.mxu0
        %v7372 = vadd.f32 0.0, %v7371
        %v7373 = vpop.f32.mrf.mxu0
        %7374 = vmatprep.mubr.f32.mxu0 0.0
        %7375 = vmatmul.mubr.f32.gmra.mxu0 %v7247
        %v7376 = vpop.f32.mrf.mxu0
        %v7377 = vadd.f32 0.0, %v7376
        %v7378 = vpop.f32.mrf.mxu0
        %7379 = vmatprep.mubr.f32.mxu0 0.0
        %7380 = vmatmul.mubr.f32.gmra.mxu0 %v7249
        %v7381 = vpop.f32.mrf.mxu0
        %v7382 = vadd.f32 0.0, %v7381
        %v7383 = vpop.f32.mrf.mxu0
        %7384 = vmatprep.mubr.f32.mxu0 0.0
        %7385 = vmatmul.mubr.f32.gmra.mxu0 %v7251
        %v7386 = vpop.f32.mrf.mxu0
        %v7387 = vadd.f32 0.0, %v7386
        %v7388 = vpop.f32.mrf.mxu0
        %7389 = vmatprep.mubr.f32.mxu0 0.0
        %7390 = vmatmul.mubr.f32.gmra.mxu0 %v7253
        %v7391 = vpop.f32.mrf.mxu0
        %v7392 = vadd.f32 0.0, %v7391
        %v7393 = vpop.f32.mrf.mxu0
        %7394 = vmatprep.mubr.f32.mxu0 0.0
        %7395 = vmatmul.mubr.f32.gmra.mxu0 %v7255
        %v7396 = vpop.f32.mrf.mxu0
        %v7397 = vadd.f32 0.0, %v7396
        %v7398 = vpop.f32.mrf.mxu0
        %7399 = vmatprep.mubr.f32.mxu0 0.0
        %7400 = vmatmul.mubr.f32.gmra.mxu0 %v7257
        %v7401 = vpop.f32.mrf.mxu0
        %v7402 = vadd.f32 0.0, %v7401
        %v7403 = vpop.f32.mrf.mxu0
        %7404 = vmatprep.mubr.f32.mxu0 0.0
        %7405 = vmatmul.mubr.f32.gmra.mxu0 %v7259
        %v7406 = vpop.f32.mrf.mxu0
        %v7407 = vadd.f32 0.0, %v7406
        %v7408 = vpop.f32.mrf.mxu0
        %7409 = vmatprep.mubr.f32.mxu0 0.0
        %7410 = vmatmul.mubr.f32.gmra.mxu0 %v7261
        %v7411 = vpop.f32.mrf.mxu0
        %v7412 = vadd.f32 0.0, %v7411
        %v7413 = vpop.f32.mrf.mxu0
        %7414 = vmatprep.mubr.f32.mxu0 0.0
        %7415 = vmatmul.mubr.f32.gmra.mxu0 %v7263
        %v7416 = vpop.f32.mrf.mxu0
        %v7417 = vadd.f32 0.0, %v7416
        %v7418 = vpop.f32.mrf.mxu0
        %7419 = vmatprep.mubr.f32.mxu0 0.0
        %7420 = vmatmul.mubr.f32.gmra.mxu0 %v7265
        %v7421 = vpop.f32.mrf.mxu0
        %v7422 = vadd.f32 0.0, %v7421
        %v7423 = vpop.f32.mrf.mxu0
        %7424 = vmatprep.mubr.f32.mxu0 0.0
        %7425 = vmatmul.mubr.f32.gmra.mxu0 %v7267
        %v7426 = vpop.f32.mrf.mxu0
        %v7427 = vadd.f32 0.0, %v7426
        %v7428 = vpop.f32.mrf.mxu0
        %7429 = vmatprep.mubr.f32.mxu0 0.0
        %7430 = vmatmul.mubr.f32.gmra.mxu0 %v7269
        %v7431 = vpop.f32.mrf.mxu0
        %v7432 = vadd.f32 0.0, %v7431
        %v7433 = vpop.f32.mrf.mxu0
        %7434 = vmatprep.mubr.f32.mxu0 0.0
        %7435 = vmatmul.mubr.f32.gmra.mxu0 %v7271
        %v7436 = vpop.f32.mrf.mxu0
        %v7437 = vadd.f32 0.0, %v7436
        %v7438 = vpop.f32.mrf.mxu0
        %7439 = vmatprep.mubr.f32.mxu0 0.0
        %7440 = vmatmul.mubr.f32.gmra.mxu0 %v7273
        %v7441 = vpop.f32.mrf.mxu0
        %v7442 = vadd.f32 0.0, %v7441
        %v7443 = vpop.f32.mrf.mxu0
        %7444 = vmatprep.mubr.f32.mxu0 0.0
        %7445 = vmatmul.mubr.f32.gmra.mxu0 %v7275
        %v7446 = vpop.f32.mrf.mxu0
        %v7447 = vadd.f32 0.0, %v7446
        %v7448 = vpop.f32.mrf.mxu0
        %7449 = vmatprep.mubr.f32.mxu0 0.0
        %7450 = vmatmul.mubr.f32.gmra.mxu0 %v7277
        %v7451 = vpop.f32.mrf.mxu0
        %v7452 = vadd.f32 0.0, %v7451
        %v7453 = vpop.f32.mrf.mxu0
        %7454 = vmatprep.mubr.f32.mxu0 0.0
        %7455 = vmatmul.mubr.f32.gmra.mxu0 %v7279
        %v7456 = vpop.f32.mrf.mxu0
        %v7457 = vadd.f32 0.0, %v7456
        %v7458 = vpop.f32.mrf.mxu0
        %7459 = vmatprep.mubr.f32.mxu0 0.0
        %7460 = vmatmul.mubr.f32.gmra.mxu0 %v7281
        %v7461 = vpop.f32.mrf.mxu0
        %v7462 = vadd.f32 0.0, %v7461
        %v7463 = vpop.f32.mrf.mxu0
        %7464 = vmatprep.mubr.f32.mxu0 0.0
        %7465 = vmatmul.mubr.f32.gmra.mxu0 %v7283
        %v7466 = vpop.f32.mrf.mxu0
        %v7467 = vadd.f32 0.0, %v7466
        %v7468 = vpop.f32.mrf.mxu0
        %7469 = vmatprep.mubr.f32.mxu0 0.0
        %7470 = vmatmul.mubr.f32.gmra.mxu0 %v7285
        %v7471 = vpop.f32.mrf.mxu0
        %v7472 = vadd.f32 0.0, %v7471
        %v7473 = vpop.f32.mrf.mxu0
        %7474 = vmatprep.mubr.f32.mxu0 0.0
        %7475 = vmatmul.mubr.f32.gmra.mxu0 %v7287
        %v7476 = vpop.f32.mrf.mxu0
        %v7477 = vadd.f32 0.0, %v7476
        %v7478 = vpop.f32.mrf.mxu0
        %7479 = vmatprep.mubr.f32.mxu0 0.0
        %7480 = vmatmul.mubr.f32.gmra.mxu0 %v7289
        %v7481 = vpop.f32.mrf.mxu0
        %v7482 = vadd.f32 0.0, %v7481
        %v7483 = vpop.f32.mrf.mxu0
        %7484 = vmatprep.mubr.f32.mxu0 0.0
        %7485 = vmatmul.mubr.f32.gmra.mxu0 %v7291
        %v7486 = vpop.f32.mrf.mxu0
        %v7487 = vadd.f32 0.0, %v7486
        %v7488 = vpop.f32.mrf.mxu0
        %7489 = vmatprep.mubr.f32.mxu0 0.0
        %7490 = vmatmul.mubr.f32.gmra.mxu0 %v7293
        %v7491 = vpop.f32.mrf.mxu0
        %v7492 = vadd.f32 0.0, %v7491
        %v7493 = vpop.f32.mrf.mxu0
        %7494 = vmatprep.mubr.f32.mxu0 0.0
        %7495 = vmatmul.mubr.f32.gmra.mxu0 %v7295
        %v7496 = vpop.f32.mrf.mxu0
        %v7497 = vadd.f32 0.0, %v7496
        %v7498 = vpop.f32.mrf.mxu0
        %7499 = vmatprep.mubr.f32.mxu0 0.0
        %7500 = vmatmul.mubr.f32.gmra.mxu0 %v7297
        %v7501 = vpop.f32.mrf.mxu0
        %v7502 = vadd.f32 0.0, %v7501
        %v7503 = vpop.f32.mrf.mxu0
        %7504 = vmatprep.mubr.f32.mxu0 0.0
        %7505 = vmatmul.mubr.f32.gmra.mxu0 %v7299
        %v7506 = vpop.f32.mrf.mxu0
        %v7507 = vadd.f32 0.0, %v7506
        %v7508 = vpop.f32.mrf.mxu0
        %7509 = vmatprep.mubr.f32.mxu0 0.0
        %7510 = vmatmul.mubr.f32.gmra.mxu0 %v7301
        %v7511 = vpop.f32.mrf.mxu0
        %v7512 = vadd.f32 0.0, %v7511
        %v7513 = vpop.f32.mrf.mxu0
        %7514 = vmatprep.mubr.f32.mxu0 0.0
        %7515 = vmatmul.mubr.f32.gmra.mxu0 %v7303
        %v7516 = vpop.f32.mrf.mxu0
        %v7517 = vadd.f32 0.0, %v7516
        %v7518 = vpop.f32.mrf.mxu0
        %7519 = vdwg.mxu0
        %v7520 = vadd.f32 %v6842, %v7372
        %v7521 = vadd.f32 %v6843, %v7377
        %v7522 = vadd.f32 %v6844, %v7382
        %v7523 = vadd.f32 %v6845, %v7387
        %v7524 = vadd.f32 %v6846, %v7392
        %v7525 = vadd.f32 %v6847, %v7397
        %v7526 = vadd.f32 %v6848, %v7402
        %v7527 = vadd.f32 %v6849, %v7407
        %v7528 = vadd.f32 %v6850, %v7412
        %v7529 = vadd.f32 %v6851, %v7417
        %v7530 = vadd.f32 %v6852, %v7422
        %v7531 = vadd.f32 %v6853, %v7427
        %v7532 = vadd.f32 %v6854, %v7432
        %v7533 = vadd.f32 %v6855, %v7437
        %v7534 = vadd.f32 %v6856, %v7442
        %v7535 = vadd.f32 %v6857, %v7447
        %v7536 = vadd.f32 %v6858, %v7452
        %v7537 = vadd.f32 %v6859, %v7457
        %v7538 = vadd.f32 %v6860, %v7462
        %v7539 = vadd.f32 %v6861, %v7467
        %v7540 = vadd.f32 %v6862, %v7472
        %v7541 = vadd.f32 %v6863, %v7477
        %v7542 = vadd.f32 %v6864, %v7482
        %v7543 = vadd.f32 %v6865, %v7487
        %v7544 = vadd.f32 %v6866, %v7492
        %v7545 = vadd.f32 %v6867, %v7497
        %v7546 = vadd.f32 %v6868, %v7502
        %v7547 = vadd.f32 %v6869, %v7507
        %v7548 = vadd.f32 %v6870, %v7512
        %v7549 = vadd.f32 %v6871, %v7517
        %s7550 = scalar_lea.vmem %s1, 2400
        %v7551 = vld [vmem:[%s7550] sm:$0xff]
        %v7552 = vld [vmem:[%s7550 + $0x8] sm:$0xff]
        %v7553 = vld [vmem:[%s7550 + $0x10] sm:$0xff]
        %v7554 = vld [vmem:[%s7550 + $0x18] sm:$0xff]
        %v7555 = vld [vmem:[%s7550 + $0x20] sm:$0xff]
        %v7556 = vld [vmem:[%s7550 + $0x28] sm:$0xff]
        %v7557 = vld [vmem:[%s7550 + $0x30] sm:$0xff]
        %v7558 = vld [vmem:[%s7550 + $0x38] sm:$0xff]
        %v7559 = vld [vmem:[%s7550 + $0x40] sm:$0xff]
        %v7560 = vld [vmem:[%s7550 + $0x48] sm:$0xff]
        %v7561 = vld [vmem:[%s7550 + $0x50] sm:$0xff]
        %v7562 = vld [vmem:[%s7550 + $0x58] sm:$0xff]
        %v7563 = vld [vmem:[%s7550 + $0x60] sm:$0xff]
        %v7564 = vld [vmem:[%s7550 + $0x68] sm:$0xff]
        %v7565 = vld [vmem:[%s7550 + $0x70] sm:$0xff]
        %v7566 = vld [vmem:[%s7550 + $0x78] sm:$0xff]
        %v7567 = vld [vmem:[%s7550 + $0x80] sm:$0xff]
        %v7568 = vld [vmem:[%s7550 + $0x88] sm:$0xff]
        %v7569 = vld [vmem:[%s7550 + $0x90] sm:$0xff]
        %v7570 = vld [vmem:[%s7550 + $0x98] sm:$0xff]
        %v7571 = vld [vmem:[%s7550 + $0xa0] sm:$0xff]
        %v7572 = vld [vmem:[%s7550 + $0xa8] sm:$0xff]
        %v7573 = vld [vmem:[%s7550 + $0xb0] sm:$0xff]
        %v7574 = vld [vmem:[%s7550 + $0xb8] sm:$0xff]
        %v7575 = vld [vmem:[%s7550 + $0xc0] sm:$0xff]
        %v7576 = vld [vmem:[%s7550 + $0xc8] sm:$0xff]
        %v7577 = vld [vmem:[%s7550 + $0xd0] sm:$0xff]
        %v7578 = vld [vmem:[%s7550 + $0xd8] sm:$0xff]
        %v7579 = vld [vmem:[%s7550 + $0xe0] sm:$0xff]
        %v7580 = vld [vmem:[%s7550 + $0xe8] sm:$0xff]
        %7582 = vset.pattern.permute.xlu0 0
        %7583 = vperm.xlu0 %7582, %v7551
        %v7584 = vpop.permute.xlu0 %7583
        %7586 = vset.pattern.permute.xlu0 0
        %7587 = vperm.xlu0 %7586, %v7552
        %v7588 = vpop.permute.xlu0 %7587
        %7590 = vset.pattern.permute.xlu0 0
        %7591 = vperm.xlu0 %7590, %v7553
        %v7592 = vpop.permute.xlu0 %7591
        %7594 = vset.pattern.permute.xlu0 0
        %7595 = vperm.xlu0 %7594, %v7554
        %v7596 = vpop.permute.xlu0 %7595
        %7598 = vset.pattern.permute.xlu0 0
        %7599 = vperm.xlu0 %7598, %v7555
        %v7600 = vpop.permute.xlu0 %7599
        %7602 = vset.pattern.permute.xlu0 0
        %7603 = vperm.xlu0 %7602, %v7556
        %v7604 = vpop.permute.xlu0 %7603
        %7606 = vset.pattern.permute.xlu0 0
        %7607 = vperm.xlu0 %7606, %v7557
        %v7608 = vpop.permute.xlu0 %7607
        %7610 = vset.pattern.permute.xlu0 0
        %7611 = vperm.xlu0 %7610, %v7558
        %v7612 = vpop.permute.xlu0 %7611
        %7614 = vset.pattern.permute.xlu0 0
        %7615 = vperm.xlu0 %7614, %v7559
        %v7616 = vpop.permute.xlu0 %7615
        %7618 = vset.pattern.permute.xlu0 0
        %7619 = vperm.xlu0 %7618, %v7560
        %v7620 = vpop.permute.xlu0 %7619
        %7622 = vset.pattern.permute.xlu0 0
        %7623 = vperm.xlu0 %7622, %v7561
        %v7624 = vpop.permute.xlu0 %7623
        %7626 = vset.pattern.permute.xlu0 0
        %7627 = vperm.xlu0 %7626, %v7562
        %v7628 = vpop.permute.xlu0 %7627
        %7630 = vset.pattern.permute.xlu0 0
        %7631 = vperm.xlu0 %7630, %v7563
        %v7632 = vpop.permute.xlu0 %7631
        %7634 = vset.pattern.permute.xlu0 0
        %7635 = vperm.xlu0 %7634, %v7564
        %v7636 = vpop.permute.xlu0 %7635
        %7638 = vset.pattern.permute.xlu0 0
        %7639 = vperm.xlu0 %7638, %v7565
        %v7640 = vpop.permute.xlu0 %7639
        %7642 = vset.pattern.permute.xlu0 0
        %7643 = vperm.xlu0 %7642, %v7566
        %v7644 = vpop.permute.xlu0 %7643
        %7646 = vset.pattern.permute.xlu0 0
        %7647 = vperm.xlu0 %7646, %v7567
        %v7648 = vpop.permute.xlu0 %7647
        %7650 = vset.pattern.permute.xlu0 0
        %7651 = vperm.xlu0 %7650, %v7568
        %v7652 = vpop.permute.xlu0 %7651
        %7654 = vset.pattern.permute.xlu0 0
        %7655 = vperm.xlu0 %7654, %v7569
        %v7656 = vpop.permute.xlu0 %7655
        %7658 = vset.pattern.permute.xlu0 0
        %7659 = vperm.xlu0 %7658, %v7570
        %v7660 = vpop.permute.xlu0 %7659
        %7662 = vset.pattern.permute.xlu0 0
        %7663 = vperm.xlu0 %7662, %v7571
        %v7664 = vpop.permute.xlu0 %7663
        %7666 = vset.pattern.permute.xlu0 0
        %7667 = vperm.xlu0 %7666, %v7572
        %v7668 = vpop.permute.xlu0 %7667
        %7670 = vset.pattern.permute.xlu0 0
        %7671 = vperm.xlu0 %7670, %v7573
        %v7672 = vpop.permute.xlu0 %7671
        %7674 = vset.pattern.permute.xlu0 0
        %7675 = vperm.xlu0 %7674, %v7574
        %v7676 = vpop.permute.xlu0 %7675
        %7678 = vset.pattern.permute.xlu0 0
        %7679 = vperm.xlu0 %7678, %v7575
        %v7680 = vpop.permute.xlu0 %7679
        %7682 = vset.pattern.permute.xlu0 0
        %7683 = vperm.xlu0 %7682, %v7576
        %v7684 = vpop.permute.xlu0 %7683
        %7686 = vset.pattern.permute.xlu0 0
        %7687 = vperm.xlu0 %7686, %v7577
        %v7688 = vpop.permute.xlu0 %7687
        %7690 = vset.pattern.permute.xlu0 0
        %7691 = vperm.xlu0 %7690, %v7578
        %v7692 = vpop.permute.xlu0 %7691
        %7694 = vset.pattern.permute.xlu0 0
        %7695 = vperm.xlu0 %7694, %v7579
        %v7696 = vpop.permute.xlu0 %7695
        %7698 = vset.pattern.permute.xlu0 0
        %7699 = vperm.xlu0 %7698, %v7580
        %v7700 = vpop.permute.xlu0 %7699
        %v7701 = vrot.slane %v7584, 1
        %v7702 = vrot.slane %v7588, 1
        %v7703 = vsel %vm553, %v7701, %v7702
        %v7704 = vrot.slane %v7592, 1
        %v7705 = vsel %vm553, %v7702, %v7704
        %v7706 = vrot.slane %v7596, 1
        %v7707 = vsel %vm553, %v7704, %v7706
        %v7708 = vrot.slane %v7600, 1
        %v7709 = vsel %vm553, %v7706, %v7708
        %v7710 = vrot.slane %v7604, 1
        %v7711 = vsel %vm553, %v7708, %v7710
        %v7712 = vrot.slane %v7608, 1
        %v7713 = vsel %vm553, %v7710, %v7712
        %v7714 = vrot.slane %v7612, 1
        %v7715 = vsel %vm553, %v7712, %v7714
        %v7716 = vrot.slane %v7616, 1
        %v7717 = vsel %vm553, %v7714, %v7716
        %v7718 = vrot.slane %v7620, 1
        %v7719 = vsel %vm553, %v7716, %v7718
        %v7720 = vrot.slane %v7624, 1
        %v7721 = vsel %vm553, %v7718, %v7720
        %v7722 = vrot.slane %v7628, 1
        %v7723 = vsel %vm553, %v7720, %v7722
        %v7724 = vrot.slane %v7632, 1
        %v7725 = vsel %vm553, %v7722, %v7724
        %v7726 = vrot.slane %v7636, 1
        %v7727 = vsel %vm553, %v7724, %v7726
        %v7728 = vrot.slane %v7640, 1
        %v7729 = vsel %vm553, %v7726, %v7728
        %v7730 = vrot.slane %v7644, 1
        %v7731 = vsel %vm553, %v7728, %v7730
        %v7732 = vrot.slane %v7648, 1
        %v7733 = vsel %vm553, %v7730, %v7732
        %v7734 = vrot.slane %v7652, 1
        %v7735 = vsel %vm553, %v7732, %v7734
        %v7736 = vrot.slane %v7656, 1
        %v7737 = vsel %vm553, %v7734, %v7736
        %v7738 = vrot.slane %v7660, 1
        %v7739 = vsel %vm553, %v7736, %v7738
        %v7740 = vrot.slane %v7664, 1
        %v7741 = vsel %vm553, %v7738, %v7740
        %v7742 = vrot.slane %v7668, 1
        %v7743 = vsel %vm553, %v7740, %v7742
        %v7744 = vrot.slane %v7672, 1
        %v7745 = vsel %vm553, %v7742, %v7744
        %v7746 = vrot.slane %v7676, 1
        %v7747 = vsel %vm553, %v7744, %v7746
        %v7748 = vrot.slane %v7680, 1
        %v7749 = vsel %vm553, %v7746, %v7748
        %v7750 = vrot.slane %v7684, 1
        %v7751 = vsel %vm553, %v7748, %v7750
        %v7752 = vrot.slane %v7688, 1
        %v7753 = vsel %vm553, %v7750, %v7752
        %v7754 = vrot.slane %v7692, 1
        %v7755 = vsel %vm553, %v7752, %v7754
        %v7756 = vrot.slane %v7696, 1
        %v7757 = vsel %vm553, %v7754, %v7756
        %v7758 = vrot.slane %v7700, 1
        %v7759 = vsel %vm553, %v7756, %v7758
        %v7791 = vmul.f32 %v1043, %v7701
        %v7792 = vmul.f32 %v1044, %v7703
        %v7793 = vmul.f32 %v1045, %v7705
        %v7794 = vmul.f32 %v1046, %v7707
        %v7795 = vmul.f32 %v1047, %v7709
        %v7796 = vmul.f32 %v1048, %v7711
        %v7797 = vmul.f32 %v1049, %v7713
        %v7798 = vmul.f32 %v1050, %v7715
        %v7799 = vmul.f32 %v1051, %v7717
        %v7800 = vmul.f32 %v1052, %v7719
        %v7801 = vmul.f32 %v1053, %v7721
        %v7802 = vmul.f32 %v1054, %v7723
        %v7803 = vmul.f32 %v1055, %v7725
        %v7804 = vmul.f32 %v1056, %v7727
        %v7805 = vmul.f32 %v1057, %v7729
        %v7806 = vmul.f32 %v1058, %v7731
        %v7807 = vmul.f32 %v1059, %v7733
        %v7808 = vmul.f32 %v1060, %v7735
        %v7809 = vmul.f32 %v1061, %v7737
        %v7810 = vmul.f32 %v1062, %v7739
        %v7811 = vmul.f32 %v1063, %v7741
        %v7812 = vmul.f32 %v1064, %v7743
        %v7813 = vmul.f32 %v1065, %v7745
        %v7814 = vmul.f32 %v1066, %v7747
        %v7815 = vmul.f32 %v1067, %v7749
        %v7816 = vmul.f32 %v1068, %v7751
        %v7817 = vmul.f32 %v1069, %v7753
        %v7818 = vmul.f32 %v1070, %v7755
        %v7819 = vmul.f32 %v1071, %v7757
        %v7820 = vmul.f32 %v7759, 0.0
        %v7821 = vmul.f32 %v7758, 0.0
        %s7822 = scalar_lea.vmem %s4, 640
        %v7823 = vld [vmem:[%s7822] sm:$0xff]
        %v7824 = vld [vmem:[%s7822 + $0x8] sm:$0xff]
        %v7825 = vld [vmem:[%s7822 + $0x10] sm:$0xff]
        %v7826 = vld [vmem:[%s7822 + $0x18] sm:$0xff]
        %v7827 = vld [vmem:[%s7822 + $0x20] sm:$0xff]
        %v7828 = vld [vmem:[%s7822 + $0x28] sm:$0xff]
        %v7829 = vld [vmem:[%s7822 + $0x30] sm:$0xff]
        %v7830 = vld [vmem:[%s7822 + $0x38] sm:$0xff]
        %v7862 = vrot.slane %v7791, 7
        %v7863 = vrot.slane %v7792, 7
        %v7864 = vsel %vm1222, %v7862, %v7863
        %v7865 = vrot.slane %v7793, 7
        %v7866 = vsel %vm1222, %v7863, %v7865
        %v7867 = vrot.slane %v7794, 7
        %v7868 = vsel %vm1222, %v7865, %v7867
        %v7869 = vrot.slane %v7795, 7
        %v7870 = vsel %vm1222, %v7867, %v7869
        %v7871 = vrot.slane %v7796, 7
        %v7872 = vsel %vm1222, %v7869, %v7871
        %v7873 = vrot.slane %v7797, 7
        %v7874 = vsel %vm1222, %v7871, %v7873
        %v7875 = vrot.slane %v7798, 7
        %v7876 = vsel %vm1222, %v7873, %v7875
        %v7877 = vrot.slane %v7799, 7
        %v7878 = vsel %vm1222, %v7875, %v7877
        %v7879 = vrot.slane %v7800, 7
        %v7880 = vsel %vm1222, %v7877, %v7879
        %v7881 = vrot.slane %v7801, 7
        %v7882 = vsel %vm1222, %v7879, %v7881
        %v7883 = vrot.slane %v7802, 7
        %v7884 = vsel %vm1222, %v7881, %v7883
        %v7885 = vrot.slane %v7803, 7
        %v7886 = vsel %vm1222, %v7883, %v7885
        %v7887 = vrot.slane %v7804, 7
        %v7888 = vsel %vm1222, %v7885, %v7887
        %v7889 = vrot.slane %v7805, 7
        %v7890 = vsel %vm1222, %v7887, %v7889
        %v7891 = vrot.slane %v7806, 7
        %v7892 = vsel %vm1222, %v7889, %v7891
        %v7893 = vrot.slane %v7807, 7
        %v7894 = vsel %vm1222, %v7891, %v7893
        %v7895 = vrot.slane %v7808, 7
        %v7896 = vsel %vm1222, %v7893, %v7895
        %v7897 = vrot.slane %v7809, 7
        %v7898 = vsel %vm1222, %v7895, %v7897
        %v7899 = vrot.slane %v7810, 7
        %v7900 = vsel %vm1222, %v7897, %v7899
        %v7901 = vrot.slane %v7811, 7
        %v7902 = vsel %vm1222, %v7899, %v7901
        %v7903 = vrot.slane %v7812, 7
        %v7904 = vsel %vm1222, %v7901, %v7903
        %v7905 = vrot.slane %v7813, 7
        %v7906 = vsel %vm1222, %v7903, %v7905
        %v7907 = vrot.slane %v7814, 7
        %v7908 = vsel %vm1222, %v7905, %v7907
        %v7909 = vrot.slane %v7815, 7
        %v7910 = vsel %vm1222, %v7907, %v7909
        %v7911 = vrot.slane %v7816, 7
        %v7912 = vsel %vm1222, %v7909, %v7911
        %v7913 = vrot.slane %v7817, 7
        %v7914 = vsel %vm1222, %v7911, %v7913
        %v7915 = vrot.slane %v7818, 7
        %v7916 = vsel %vm1222, %v7913, %v7915
        %v7917 = vrot.slane %v7819, 7
        %v7918 = vsel %vm1222, %v7915, %v7917
        %v7919 = vrot.slane %v7820, 7
        %v7920 = vsel %vm1222, %v7917, %v7919
        %v7921 = vrot.slane %v7821, 7
        %v7922 = vsel %vm1222, %v7919, %v7921
        %v7923 = vsel %vm1727, %v7864, 0
        %v7925 = vsel %vm1727, %v7866, 0
        %v7927 = vsel %vm1727, %v7868, 0
        %v7929 = vsel %vm1727, %v7870, 0
        %v7931 = vsel %vm1727, %v7872, 0
        %v7933 = vsel %vm1727, %v7874, 0
        %v7935 = vsel %vm1727, %v7876, 0
        %v7937 = vsel %vm1727, %v7878, 0
        %v7939 = vsel %vm1727, %v7880, 0
        %v7941 = vsel %vm1727, %v7882, 0
        %v7943 = vsel %vm1727, %v7884, 0
        %v7945 = vsel %vm1727, %v7886, 0
        %v7947 = vsel %vm1727, %v7888, 0
        %v7949 = vsel %vm1727, %v7890, 0
        %v7951 = vsel %vm1727, %v7892, 0
        %v7953 = vsel %vm1727, %v7894, 0
        %v7955 = vsel %vm1727, %v7896, 0
        %v7957 = vsel %vm1727, %v7898, 0
        %v7959 = vsel %vm1727, %v7900, 0
        %v7961 = vsel %vm1727, %v7902, 0
        %v7963 = vsel %vm1727, %v7904, 0
        %v7965 = vsel %vm1727, %v7906, 0
        %v7967 = vsel %vm1727, %v7908, 0
        %v7969 = vsel %vm1727, %v7910, 0
        %v7971 = vsel %vm1727, %v7912, 0
        %v7973 = vsel %vm1727, %v7914, 0
        %v7975 = vsel %vm1727, %v7916, 0
        %v7977 = vsel %vm1727, %v7918, 0
        %v7979 = vsel %vm1727, %v7920, 0
        %v7981 = vsel %vm1727, %v7922, 0
        %7983 = vmatprep.subr.mxu0 0.0
        %7984 = vmatpush1.msra.mxu0 0.0
        %7985 = vmatprep.subr.mxu0 0.0
        %7986 = vmatpush1.msra.mxu0 0.0
        %7987 = vmatprep.subr.mxu0 0.0
        %7988 = vmatpush1.msra.mxu0 0.0
        %7989 = vmatprep.subr.mxu0 0.0
        %7990 = vmatpush1.msra.mxu0 0.0
        %7991 = vmatprep.subr.mxu0 0.0
        %7992 = vmatpush1.msra.mxu0 0.0
        %7993 = vmatprep.subr.mxu0 0.0
        %7994 = vmatpush1.msra.mxu0 0.0
        %7995 = vmatprep.subr.mxu0 0.0
        %7996 = vmatpush1.msra.mxu0 0.0
        %7997 = vmatprep.subr.mxu0 0.0
        %7998 = vmatpush1.msra.mxu0 0.0
        %7999 = vmatprep.subr.mxu0 0.0
        %8000 = vmatpush1.msra.mxu0 %v7830
        %8001 = vmatprep.subr.mxu0 0.0
        %8002 = vmatpush1.msra.mxu0 %v7829
        %8003 = vmatprep.subr.mxu0 0.0
        %8004 = vmatpush1.msra.mxu0 %v7828
        %8005 = vmatprep.subr.mxu0 0.0
        %8006 = vmatpush1.msra.mxu0 %v7827
        %8007 = vmatprep.subr.mxu0 0.0
        %8008 = vmatpush1.msra.mxu0 %v7826
        %8009 = vmatprep.subr.mxu0 0.0
        %8010 = vmatpush1.msra.mxu0 %v7825
        %8011 = vmatprep.subr.mxu0 0.0
        %8012 = vmatpush1.msra.mxu0 %v7824
        %8013 = vmatprep.subr.mxu0 0.0
        %8014 = vmatpush1.msra.mxu0 %v7823
        %8015 = vmatprep.subr.mxu0 0.0
        %8016 = vmatpush2.msra.mxu0 0.0
        %8017 = vmatprep.subr.mxu0 0.0
        %8018 = vmatpush2.msra.mxu0 0.0
        %8019 = vmatprep.subr.mxu0 0.0
        %8020 = vmatpush2.msra.mxu0 0.0
        %8021 = vmatprep.subr.mxu0 0.0
        %8022 = vmatpush2.msra.mxu0 0.0
        %8023 = vmatprep.subr.mxu0 0.0
        %8024 = vmatpush2.msra.mxu0 0.0
        %8025 = vmatprep.subr.mxu0 0.0
        %8026 = vmatpush2.msra.mxu0 0.0
        %8027 = vmatprep.subr.mxu0 0.0
        %8028 = vmatpush2.msra.mxu0 0.0
        %8029 = vmatprep.subr.mxu0 0.0
        %8030 = vmatpush2.msra.mxu0 0.0
        %8031 = vmatprep.subr.mxu0 0.0
        %8032 = vmatpush2.msra.mxu0 0.0
        %8033 = vmatprep.subr.mxu0 0.0
        %8034 = vmatpush2.msra.mxu0 0.0
        %8035 = vmatprep.subr.mxu0 0.0
        %8036 = vmatpush2.msra.mxu0 0.0
        %8037 = vmatprep.subr.mxu0 0.0
        %8038 = vmatpush2.msra.mxu0 0.0
        %8039 = vmatprep.subr.mxu0 0.0
        %8040 = vmatpush2.msra.mxu0 0.0
        %8041 = vmatprep.subr.mxu0 0.0
        %8042 = vmatpush2.msra.mxu0 0.0
        %8043 = vmatprep.subr.mxu0 0.0
        %8044 = vmatpush2.msra.mxu0 0.0
        %8045 = vmatprep.subr.mxu0 0.0
        %8046 = vmatpush2.msra.mxu0 0.0
        %8047 = vmatprep.mubr.f32.mxu0 0.0
        %8048 = vmatmul.mubr.f32.gmra.mxu0 %v7923
        %v8049 = vpop.f32.mrf.mxu0
        %v8050 = vadd.f32 0.0, %v8049
        %v8051 = vpop.f32.mrf.mxu0
        %8052 = vmatprep.mubr.f32.mxu0 0.0
        %8053 = vmatmul.mubr.f32.gmra.mxu0 %v7925
        %v8054 = vpop.f32.mrf.mxu0
        %v8055 = vadd.f32 0.0, %v8054
        %v8056 = vpop.f32.mrf.mxu0
        %8057 = vmatprep.mubr.f32.mxu0 0.0
        %8058 = vmatmul.mubr.f32.gmra.mxu0 %v7927
        %v8059 = vpop.f32.mrf.mxu0
        %v8060 = vadd.f32 0.0, %v8059
        %v8061 = vpop.f32.mrf.mxu0
        %8062 = vmatprep.mubr.f32.mxu0 0.0
        %8063 = vmatmul.mubr.f32.gmra.mxu0 %v7929
        %v8064 = vpop.f32.mrf.mxu0
        %v8065 = vadd.f32 0.0, %v8064
        %v8066 = vpop.f32.mrf.mxu0
        %8067 = vmatprep.mubr.f32.mxu0 0.0
        %8068 = vmatmul.mubr.f32.gmra.mxu0 %v7931
        %v8069 = vpop.f32.mrf.mxu0
        %v8070 = vadd.f32 0.0, %v8069
        %v8071 = vpop.f32.mrf.mxu0
        %8072 = vmatprep.mubr.f32.mxu0 0.0
        %8073 = vmatmul.mubr.f32.gmra.mxu0 %v7933
        %v8074 = vpop.f32.mrf.mxu0
        %v8075 = vadd.f32 0.0, %v8074
        %v8076 = vpop.f32.mrf.mxu0
        %8077 = vmatprep.mubr.f32.mxu0 0.0
        %8078 = vmatmul.mubr.f32.gmra.mxu0 %v7935
        %v8079 = vpop.f32.mrf.mxu0
        %v8080 = vadd.f32 0.0, %v8079
        %v8081 = vpop.f32.mrf.mxu0
        %8082 = vmatprep.mubr.f32.mxu0 0.0
        %8083 = vmatmul.mubr.f32.gmra.mxu0 %v7937
        %v8084 = vpop.f32.mrf.mxu0
        %v8085 = vadd.f32 0.0, %v8084
        %v8086 = vpop.f32.mrf.mxu0
        %8087 = vmatprep.mubr.f32.mxu0 0.0
        %8088 = vmatmul.mubr.f32.gmra.mxu0 %v7939
        %v8089 = vpop.f32.mrf.mxu0
        %v8090 = vadd.f32 0.0, %v8089
        %v8091 = vpop.f32.mrf.mxu0
        %8092 = vmatprep.mubr.f32.mxu0 0.0
        %8093 = vmatmul.mubr.f32.gmra.mxu0 %v7941
        %v8094 = vpop.f32.mrf.mxu0
        %v8095 = vadd.f32 0.0, %v8094
        %v8096 = vpop.f32.mrf.mxu0
        %8097 = vmatprep.mubr.f32.mxu0 0.0
        %8098 = vmatmul.mubr.f32.gmra.mxu0 %v7943
        %v8099 = vpop.f32.mrf.mxu0
        %v8100 = vadd.f32 0.0, %v8099
        %v8101 = vpop.f32.mrf.mxu0
        %8102 = vmatprep.mubr.f32.mxu0 0.0
        %8103 = vmatmul.mubr.f32.gmra.mxu0 %v7945
        %v8104 = vpop.f32.mrf.mxu0
        %v8105 = vadd.f32 0.0, %v8104
        %v8106 = vpop.f32.mrf.mxu0
        %8107 = vmatprep.mubr.f32.mxu0 0.0
        %8108 = vmatmul.mubr.f32.gmra.mxu0 %v7947
        %v8109 = vpop.f32.mrf.mxu0
        %v8110 = vadd.f32 0.0, %v8109
        %v8111 = vpop.f32.mrf.mxu0
        %8112 = vmatprep.mubr.f32.mxu0 0.0
        %8113 = vmatmul.mubr.f32.gmra.mxu0 %v7949
        %v8114 = vpop.f32.mrf.mxu0
        %v8115 = vadd.f32 0.0, %v8114
        %v8116 = vpop.f32.mrf.mxu0
        %8117 = vmatprep.mubr.f32.mxu0 0.0
        %8118 = vmatmul.mubr.f32.gmra.mxu0 %v7951
        %v8119 = vpop.f32.mrf.mxu0
        %v8120 = vadd.f32 0.0, %v8119
        %v8121 = vpop.f32.mrf.mxu0
        %8122 = vmatprep.mubr.f32.mxu0 0.0
        %8123 = vmatmul.mubr.f32.gmra.mxu0 %v7953
        %v8124 = vpop.f32.mrf.mxu0
        %v8125 = vadd.f32 0.0, %v8124
        %v8126 = vpop.f32.mrf.mxu0
        %8127 = vmatprep.mubr.f32.mxu0 0.0
        %8128 = vmatmul.mubr.f32.gmra.mxu0 %v7955
        %v8129 = vpop.f32.mrf.mxu0
        %v8130 = vadd.f32 0.0, %v8129
        %v8131 = vpop.f32.mrf.mxu0
        %8132 = vmatprep.mubr.f32.mxu0 0.0
        %8133 = vmatmul.mubr.f32.gmra.mxu0 %v7957
        %v8134 = vpop.f32.mrf.mxu0
        %v8135 = vadd.f32 0.0, %v8134
        %v8136 = vpop.f32.mrf.mxu0
        %8137 = vmatprep.mubr.f32.mxu0 0.0
        %8138 = vmatmul.mubr.f32.gmra.mxu0 %v7959
        %v8139 = vpop.f32.mrf.mxu0
        %v8140 = vadd.f32 0.0, %v8139
        %v8141 = vpop.f32.mrf.mxu0
        %8142 = vmatprep.mubr.f32.mxu0 0.0
        %8143 = vmatmul.mubr.f32.gmra.mxu0 %v7961
        %v8144 = vpop.f32.mrf.mxu0
        %v8145 = vadd.f32 0.0, %v8144
        %v8146 = vpop.f32.mrf.mxu0
        %8147 = vmatprep.mubr.f32.mxu0 0.0
        %8148 = vmatmul.mubr.f32.gmra.mxu0 %v7963
        %v8149 = vpop.f32.mrf.mxu0
        %v8150 = vadd.f32 0.0, %v8149
        %v8151 = vpop.f32.mrf.mxu0
        %8152 = vmatprep.mubr.f32.mxu0 0.0
        %8153 = vmatmul.mubr.f32.gmra.mxu0 %v7965
        %v8154 = vpop.f32.mrf.mxu0
        %v8155 = vadd.f32 0.0, %v8154
        %v8156 = vpop.f32.mrf.mxu0
        %8157 = vmatprep.mubr.f32.mxu0 0.0
        %8158 = vmatmul.mubr.f32.gmra.mxu0 %v7967
        %v8159 = vpop.f32.mrf.mxu0
        %v8160 = vadd.f32 0.0, %v8159
        %v8161 = vpop.f32.mrf.mxu0
        %8162 = vmatprep.mubr.f32.mxu0 0.0
        %8163 = vmatmul.mubr.f32.gmra.mxu0 %v7969
        %v8164 = vpop.f32.mrf.mxu0
        %v8165 = vadd.f32 0.0, %v8164
        %v8166 = vpop.f32.mrf.mxu0
        %8167 = vmatprep.mubr.f32.mxu0 0.0
        %8168 = vmatmul.mubr.f32.gmra.mxu0 %v7971
        %v8169 = vpop.f32.mrf.mxu0
        %v8170 = vadd.f32 0.0, %v8169
        %v8171 = vpop.f32.mrf.mxu0
        %8172 = vmatprep.mubr.f32.mxu0 0.0
        %8173 = vmatmul.mubr.f32.gmra.mxu0 %v7973
        %v8174 = vpop.f32.mrf.mxu0
        %v8175 = vadd.f32 0.0, %v8174
        %v8176 = vpop.f32.mrf.mxu0
        %8177 = vmatprep.mubr.f32.mxu0 0.0
        %8178 = vmatmul.mubr.f32.gmra.mxu0 %v7975
        %v8179 = vpop.f32.mrf.mxu0
        %v8180 = vadd.f32 0.0, %v8179
        %v8181 = vpop.f32.mrf.mxu0
        %8182 = vmatprep.mubr.f32.mxu0 0.0
        %8183 = vmatmul.mubr.f32.gmra.mxu0 %v7977
        %v8184 = vpop.f32.mrf.mxu0
        %v8185 = vadd.f32 0.0, %v8184
        %v8186 = vpop.f32.mrf.mxu0
        %8187 = vmatprep.mubr.f32.mxu0 0.0
        %8188 = vmatmul.mubr.f32.gmra.mxu0 %v7979
        %v8189 = vpop.f32.mrf.mxu0
        %v8190 = vadd.f32 0.0, %v8189
        %v8191 = vpop.f32.mrf.mxu0
        %8192 = vmatprep.mubr.f32.mxu0 0.0
        %8193 = vmatmul.mubr.f32.gmra.mxu0 %v7981
        %v8194 = vpop.f32.mrf.mxu0
        %v8195 = vadd.f32 0.0, %v8194
        %v8196 = vpop.f32.mrf.mxu0
        %8197 = vdwg.mxu0
        %v8198 = vadd.f32 %v7520, %v8050
        %v8199 = vadd.f32 %v7521, %v8055
        %v8200 = vadd.f32 %v7522, %v8060
        %v8201 = vadd.f32 %v7523, %v8065
        %v8202 = vadd.f32 %v7524, %v8070
        %v8203 = vadd.f32 %v7525, %v8075
        %v8204 = vadd.f32 %v7526, %v8080
        %v8205 = vadd.f32 %v7527, %v8085
        %v8206 = vadd.f32 %v7528, %v8090
        %v8207 = vadd.f32 %v7529, %v8095
        %v8208 = vadd.f32 %v7530, %v8100
        %v8209 = vadd.f32 %v7531, %v8105
        %v8210 = vadd.f32 %v7532, %v8110
        %v8211 = vadd.f32 %v7533, %v8115
        %v8212 = vadd.f32 %v7534, %v8120
        %v8213 = vadd.f32 %v7535, %v8125
        %v8214 = vadd.f32 %v7536, %v8130
        %v8215 = vadd.f32 %v7537, %v8135
        %v8216 = vadd.f32 %v7538, %v8140
        %v8217 = vadd.f32 %v7539, %v8145
        %v8218 = vadd.f32 %v7540, %v8150
        %v8219 = vadd.f32 %v7541, %v8155
        %v8220 = vadd.f32 %v7542, %v8160
        %v8221 = vadd.f32 %v7543, %v8165
        %v8222 = vadd.f32 %v7544, %v8170
        %v8223 = vadd.f32 %v7545, %v8175
        %v8224 = vadd.f32 %v7546, %v8180
        %v8225 = vadd.f32 %v7547, %v8185
        %v8226 = vadd.f32 %v7548, %v8190
        %v8227 = vadd.f32 %v7549, %v8195
        %s8228 = scalar_lea.vmem %s1, 2640
        %v8229 = vld [vmem:[%s8228] sm:$0xff]
        %v8230 = vld [vmem:[%s8228 + $0x8] sm:$0xff]
        %v8231 = vld [vmem:[%s8228 + $0x10] sm:$0xff]
        %v8232 = vld [vmem:[%s8228 + $0x18] sm:$0xff]
        %v8233 = vld [vmem:[%s8228 + $0x20] sm:$0xff]
        %v8234 = vld [vmem:[%s8228 + $0x28] sm:$0xff]
        %v8235 = vld [vmem:[%s8228 + $0x30] sm:$0xff]
        %v8236 = vld [vmem:[%s8228 + $0x38] sm:$0xff]
        %v8237 = vld [vmem:[%s8228 + $0x40] sm:$0xff]
        %v8238 = vld [vmem:[%s8228 + $0x48] sm:$0xff]
        %v8239 = vld [vmem:[%s8228 + $0x50] sm:$0xff]
        %v8240 = vld [vmem:[%s8228 + $0x58] sm:$0xff]
        %v8241 = vld [vmem:[%s8228 + $0x60] sm:$0xff]
        %v8242 = vld [vmem:[%s8228 + $0x68] sm:$0xff]
        %v8243 = vld [vmem:[%s8228 + $0x70] sm:$0xff]
        %v8244 = vld [vmem:[%s8228 + $0x78] sm:$0xff]
        %v8245 = vld [vmem:[%s8228 + $0x80] sm:$0xff]
        %v8246 = vld [vmem:[%s8228 + $0x88] sm:$0xff]
        %v8247 = vld [vmem:[%s8228 + $0x90] sm:$0xff]
        %v8248 = vld [vmem:[%s8228 + $0x98] sm:$0xff]
        %v8249 = vld [vmem:[%s8228 + $0xa0] sm:$0xff]
        %v8250 = vld [vmem:[%s8228 + $0xa8] sm:$0xff]
        %v8251 = vld [vmem:[%s8228 + $0xb0] sm:$0xff]
        %v8252 = vld [vmem:[%s8228 + $0xb8] sm:$0xff]
        %v8253 = vld [vmem:[%s8228 + $0xc0] sm:$0xff]
        %v8254 = vld [vmem:[%s8228 + $0xc8] sm:$0xff]
        %v8255 = vld [vmem:[%s8228 + $0xd0] sm:$0xff]
        %v8256 = vld [vmem:[%s8228 + $0xd8] sm:$0xff]
        %v8257 = vld [vmem:[%s8228 + $0xe0] sm:$0xff]
        %v8258 = vld [vmem:[%s8228 + $0xe8] sm:$0xff]
        %8260 = vset.pattern.permute.xlu0 0
        %8261 = vperm.xlu0 %8260, %v8229
        %v8262 = vpop.permute.xlu0 %8261
        %8265 = vset.pattern.permute.xlu0 0
        %8266 = vperm.xlu0 %8265, %v8230
        %v8267 = vpop.permute.xlu0 %8266
        %8270 = vset.pattern.permute.xlu0 0
        %8271 = vperm.xlu0 %8270, %v8231
        %v8272 = vpop.permute.xlu0 %8271
        %8275 = vset.pattern.permute.xlu0 0
        %8276 = vperm.xlu0 %8275, %v8232
        %v8277 = vpop.permute.xlu0 %8276
        %8280 = vset.pattern.permute.xlu0 0
        %8281 = vperm.xlu0 %8280, %v8233
        %v8282 = vpop.permute.xlu0 %8281
        %8285 = vset.pattern.permute.xlu0 0
        %8286 = vperm.xlu0 %8285, %v8234
        %v8287 = vpop.permute.xlu0 %8286
        %8290 = vset.pattern.permute.xlu0 0
        %8291 = vperm.xlu0 %8290, %v8235
        %v8292 = vpop.permute.xlu0 %8291
        %8295 = vset.pattern.permute.xlu0 0
        %8296 = vperm.xlu0 %8295, %v8236
        %v8297 = vpop.permute.xlu0 %8296
        %8300 = vset.pattern.permute.xlu0 0
        %8301 = vperm.xlu0 %8300, %v8237
        %v8302 = vpop.permute.xlu0 %8301
        %8305 = vset.pattern.permute.xlu0 0
        %8306 = vperm.xlu0 %8305, %v8238
        %v8307 = vpop.permute.xlu0 %8306
        %8310 = vset.pattern.permute.xlu0 0
        %8311 = vperm.xlu0 %8310, %v8239
        %v8312 = vpop.permute.xlu0 %8311
        %8315 = vset.pattern.permute.xlu0 0
        %8316 = vperm.xlu0 %8315, %v8240
        %v8317 = vpop.permute.xlu0 %8316
        %8320 = vset.pattern.permute.xlu0 0
        %8321 = vperm.xlu0 %8320, %v8241
        %v8322 = vpop.permute.xlu0 %8321
        %8325 = vset.pattern.permute.xlu0 0
        %8326 = vperm.xlu0 %8325, %v8242
        %v8327 = vpop.permute.xlu0 %8326
        %8330 = vset.pattern.permute.xlu0 0
        %8331 = vperm.xlu0 %8330, %v8243
        %v8332 = vpop.permute.xlu0 %8331
        %8335 = vset.pattern.permute.xlu0 0
        %8336 = vperm.xlu0 %8335, %v8244
        %v8337 = vpop.permute.xlu0 %8336
        %8340 = vset.pattern.permute.xlu0 0
        %8341 = vperm.xlu0 %8340, %v8245
        %v8342 = vpop.permute.xlu0 %8341
        %8345 = vset.pattern.permute.xlu0 0
        %8346 = vperm.xlu0 %8345, %v8246
        %v8347 = vpop.permute.xlu0 %8346
        %8350 = vset.pattern.permute.xlu0 0
        %8351 = vperm.xlu0 %8350, %v8247
        %v8352 = vpop.permute.xlu0 %8351
        %8355 = vset.pattern.permute.xlu0 0
        %8356 = vperm.xlu0 %8355, %v8248
        %v8357 = vpop.permute.xlu0 %8356
        %8360 = vset.pattern.permute.xlu0 0
        %8361 = vperm.xlu0 %8360, %v8249
        %v8362 = vpop.permute.xlu0 %8361
        %8365 = vset.pattern.permute.xlu0 0
        %8366 = vperm.xlu0 %8365, %v8250
        %v8367 = vpop.permute.xlu0 %8366
        %8370 = vset.pattern.permute.xlu0 0
        %8371 = vperm.xlu0 %8370, %v8251
        %v8372 = vpop.permute.xlu0 %8371
        %8375 = vset.pattern.permute.xlu0 0
        %8376 = vperm.xlu0 %8375, %v8252
        %v8377 = vpop.permute.xlu0 %8376
        %8380 = vset.pattern.permute.xlu0 0
        %8381 = vperm.xlu0 %8380, %v8253
        %v8382 = vpop.permute.xlu0 %8381
        %8385 = vset.pattern.permute.xlu0 0
        %8386 = vperm.xlu0 %8385, %v8254
        %v8387 = vpop.permute.xlu0 %8386
        %8390 = vset.pattern.permute.xlu0 0
        %8391 = vperm.xlu0 %8390, %v8255
        %v8392 = vpop.permute.xlu0 %8391
        %8395 = vset.pattern.permute.xlu0 0
        %8396 = vperm.xlu0 %8395, %v8256
        %v8397 = vpop.permute.xlu0 %8396
        %8400 = vset.pattern.permute.xlu0 0
        %8401 = vperm.xlu0 %8400, %v8257
        %v8402 = vpop.permute.xlu0 %8401
        %8405 = vset.pattern.permute.xlu0 0
        %8406 = vperm.xlu0 %8405, %v8258
        %v8407 = vpop.permute.xlu0 %8406
        %v8409 = vmul.f32 %v1044, %v8262
        %v8410 = vmul.f32 %v1045, %v8267
        %v8411 = vmul.f32 %v1046, %v8272
        %v8412 = vmul.f32 %v1047, %v8277
        %v8413 = vmul.f32 %v1048, %v8282
        %v8414 = vmul.f32 %v1049, %v8287
        %v8415 = vmul.f32 %v1050, %v8292
        %v8416 = vmul.f32 %v1051, %v8297
        %v8417 = vmul.f32 %v1052, %v8302
        %v8418 = vmul.f32 %v1053, %v8307
        %v8419 = vmul.f32 %v1054, %v8312
        %v8420 = vmul.f32 %v1055, %v8317
        %v8421 = vmul.f32 %v1056, %v8322
        %v8422 = vmul.f32 %v1057, %v8327
        %v8423 = vmul.f32 %v1058, %v8332
        %v8424 = vmul.f32 %v1059, %v8337
        %v8425 = vmul.f32 %v1060, %v8342
        %v8426 = vmul.f32 %v1061, %v8347
        %v8427 = vmul.f32 %v1062, %v8352
        %v8428 = vmul.f32 %v1063, %v8357
        %v8429 = vmul.f32 %v1064, %v8362
        %v8430 = vmul.f32 %v1065, %v8367
        %v8431 = vmul.f32 %v1066, %v8372
        %v8432 = vmul.f32 %v1067, %v8377
        %v8433 = vmul.f32 %v1068, %v8382
        %v8434 = vmul.f32 %v1069, %v8387
        %v8435 = vmul.f32 %v1070, %v8392
        %v8436 = vmul.f32 %v1071, %v8397
        %v8437 = vmul.f32 %v8402, 0.0
        %v8438 = vmul.f32 %v8407, 0.0
        %s8439 = scalar_lea.vmem %s4, 704
        %v8440 = vld [vmem:[%s8439] sm:$0xff]
        %v8441 = vld [vmem:[%s8439 + $0x8] sm:$0xff]
        %v8442 = vld [vmem:[%s8439 + $0x10] sm:$0xff]
        %v8443 = vld [vmem:[%s8439 + $0x18] sm:$0xff]
        %v8444 = vld [vmem:[%s8439 + $0x20] sm:$0xff]
        %v8445 = vld [vmem:[%s8439 + $0x28] sm:$0xff]
        %v8446 = vld [vmem:[%s8439 + $0x30] sm:$0xff]
        %v8447 = vld [vmem:[%s8439 + $0x38] sm:$0xff]
        %v8449 = vsel %vm1727, %v8409, 0
        %v8452 = vsel %vm1727, %v8410, 0
        %v8455 = vsel %vm1727, %v8411, 0
        %v8458 = vsel %vm1727, %v8412, 0
        %v8461 = vsel %vm1727, %v8413, 0
        %v8464 = vsel %vm1727, %v8414, 0
        %v8467 = vsel %vm1727, %v8415, 0
        %v8470 = vsel %vm1727, %v8416, 0
        %v8473 = vsel %vm1727, %v8417, 0
        %v8476 = vsel %vm1727, %v8418, 0
        %v8479 = vsel %vm1727, %v8419, 0
        %v8482 = vsel %vm1727, %v8420, 0
        %v8485 = vsel %vm1727, %v8421, 0
        %v8488 = vsel %vm1727, %v8422, 0
        %v8491 = vsel %vm1727, %v8423, 0
        %v8494 = vsel %vm1727, %v8424, 0
        %v8497 = vsel %vm1727, %v8425, 0
        %v8500 = vsel %vm1727, %v8426, 0
        %v8503 = vsel %vm1727, %v8427, 0
        %v8506 = vsel %vm1727, %v8428, 0
        %v8509 = vsel %vm1727, %v8429, 0
        %v8512 = vsel %vm1727, %v8430, 0
        %v8515 = vsel %vm1727, %v8431, 0
        %v8518 = vsel %vm1727, %v8432, 0
        %v8521 = vsel %vm1727, %v8433, 0
        %v8524 = vsel %vm1727, %v8434, 0
        %v8527 = vsel %vm1727, %v8435, 0
        %v8530 = vsel %vm1727, %v8436, 0
        %v8533 = vsel %vm1727, %v8437, 0
        %v8536 = vsel %vm1727, %v8438, 0
        %8538 = vmatprep.subr.mxu0 0.0
        %8539 = vmatpush1.msra.mxu0 0.0
        %8540 = vmatprep.subr.mxu0 0.0
        %8541 = vmatpush1.msra.mxu0 0.0
        %8542 = vmatprep.subr.mxu0 0.0
        %8543 = vmatpush1.msra.mxu0 0.0
        %8544 = vmatprep.subr.mxu0 0.0
        %8545 = vmatpush1.msra.mxu0 0.0
        %8546 = vmatprep.subr.mxu0 0.0
        %8547 = vmatpush1.msra.mxu0 0.0
        %8548 = vmatprep.subr.mxu0 0.0
        %8549 = vmatpush1.msra.mxu0 0.0
        %8550 = vmatprep.subr.mxu0 0.0
        %8551 = vmatpush1.msra.mxu0 0.0
        %8552 = vmatprep.subr.mxu0 0.0
        %8553 = vmatpush1.msra.mxu0 0.0
        %8554 = vmatprep.subr.mxu0 0.0
        %8555 = vmatpush1.msra.mxu0 %v8447
        %8556 = vmatprep.subr.mxu0 0.0
        %8557 = vmatpush1.msra.mxu0 %v8446
        %8558 = vmatprep.subr.mxu0 0.0
        %8559 = vmatpush1.msra.mxu0 %v8445
        %8560 = vmatprep.subr.mxu0 0.0
        %8561 = vmatpush1.msra.mxu0 %v8444
        %8562 = vmatprep.subr.mxu0 0.0
        %8563 = vmatpush1.msra.mxu0 %v8443
        %8564 = vmatprep.subr.mxu0 0.0
        %8565 = vmatpush1.msra.mxu0 %v8442
        %8566 = vmatprep.subr.mxu0 0.0
        %8567 = vmatpush1.msra.mxu0 %v8441
        %8568 = vmatprep.subr.mxu0 0.0
        %8569 = vmatpush1.msra.mxu0 %v8440
        %8570 = vmatprep.subr.mxu0 0.0
        %8571 = vmatpush2.msra.mxu0 0.0
        %8572 = vmatprep.subr.mxu0 0.0
        %8573 = vmatpush2.msra.mxu0 0.0
        %8574 = vmatprep.subr.mxu0 0.0
        %8575 = vmatpush2.msra.mxu0 0.0
        %8576 = vmatprep.subr.mxu0 0.0
        %8577 = vmatpush2.msra.mxu0 0.0
        %8578 = vmatprep.subr.mxu0 0.0
        %8579 = vmatpush2.msra.mxu0 0.0
        %8580 = vmatprep.subr.mxu0 0.0
        %8581 = vmatpush2.msra.mxu0 0.0
        %8582 = vmatprep.subr.mxu0 0.0
        %8583 = vmatpush2.msra.mxu0 0.0
        %8584 = vmatprep.subr.mxu0 0.0
        %8585 = vmatpush2.msra.mxu0 0.0
        %8586 = vmatprep.subr.mxu0 0.0
        %8587 = vmatpush2.msra.mxu0 0.0
        %8588 = vmatprep.subr.mxu0 0.0
        %8589 = vmatpush2.msra.mxu0 0.0
        %8590 = vmatprep.subr.mxu0 0.0
        %8591 = vmatpush2.msra.mxu0 0.0
        %8592 = vmatprep.subr.mxu0 0.0
        %8593 = vmatpush2.msra.mxu0 0.0
        %8594 = vmatprep.subr.mxu0 0.0
        %8595 = vmatpush2.msra.mxu0 0.0
        %8596 = vmatprep.subr.mxu0 0.0
        %8597 = vmatpush2.msra.mxu0 0.0
        %8598 = vmatprep.subr.mxu0 0.0
        %8599 = vmatpush2.msra.mxu0 0.0
        %8600 = vmatprep.subr.mxu0 0.0
        %8601 = vmatpush2.msra.mxu0 0.0
        %8602 = vmatprep.mubr.f32.mxu0 0.0
        %8603 = vmatmul.mubr.f32.gmra.mxu0 %v8449
        %v8604 = vpop.f32.mrf.mxu0
        %v8605 = vadd.f32 0.0, %v8604
        %v8606 = vpop.f32.mrf.mxu0
        %8607 = vmatprep.mubr.f32.mxu0 0.0
        %8608 = vmatmul.mubr.f32.gmra.mxu0 %v8452
        %v8609 = vpop.f32.mrf.mxu0
        %v8610 = vadd.f32 0.0, %v8609
        %v8611 = vpop.f32.mrf.mxu0
        %8612 = vmatprep.mubr.f32.mxu0 0.0
        %8613 = vmatmul.mubr.f32.gmra.mxu0 %v8455
        %v8614 = vpop.f32.mrf.mxu0
        %v8615 = vadd.f32 0.0, %v8614
        %v8616 = vpop.f32.mrf.mxu0
        %8617 = vmatprep.mubr.f32.mxu0 0.0
        %8618 = vmatmul.mubr.f32.gmra.mxu0 %v8458
        %v8619 = vpop.f32.mrf.mxu0
        %v8620 = vadd.f32 0.0, %v8619
        %v8621 = vpop.f32.mrf.mxu0
        %8622 = vmatprep.mubr.f32.mxu0 0.0
        %8623 = vmatmul.mubr.f32.gmra.mxu0 %v8461
        %v8624 = vpop.f32.mrf.mxu0
        %v8625 = vadd.f32 0.0, %v8624
        %v8626 = vpop.f32.mrf.mxu0
        %8627 = vmatprep.mubr.f32.mxu0 0.0
        %8628 = vmatmul.mubr.f32.gmra.mxu0 %v8464
        %v8629 = vpop.f32.mrf.mxu0
        %v8630 = vadd.f32 0.0, %v8629
        %v8631 = vpop.f32.mrf.mxu0
        %8632 = vmatprep.mubr.f32.mxu0 0.0
        %8633 = vmatmul.mubr.f32.gmra.mxu0 %v8467
        %v8634 = vpop.f32.mrf.mxu0
        %v8635 = vadd.f32 0.0, %v8634
        %v8636 = vpop.f32.mrf.mxu0
        %8637 = vmatprep.mubr.f32.mxu0 0.0
        %8638 = vmatmul.mubr.f32.gmra.mxu0 %v8470
        %v8639 = vpop.f32.mrf.mxu0
        %v8640 = vadd.f32 0.0, %v8639
        %v8641 = vpop.f32.mrf.mxu0
        %8642 = vmatprep.mubr.f32.mxu0 0.0
        %8643 = vmatmul.mubr.f32.gmra.mxu0 %v8473
        %v8644 = vpop.f32.mrf.mxu0
        %v8645 = vadd.f32 0.0, %v8644
        %v8646 = vpop.f32.mrf.mxu0
        %8647 = vmatprep.mubr.f32.mxu0 0.0
        %8648 = vmatmul.mubr.f32.gmra.mxu0 %v8476
        %v8649 = vpop.f32.mrf.mxu0
        %v8650 = vadd.f32 0.0, %v8649
        %v8651 = vpop.f32.mrf.mxu0
        %8652 = vmatprep.mubr.f32.mxu0 0.0
        %8653 = vmatmul.mubr.f32.gmra.mxu0 %v8479
        %v8654 = vpop.f32.mrf.mxu0
        %v8655 = vadd.f32 0.0, %v8654
        %v8656 = vpop.f32.mrf.mxu0
        %8657 = vmatprep.mubr.f32.mxu0 0.0
        %8658 = vmatmul.mubr.f32.gmra.mxu0 %v8482
        %v8659 = vpop.f32.mrf.mxu0
        %v8660 = vadd.f32 0.0, %v8659
        %v8661 = vpop.f32.mrf.mxu0
        %8662 = vmatprep.mubr.f32.mxu0 0.0
        %8663 = vmatmul.mubr.f32.gmra.mxu0 %v8485
        %v8664 = vpop.f32.mrf.mxu0
        %v8665 = vadd.f32 0.0, %v8664
        %v8666 = vpop.f32.mrf.mxu0
        %8667 = vmatprep.mubr.f32.mxu0 0.0
        %8668 = vmatmul.mubr.f32.gmra.mxu0 %v8488
        %v8669 = vpop.f32.mrf.mxu0
        %v8670 = vadd.f32 0.0, %v8669
        %v8671 = vpop.f32.mrf.mxu0
        %8672 = vmatprep.mubr.f32.mxu0 0.0
        %8673 = vmatmul.mubr.f32.gmra.mxu0 %v8491
        %v8674 = vpop.f32.mrf.mxu0
        %v8675 = vadd.f32 0.0, %v8674
        %v8676 = vpop.f32.mrf.mxu0
        %8677 = vmatprep.mubr.f32.mxu0 0.0
        %8678 = vmatmul.mubr.f32.gmra.mxu0 %v8494
        %v8679 = vpop.f32.mrf.mxu0
        %v8680 = vadd.f32 0.0, %v8679
        %v8681 = vpop.f32.mrf.mxu0
        %8682 = vmatprep.mubr.f32.mxu0 0.0
        %8683 = vmatmul.mubr.f32.gmra.mxu0 %v8497
        %v8684 = vpop.f32.mrf.mxu0
        %v8685 = vadd.f32 0.0, %v8684
        %v8686 = vpop.f32.mrf.mxu0
        %8687 = vmatprep.mubr.f32.mxu0 0.0
        %8688 = vmatmul.mubr.f32.gmra.mxu0 %v8500
        %v8689 = vpop.f32.mrf.mxu0
        %v8690 = vadd.f32 0.0, %v8689
        %v8691 = vpop.f32.mrf.mxu0
        %8692 = vmatprep.mubr.f32.mxu0 0.0
        %8693 = vmatmul.mubr.f32.gmra.mxu0 %v8503
        %v8694 = vpop.f32.mrf.mxu0
        %v8695 = vadd.f32 0.0, %v8694
        %v8696 = vpop.f32.mrf.mxu0
        %8697 = vmatprep.mubr.f32.mxu0 0.0
        %8698 = vmatmul.mubr.f32.gmra.mxu0 %v8506
        %v8699 = vpop.f32.mrf.mxu0
        %v8700 = vadd.f32 0.0, %v8699
        %v8701 = vpop.f32.mrf.mxu0
        %8702 = vmatprep.mubr.f32.mxu0 0.0
        %8703 = vmatmul.mubr.f32.gmra.mxu0 %v8509
        %v8704 = vpop.f32.mrf.mxu0
        %v8705 = vadd.f32 0.0, %v8704
        %v8706 = vpop.f32.mrf.mxu0
        %8707 = vmatprep.mubr.f32.mxu0 0.0
        %8708 = vmatmul.mubr.f32.gmra.mxu0 %v8512
        %v8709 = vpop.f32.mrf.mxu0
        %v8710 = vadd.f32 0.0, %v8709
        %v8711 = vpop.f32.mrf.mxu0
        %8712 = vmatprep.mubr.f32.mxu0 0.0
        %8713 = vmatmul.mubr.f32.gmra.mxu0 %v8515
        %v8714 = vpop.f32.mrf.mxu0
        %v8715 = vadd.f32 0.0, %v8714
        %v8716 = vpop.f32.mrf.mxu0
        %8717 = vmatprep.mubr.f32.mxu0 0.0
        %8718 = vmatmul.mubr.f32.gmra.mxu0 %v8518
        %v8719 = vpop.f32.mrf.mxu0
        %v8720 = vadd.f32 0.0, %v8719
        %v8721 = vpop.f32.mrf.mxu0
        %8722 = vmatprep.mubr.f32.mxu0 0.0
        %8723 = vmatmul.mubr.f32.gmra.mxu0 %v8521
        %v8724 = vpop.f32.mrf.mxu0
        %v8725 = vadd.f32 0.0, %v8724
        %v8726 = vpop.f32.mrf.mxu0
        %8727 = vmatprep.mubr.f32.mxu0 0.0
        %8728 = vmatmul.mubr.f32.gmra.mxu0 %v8524
        %v8729 = vpop.f32.mrf.mxu0
        %v8730 = vadd.f32 0.0, %v8729
        %v8731 = vpop.f32.mrf.mxu0
        %8732 = vmatprep.mubr.f32.mxu0 0.0
        %8733 = vmatmul.mubr.f32.gmra.mxu0 %v8527
        %v8734 = vpop.f32.mrf.mxu0
        %v8735 = vadd.f32 0.0, %v8734
        %v8736 = vpop.f32.mrf.mxu0
        %8737 = vmatprep.mubr.f32.mxu0 0.0
        %8738 = vmatmul.mubr.f32.gmra.mxu0 %v8530
        %v8739 = vpop.f32.mrf.mxu0
        %v8740 = vadd.f32 0.0, %v8739
        %v8741 = vpop.f32.mrf.mxu0
        %8742 = vmatprep.mubr.f32.mxu0 0.0
        %8743 = vmatmul.mubr.f32.gmra.mxu0 %v8533
        %v8744 = vpop.f32.mrf.mxu0
        %v8745 = vadd.f32 0.0, %v8744
        %v8746 = vpop.f32.mrf.mxu0
        %8747 = vmatprep.mubr.f32.mxu0 0.0
        %8748 = vmatmul.mubr.f32.gmra.mxu0 %v8536
        %v8749 = vpop.f32.mrf.mxu0
        %v8750 = vadd.f32 0.0, %v8749
        %v8751 = vpop.f32.mrf.mxu0
        %8752 = vdwg.mxu0
        %v8753 = vadd.f32 %v8198, %v8605
        %v8754 = vadd.f32 %v8199, %v8610
        %v8755 = vadd.f32 %v8200, %v8615
        %v8756 = vadd.f32 %v8201, %v8620
        %v8757 = vadd.f32 %v8202, %v8625
        %v8758 = vadd.f32 %v8203, %v8630
        %v8759 = vadd.f32 %v8204, %v8635
        %v8760 = vadd.f32 %v8205, %v8640
        %v8761 = vadd.f32 %v8206, %v8645
        %v8762 = vadd.f32 %v8207, %v8650
        %v8763 = vadd.f32 %v8208, %v8655
        %v8764 = vadd.f32 %v8209, %v8660
        %v8765 = vadd.f32 %v8210, %v8665
        %v8766 = vadd.f32 %v8211, %v8670
        %v8767 = vadd.f32 %v8212, %v8675
        %v8768 = vadd.f32 %v8213, %v8680
        %v8769 = vadd.f32 %v8214, %v8685
        %v8770 = vadd.f32 %v8215, %v8690
        %v8771 = vadd.f32 %v8216, %v8695
        %v8772 = vadd.f32 %v8217, %v8700
        %v8773 = vadd.f32 %v8218, %v8705
        %v8774 = vadd.f32 %v8219, %v8710
        %v8775 = vadd.f32 %v8220, %v8715
        %v8776 = vadd.f32 %v8221, %v8720
        %v8777 = vadd.f32 %v8222, %v8725
        %v8778 = vadd.f32 %v8223, %v8730
        %v8779 = vadd.f32 %v8224, %v8735
        %v8780 = vadd.f32 %v8225, %v8740
        %v8781 = vadd.f32 %v8226, %v8745
        %v8782 = vadd.f32 %v8227, %v8750
        %s8783 = scalar_lea.vmem %s1, 2880
        %v8784 = vld [vmem:[%s8783] sm:$0xff]
        %v8785 = vld [vmem:[%s8783 + $0x8] sm:$0xff]
        %v8786 = vld [vmem:[%s8783 + $0x10] sm:$0xff]
        %v8787 = vld [vmem:[%s8783 + $0x18] sm:$0xff]
        %v8788 = vld [vmem:[%s8783 + $0x20] sm:$0xff]
        %v8789 = vld [vmem:[%s8783 + $0x28] sm:$0xff]
        %v8790 = vld [vmem:[%s8783 + $0x30] sm:$0xff]
        %v8791 = vld [vmem:[%s8783 + $0x38] sm:$0xff]
        %v8792 = vld [vmem:[%s8783 + $0x40] sm:$0xff]
        %v8793 = vld [vmem:[%s8783 + $0x48] sm:$0xff]
        %v8794 = vld [vmem:[%s8783 + $0x50] sm:$0xff]
        %v8795 = vld [vmem:[%s8783 + $0x58] sm:$0xff]
        %v8796 = vld [vmem:[%s8783 + $0x60] sm:$0xff]
        %v8797 = vld [vmem:[%s8783 + $0x68] sm:$0xff]
        %v8798 = vld [vmem:[%s8783 + $0x70] sm:$0xff]
        %v8799 = vld [vmem:[%s8783 + $0x78] sm:$0xff]
        %v8800 = vld [vmem:[%s8783 + $0x80] sm:$0xff]
        %v8801 = vld [vmem:[%s8783 + $0x88] sm:$0xff]
        %v8802 = vld [vmem:[%s8783 + $0x90] sm:$0xff]
        %v8803 = vld [vmem:[%s8783 + $0x98] sm:$0xff]
        %v8804 = vld [vmem:[%s8783 + $0xa0] sm:$0xff]
        %v8805 = vld [vmem:[%s8783 + $0xa8] sm:$0xff]
        %v8806 = vld [vmem:[%s8783 + $0xb0] sm:$0xff]
        %v8807 = vld [vmem:[%s8783 + $0xb8] sm:$0xff]
        %v8808 = vld [vmem:[%s8783 + $0xc0] sm:$0xff]
        %v8809 = vld [vmem:[%s8783 + $0xc8] sm:$0xff]
        %v8810 = vld [vmem:[%s8783 + $0xd0] sm:$0xff]
        %v8811 = vld [vmem:[%s8783 + $0xd8] sm:$0xff]
        %v8812 = vld [vmem:[%s8783 + $0xe0] sm:$0xff]
        %v8813 = vld [vmem:[%s8783 + $0xe8] sm:$0xff]
        %8815 = vset.pattern.permute.xlu0 0
        %8816 = vperm.xlu0 %8815, %v8784
        %v8817 = vpop.permute.xlu0 %8816
        %8819 = vset.pattern.permute.xlu0 0
        %8820 = vperm.xlu0 %8819, %v8785
        %v8821 = vpop.permute.xlu0 %8820
        %8823 = vset.pattern.permute.xlu0 0
        %8824 = vperm.xlu0 %8823, %v8786
        %v8825 = vpop.permute.xlu0 %8824
        %8827 = vset.pattern.permute.xlu0 0
        %8828 = vperm.xlu0 %8827, %v8787
        %v8829 = vpop.permute.xlu0 %8828
        %8831 = vset.pattern.permute.xlu0 0
        %8832 = vperm.xlu0 %8831, %v8788
        %v8833 = vpop.permute.xlu0 %8832
        %8835 = vset.pattern.permute.xlu0 0
        %8836 = vperm.xlu0 %8835, %v8789
        %v8837 = vpop.permute.xlu0 %8836
        %8839 = vset.pattern.permute.xlu0 0
        %8840 = vperm.xlu0 %8839, %v8790
        %v8841 = vpop.permute.xlu0 %8840
        %8843 = vset.pattern.permute.xlu0 0
        %8844 = vperm.xlu0 %8843, %v8791
        %v8845 = vpop.permute.xlu0 %8844
        %8847 = vset.pattern.permute.xlu0 0
        %8848 = vperm.xlu0 %8847, %v8792
        %v8849 = vpop.permute.xlu0 %8848
        %8851 = vset.pattern.permute.xlu0 0
        %8852 = vperm.xlu0 %8851, %v8793
        %v8853 = vpop.permute.xlu0 %8852
        %8855 = vset.pattern.permute.xlu0 0
        %8856 = vperm.xlu0 %8855, %v8794
        %v8857 = vpop.permute.xlu0 %8856
        %8859 = vset.pattern.permute.xlu0 0
        %8860 = vperm.xlu0 %8859, %v8795
        %v8861 = vpop.permute.xlu0 %8860
        %8863 = vset.pattern.permute.xlu0 0
        %8864 = vperm.xlu0 %8863, %v8796
        %v8865 = vpop.permute.xlu0 %8864
        %8867 = vset.pattern.permute.xlu0 0
        %8868 = vperm.xlu0 %8867, %v8797
        %v8869 = vpop.permute.xlu0 %8868
        %8871 = vset.pattern.permute.xlu0 0
        %8872 = vperm.xlu0 %8871, %v8798
        %v8873 = vpop.permute.xlu0 %8872
        %8875 = vset.pattern.permute.xlu0 0
        %8876 = vperm.xlu0 %8875, %v8799
        %v8877 = vpop.permute.xlu0 %8876
        %8879 = vset.pattern.permute.xlu0 0
        %8880 = vperm.xlu0 %8879, %v8800
        %v8881 = vpop.permute.xlu0 %8880
        %8883 = vset.pattern.permute.xlu0 0
        %8884 = vperm.xlu0 %8883, %v8801
        %v8885 = vpop.permute.xlu0 %8884
        %8887 = vset.pattern.permute.xlu0 0
        %8888 = vperm.xlu0 %8887, %v8802
        %v8889 = vpop.permute.xlu0 %8888
        %8891 = vset.pattern.permute.xlu0 0
        %8892 = vperm.xlu0 %8891, %v8803
        %v8893 = vpop.permute.xlu0 %8892
        %8895 = vset.pattern.permute.xlu0 0
        %8896 = vperm.xlu0 %8895, %v8804
        %v8897 = vpop.permute.xlu0 %8896
        %8899 = vset.pattern.permute.xlu0 0
        %8900 = vperm.xlu0 %8899, %v8805
        %v8901 = vpop.permute.xlu0 %8900
        %8903 = vset.pattern.permute.xlu0 0
        %8904 = vperm.xlu0 %8903, %v8806
        %v8905 = vpop.permute.xlu0 %8904
        %8907 = vset.pattern.permute.xlu0 0
        %8908 = vperm.xlu0 %8907, %v8807
        %v8909 = vpop.permute.xlu0 %8908
        %8911 = vset.pattern.permute.xlu0 0
        %8912 = vperm.xlu0 %8911, %v8808
        %v8913 = vpop.permute.xlu0 %8912
        %8915 = vset.pattern.permute.xlu0 0
        %8916 = vperm.xlu0 %8915, %v8809
        %v8917 = vpop.permute.xlu0 %8916
        %8919 = vset.pattern.permute.xlu0 0
        %8920 = vperm.xlu0 %8919, %v8810
        %v8921 = vpop.permute.xlu0 %8920
        %8923 = vset.pattern.permute.xlu0 0
        %8924 = vperm.xlu0 %8923, %v8811
        %v8925 = vpop.permute.xlu0 %8924
        %8927 = vset.pattern.permute.xlu0 0
        %8928 = vperm.xlu0 %8927, %v8812
        %v8929 = vpop.permute.xlu0 %8928
        %8931 = vset.pattern.permute.xlu0 0
        %8932 = vperm.xlu0 %8931, %v8813
        %v8933 = vpop.permute.xlu0 %8932
        %v8934 = vrot.slane %v8817, 3
        %v8935 = vrot.slane %v8821, 3
        %v8936 = vsel %vm2683, %v8934, %v8935
        %v8937 = vrot.slane %v8825, 3
        %v8938 = vsel %vm2683, %v8935, %v8937
        %v8939 = vrot.slane %v8829, 3
        %v8940 = vsel %vm2683, %v8937, %v8939
        %v8941 = vrot.slane %v8833, 3
        %v8942 = vsel %vm2683, %v8939, %v8941
        %v8943 = vrot.slane %v8837, 3
        %v8944 = vsel %vm2683, %v8941, %v8943
        %v8945 = vrot.slane %v8841, 3
        %v8946 = vsel %vm2683, %v8943, %v8945
        %v8947 = vrot.slane %v8845, 3
        %v8948 = vsel %vm2683, %v8945, %v8947
        %v8949 = vrot.slane %v8849, 3
        %v8950 = vsel %vm2683, %v8947, %v8949
        %v8951 = vrot.slane %v8853, 3
        %v8952 = vsel %vm2683, %v8949, %v8951
        %v8953 = vrot.slane %v8857, 3
        %v8954 = vsel %vm2683, %v8951, %v8953
        %v8955 = vrot.slane %v8861, 3
        %v8956 = vsel %vm2683, %v8953, %v8955
        %v8957 = vrot.slane %v8865, 3
        %v8958 = vsel %vm2683, %v8955, %v8957
        %v8959 = vrot.slane %v8869, 3
        %v8960 = vsel %vm2683, %v8957, %v8959
        %v8961 = vrot.slane %v8873, 3
        %v8962 = vsel %vm2683, %v8959, %v8961
        %v8963 = vrot.slane %v8877, 3
        %v8964 = vsel %vm2683, %v8961, %v8963
        %v8965 = vrot.slane %v8881, 3
        %v8966 = vsel %vm2683, %v8963, %v8965
        %v8967 = vrot.slane %v8885, 3
        %v8968 = vsel %vm2683, %v8965, %v8967
        %v8969 = vrot.slane %v8889, 3
        %v8970 = vsel %vm2683, %v8967, %v8969
        %v8971 = vrot.slane %v8893, 3
        %v8972 = vsel %vm2683, %v8969, %v8971
        %v8973 = vrot.slane %v8897, 3
        %v8974 = vsel %vm2683, %v8971, %v8973
        %v8975 = vrot.slane %v8901, 3
        %v8976 = vsel %vm2683, %v8973, %v8975
        %v8977 = vrot.slane %v8905, 3
        %v8978 = vsel %vm2683, %v8975, %v8977
        %v8979 = vrot.slane %v8909, 3
        %v8980 = vsel %vm2683, %v8977, %v8979
        %v8981 = vrot.slane %v8913, 3
        %v8982 = vsel %vm2683, %v8979, %v8981
        %v8983 = vrot.slane %v8917, 3
        %v8984 = vsel %vm2683, %v8981, %v8983
        %v8985 = vrot.slane %v8921, 3
        %v8986 = vsel %vm2683, %v8983, %v8985
        %v8987 = vrot.slane %v8925, 3
        %v8988 = vsel %vm2683, %v8985, %v8987
        %v8989 = vrot.slane %v8929, 3
        %v8990 = vsel %vm2683, %v8987, %v8989
        %v8991 = vrot.slane %v8933, 3
        %v8992 = vsel %vm2683, %v8989, %v8991
        %v9024 = vmul.f32 %v1045, %v8934
        %v9025 = vmul.f32 %v1046, %v8936
        %v9026 = vmul.f32 %v1047, %v8938
        %v9027 = vmul.f32 %v1048, %v8940
        %v9028 = vmul.f32 %v1049, %v8942
        %v9029 = vmul.f32 %v1050, %v8944
        %v9030 = vmul.f32 %v1051, %v8946
        %v9031 = vmul.f32 %v1052, %v8948
        %v9032 = vmul.f32 %v1053, %v8950
        %v9033 = vmul.f32 %v1054, %v8952
        %v9034 = vmul.f32 %v1055, %v8954
        %v9035 = vmul.f32 %v1056, %v8956
        %v9036 = vmul.f32 %v1057, %v8958
        %v9037 = vmul.f32 %v1058, %v8960
        %v9038 = vmul.f32 %v1059, %v8962
        %v9039 = vmul.f32 %v1060, %v8964
        %v9040 = vmul.f32 %v1061, %v8966
        %v9041 = vmul.f32 %v1062, %v8968
        %v9042 = vmul.f32 %v1063, %v8970
        %v9043 = vmul.f32 %v1064, %v8972
        %v9044 = vmul.f32 %v1065, %v8974
        %v9045 = vmul.f32 %v1066, %v8976
        %v9046 = vmul.f32 %v1067, %v8978
        %v9047 = vmul.f32 %v1068, %v8980
        %v9048 = vmul.f32 %v1069, %v8982
        %v9049 = vmul.f32 %v1070, %v8984
        %v9050 = vmul.f32 %v1071, %v8986
        %v9051 = vmul.f32 %v8988, 0.0
        %v9052 = vmul.f32 %v8990, 0.0
        %v9053 = vmul.f32 %v8992, 0.0
        %v9054 = vmul.f32 %v8991, 0.0
        %s9055 = scalar_lea.vmem %s4, 768
        %v9056 = vld [vmem:[%s9055] sm:$0xff]
        %v9057 = vld [vmem:[%s9055 + $0x8] sm:$0xff]
        %v9058 = vld [vmem:[%s9055 + $0x10] sm:$0xff]
        %v9059 = vld [vmem:[%s9055 + $0x18] sm:$0xff]
        %v9060 = vld [vmem:[%s9055 + $0x20] sm:$0xff]
        %v9061 = vld [vmem:[%s9055 + $0x28] sm:$0xff]
        %v9062 = vld [vmem:[%s9055 + $0x30] sm:$0xff]
        %v9063 = vld [vmem:[%s9055 + $0x38] sm:$0xff]
        %v9095 = vrot.slane %v9024, 5
        %v9096 = vrot.slane %v9025, 5
        %v9097 = vsel %vm2521, %v9095, %v9096
        %v9098 = vrot.slane %v9026, 5
        %v9099 = vsel %vm2521, %v9096, %v9098
        %v9100 = vrot.slane %v9027, 5
        %v9101 = vsel %vm2521, %v9098, %v9100
        %v9102 = vrot.slane %v9028, 5
        %v9103 = vsel %vm2521, %v9100, %v9102
        %v9104 = vrot.slane %v9029, 5
        %v9105 = vsel %vm2521, %v9102, %v9104
        %v9106 = vrot.slane %v9030, 5
        %v9107 = vsel %vm2521, %v9104, %v9106
        %v9108 = vrot.slane %v9031, 5
        %v9109 = vsel %vm2521, %v9106, %v9108
        %v9110 = vrot.slane %v9032, 5
        %v9111 = vsel %vm2521, %v9108, %v9110
        %v9112 = vrot.slane %v9033, 5
        %v9113 = vsel %vm2521, %v9110, %v9112
        %v9114 = vrot.slane %v9034, 5
        %v9115 = vsel %vm2521, %v9112, %v9114
        %v9116 = vrot.slane %v9035, 5
        %v9117 = vsel %vm2521, %v9114, %v9116
        %v9118 = vrot.slane %v9036, 5
        %v9119 = vsel %vm2521, %v9116, %v9118
        %v9120 = vrot.slane %v9037, 5
        %v9121 = vsel %vm2521, %v9118, %v9120
        %v9122 = vrot.slane %v9038, 5
        %v9123 = vsel %vm2521, %v9120, %v9122
        %v9124 = vrot.slane %v9039, 5
        %v9125 = vsel %vm2521, %v9122, %v9124
        %v9126 = vrot.slane %v9040, 5
        %v9127 = vsel %vm2521, %v9124, %v9126
        %v9128 = vrot.slane %v9041, 5
        %v9129 = vsel %vm2521, %v9126, %v9128
        %v9130 = vrot.slane %v9042, 5
        %v9131 = vsel %vm2521, %v9128, %v9130
        %v9132 = vrot.slane %v9043, 5
        %v9133 = vsel %vm2521, %v9130, %v9132
        %v9134 = vrot.slane %v9044, 5
        %v9135 = vsel %vm2521, %v9132, %v9134
        %v9136 = vrot.slane %v9045, 5
        %v9137 = vsel %vm2521, %v9134, %v9136
        %v9138 = vrot.slane %v9046, 5
        %v9139 = vsel %vm2521, %v9136, %v9138
        %v9140 = vrot.slane %v9047, 5
        %v9141 = vsel %vm2521, %v9138, %v9140
        %v9142 = vrot.slane %v9048, 5
        %v9143 = vsel %vm2521, %v9140, %v9142
        %v9144 = vrot.slane %v9049, 5
        %v9145 = vsel %vm2521, %v9142, %v9144
        %v9146 = vrot.slane %v9050, 5
        %v9147 = vsel %vm2521, %v9144, %v9146
        %v9148 = vrot.slane %v9051, 5
        %v9149 = vsel %vm2521, %v9146, %v9148
        %v9150 = vrot.slane %v9052, 5
        %v9151 = vsel %vm2521, %v9148, %v9150
        %v9152 = vrot.slane %v9053, 5
        %v9153 = vsel %vm2521, %v9150, %v9152
        %v9154 = vrot.slane %v9054, 5
        %v9155 = vsel %vm2521, %v9152, %v9154
        %v9156 = vsel %vm1727, %v9097, 0
        %v9158 = vsel %vm1727, %v9099, 0
        %v9160 = vsel %vm1727, %v9101, 0
        %v9162 = vsel %vm1727, %v9103, 0
        %v9164 = vsel %vm1727, %v9105, 0
        %v9166 = vsel %vm1727, %v9107, 0
        %v9168 = vsel %vm1727, %v9109, 0
        %v9170 = vsel %vm1727, %v9111, 0
        %v9172 = vsel %vm1727, %v9113, 0
        %v9174 = vsel %vm1727, %v9115, 0
        %v9176 = vsel %vm1727, %v9117, 0
        %v9178 = vsel %vm1727, %v9119, 0
        %v9180 = vsel %vm1727, %v9121, 0
        %v9182 = vsel %vm1727, %v9123, 0
        %v9184 = vsel %vm1727, %v9125, 0
        %v9186 = vsel %vm1727, %v9127, 0
        %v9188 = vsel %vm1727, %v9129, 0
        %v9190 = vsel %vm1727, %v9131, 0
        %v9192 = vsel %vm1727, %v9133, 0
        %v9194 = vsel %vm1727, %v9135, 0
        %v9196 = vsel %vm1727, %v9137, 0
        %v9198 = vsel %vm1727, %v9139, 0
        %v9200 = vsel %vm1727, %v9141, 0
        %v9202 = vsel %vm1727, %v9143, 0
        %v9204 = vsel %vm1727, %v9145, 0
        %v9206 = vsel %vm1727, %v9147, 0
        %v9208 = vsel %vm1727, %v9149, 0
        %v9210 = vsel %vm1727, %v9151, 0
        %v9212 = vsel %vm1727, %v9153, 0
        %v9214 = vsel %vm1727, %v9155, 0
        %9216 = vmatprep.subr.mxu0 0.0
        %9217 = vmatpush1.msra.mxu0 0.0
        %9218 = vmatprep.subr.mxu0 0.0
        %9219 = vmatpush1.msra.mxu0 0.0
        %9220 = vmatprep.subr.mxu0 0.0
        %9221 = vmatpush1.msra.mxu0 0.0
        %9222 = vmatprep.subr.mxu0 0.0
        %9223 = vmatpush1.msra.mxu0 0.0
        %9224 = vmatprep.subr.mxu0 0.0
        %9225 = vmatpush1.msra.mxu0 0.0
        %9226 = vmatprep.subr.mxu0 0.0
        %9227 = vmatpush1.msra.mxu0 0.0
        %9228 = vmatprep.subr.mxu0 0.0
        %9229 = vmatpush1.msra.mxu0 0.0
        %9230 = vmatprep.subr.mxu0 0.0
        %9231 = vmatpush1.msra.mxu0 0.0
        %9232 = vmatprep.subr.mxu0 0.0
        %9233 = vmatpush1.msra.mxu0 %v9063
        %9234 = vmatprep.subr.mxu0 0.0
        %9235 = vmatpush1.msra.mxu0 %v9062
        %9236 = vmatprep.subr.mxu0 0.0
        %9237 = vmatpush1.msra.mxu0 %v9061
        %9238 = vmatprep.subr.mxu0 0.0
        %9239 = vmatpush1.msra.mxu0 %v9060
        %9240 = vmatprep.subr.mxu0 0.0
        %9241 = vmatpush1.msra.mxu0 %v9059
        %9242 = vmatprep.subr.mxu0 0.0
        %9243 = vmatpush1.msra.mxu0 %v9058
        %9244 = vmatprep.subr.mxu0 0.0
        %9245 = vmatpush1.msra.mxu0 %v9057
        %9246 = vmatprep.subr.mxu0 0.0
        %9247 = vmatpush1.msra.mxu0 %v9056
        %9248 = vmatprep.subr.mxu0 0.0
        %9249 = vmatpush2.msra.mxu0 0.0
        %9250 = vmatprep.subr.mxu0 0.0
        %9251 = vmatpush2.msra.mxu0 0.0
        %9252 = vmatprep.subr.mxu0 0.0
        %9253 = vmatpush2.msra.mxu0 0.0
        %9254 = vmatprep.subr.mxu0 0.0
        %9255 = vmatpush2.msra.mxu0 0.0
        %9256 = vmatprep.subr.mxu0 0.0
        %9257 = vmatpush2.msra.mxu0 0.0
        %9258 = vmatprep.subr.mxu0 0.0
        %9259 = vmatpush2.msra.mxu0 0.0
        %9260 = vmatprep.subr.mxu0 0.0
        %9261 = vmatpush2.msra.mxu0 0.0
        %9262 = vmatprep.subr.mxu0 0.0
        %9263 = vmatpush2.msra.mxu0 0.0
        %9264 = vmatprep.subr.mxu0 0.0
        %9265 = vmatpush2.msra.mxu0 0.0
        %9266 = vmatprep.subr.mxu0 0.0
        %9267 = vmatpush2.msra.mxu0 0.0
        %9268 = vmatprep.subr.mxu0 0.0
        %9269 = vmatpush2.msra.mxu0 0.0
        %9270 = vmatprep.subr.mxu0 0.0
        %9271 = vmatpush2.msra.mxu0 0.0
        %9272 = vmatprep.subr.mxu0 0.0
        %9273 = vmatpush2.msra.mxu0 0.0
        %9274 = vmatprep.subr.mxu0 0.0
        %9275 = vmatpush2.msra.mxu0 0.0
        %9276 = vmatprep.subr.mxu0 0.0
        %9277 = vmatpush2.msra.mxu0 0.0
        %9278 = vmatprep.subr.mxu0 0.0
        %9279 = vmatpush2.msra.mxu0 0.0
        %9280 = vmatprep.mubr.f32.mxu0 0.0
        %9281 = vmatmul.mubr.f32.gmra.mxu0 %v9156
        %v9282 = vpop.f32.mrf.mxu0
        %v9283 = vadd.f32 0.0, %v9282
        %v9284 = vpop.f32.mrf.mxu0
        %9285 = vmatprep.mubr.f32.mxu0 0.0
        %9286 = vmatmul.mubr.f32.gmra.mxu0 %v9158
        %v9287 = vpop.f32.mrf.mxu0
        %v9288 = vadd.f32 0.0, %v9287
        %v9289 = vpop.f32.mrf.mxu0
        %9290 = vmatprep.mubr.f32.mxu0 0.0
        %9291 = vmatmul.mubr.f32.gmra.mxu0 %v9160
        %v9292 = vpop.f32.mrf.mxu0
        %v9293 = vadd.f32 0.0, %v9292
        %v9294 = vpop.f32.mrf.mxu0
        %9295 = vmatprep.mubr.f32.mxu0 0.0
        %9296 = vmatmul.mubr.f32.gmra.mxu0 %v9162
        %v9297 = vpop.f32.mrf.mxu0
        %v9298 = vadd.f32 0.0, %v9297
        %v9299 = vpop.f32.mrf.mxu0
        %9300 = vmatprep.mubr.f32.mxu0 0.0
        %9301 = vmatmul.mubr.f32.gmra.mxu0 %v9164
        %v9302 = vpop.f32.mrf.mxu0
        %v9303 = vadd.f32 0.0, %v9302
        %v9304 = vpop.f32.mrf.mxu0
        %9305 = vmatprep.mubr.f32.mxu0 0.0
        %9306 = vmatmul.mubr.f32.gmra.mxu0 %v9166
        %v9307 = vpop.f32.mrf.mxu0
        %v9308 = vadd.f32 0.0, %v9307
        %v9309 = vpop.f32.mrf.mxu0
        %9310 = vmatprep.mubr.f32.mxu0 0.0
        %9311 = vmatmul.mubr.f32.gmra.mxu0 %v9168
        %v9312 = vpop.f32.mrf.mxu0
        %v9313 = vadd.f32 0.0, %v9312
        %v9314 = vpop.f32.mrf.mxu0
        %9315 = vmatprep.mubr.f32.mxu0 0.0
        %9316 = vmatmul.mubr.f32.gmra.mxu0 %v9170
        %v9317 = vpop.f32.mrf.mxu0
        %v9318 = vadd.f32 0.0, %v9317
        %v9319 = vpop.f32.mrf.mxu0
        %9320 = vmatprep.mubr.f32.mxu0 0.0
        %9321 = vmatmul.mubr.f32.gmra.mxu0 %v9172
        %v9322 = vpop.f32.mrf.mxu0
        %v9323 = vadd.f32 0.0, %v9322
        %v9324 = vpop.f32.mrf.mxu0
        %9325 = vmatprep.mubr.f32.mxu0 0.0
        %9326 = vmatmul.mubr.f32.gmra.mxu0 %v9174
        %v9327 = vpop.f32.mrf.mxu0
        %v9328 = vadd.f32 0.0, %v9327
        %v9329 = vpop.f32.mrf.mxu0
        %9330 = vmatprep.mubr.f32.mxu0 0.0
        %9331 = vmatmul.mubr.f32.gmra.mxu0 %v9176
        %v9332 = vpop.f32.mrf.mxu0
        %v9333 = vadd.f32 0.0, %v9332
        %v9334 = vpop.f32.mrf.mxu0
        %9335 = vmatprep.mubr.f32.mxu0 0.0
        %9336 = vmatmul.mubr.f32.gmra.mxu0 %v9178
        %v9337 = vpop.f32.mrf.mxu0
        %v9338 = vadd.f32 0.0, %v9337
        %v9339 = vpop.f32.mrf.mxu0
        %9340 = vmatprep.mubr.f32.mxu0 0.0
        %9341 = vmatmul.mubr.f32.gmra.mxu0 %v9180
        %v9342 = vpop.f32.mrf.mxu0
        %v9343 = vadd.f32 0.0, %v9342
        %v9344 = vpop.f32.mrf.mxu0
        %9345 = vmatprep.mubr.f32.mxu0 0.0
        %9346 = vmatmul.mubr.f32.gmra.mxu0 %v9182
        %v9347 = vpop.f32.mrf.mxu0
        %v9348 = vadd.f32 0.0, %v9347
        %v9349 = vpop.f32.mrf.mxu0
        %9350 = vmatprep.mubr.f32.mxu0 0.0
        %9351 = vmatmul.mubr.f32.gmra.mxu0 %v9184
        %v9352 = vpop.f32.mrf.mxu0
        %v9353 = vadd.f32 0.0, %v9352
        %v9354 = vpop.f32.mrf.mxu0
        %9355 = vmatprep.mubr.f32.mxu0 0.0
        %9356 = vmatmul.mubr.f32.gmra.mxu0 %v9186
        %v9357 = vpop.f32.mrf.mxu0
        %v9358 = vadd.f32 0.0, %v9357
        %v9359 = vpop.f32.mrf.mxu0
        %9360 = vmatprep.mubr.f32.mxu0 0.0
        %9361 = vmatmul.mubr.f32.gmra.mxu0 %v9188
        %v9362 = vpop.f32.mrf.mxu0
        %v9363 = vadd.f32 0.0, %v9362
        %v9364 = vpop.f32.mrf.mxu0
        %9365 = vmatprep.mubr.f32.mxu0 0.0
        %9366 = vmatmul.mubr.f32.gmra.mxu0 %v9190
        %v9367 = vpop.f32.mrf.mxu0
        %v9368 = vadd.f32 0.0, %v9367
        %v9369 = vpop.f32.mrf.mxu0
        %9370 = vmatprep.mubr.f32.mxu0 0.0
        %9371 = vmatmul.mubr.f32.gmra.mxu0 %v9192
        %v9372 = vpop.f32.mrf.mxu0
        %v9373 = vadd.f32 0.0, %v9372
        %v9374 = vpop.f32.mrf.mxu0
        %9375 = vmatprep.mubr.f32.mxu0 0.0
        %9376 = vmatmul.mubr.f32.gmra.mxu0 %v9194
        %v9377 = vpop.f32.mrf.mxu0
        %v9378 = vadd.f32 0.0, %v9377
        %v9379 = vpop.f32.mrf.mxu0
        %9380 = vmatprep.mubr.f32.mxu0 0.0
        %9381 = vmatmul.mubr.f32.gmra.mxu0 %v9196
        %v9382 = vpop.f32.mrf.mxu0
        %v9383 = vadd.f32 0.0, %v9382
        %v9384 = vpop.f32.mrf.mxu0
        %9385 = vmatprep.mubr.f32.mxu0 0.0
        %9386 = vmatmul.mubr.f32.gmra.mxu0 %v9198
        %v9387 = vpop.f32.mrf.mxu0
        %v9388 = vadd.f32 0.0, %v9387
        %v9389 = vpop.f32.mrf.mxu0
        %9390 = vmatprep.mubr.f32.mxu0 0.0
        %9391 = vmatmul.mubr.f32.gmra.mxu0 %v9200
        %v9392 = vpop.f32.mrf.mxu0
        %v9393 = vadd.f32 0.0, %v9392
        %v9394 = vpop.f32.mrf.mxu0
        %9395 = vmatprep.mubr.f32.mxu0 0.0
        %9396 = vmatmul.mubr.f32.gmra.mxu0 %v9202
        %v9397 = vpop.f32.mrf.mxu0
        %v9398 = vadd.f32 0.0, %v9397
        %v9399 = vpop.f32.mrf.mxu0
        %9400 = vmatprep.mubr.f32.mxu0 0.0
        %9401 = vmatmul.mubr.f32.gmra.mxu0 %v9204
        %v9402 = vpop.f32.mrf.mxu0
        %v9403 = vadd.f32 0.0, %v9402
        %v9404 = vpop.f32.mrf.mxu0
        %9405 = vmatprep.mubr.f32.mxu0 0.0
        %9406 = vmatmul.mubr.f32.gmra.mxu0 %v9206
        %v9407 = vpop.f32.mrf.mxu0
        %v9408 = vadd.f32 0.0, %v9407
        %v9409 = vpop.f32.mrf.mxu0
        %9410 = vmatprep.mubr.f32.mxu0 0.0
        %9411 = vmatmul.mubr.f32.gmra.mxu0 %v9208
        %v9412 = vpop.f32.mrf.mxu0
        %v9413 = vadd.f32 0.0, %v9412
        %v9414 = vpop.f32.mrf.mxu0
        %9415 = vmatprep.mubr.f32.mxu0 0.0
        %9416 = vmatmul.mubr.f32.gmra.mxu0 %v9210
        %v9417 = vpop.f32.mrf.mxu0
        %v9418 = vadd.f32 0.0, %v9417
        %v9419 = vpop.f32.mrf.mxu0
        %9420 = vmatprep.mubr.f32.mxu0 0.0
        %9421 = vmatmul.mubr.f32.gmra.mxu0 %v9212
        %v9422 = vpop.f32.mrf.mxu0
        %v9423 = vadd.f32 0.0, %v9422
        %v9424 = vpop.f32.mrf.mxu0
        %9425 = vmatprep.mubr.f32.mxu0 0.0
        %9426 = vmatmul.mubr.f32.gmra.mxu0 %v9214
        %v9427 = vpop.f32.mrf.mxu0
        %v9428 = vadd.f32 0.0, %v9427
        %v9429 = vpop.f32.mrf.mxu0
        %9430 = vdwg.mxu0
        %v9431 = vadd.f32 %v8753, %v9283
        %v9432 = vadd.f32 %v8754, %v9288
        %v9433 = vadd.f32 %v8755, %v9293
        %v9434 = vadd.f32 %v8756, %v9298
        %v9435 = vadd.f32 %v8757, %v9303
        %v9436 = vadd.f32 %v8758, %v9308
        %v9437 = vadd.f32 %v8759, %v9313
        %v9438 = vadd.f32 %v8760, %v9318
        %v9439 = vadd.f32 %v8761, %v9323
        %v9440 = vadd.f32 %v8762, %v9328
        %v9441 = vadd.f32 %v8763, %v9333
        %v9442 = vadd.f32 %v8764, %v9338
        %v9443 = vadd.f32 %v8765, %v9343
        %v9444 = vadd.f32 %v8766, %v9348
        %v9445 = vadd.f32 %v8767, %v9353
        %v9446 = vadd.f32 %v8768, %v9358
        %v9447 = vadd.f32 %v8769, %v9363
        %v9448 = vadd.f32 %v8770, %v9368
        %v9449 = vadd.f32 %v8771, %v9373
        %v9450 = vadd.f32 %v8772, %v9378
        %v9451 = vadd.f32 %v8773, %v9383
        %v9452 = vadd.f32 %v8774, %v9388
        %v9453 = vadd.f32 %v8775, %v9393
        %v9454 = vadd.f32 %v8776, %v9398
        %v9455 = vadd.f32 %v8777, %v9403
        %v9456 = vadd.f32 %v8778, %v9408
        %v9457 = vadd.f32 %v8779, %v9413
        %v9458 = vadd.f32 %v8780, %v9418
        %v9459 = vadd.f32 %v8781, %v9423
        %v9460 = vadd.f32 %v8782, %v9428
        %s9461 = scalar_lea.vmem %s1, 3120
        %v9462 = vld [vmem:[%s9461] sm:$0xff]
        %v9463 = vld [vmem:[%s9461 + $0x8] sm:$0xff]
        %v9464 = vld [vmem:[%s9461 + $0x10] sm:$0xff]
        %v9465 = vld [vmem:[%s9461 + $0x18] sm:$0xff]
        %v9466 = vld [vmem:[%s9461 + $0x20] sm:$0xff]
        %v9467 = vld [vmem:[%s9461 + $0x28] sm:$0xff]
        %v9468 = vld [vmem:[%s9461 + $0x30] sm:$0xff]
        %v9469 = vld [vmem:[%s9461 + $0x38] sm:$0xff]
        %v9470 = vld [vmem:[%s9461 + $0x40] sm:$0xff]
        %v9471 = vld [vmem:[%s9461 + $0x48] sm:$0xff]
        %v9472 = vld [vmem:[%s9461 + $0x50] sm:$0xff]
        %v9473 = vld [vmem:[%s9461 + $0x58] sm:$0xff]
        %v9474 = vld [vmem:[%s9461 + $0x60] sm:$0xff]
        %v9475 = vld [vmem:[%s9461 + $0x68] sm:$0xff]
        %v9476 = vld [vmem:[%s9461 + $0x70] sm:$0xff]
        %v9477 = vld [vmem:[%s9461 + $0x78] sm:$0xff]
        %v9478 = vld [vmem:[%s9461 + $0x80] sm:$0xff]
        %v9479 = vld [vmem:[%s9461 + $0x88] sm:$0xff]
        %v9480 = vld [vmem:[%s9461 + $0x90] sm:$0xff]
        %v9481 = vld [vmem:[%s9461 + $0x98] sm:$0xff]
        %v9482 = vld [vmem:[%s9461 + $0xa0] sm:$0xff]
        %v9483 = vld [vmem:[%s9461 + $0xa8] sm:$0xff]
        %v9484 = vld [vmem:[%s9461 + $0xb0] sm:$0xff]
        %v9485 = vld [vmem:[%s9461 + $0xb8] sm:$0xff]
        %v9486 = vld [vmem:[%s9461 + $0xc0] sm:$0xff]
        %v9487 = vld [vmem:[%s9461 + $0xc8] sm:$0xff]
        %v9488 = vld [vmem:[%s9461 + $0xd0] sm:$0xff]
        %v9489 = vld [vmem:[%s9461 + $0xd8] sm:$0xff]
        %v9490 = vld [vmem:[%s9461 + $0xe0] sm:$0xff]
        %v9491 = vld [vmem:[%s9461 + $0xe8] sm:$0xff]
        %9493 = vset.pattern.permute.xlu0 0
        %9494 = vperm.xlu0 %9493, %v9462
        %v9495 = vpop.permute.xlu0 %9494
        %9497 = vset.pattern.permute.xlu0 0
        %9498 = vperm.xlu0 %9497, %v9463
        %v9499 = vpop.permute.xlu0 %9498
        %9501 = vset.pattern.permute.xlu0 0
        %9502 = vperm.xlu0 %9501, %v9464
        %v9503 = vpop.permute.xlu0 %9502
        %9505 = vset.pattern.permute.xlu0 0
        %9506 = vperm.xlu0 %9505, %v9465
        %v9507 = vpop.permute.xlu0 %9506
        %9509 = vset.pattern.permute.xlu0 0
        %9510 = vperm.xlu0 %9509, %v9466
        %v9511 = vpop.permute.xlu0 %9510
        %9513 = vset.pattern.permute.xlu0 0
        %9514 = vperm.xlu0 %9513, %v9467
        %v9515 = vpop.permute.xlu0 %9514
        %9517 = vset.pattern.permute.xlu0 0
        %9518 = vperm.xlu0 %9517, %v9468
        %v9519 = vpop.permute.xlu0 %9518
        %9521 = vset.pattern.permute.xlu0 0
        %9522 = vperm.xlu0 %9521, %v9469
        %v9523 = vpop.permute.xlu0 %9522
        %9525 = vset.pattern.permute.xlu0 0
        %9526 = vperm.xlu0 %9525, %v9470
        %v9527 = vpop.permute.xlu0 %9526
        %9529 = vset.pattern.permute.xlu0 0
        %9530 = vperm.xlu0 %9529, %v9471
        %v9531 = vpop.permute.xlu0 %9530
        %9533 = vset.pattern.permute.xlu0 0
        %9534 = vperm.xlu0 %9533, %v9472
        %v9535 = vpop.permute.xlu0 %9534
        %9537 = vset.pattern.permute.xlu0 0
        %9538 = vperm.xlu0 %9537, %v9473
        %v9539 = vpop.permute.xlu0 %9538
        %9541 = vset.pattern.permute.xlu0 0
        %9542 = vperm.xlu0 %9541, %v9474
        %v9543 = vpop.permute.xlu0 %9542
        %9545 = vset.pattern.permute.xlu0 0
        %9546 = vperm.xlu0 %9545, %v9475
        %v9547 = vpop.permute.xlu0 %9546
        %9549 = vset.pattern.permute.xlu0 0
        %9550 = vperm.xlu0 %9549, %v9476
        %v9551 = vpop.permute.xlu0 %9550
        %9553 = vset.pattern.permute.xlu0 0
        %9554 = vperm.xlu0 %9553, %v9477
        %v9555 = vpop.permute.xlu0 %9554
        %9557 = vset.pattern.permute.xlu0 0
        %9558 = vperm.xlu0 %9557, %v9478
        %v9559 = vpop.permute.xlu0 %9558
        %9561 = vset.pattern.permute.xlu0 0
        %9562 = vperm.xlu0 %9561, %v9479
        %v9563 = vpop.permute.xlu0 %9562
        %9565 = vset.pattern.permute.xlu0 0
        %9566 = vperm.xlu0 %9565, %v9480
        %v9567 = vpop.permute.xlu0 %9566
        %9569 = vset.pattern.permute.xlu0 0
        %9570 = vperm.xlu0 %9569, %v9481
        %v9571 = vpop.permute.xlu0 %9570
        %9573 = vset.pattern.permute.xlu0 0
        %9574 = vperm.xlu0 %9573, %v9482
        %v9575 = vpop.permute.xlu0 %9574
        %9577 = vset.pattern.permute.xlu0 0
        %9578 = vperm.xlu0 %9577, %v9483
        %v9579 = vpop.permute.xlu0 %9578
        %9581 = vset.pattern.permute.xlu0 0
        %9582 = vperm.xlu0 %9581, %v9484
        %v9583 = vpop.permute.xlu0 %9582
        %9585 = vset.pattern.permute.xlu0 0
        %9586 = vperm.xlu0 %9585, %v9485
        %v9587 = vpop.permute.xlu0 %9586
        %9589 = vset.pattern.permute.xlu0 0
        %9590 = vperm.xlu0 %9589, %v9486
        %v9591 = vpop.permute.xlu0 %9590
        %9593 = vset.pattern.permute.xlu0 0
        %9594 = vperm.xlu0 %9593, %v9487
        %v9595 = vpop.permute.xlu0 %9594
        %9597 = vset.pattern.permute.xlu0 0
        %9598 = vperm.xlu0 %9597, %v9488
        %v9599 = vpop.permute.xlu0 %9598
        %9601 = vset.pattern.permute.xlu0 0
        %9602 = vperm.xlu0 %9601, %v9489
        %v9603 = vpop.permute.xlu0 %9602
        %9605 = vset.pattern.permute.xlu0 0
        %9606 = vperm.xlu0 %9605, %v9490
        %v9607 = vpop.permute.xlu0 %9606
        %9609 = vset.pattern.permute.xlu0 0
        %9610 = vperm.xlu0 %9609, %v9491
        %v9611 = vpop.permute.xlu0 %9610
        %v9612 = vrot.slane %v9495, 2
        %v9613 = vrot.slane %v9499, 2
        %v9614 = vsel %vm1665, %v9612, %v9613
        %v9615 = vrot.slane %v9503, 2
        %v9616 = vsel %vm1665, %v9613, %v9615
        %v9617 = vrot.slane %v9507, 2
        %v9618 = vsel %vm1665, %v9615, %v9617
        %v9619 = vrot.slane %v9511, 2
        %v9620 = vsel %vm1665, %v9617, %v9619
        %v9621 = vrot.slane %v9515, 2
        %v9622 = vsel %vm1665, %v9619, %v9621
        %v9623 = vrot.slane %v9519, 2
        %v9624 = vsel %vm1665, %v9621, %v9623
        %v9625 = vrot.slane %v9523, 2
        %v9626 = vsel %vm1665, %v9623, %v9625
        %v9627 = vrot.slane %v9527, 2
        %v9628 = vsel %vm1665, %v9625, %v9627
        %v9629 = vrot.slane %v9531, 2
        %v9630 = vsel %vm1665, %v9627, %v9629
        %v9631 = vrot.slane %v9535, 2
        %v9632 = vsel %vm1665, %v9629, %v9631
        %v9633 = vrot.slane %v9539, 2
        %v9634 = vsel %vm1665, %v9631, %v9633
        %v9635 = vrot.slane %v9543, 2
        %v9636 = vsel %vm1665, %v9633, %v9635
        %v9637 = vrot.slane %v9547, 2
        %v9638 = vsel %vm1665, %v9635, %v9637
        %v9639 = vrot.slane %v9551, 2
        %v9640 = vsel %vm1665, %v9637, %v9639
        %v9641 = vrot.slane %v9555, 2
        %v9642 = vsel %vm1665, %v9639, %v9641
        %v9643 = vrot.slane %v9559, 2
        %v9644 = vsel %vm1665, %v9641, %v9643
        %v9645 = vrot.slane %v9563, 2
        %v9646 = vsel %vm1665, %v9643, %v9645
        %v9647 = vrot.slane %v9567, 2
        %v9648 = vsel %vm1665, %v9645, %v9647
        %v9649 = vrot.slane %v9571, 2
        %v9650 = vsel %vm1665, %v9647, %v9649
        %v9651 = vrot.slane %v9575, 2
        %v9652 = vsel %vm1665, %v9649, %v9651
        %v9653 = vrot.slane %v9579, 2
        %v9654 = vsel %vm1665, %v9651, %v9653
        %v9655 = vrot.slane %v9583, 2
        %v9656 = vsel %vm1665, %v9653, %v9655
        %v9657 = vrot.slane %v9587, 2
        %v9658 = vsel %vm1665, %v9655, %v9657
        %v9659 = vrot.slane %v9591, 2
        %v9660 = vsel %vm1665, %v9657, %v9659
        %v9661 = vrot.slane %v9595, 2
        %v9662 = vsel %vm1665, %v9659, %v9661
        %v9663 = vrot.slane %v9599, 2
        %v9664 = vsel %vm1665, %v9661, %v9663
        %v9665 = vrot.slane %v9603, 2
        %v9666 = vsel %vm1665, %v9663, %v9665
        %v9667 = vrot.slane %v9607, 2
        %v9668 = vsel %vm1665, %v9665, %v9667
        %v9669 = vrot.slane %v9611, 2
        %v9670 = vsel %vm1665, %v9667, %v9669
        %v9702 = vmul.f32 %v1045, %v9612
        %v9703 = vmul.f32 %v1046, %v9614
        %v9704 = vmul.f32 %v1047, %v9616
        %v9705 = vmul.f32 %v1048, %v9618
        %v9706 = vmul.f32 %v1049, %v9620
        %v9707 = vmul.f32 %v1050, %v9622
        %v9708 = vmul.f32 %v1051, %v9624
        %v9709 = vmul.f32 %v1052, %v9626
        %v9710 = vmul.f32 %v1053, %v9628
        %v9711 = vmul.f32 %v1054, %v9630
        %v9712 = vmul.f32 %v1055, %v9632
        %v9713 = vmul.f32 %v1056, %v9634
        %v9714 = vmul.f32 %v1057, %v9636
        %v9715 = vmul.f32 %v1058, %v9638
        %v9716 = vmul.f32 %v1059, %v9640
        %v9717 = vmul.f32 %v1060, %v9642
        %v9718 = vmul.f32 %v1061, %v9644
        %v9719 = vmul.f32 %v1062, %v9646
        %v9720 = vmul.f32 %v1063, %v9648
        %v9721 = vmul.f32 %v1064, %v9650
        %v9722 = vmul.f32 %v1065, %v9652
        %v9723 = vmul.f32 %v1066, %v9654
        %v9724 = vmul.f32 %v1067, %v9656
        %v9725 = vmul.f32 %v1068, %v9658
        %v9726 = vmul.f32 %v1069, %v9660
        %v9727 = vmul.f32 %v1070, %v9662
        %v9728 = vmul.f32 %v1071, %v9664
        %v9729 = vmul.f32 %v9666, 0.0
        %v9730 = vmul.f32 %v9668, 0.0
        %v9731 = vmul.f32 %v9670, 0.0
        %v9732 = vmul.f32 %v9669, 0.0
        %s9733 = scalar_lea.vmem %s4, 832
        %v9734 = vld [vmem:[%s9733] sm:$0xff]
        %v9735 = vld [vmem:[%s9733 + $0x8] sm:$0xff]
        %v9736 = vld [vmem:[%s9733 + $0x10] sm:$0xff]
        %v9737 = vld [vmem:[%s9733 + $0x18] sm:$0xff]
        %v9738 = vld [vmem:[%s9733 + $0x20] sm:$0xff]
        %v9739 = vld [vmem:[%s9733 + $0x28] sm:$0xff]
        %v9740 = vld [vmem:[%s9733 + $0x30] sm:$0xff]
        %v9741 = vld [vmem:[%s9733 + $0x38] sm:$0xff]
        %v9773 = vrot.slane %v9702, 6
        %v9774 = vrot.slane %v9703, 6
        %v9775 = vsel %vm1503, %v9773, %v9774
        %v9776 = vrot.slane %v9704, 6
        %v9777 = vsel %vm1503, %v9774, %v9776
        %v9778 = vrot.slane %v9705, 6
        %v9779 = vsel %vm1503, %v9776, %v9778
        %v9780 = vrot.slane %v9706, 6
        %v9781 = vsel %vm1503, %v9778, %v9780
        %v9782 = vrot.slane %v9707, 6
        %v9783 = vsel %vm1503, %v9780, %v9782
        %v9784 = vrot.slane %v9708, 6
        %v9785 = vsel %vm1503, %v9782, %v9784
        %v9786 = vrot.slane %v9709, 6
        %v9787 = vsel %vm1503, %v9784, %v9786
        %v9788 = vrot.slane %v9710, 6
        %v9789 = vsel %vm1503, %v9786, %v9788
        %v9790 = vrot.slane %v9711, 6
        %v9791 = vsel %vm1503, %v9788, %v9790
        %v9792 = vrot.slane %v9712, 6
        %v9793 = vsel %vm1503, %v9790, %v9792
        %v9794 = vrot.slane %v9713, 6
        %v9795 = vsel %vm1503, %v9792, %v9794
        %v9796 = vrot.slane %v9714, 6
        %v9797 = vsel %vm1503, %v9794, %v9796
        %v9798 = vrot.slane %v9715, 6
        %v9799 = vsel %vm1503, %v9796, %v9798
        %v9800 = vrot.slane %v9716, 6
        %v9801 = vsel %vm1503, %v9798, %v9800
        %v9802 = vrot.slane %v9717, 6
        %v9803 = vsel %vm1503, %v9800, %v9802
        %v9804 = vrot.slane %v9718, 6
        %v9805 = vsel %vm1503, %v9802, %v9804
        %v9806 = vrot.slane %v9719, 6
        %v9807 = vsel %vm1503, %v9804, %v9806
        %v9808 = vrot.slane %v9720, 6
        %v9809 = vsel %vm1503, %v9806, %v9808
        %v9810 = vrot.slane %v9721, 6
        %v9811 = vsel %vm1503, %v9808, %v9810
        %v9812 = vrot.slane %v9722, 6
        %v9813 = vsel %vm1503, %v9810, %v9812
        %v9814 = vrot.slane %v9723, 6
        %v9815 = vsel %vm1503, %v9812, %v9814
        %v9816 = vrot.slane %v9724, 6
        %v9817 = vsel %vm1503, %v9814, %v9816
        %v9818 = vrot.slane %v9725, 6
        %v9819 = vsel %vm1503, %v9816, %v9818
        %v9820 = vrot.slane %v9726, 6
        %v9821 = vsel %vm1503, %v9818, %v9820
        %v9822 = vrot.slane %v9727, 6
        %v9823 = vsel %vm1503, %v9820, %v9822
        %v9824 = vrot.slane %v9728, 6
        %v9825 = vsel %vm1503, %v9822, %v9824
        %v9826 = vrot.slane %v9729, 6
        %v9827 = vsel %vm1503, %v9824, %v9826
        %v9828 = vrot.slane %v9730, 6
        %v9829 = vsel %vm1503, %v9826, %v9828
        %v9830 = vrot.slane %v9731, 6
        %v9831 = vsel %vm1503, %v9828, %v9830
        %v9832 = vrot.slane %v9732, 6
        %v9833 = vsel %vm1503, %v9830, %v9832
        %v9834 = vsel %vm1727, %v9775, 0
        %v9836 = vsel %vm1727, %v9777, 0
        %v9838 = vsel %vm1727, %v9779, 0
        %v9840 = vsel %vm1727, %v9781, 0
        %v9842 = vsel %vm1727, %v9783, 0
        %v9844 = vsel %vm1727, %v9785, 0
        %v9846 = vsel %vm1727, %v9787, 0
        %v9848 = vsel %vm1727, %v9789, 0
        %v9850 = vsel %vm1727, %v9791, 0
        %v9852 = vsel %vm1727, %v9793, 0
        %v9854 = vsel %vm1727, %v9795, 0
        %v9856 = vsel %vm1727, %v9797, 0
        %v9858 = vsel %vm1727, %v9799, 0
        %v9860 = vsel %vm1727, %v9801, 0
        %v9862 = vsel %vm1727, %v9803, 0
        %v9864 = vsel %vm1727, %v9805, 0
        %v9866 = vsel %vm1727, %v9807, 0
        %v9868 = vsel %vm1727, %v9809, 0
        %v9870 = vsel %vm1727, %v9811, 0
        %v9872 = vsel %vm1727, %v9813, 0
        %v9874 = vsel %vm1727, %v9815, 0
        %v9876 = vsel %vm1727, %v9817, 0
        %v9878 = vsel %vm1727, %v9819, 0
        %v9880 = vsel %vm1727, %v9821, 0
        %v9882 = vsel %vm1727, %v9823, 0
        %v9884 = vsel %vm1727, %v9825, 0
        %v9886 = vsel %vm1727, %v9827, 0
        %v9888 = vsel %vm1727, %v9829, 0
        %v9890 = vsel %vm1727, %v9831, 0
        %v9892 = vsel %vm1727, %v9833, 0
        %9894 = vmatprep.subr.mxu0 0.0
        %9895 = vmatpush1.msra.mxu0 0.0
        %9896 = vmatprep.subr.mxu0 0.0
        %9897 = vmatpush1.msra.mxu0 0.0
        %9898 = vmatprep.subr.mxu0 0.0
        %9899 = vmatpush1.msra.mxu0 0.0
        %9900 = vmatprep.subr.mxu0 0.0
        %9901 = vmatpush1.msra.mxu0 0.0
        %9902 = vmatprep.subr.mxu0 0.0
        %9903 = vmatpush1.msra.mxu0 0.0
        %9904 = vmatprep.subr.mxu0 0.0
        %9905 = vmatpush1.msra.mxu0 0.0
        %9906 = vmatprep.subr.mxu0 0.0
        %9907 = vmatpush1.msra.mxu0 0.0
        %9908 = vmatprep.subr.mxu0 0.0
        %9909 = vmatpush1.msra.mxu0 0.0
        %9910 = vmatprep.subr.mxu0 0.0
        %9911 = vmatpush1.msra.mxu0 %v9741
        %9912 = vmatprep.subr.mxu0 0.0
        %9913 = vmatpush1.msra.mxu0 %v9740
        %9914 = vmatprep.subr.mxu0 0.0
        %9915 = vmatpush1.msra.mxu0 %v9739
        %9916 = vmatprep.subr.mxu0 0.0
        %9917 = vmatpush1.msra.mxu0 %v9738
        %9918 = vmatprep.subr.mxu0 0.0
        %9919 = vmatpush1.msra.mxu0 %v9737
        %9920 = vmatprep.subr.mxu0 0.0
        %9921 = vmatpush1.msra.mxu0 %v9736
        %9922 = vmatprep.subr.mxu0 0.0
        %9923 = vmatpush1.msra.mxu0 %v9735
        %9924 = vmatprep.subr.mxu0 0.0
        %9925 = vmatpush1.msra.mxu0 %v9734
        %9926 = vmatprep.subr.mxu0 0.0
        %9927 = vmatpush2.msra.mxu0 0.0
        %9928 = vmatprep.subr.mxu0 0.0
        %9929 = vmatpush2.msra.mxu0 0.0
        %9930 = vmatprep.subr.mxu0 0.0
        %9931 = vmatpush2.msra.mxu0 0.0
        %9932 = vmatprep.subr.mxu0 0.0
        %9933 = vmatpush2.msra.mxu0 0.0
        %9934 = vmatprep.subr.mxu0 0.0
        %9935 = vmatpush2.msra.mxu0 0.0
        %9936 = vmatprep.subr.mxu0 0.0
        %9937 = vmatpush2.msra.mxu0 0.0
        %9938 = vmatprep.subr.mxu0 0.0
        %9939 = vmatpush2.msra.mxu0 0.0
        %9940 = vmatprep.subr.mxu0 0.0
        %9941 = vmatpush2.msra.mxu0 0.0
        %9942 = vmatprep.subr.mxu0 0.0
        %9943 = vmatpush2.msra.mxu0 0.0
        %9944 = vmatprep.subr.mxu0 0.0
        %9945 = vmatpush2.msra.mxu0 0.0
        %9946 = vmatprep.subr.mxu0 0.0
        %9947 = vmatpush2.msra.mxu0 0.0
        %9948 = vmatprep.subr.mxu0 0.0
        %9949 = vmatpush2.msra.mxu0 0.0
        %9950 = vmatprep.subr.mxu0 0.0
        %9951 = vmatpush2.msra.mxu0 0.0
        %9952 = vmatprep.subr.mxu0 0.0
        %9953 = vmatpush2.msra.mxu0 0.0
        %9954 = vmatprep.subr.mxu0 0.0
        %9955 = vmatpush2.msra.mxu0 0.0
        %9956 = vmatprep.subr.mxu0 0.0
        %9957 = vmatpush2.msra.mxu0 0.0
        %9958 = vmatprep.mubr.f32.mxu0 0.0
        %9959 = vmatmul.mubr.f32.gmra.mxu0 %v9834
        %v9960 = vpop.f32.mrf.mxu0
        %v9961 = vadd.f32 0.0, %v9960
        %v9962 = vpop.f32.mrf.mxu0
        %9963 = vmatprep.mubr.f32.mxu0 0.0
        %9964 = vmatmul.mubr.f32.gmra.mxu0 %v9836
        %v9965 = vpop.f32.mrf.mxu0
        %v9966 = vadd.f32 0.0, %v9965
        %v9967 = vpop.f32.mrf.mxu0
        %9968 = vmatprep.mubr.f32.mxu0 0.0
        %9969 = vmatmul.mubr.f32.gmra.mxu0 %v9838
        %v9970 = vpop.f32.mrf.mxu0
        %v9971 = vadd.f32 0.0, %v9970
        %v9972 = vpop.f32.mrf.mxu0
        %9973 = vmatprep.mubr.f32.mxu0 0.0
        %9974 = vmatmul.mubr.f32.gmra.mxu0 %v9840
        %v9975 = vpop.f32.mrf.mxu0
        %v9976 = vadd.f32 0.0, %v9975
        %v9977 = vpop.f32.mrf.mxu0
        %9978 = vmatprep.mubr.f32.mxu0 0.0
        %9979 = vmatmul.mubr.f32.gmra.mxu0 %v9842
        %v9980 = vpop.f32.mrf.mxu0
        %v9981 = vadd.f32 0.0, %v9980
        %v9982 = vpop.f32.mrf.mxu0
        %9983 = vmatprep.mubr.f32.mxu0 0.0
        %9984 = vmatmul.mubr.f32.gmra.mxu0 %v9844
        %v9985 = vpop.f32.mrf.mxu0
        %v9986 = vadd.f32 0.0, %v9985
        %v9987 = vpop.f32.mrf.mxu0
        %9988 = vmatprep.mubr.f32.mxu0 0.0
        %9989 = vmatmul.mubr.f32.gmra.mxu0 %v9846
        %v9990 = vpop.f32.mrf.mxu0
        %v9991 = vadd.f32 0.0, %v9990
        %v9992 = vpop.f32.mrf.mxu0
        %9993 = vmatprep.mubr.f32.mxu0 0.0
        %9994 = vmatmul.mubr.f32.gmra.mxu0 %v9848
        %v9995 = vpop.f32.mrf.mxu0
        %v9996 = vadd.f32 0.0, %v9995
        %v9997 = vpop.f32.mrf.mxu0
        %9998 = vmatprep.mubr.f32.mxu0 0.0
        %9999 = vmatmul.mubr.f32.gmra.mxu0 %v9850
        %v10000 = vpop.f32.mrf.mxu0
        %v10001 = vadd.f32 0.0, %v10000
        %v10002 = vpop.f32.mrf.mxu0
        %10003 = vmatprep.mubr.f32.mxu0 0.0
        %10004 = vmatmul.mubr.f32.gmra.mxu0 %v9852
        %v10005 = vpop.f32.mrf.mxu0
        %v10006 = vadd.f32 0.0, %v10005
        %v10007 = vpop.f32.mrf.mxu0
        %10008 = vmatprep.mubr.f32.mxu0 0.0
        %10009 = vmatmul.mubr.f32.gmra.mxu0 %v9854
        %v10010 = vpop.f32.mrf.mxu0
        %v10011 = vadd.f32 0.0, %v10010
        %v10012 = vpop.f32.mrf.mxu0
        %10013 = vmatprep.mubr.f32.mxu0 0.0
        %10014 = vmatmul.mubr.f32.gmra.mxu0 %v9856
        %v10015 = vpop.f32.mrf.mxu0
        %v10016 = vadd.f32 0.0, %v10015
        %v10017 = vpop.f32.mrf.mxu0
        %10018 = vmatprep.mubr.f32.mxu0 0.0
        %10019 = vmatmul.mubr.f32.gmra.mxu0 %v9858
        %v10020 = vpop.f32.mrf.mxu0
        %v10021 = vadd.f32 0.0, %v10020
        %v10022 = vpop.f32.mrf.mxu0
        %10023 = vmatprep.mubr.f32.mxu0 0.0
        %10024 = vmatmul.mubr.f32.gmra.mxu0 %v9860
        %v10025 = vpop.f32.mrf.mxu0
        %v10026 = vadd.f32 0.0, %v10025
        %v10027 = vpop.f32.mrf.mxu0
        %10028 = vmatprep.mubr.f32.mxu0 0.0
        %10029 = vmatmul.mubr.f32.gmra.mxu0 %v9862
        %v10030 = vpop.f32.mrf.mxu0
        %v10031 = vadd.f32 0.0, %v10030
        %v10032 = vpop.f32.mrf.mxu0
        %10033 = vmatprep.mubr.f32.mxu0 0.0
        %10034 = vmatmul.mubr.f32.gmra.mxu0 %v9864
        %v10035 = vpop.f32.mrf.mxu0
        %v10036 = vadd.f32 0.0, %v10035
        %v10037 = vpop.f32.mrf.mxu0
        %10038 = vmatprep.mubr.f32.mxu0 0.0
        %10039 = vmatmul.mubr.f32.gmra.mxu0 %v9866
        %v10040 = vpop.f32.mrf.mxu0
        %v10041 = vadd.f32 0.0, %v10040
        %v10042 = vpop.f32.mrf.mxu0
        %10043 = vmatprep.mubr.f32.mxu0 0.0
        %10044 = vmatmul.mubr.f32.gmra.mxu0 %v9868
        %v10045 = vpop.f32.mrf.mxu0
        %v10046 = vadd.f32 0.0, %v10045
        %v10047 = vpop.f32.mrf.mxu0
        %10048 = vmatprep.mubr.f32.mxu0 0.0
        %10049 = vmatmul.mubr.f32.gmra.mxu0 %v9870
        %v10050 = vpop.f32.mrf.mxu0
        %v10051 = vadd.f32 0.0, %v10050
        %v10052 = vpop.f32.mrf.mxu0
        %10053 = vmatprep.mubr.f32.mxu0 0.0
        %10054 = vmatmul.mubr.f32.gmra.mxu0 %v9872
        %v10055 = vpop.f32.mrf.mxu0
        %v10056 = vadd.f32 0.0, %v10055
        %v10057 = vpop.f32.mrf.mxu0
        %10058 = vmatprep.mubr.f32.mxu0 0.0
        %10059 = vmatmul.mubr.f32.gmra.mxu0 %v9874
        %v10060 = vpop.f32.mrf.mxu0
        %v10061 = vadd.f32 0.0, %v10060
        %v10062 = vpop.f32.mrf.mxu0
        %10063 = vmatprep.mubr.f32.mxu0 0.0
        %10064 = vmatmul.mubr.f32.gmra.mxu0 %v9876
        %v10065 = vpop.f32.mrf.mxu0
        %v10066 = vadd.f32 0.0, %v10065
        %v10067 = vpop.f32.mrf.mxu0
        %10068 = vmatprep.mubr.f32.mxu0 0.0
        %10069 = vmatmul.mubr.f32.gmra.mxu0 %v9878
        %v10070 = vpop.f32.mrf.mxu0
        %v10071 = vadd.f32 0.0, %v10070
        %v10072 = vpop.f32.mrf.mxu0
        %10073 = vmatprep.mubr.f32.mxu0 0.0
        %10074 = vmatmul.mubr.f32.gmra.mxu0 %v9880
        %v10075 = vpop.f32.mrf.mxu0
        %v10076 = vadd.f32 0.0, %v10075
        %v10077 = vpop.f32.mrf.mxu0
        %10078 = vmatprep.mubr.f32.mxu0 0.0
        %10079 = vmatmul.mubr.f32.gmra.mxu0 %v9882
        %v10080 = vpop.f32.mrf.mxu0
        %v10081 = vadd.f32 0.0, %v10080
        %v10082 = vpop.f32.mrf.mxu0
        %10083 = vmatprep.mubr.f32.mxu0 0.0
        %10084 = vmatmul.mubr.f32.gmra.mxu0 %v9884
        %v10085 = vpop.f32.mrf.mxu0
        %v10086 = vadd.f32 0.0, %v10085
        %v10087 = vpop.f32.mrf.mxu0
        %10088 = vmatprep.mubr.f32.mxu0 0.0
        %10089 = vmatmul.mubr.f32.gmra.mxu0 %v9886
        %v10090 = vpop.f32.mrf.mxu0
        %v10091 = vadd.f32 0.0, %v10090
        %v10092 = vpop.f32.mrf.mxu0
        %10093 = vmatprep.mubr.f32.mxu0 0.0
        %10094 = vmatmul.mubr.f32.gmra.mxu0 %v9888
        %v10095 = vpop.f32.mrf.mxu0
        %v10096 = vadd.f32 0.0, %v10095
        %v10097 = vpop.f32.mrf.mxu0
        %10098 = vmatprep.mubr.f32.mxu0 0.0
        %10099 = vmatmul.mubr.f32.gmra.mxu0 %v9890
        %v10100 = vpop.f32.mrf.mxu0
        %v10101 = vadd.f32 0.0, %v10100
        %v10102 = vpop.f32.mrf.mxu0
        %10103 = vmatprep.mubr.f32.mxu0 0.0
        %10104 = vmatmul.mubr.f32.gmra.mxu0 %v9892
        %v10105 = vpop.f32.mrf.mxu0
        %v10106 = vadd.f32 0.0, %v10105
        %v10107 = vpop.f32.mrf.mxu0
        %10108 = vdwg.mxu0
        %v10109 = vadd.f32 %v9431, %v9961
        %v10110 = vadd.f32 %v9432, %v9966
        %v10111 = vadd.f32 %v9433, %v9971
        %v10112 = vadd.f32 %v9434, %v9976
        %v10113 = vadd.f32 %v9435, %v9981
        %v10114 = vadd.f32 %v9436, %v9986
        %v10115 = vadd.f32 %v9437, %v9991
        %v10116 = vadd.f32 %v9438, %v9996
        %v10117 = vadd.f32 %v9439, %v10001
        %v10118 = vadd.f32 %v9440, %v10006
        %v10119 = vadd.f32 %v9441, %v10011
        %v10120 = vadd.f32 %v9442, %v10016
        %v10121 = vadd.f32 %v9443, %v10021
        %v10122 = vadd.f32 %v9444, %v10026
        %v10123 = vadd.f32 %v9445, %v10031
        %v10124 = vadd.f32 %v9446, %v10036
        %v10125 = vadd.f32 %v9447, %v10041
        %v10126 = vadd.f32 %v9448, %v10046
        %v10127 = vadd.f32 %v9449, %v10051
        %v10128 = vadd.f32 %v9450, %v10056
        %v10129 = vadd.f32 %v9451, %v10061
        %v10130 = vadd.f32 %v9452, %v10066
        %v10131 = vadd.f32 %v9453, %v10071
        %v10132 = vadd.f32 %v9454, %v10076
        %v10133 = vadd.f32 %v9455, %v10081
        %v10134 = vadd.f32 %v9456, %v10086
        %v10135 = vadd.f32 %v9457, %v10091
        %v10136 = vadd.f32 %v9458, %v10096
        %v10137 = vadd.f32 %v9459, %v10101
        %v10138 = vadd.f32 %v9460, %v10106
        %s10139 = scalar_lea.vmem %s1, 3360
        %v10140 = vld [vmem:[%s10139] sm:$0xff]
        %v10141 = vld [vmem:[%s10139 + $0x8] sm:$0xff]
        %v10142 = vld [vmem:[%s10139 + $0x10] sm:$0xff]
        %v10143 = vld [vmem:[%s10139 + $0x18] sm:$0xff]
        %v10144 = vld [vmem:[%s10139 + $0x20] sm:$0xff]
        %v10145 = vld [vmem:[%s10139 + $0x28] sm:$0xff]
        %v10146 = vld [vmem:[%s10139 + $0x30] sm:$0xff]
        %v10147 = vld [vmem:[%s10139 + $0x38] sm:$0xff]
        %v10148 = vld [vmem:[%s10139 + $0x40] sm:$0xff]
        %v10149 = vld [vmem:[%s10139 + $0x48] sm:$0xff]
        %v10150 = vld [vmem:[%s10139 + $0x50] sm:$0xff]
        %v10151 = vld [vmem:[%s10139 + $0x58] sm:$0xff]
        %v10152 = vld [vmem:[%s10139 + $0x60] sm:$0xff]
        %v10153 = vld [vmem:[%s10139 + $0x68] sm:$0xff]
        %v10154 = vld [vmem:[%s10139 + $0x70] sm:$0xff]
        %v10155 = vld [vmem:[%s10139 + $0x78] sm:$0xff]
        %v10156 = vld [vmem:[%s10139 + $0x80] sm:$0xff]
        %v10157 = vld [vmem:[%s10139 + $0x88] sm:$0xff]
        %v10158 = vld [vmem:[%s10139 + $0x90] sm:$0xff]
        %v10159 = vld [vmem:[%s10139 + $0x98] sm:$0xff]
        %v10160 = vld [vmem:[%s10139 + $0xa0] sm:$0xff]
        %v10161 = vld [vmem:[%s10139 + $0xa8] sm:$0xff]
        %v10162 = vld [vmem:[%s10139 + $0xb0] sm:$0xff]
        %v10163 = vld [vmem:[%s10139 + $0xb8] sm:$0xff]
        %v10164 = vld [vmem:[%s10139 + $0xc0] sm:$0xff]
        %v10165 = vld [vmem:[%s10139 + $0xc8] sm:$0xff]
        %v10166 = vld [vmem:[%s10139 + $0xd0] sm:$0xff]
        %v10167 = vld [vmem:[%s10139 + $0xd8] sm:$0xff]
        %v10168 = vld [vmem:[%s10139 + $0xe0] sm:$0xff]
        %v10169 = vld [vmem:[%s10139 + $0xe8] sm:$0xff]
        %10171 = vset.pattern.permute.xlu0 0
        %10172 = vperm.xlu0 %10171, %v10140
        %v10173 = vpop.permute.xlu0 %10172
        %10175 = vset.pattern.permute.xlu0 0
        %10176 = vperm.xlu0 %10175, %v10141
        %v10177 = vpop.permute.xlu0 %10176
        %10179 = vset.pattern.permute.xlu0 0
        %10180 = vperm.xlu0 %10179, %v10142
        %v10181 = vpop.permute.xlu0 %10180
        %10183 = vset.pattern.permute.xlu0 0
        %10184 = vperm.xlu0 %10183, %v10143
        %v10185 = vpop.permute.xlu0 %10184
        %10187 = vset.pattern.permute.xlu0 0
        %10188 = vperm.xlu0 %10187, %v10144
        %v10189 = vpop.permute.xlu0 %10188
        %10191 = vset.pattern.permute.xlu0 0
        %10192 = vperm.xlu0 %10191, %v10145
        %v10193 = vpop.permute.xlu0 %10192
        %10195 = vset.pattern.permute.xlu0 0
        %10196 = vperm.xlu0 %10195, %v10146
        %v10197 = vpop.permute.xlu0 %10196
        %10199 = vset.pattern.permute.xlu0 0
        %10200 = vperm.xlu0 %10199, %v10147
        %v10201 = vpop.permute.xlu0 %10200
        %10203 = vset.pattern.permute.xlu0 0
        %10204 = vperm.xlu0 %10203, %v10148
        %v10205 = vpop.permute.xlu0 %10204
        %10207 = vset.pattern.permute.xlu0 0
        %10208 = vperm.xlu0 %10207, %v10149
        %v10209 = vpop.permute.xlu0 %10208
        %10211 = vset.pattern.permute.xlu0 0
        %10212 = vperm.xlu0 %10211, %v10150
        %v10213 = vpop.permute.xlu0 %10212
        %10215 = vset.pattern.permute.xlu0 0
        %10216 = vperm.xlu0 %10215, %v10151
        %v10217 = vpop.permute.xlu0 %10216
        %10219 = vset.pattern.permute.xlu0 0
        %10220 = vperm.xlu0 %10219, %v10152
        %v10221 = vpop.permute.xlu0 %10220
        %10223 = vset.pattern.permute.xlu0 0
        %10224 = vperm.xlu0 %10223, %v10153
        %v10225 = vpop.permute.xlu0 %10224
        %10227 = vset.pattern.permute.xlu0 0
        %10228 = vperm.xlu0 %10227, %v10154
        %v10229 = vpop.permute.xlu0 %10228
        %10231 = vset.pattern.permute.xlu0 0
        %10232 = vperm.xlu0 %10231, %v10155
        %v10233 = vpop.permute.xlu0 %10232
        %10235 = vset.pattern.permute.xlu0 0
        %10236 = vperm.xlu0 %10235, %v10156
        %v10237 = vpop.permute.xlu0 %10236
        %10239 = vset.pattern.permute.xlu0 0
        %10240 = vperm.xlu0 %10239, %v10157
        %v10241 = vpop.permute.xlu0 %10240
        %10243 = vset.pattern.permute.xlu0 0
        %10244 = vperm.xlu0 %10243, %v10158
        %v10245 = vpop.permute.xlu0 %10244
        %10247 = vset.pattern.permute.xlu0 0
        %10248 = vperm.xlu0 %10247, %v10159
        %v10249 = vpop.permute.xlu0 %10248
        %10251 = vset.pattern.permute.xlu0 0
        %10252 = vperm.xlu0 %10251, %v10160
        %v10253 = vpop.permute.xlu0 %10252
        %10255 = vset.pattern.permute.xlu0 0
        %10256 = vperm.xlu0 %10255, %v10161
        %v10257 = vpop.permute.xlu0 %10256
        %10259 = vset.pattern.permute.xlu0 0
        %10260 = vperm.xlu0 %10259, %v10162
        %v10261 = vpop.permute.xlu0 %10260
        %10263 = vset.pattern.permute.xlu0 0
        %10264 = vperm.xlu0 %10263, %v10163
        %v10265 = vpop.permute.xlu0 %10264
        %10267 = vset.pattern.permute.xlu0 0
        %10268 = vperm.xlu0 %10267, %v10164
        %v10269 = vpop.permute.xlu0 %10268
        %10271 = vset.pattern.permute.xlu0 0
        %10272 = vperm.xlu0 %10271, %v10165
        %v10273 = vpop.permute.xlu0 %10272
        %10275 = vset.pattern.permute.xlu0 0
        %10276 = vperm.xlu0 %10275, %v10166
        %v10277 = vpop.permute.xlu0 %10276
        %10279 = vset.pattern.permute.xlu0 0
        %10280 = vperm.xlu0 %10279, %v10167
        %v10281 = vpop.permute.xlu0 %10280
        %10283 = vset.pattern.permute.xlu0 0
        %10284 = vperm.xlu0 %10283, %v10168
        %v10285 = vpop.permute.xlu0 %10284
        %10287 = vset.pattern.permute.xlu0 0
        %10288 = vperm.xlu0 %10287, %v10169
        %v10289 = vpop.permute.xlu0 %10288
        %v10290 = vrot.slane %v10173, 1
        %v10291 = vrot.slane %v10177, 1
        %v10292 = vsel %vm553, %v10290, %v10291
        %v10293 = vrot.slane %v10181, 1
        %v10294 = vsel %vm553, %v10291, %v10293
        %v10295 = vrot.slane %v10185, 1
        %v10296 = vsel %vm553, %v10293, %v10295
        %v10297 = vrot.slane %v10189, 1
        %v10298 = vsel %vm553, %v10295, %v10297
        %v10299 = vrot.slane %v10193, 1
        %v10300 = vsel %vm553, %v10297, %v10299
        %v10301 = vrot.slane %v10197, 1
        %v10302 = vsel %vm553, %v10299, %v10301
        %v10303 = vrot.slane %v10201, 1
        %v10304 = vsel %vm553, %v10301, %v10303
        %v10305 = vrot.slane %v10205, 1
        %v10306 = vsel %vm553, %v10303, %v10305
        %v10307 = vrot.slane %v10209, 1
        %v10308 = vsel %vm553, %v10305, %v10307
        %v10309 = vrot.slane %v10213, 1
        %v10310 = vsel %vm553, %v10307, %v10309
        %v10311 = vrot.slane %v10217, 1
        %v10312 = vsel %vm553, %v10309, %v10311
        %v10313 = vrot.slane %v10221, 1
        %v10314 = vsel %vm553, %v10311, %v10313
        %v10315 = vrot.slane %v10225, 1
        %v10316 = vsel %vm553, %v10313, %v10315
        %v10317 = vrot.slane %v10229, 1
        %v10318 = vsel %vm553, %v10315, %v10317
        %v10319 = vrot.slane %v10233, 1
        %v10320 = vsel %vm553, %v10317, %v10319
        %v10321 = vrot.slane %v10237, 1
        %v10322 = vsel %vm553, %v10319, %v10321
        %v10323 = vrot.slane %v10241, 1
        %v10324 = vsel %vm553, %v10321, %v10323
        %v10325 = vrot.slane %v10245, 1
        %v10326 = vsel %vm553, %v10323, %v10325
        %v10327 = vrot.slane %v10249, 1
        %v10328 = vsel %vm553, %v10325, %v10327
        %v10329 = vrot.slane %v10253, 1
        %v10330 = vsel %vm553, %v10327, %v10329
        %v10331 = vrot.slane %v10257, 1
        %v10332 = vsel %vm553, %v10329, %v10331
        %v10333 = vrot.slane %v10261, 1
        %v10334 = vsel %vm553, %v10331, %v10333
        %v10335 = vrot.slane %v10265, 1
        %v10336 = vsel %vm553, %v10333, %v10335
        %v10337 = vrot.slane %v10269, 1
        %v10338 = vsel %vm553, %v10335, %v10337
        %v10339 = vrot.slane %v10273, 1
        %v10340 = vsel %vm553, %v10337, %v10339
        %v10341 = vrot.slane %v10277, 1
        %v10342 = vsel %vm553, %v10339, %v10341
        %v10343 = vrot.slane %v10281, 1
        %v10344 = vsel %vm553, %v10341, %v10343
        %v10345 = vrot.slane %v10285, 1
        %v10346 = vsel %vm553, %v10343, %v10345
        %v10347 = vrot.slane %v10289, 1
        %v10348 = vsel %vm553, %v10345, %v10347
        %v10380 = vmul.f32 %v1045, %v10290
        %v10381 = vmul.f32 %v1046, %v10292
        %v10382 = vmul.f32 %v1047, %v10294
        %v10383 = vmul.f32 %v1048, %v10296
        %v10384 = vmul.f32 %v1049, %v10298
        %v10385 = vmul.f32 %v1050, %v10300
        %v10386 = vmul.f32 %v1051, %v10302
        %v10387 = vmul.f32 %v1052, %v10304
        %v10388 = vmul.f32 %v1053, %v10306
        %v10389 = vmul.f32 %v1054, %v10308
        %v10390 = vmul.f32 %v1055, %v10310
        %v10391 = vmul.f32 %v1056, %v10312
        %v10392 = vmul.f32 %v1057, %v10314
        %v10393 = vmul.f32 %v1058, %v10316
        %v10394 = vmul.f32 %v1059, %v10318
        %v10395 = vmul.f32 %v1060, %v10320
        %v10396 = vmul.f32 %v1061, %v10322
        %v10397 = vmul.f32 %v1062, %v10324
        %v10398 = vmul.f32 %v1063, %v10326
        %v10399 = vmul.f32 %v1064, %v10328
        %v10400 = vmul.f32 %v1065, %v10330
        %v10401 = vmul.f32 %v1066, %v10332
        %v10402 = vmul.f32 %v1067, %v10334
        %v10403 = vmul.f32 %v1068, %v10336
        %v10404 = vmul.f32 %v1069, %v10338
        %v10405 = vmul.f32 %v1070, %v10340
        %v10406 = vmul.f32 %v1071, %v10342
        %v10407 = vmul.f32 %v10344, 0.0
        %v10408 = vmul.f32 %v10346, 0.0
        %v10409 = vmul.f32 %v10348, 0.0
        %v10410 = vmul.f32 %v10347, 0.0
        %s10411 = scalar_lea.vmem %s4, 896
        %v10412 = vld [vmem:[%s10411] sm:$0xff]
        %v10413 = vld [vmem:[%s10411 + $0x8] sm:$0xff]
        %v10414 = vld [vmem:[%s10411 + $0x10] sm:$0xff]
        %v10415 = vld [vmem:[%s10411 + $0x18] sm:$0xff]
        %v10416 = vld [vmem:[%s10411 + $0x20] sm:$0xff]
        %v10417 = vld [vmem:[%s10411 + $0x28] sm:$0xff]
        %v10418 = vld [vmem:[%s10411 + $0x30] sm:$0xff]
        %v10419 = vld [vmem:[%s10411 + $0x38] sm:$0xff]
        %v10451 = vrot.slane %v10380, 7
        %v10452 = vrot.slane %v10381, 7
        %v10453 = vsel %vm1222, %v10451, %v10452
        %v10454 = vrot.slane %v10382, 7
        %v10455 = vsel %vm1222, %v10452, %v10454
        %v10456 = vrot.slane %v10383, 7
        %v10457 = vsel %vm1222, %v10454, %v10456
        %v10458 = vrot.slane %v10384, 7
        %v10459 = vsel %vm1222, %v10456, %v10458
        %v10460 = vrot.slane %v10385, 7
        %v10461 = vsel %vm1222, %v10458, %v10460
        %v10462 = vrot.slane %v10386, 7
        %v10463 = vsel %vm1222, %v10460, %v10462
        %v10464 = vrot.slane %v10387, 7
        %v10465 = vsel %vm1222, %v10462, %v10464
        %v10466 = vrot.slane %v10388, 7
        %v10467 = vsel %vm1222, %v10464, %v10466
        %v10468 = vrot.slane %v10389, 7
        %v10469 = vsel %vm1222, %v10466, %v10468
        %v10470 = vrot.slane %v10390, 7
        %v10471 = vsel %vm1222, %v10468, %v10470
        %v10472 = vrot.slane %v10391, 7
        %v10473 = vsel %vm1222, %v10470, %v10472
        %v10474 = vrot.slane %v10392, 7
        %v10475 = vsel %vm1222, %v10472, %v10474
        %v10476 = vrot.slane %v10393, 7
        %v10477 = vsel %vm1222, %v10474, %v10476
        %v10478 = vrot.slane %v10394, 7
        %v10479 = vsel %vm1222, %v10476, %v10478
        %v10480 = vrot.slane %v10395, 7
        %v10481 = vsel %vm1222, %v10478, %v10480
        %v10482 = vrot.slane %v10396, 7
        %v10483 = vsel %vm1222, %v10480, %v10482
        %v10484 = vrot.slane %v10397, 7
        %v10485 = vsel %vm1222, %v10482, %v10484
        %v10486 = vrot.slane %v10398, 7
        %v10487 = vsel %vm1222, %v10484, %v10486
        %v10488 = vrot.slane %v10399, 7
        %v10489 = vsel %vm1222, %v10486, %v10488
        %v10490 = vrot.slane %v10400, 7
        %v10491 = vsel %vm1222, %v10488, %v10490
        %v10492 = vrot.slane %v10401, 7
        %v10493 = vsel %vm1222, %v10490, %v10492
        %v10494 = vrot.slane %v10402, 7
        %v10495 = vsel %vm1222, %v10492, %v10494
        %v10496 = vrot.slane %v10403, 7
        %v10497 = vsel %vm1222, %v10494, %v10496
        %v10498 = vrot.slane %v10404, 7
        %v10499 = vsel %vm1222, %v10496, %v10498
        %v10500 = vrot.slane %v10405, 7
        %v10501 = vsel %vm1222, %v10498, %v10500
        %v10502 = vrot.slane %v10406, 7
        %v10503 = vsel %vm1222, %v10500, %v10502
        %v10504 = vrot.slane %v10407, 7
        %v10505 = vsel %vm1222, %v10502, %v10504
        %v10506 = vrot.slane %v10408, 7
        %v10507 = vsel %vm1222, %v10504, %v10506
        %v10508 = vrot.slane %v10409, 7
        %v10509 = vsel %vm1222, %v10506, %v10508
        %v10510 = vrot.slane %v10410, 7
        %v10511 = vsel %vm1222, %v10508, %v10510
        %v10512 = vsel %vm1727, %v10453, 0
        %v10514 = vsel %vm1727, %v10455, 0
        %v10516 = vsel %vm1727, %v10457, 0
        %v10518 = vsel %vm1727, %v10459, 0
        %v10520 = vsel %vm1727, %v10461, 0
        %v10522 = vsel %vm1727, %v10463, 0
        %v10524 = vsel %vm1727, %v10465, 0
        %v10526 = vsel %vm1727, %v10467, 0
        %v10528 = vsel %vm1727, %v10469, 0
        %v10530 = vsel %vm1727, %v10471, 0
        %v10532 = vsel %vm1727, %v10473, 0
        %v10534 = vsel %vm1727, %v10475, 0
        %v10536 = vsel %vm1727, %v10477, 0
        %v10538 = vsel %vm1727, %v10479, 0
        %v10540 = vsel %vm1727, %v10481, 0
        %v10542 = vsel %vm1727, %v10483, 0
        %v10544 = vsel %vm1727, %v10485, 0
        %v10546 = vsel %vm1727, %v10487, 0
        %v10548 = vsel %vm1727, %v10489, 0
        %v10550 = vsel %vm1727, %v10491, 0
        %v10552 = vsel %vm1727, %v10493, 0
        %v10554 = vsel %vm1727, %v10495, 0
        %v10556 = vsel %vm1727, %v10497, 0
        %v10558 = vsel %vm1727, %v10499, 0
        %v10560 = vsel %vm1727, %v10501, 0
        %v10562 = vsel %vm1727, %v10503, 0
        %v10564 = vsel %vm1727, %v10505, 0
        %v10566 = vsel %vm1727, %v10507, 0
        %v10568 = vsel %vm1727, %v10509, 0
        %v10570 = vsel %vm1727, %v10511, 0
        %10572 = vmatprep.subr.mxu0 0.0
        %10573 = vmatpush1.msra.mxu0 0.0
        %10574 = vmatprep.subr.mxu0 0.0
        %10575 = vmatpush1.msra.mxu0 0.0
        %10576 = vmatprep.subr.mxu0 0.0
        %10577 = vmatpush1.msra.mxu0 0.0
        %10578 = vmatprep.subr.mxu0 0.0
        %10579 = vmatpush1.msra.mxu0 0.0
        %10580 = vmatprep.subr.mxu0 0.0
        %10581 = vmatpush1.msra.mxu0 0.0
        %10582 = vmatprep.subr.mxu0 0.0
        %10583 = vmatpush1.msra.mxu0 0.0
        %10584 = vmatprep.subr.mxu0 0.0
        %10585 = vmatpush1.msra.mxu0 0.0
        %10586 = vmatprep.subr.mxu0 0.0
        %10587 = vmatpush1.msra.mxu0 0.0
        %10588 = vmatprep.subr.mxu0 0.0
        %10589 = vmatpush1.msra.mxu0 %v10419
        %10590 = vmatprep.subr.mxu0 0.0
        %10591 = vmatpush1.msra.mxu0 %v10418
        %10592 = vmatprep.subr.mxu0 0.0
        %10593 = vmatpush1.msra.mxu0 %v10417
        %10594 = vmatprep.subr.mxu0 0.0
        %10595 = vmatpush1.msra.mxu0 %v10416
        %10596 = vmatprep.subr.mxu0 0.0
        %10597 = vmatpush1.msra.mxu0 %v10415
        %10598 = vmatprep.subr.mxu0 0.0
        %10599 = vmatpush1.msra.mxu0 %v10414
        %10600 = vmatprep.subr.mxu0 0.0
        %10601 = vmatpush1.msra.mxu0 %v10413
        %10602 = vmatprep.subr.mxu0 0.0
        %10603 = vmatpush1.msra.mxu0 %v10412
        %10604 = vmatprep.subr.mxu0 0.0
        %10605 = vmatpush2.msra.mxu0 0.0
        %10606 = vmatprep.subr.mxu0 0.0
        %10607 = vmatpush2.msra.mxu0 0.0
        %10608 = vmatprep.subr.mxu0 0.0
        %10609 = vmatpush2.msra.mxu0 0.0
        %10610 = vmatprep.subr.mxu0 0.0
        %10611 = vmatpush2.msra.mxu0 0.0
        %10612 = vmatprep.subr.mxu0 0.0
        %10613 = vmatpush2.msra.mxu0 0.0
        %10614 = vmatprep.subr.mxu0 0.0
        %10615 = vmatpush2.msra.mxu0 0.0
        %10616 = vmatprep.subr.mxu0 0.0
        %10617 = vmatpush2.msra.mxu0 0.0
        %10618 = vmatprep.subr.mxu0 0.0
        %10619 = vmatpush2.msra.mxu0 0.0
        %10620 = vmatprep.subr.mxu0 0.0
        %10621 = vmatpush2.msra.mxu0 0.0
        %10622 = vmatprep.subr.mxu0 0.0
        %10623 = vmatpush2.msra.mxu0 0.0
        %10624 = vmatprep.subr.mxu0 0.0
        %10625 = vmatpush2.msra.mxu0 0.0
        %10626 = vmatprep.subr.mxu0 0.0
        %10627 = vmatpush2.msra.mxu0 0.0
        %10628 = vmatprep.subr.mxu0 0.0
        %10629 = vmatpush2.msra.mxu0 0.0
        %10630 = vmatprep.subr.mxu0 0.0
        %10631 = vmatpush2.msra.mxu0 0.0
        %10632 = vmatprep.subr.mxu0 0.0
        %10633 = vmatpush2.msra.mxu0 0.0
        %10634 = vmatprep.subr.mxu0 0.0
        %10635 = vmatpush2.msra.mxu0 0.0
        %10636 = vmatprep.mubr.f32.mxu0 0.0
        %10637 = vmatmul.mubr.f32.gmra.mxu0 %v10512
        %v10638 = vpop.f32.mrf.mxu0
        %v10639 = vadd.f32 0.0, %v10638
        %v10640 = vpop.f32.mrf.mxu0
        %10641 = vmatprep.mubr.f32.mxu0 0.0
        %10642 = vmatmul.mubr.f32.gmra.mxu0 %v10514
        %v10643 = vpop.f32.mrf.mxu0
        %v10644 = vadd.f32 0.0, %v10643
        %v10645 = vpop.f32.mrf.mxu0
        %10646 = vmatprep.mubr.f32.mxu0 0.0
        %10647 = vmatmul.mubr.f32.gmra.mxu0 %v10516
        %v10648 = vpop.f32.mrf.mxu0
        %v10649 = vadd.f32 0.0, %v10648
        %v10650 = vpop.f32.mrf.mxu0
        %10651 = vmatprep.mubr.f32.mxu0 0.0
        %10652 = vmatmul.mubr.f32.gmra.mxu0 %v10518
        %v10653 = vpop.f32.mrf.mxu0
        %v10654 = vadd.f32 0.0, %v10653
        %v10655 = vpop.f32.mrf.mxu0
        %10656 = vmatprep.mubr.f32.mxu0 0.0
        %10657 = vmatmul.mubr.f32.gmra.mxu0 %v10520
        %v10658 = vpop.f32.mrf.mxu0
        %v10659 = vadd.f32 0.0, %v10658
        %v10660 = vpop.f32.mrf.mxu0
        %10661 = vmatprep.mubr.f32.mxu0 0.0
        %10662 = vmatmul.mubr.f32.gmra.mxu0 %v10522
        %v10663 = vpop.f32.mrf.mxu0
        %v10664 = vadd.f32 0.0, %v10663
        %v10665 = vpop.f32.mrf.mxu0
        %10666 = vmatprep.mubr.f32.mxu0 0.0
        %10667 = vmatmul.mubr.f32.gmra.mxu0 %v10524
        %v10668 = vpop.f32.mrf.mxu0
        %v10669 = vadd.f32 0.0, %v10668
        %v10670 = vpop.f32.mrf.mxu0
        %10671 = vmatprep.mubr.f32.mxu0 0.0
        %10672 = vmatmul.mubr.f32.gmra.mxu0 %v10526
        %v10673 = vpop.f32.mrf.mxu0
        %v10674 = vadd.f32 0.0, %v10673
        %v10675 = vpop.f32.mrf.mxu0
        %10676 = vmatprep.mubr.f32.mxu0 0.0
        %10677 = vmatmul.mubr.f32.gmra.mxu0 %v10528
        %v10678 = vpop.f32.mrf.mxu0
        %v10679 = vadd.f32 0.0, %v10678
        %v10680 = vpop.f32.mrf.mxu0
        %10681 = vmatprep.mubr.f32.mxu0 0.0
        %10682 = vmatmul.mubr.f32.gmra.mxu0 %v10530
        %v10683 = vpop.f32.mrf.mxu0
        %v10684 = vadd.f32 0.0, %v10683
        %v10685 = vpop.f32.mrf.mxu0
        %10686 = vmatprep.mubr.f32.mxu0 0.0
        %10687 = vmatmul.mubr.f32.gmra.mxu0 %v10532
        %v10688 = vpop.f32.mrf.mxu0
        %v10689 = vadd.f32 0.0, %v10688
        %v10690 = vpop.f32.mrf.mxu0
        %10691 = vmatprep.mubr.f32.mxu0 0.0
        %10692 = vmatmul.mubr.f32.gmra.mxu0 %v10534
        %v10693 = vpop.f32.mrf.mxu0
        %v10694 = vadd.f32 0.0, %v10693
        %v10695 = vpop.f32.mrf.mxu0
        %10696 = vmatprep.mubr.f32.mxu0 0.0
        %10697 = vmatmul.mubr.f32.gmra.mxu0 %v10536
        %v10698 = vpop.f32.mrf.mxu0
        %v10699 = vadd.f32 0.0, %v10698
        %v10700 = vpop.f32.mrf.mxu0
        %10701 = vmatprep.mubr.f32.mxu0 0.0
        %10702 = vmatmul.mubr.f32.gmra.mxu0 %v10538
        %v10703 = vpop.f32.mrf.mxu0
        %v10704 = vadd.f32 0.0, %v10703
        %v10705 = vpop.f32.mrf.mxu0
        %10706 = vmatprep.mubr.f32.mxu0 0.0
        %10707 = vmatmul.mubr.f32.gmra.mxu0 %v10540
        %v10708 = vpop.f32.mrf.mxu0
        %v10709 = vadd.f32 0.0, %v10708
        %v10710 = vpop.f32.mrf.mxu0
        %10711 = vmatprep.mubr.f32.mxu0 0.0
        %10712 = vmatmul.mubr.f32.gmra.mxu0 %v10542
        %v10713 = vpop.f32.mrf.mxu0
        %v10714 = vadd.f32 0.0, %v10713
        %v10715 = vpop.f32.mrf.mxu0
        %10716 = vmatprep.mubr.f32.mxu0 0.0
        %10717 = vmatmul.mubr.f32.gmra.mxu0 %v10544
        %v10718 = vpop.f32.mrf.mxu0
        %v10719 = vadd.f32 0.0, %v10718
        %v10720 = vpop.f32.mrf.mxu0
        %10721 = vmatprep.mubr.f32.mxu0 0.0
        %10722 = vmatmul.mubr.f32.gmra.mxu0 %v10546
        %v10723 = vpop.f32.mrf.mxu0
        %v10724 = vadd.f32 0.0, %v10723
        %v10725 = vpop.f32.mrf.mxu0
        %10726 = vmatprep.mubr.f32.mxu0 0.0
        %10727 = vmatmul.mubr.f32.gmra.mxu0 %v10548
        %v10728 = vpop.f32.mrf.mxu0
        %v10729 = vadd.f32 0.0, %v10728
        %v10730 = vpop.f32.mrf.mxu0
        %10731 = vmatprep.mubr.f32.mxu0 0.0
        %10732 = vmatmul.mubr.f32.gmra.mxu0 %v10550
        %v10733 = vpop.f32.mrf.mxu0
        %v10734 = vadd.f32 0.0, %v10733
        %v10735 = vpop.f32.mrf.mxu0
        %10736 = vmatprep.mubr.f32.mxu0 0.0
        %10737 = vmatmul.mubr.f32.gmra.mxu0 %v10552
        %v10738 = vpop.f32.mrf.mxu0
        %v10739 = vadd.f32 0.0, %v10738
        %v10740 = vpop.f32.mrf.mxu0
        %10741 = vmatprep.mubr.f32.mxu0 0.0
        %10742 = vmatmul.mubr.f32.gmra.mxu0 %v10554
        %v10743 = vpop.f32.mrf.mxu0
        %v10744 = vadd.f32 0.0, %v10743
        %v10745 = vpop.f32.mrf.mxu0
        %10746 = vmatprep.mubr.f32.mxu0 0.0
        %10747 = vmatmul.mubr.f32.gmra.mxu0 %v10556
        %v10748 = vpop.f32.mrf.mxu0
        %v10749 = vadd.f32 0.0, %v10748
        %v10750 = vpop.f32.mrf.mxu0
        %10751 = vmatprep.mubr.f32.mxu0 0.0
        %10752 = vmatmul.mubr.f32.gmra.mxu0 %v10558
        %v10753 = vpop.f32.mrf.mxu0
        %v10754 = vadd.f32 0.0, %v10753
        %v10755 = vpop.f32.mrf.mxu0
        %10756 = vmatprep.mubr.f32.mxu0 0.0
        %10757 = vmatmul.mubr.f32.gmra.mxu0 %v10560
        %v10758 = vpop.f32.mrf.mxu0
        %v10759 = vadd.f32 0.0, %v10758
        %v10760 = vpop.f32.mrf.mxu0
        %10761 = vmatprep.mubr.f32.mxu0 0.0
        %10762 = vmatmul.mubr.f32.gmra.mxu0 %v10562
        %v10763 = vpop.f32.mrf.mxu0
        %v10764 = vadd.f32 0.0, %v10763
        %v10765 = vpop.f32.mrf.mxu0
        %10766 = vmatprep.mubr.f32.mxu0 0.0
        %10767 = vmatmul.mubr.f32.gmra.mxu0 %v10564
        %v10768 = vpop.f32.mrf.mxu0
        %v10769 = vadd.f32 0.0, %v10768
        %v10770 = vpop.f32.mrf.mxu0
        %10771 = vmatprep.mubr.f32.mxu0 0.0
        %10772 = vmatmul.mubr.f32.gmra.mxu0 %v10566
        %v10773 = vpop.f32.mrf.mxu0
        %v10774 = vadd.f32 0.0, %v10773
        %v10775 = vpop.f32.mrf.mxu0
        %10776 = vmatprep.mubr.f32.mxu0 0.0
        %10777 = vmatmul.mubr.f32.gmra.mxu0 %v10568
        %v10778 = vpop.f32.mrf.mxu0
        %v10779 = vadd.f32 0.0, %v10778
        %v10780 = vpop.f32.mrf.mxu0
        %10781 = vmatprep.mubr.f32.mxu0 0.0
        %10782 = vmatmul.mubr.f32.gmra.mxu0 %v10570
        %v10783 = vpop.f32.mrf.mxu0
        %v10784 = vadd.f32 0.0, %v10783
        %v10785 = vpop.f32.mrf.mxu0
        %10786 = vdwg.mxu0
        %v10787 = vadd.f32 %v10109, %v10639
        %v10788 = vadd.f32 %v10110, %v10644
        %v10789 = vadd.f32 %v10111, %v10649
        %v10790 = vadd.f32 %v10112, %v10654
        %v10791 = vadd.f32 %v10113, %v10659
        %v10792 = vadd.f32 %v10114, %v10664
        %v10793 = vadd.f32 %v10115, %v10669
        %v10794 = vadd.f32 %v10116, %v10674
        %v10795 = vadd.f32 %v10117, %v10679
        %v10796 = vadd.f32 %v10118, %v10684
        %v10797 = vadd.f32 %v10119, %v10689
        %v10798 = vadd.f32 %v10120, %v10694
        %v10799 = vadd.f32 %v10121, %v10699
        %v10800 = vadd.f32 %v10122, %v10704
        %v10801 = vadd.f32 %v10123, %v10709
        %v10802 = vadd.f32 %v10124, %v10714
        %v10803 = vadd.f32 %v10125, %v10719
        %v10804 = vadd.f32 %v10126, %v10724
        %v10805 = vadd.f32 %v10127, %v10729
        %v10806 = vadd.f32 %v10128, %v10734
        %v10807 = vadd.f32 %v10129, %v10739
        %v10808 = vadd.f32 %v10130, %v10744
        %v10809 = vadd.f32 %v10131, %v10749
        %v10810 = vadd.f32 %v10132, %v10754
        %v10811 = vadd.f32 %v10133, %v10759
        %v10812 = vadd.f32 %v10134, %v10764
        %v10813 = vadd.f32 %v10135, %v10769
        %v10814 = vadd.f32 %v10136, %v10774
        %v10815 = vadd.f32 %v10137, %v10779
        %v10816 = vadd.f32 %v10138, %v10784
        %v10817 = vld [vmem:[%s5] sm:$0x1]
        %v10819 = vlaneseq
        %v10820 = vshrl.u32 %v10819, 7
        %v10821 = vsub.s32 0, %v10820
        %v10822 = vrot.slane %v10817, %v10821
        %v10824 = vadd.f32 %v10787, %v10822
        %v10825 = vadd.f32 %v10788, %v10822
        %v10826 = vadd.f32 %v10789, %v10822
        %v10827 = vadd.f32 %v10790, %v10822
        %v10828 = vadd.f32 %v10791, %v10822
        %v10829 = vadd.f32 %v10792, %v10822
        %v10830 = vadd.f32 %v10793, %v10822
        %v10831 = vadd.f32 %v10794, %v10822
        %v10832 = vadd.f32 %v10795, %v10822
        %v10833 = vadd.f32 %v10796, %v10822
        %v10834 = vadd.f32 %v10797, %v10822
        %v10835 = vadd.f32 %v10798, %v10822
        %v10836 = vadd.f32 %v10799, %v10822
        %v10837 = vadd.f32 %v10800, %v10822
        %v10838 = vadd.f32 %v10801, %v10822
        %v10839 = vadd.f32 %v10802, %v10822
        %v10840 = vadd.f32 %v10803, %v10822
        %v10841 = vadd.f32 %v10804, %v10822
        %v10842 = vadd.f32 %v10805, %v10822
        %v10843 = vadd.f32 %v10806, %v10822
        %v10844 = vadd.f32 %v10807, %v10822
        %v10845 = vadd.f32 %v10808, %v10822
        %v10846 = vadd.f32 %v10809, %v10822
        %v10847 = vadd.f32 %v10810, %v10822
        %v10848 = vadd.f32 %v10811, %v10822
        %v10849 = vadd.f32 %v10812, %v10822
        %v10850 = vadd.f32 %v10813, %v10822
        %v10851 = vadd.f32 %v10814, %v10822
        %v10852 = vadd.f32 %v10815, %v10822
        %v10853 = vadd.f32 %v10816, %v10822
        %v10854 = vmul.f32 %v10824, 0.01
        %v10855 = vmul.f32 %v10825, 0.01
        %v10856 = vmul.f32 %v10826, 0.01
        %v10857 = vmul.f32 %v10827, 0.01
        %v10858 = vmul.f32 %v10828, 0.01
        %v10859 = vmul.f32 %v10829, 0.01
        %v10860 = vmul.f32 %v10830, 0.01
        %v10861 = vmul.f32 %v10831, 0.01
        %v10862 = vmul.f32 %v10832, 0.01
        %v10863 = vmul.f32 %v10833, 0.01
        %v10864 = vmul.f32 %v10834, 0.01
        %v10865 = vmul.f32 %v10835, 0.01
        %v10866 = vmul.f32 %v10836, 0.01
        %v10867 = vmul.f32 %v10837, 0.01
        %v10868 = vmul.f32 %v10838, 0.01
        %v10869 = vmul.f32 %v10839, 0.01
        %v10870 = vmul.f32 %v10840, 0.01
        %v10871 = vmul.f32 %v10841, 0.01
        %v10872 = vmul.f32 %v10842, 0.01
        %v10873 = vmul.f32 %v10843, 0.01
        %v10874 = vmul.f32 %v10844, 0.01
        %v10875 = vmul.f32 %v10845, 0.01
        %v10876 = vmul.f32 %v10846, 0.01
        %v10877 = vmul.f32 %v10847, 0.01
        %v10878 = vmul.f32 %v10848, 0.01
        %v10879 = vmul.f32 %v10849, 0.01
        %v10880 = vmul.f32 %v10850, 0.01
        %v10881 = vmul.f32 %v10851, 0.01
        %v10882 = vmul.f32 %v10852, 0.01
        %v10883 = vmul.f32 %v10853, 0.01
        %v10884 = vmax.f32 %v10824, %v10854
        %v10885 = vmax.f32 %v10825, %v10855
        %v10886 = vmax.f32 %v10826, %v10856
        %v10887 = vmax.f32 %v10827, %v10857
        %v10888 = vmax.f32 %v10828, %v10858
        %v10889 = vmax.f32 %v10829, %v10859
        %v10890 = vmax.f32 %v10830, %v10860
        %v10891 = vmax.f32 %v10831, %v10861
        %v10892 = vmax.f32 %v10832, %v10862
        %v10893 = vmax.f32 %v10833, %v10863
        %v10894 = vmax.f32 %v10834, %v10864
        %v10895 = vmax.f32 %v10835, %v10865
        %v10896 = vmax.f32 %v10836, %v10866
        %v10897 = vmax.f32 %v10837, %v10867
        %v10898 = vmax.f32 %v10838, %v10868
        %v10899 = vmax.f32 %v10839, %v10869
        %v10900 = vmax.f32 %v10840, %v10870
        %v10901 = vmax.f32 %v10841, %v10871
        %v10902 = vmax.f32 %v10842, %v10872
        %v10903 = vmax.f32 %v10843, %v10873
        %v10904 = vmax.f32 %v10844, %v10874
        %v10905 = vmax.f32 %v10845, %v10875
        %v10906 = vmax.f32 %v10846, %v10876
        %v10907 = vmax.f32 %v10847, %v10877
        %v10908 = vmax.f32 %v10848, %v10878
        %v10909 = vmax.f32 %v10849, %v10879
        %v10910 = vmax.f32 %v10850, %v10880
        %v10911 = vmax.f32 %v10851, %v10881
        %v10912 = vmax.f32 %v10852, %v10882
        %v10913 = vmax.f32 %v10853, %v10883
        %v10944 = vrot.slane %v10885, 7
        %v10945 = vrot.slane %v10886, 7
        %v10946 = vsel %vm1222, %v10944, %v10945
        %v10947 = vrot.slane %v10887, 7
        %v10948 = vsel %vm1222, %v10945, %v10947
        %v10949 = vrot.slane %v10888, 7
        %v10950 = vsel %vm1222, %v10947, %v10949
        %v10951 = vrot.slane %v10889, 7
        %v10952 = vsel %vm1222, %v10949, %v10951
        %v10953 = vrot.slane %v10890, 7
        %v10954 = vsel %vm1222, %v10951, %v10953
        %v10955 = vrot.slane %v10891, 7
        %v10956 = vsel %vm1222, %v10953, %v10955
        %v10957 = vrot.slane %v10892, 7
        %v10958 = vsel %vm1222, %v10955, %v10957
        %v10959 = vrot.slane %v10893, 7
        %v10960 = vsel %vm1222, %v10957, %v10959
        %v10961 = vrot.slane %v10894, 7
        %v10962 = vsel %vm1222, %v10959, %v10961
        %v10963 = vrot.slane %v10895, 7
        %v10964 = vsel %vm1222, %v10961, %v10963
        %v10965 = vrot.slane %v10896, 7
        %v10966 = vsel %vm1222, %v10963, %v10965
        %v10967 = vrot.slane %v10897, 7
        %v10968 = vsel %vm1222, %v10965, %v10967
        %v10969 = vrot.slane %v10898, 7
        %v10970 = vsel %vm1222, %v10967, %v10969
        %v10971 = vrot.slane %v10899, 7
        %v10972 = vsel %vm1222, %v10969, %v10971
        %v10973 = vrot.slane %v10900, 7
        %v10974 = vsel %vm1222, %v10971, %v10973
        %v10975 = vrot.slane %v10901, 7
        %v10976 = vsel %vm1222, %v10973, %v10975
        %v10977 = vrot.slane %v10902, 7
        %v10978 = vsel %vm1222, %v10975, %v10977
        %v10979 = vrot.slane %v10903, 7
        %v10980 = vsel %vm1222, %v10977, %v10979
        %v10981 = vrot.slane %v10904, 7
        %v10982 = vsel %vm1222, %v10979, %v10981
        %v10983 = vrot.slane %v10905, 7
        %v10984 = vsel %vm1222, %v10981, %v10983
        %v10985 = vrot.slane %v10906, 7
        %v10986 = vsel %vm1222, %v10983, %v10985
        %v10987 = vrot.slane %v10907, 7
        %v10988 = vsel %vm1222, %v10985, %v10987
        %v10989 = vrot.slane %v10908, 7
        %v10990 = vsel %vm1222, %v10987, %v10989
        %v10991 = vrot.slane %v10909, 7
        %v10992 = vsel %vm1222, %v10989, %v10991
        %v10993 = vrot.slane %v10910, 7
        %v10994 = vsel %vm1222, %v10991, %v10993
        %v10995 = vrot.slane %v10911, 7
        %v10996 = vsel %vm1222, %v10993, %v10995
        %v10997 = vrot.slane %v10912, 7
        %v10998 = vsel %vm1222, %v10995, %v10997
        %v10999 = vrot.slane %v10913, 7
        %v11000 = vsel %vm1222, %v10997, %v10999
        %v11001 = vrot.slane 0.0, 7
        %v11002 = vsel %vm1222, %v10999, %v11001
        %v11003 = vsel %vm1222, %v11001, %v11001
        %v11034 = vmax.f32 %v10884, %v10946
        %v11035 = vmax.f32 %v10885, %v10948
        %v11036 = vmax.f32 %v10886, %v10950
        %v11037 = vmax.f32 %v10887, %v10952
        %v11038 = vmax.f32 %v10888, %v10954
        %v11039 = vmax.f32 %v10889, %v10956
        %v11040 = vmax.f32 %v10890, %v10958
        %v11041 = vmax.f32 %v10891, %v10960
        %v11042 = vmax.f32 %v10892, %v10962
        %v11043 = vmax.f32 %v10893, %v10964
        %v11044 = vmax.f32 %v10894, %v10966
        %v11045 = vmax.f32 %v10895, %v10968
        %v11046 = vmax.f32 %v10896, %v10970
        %v11047 = vmax.f32 %v10897, %v10972
        %v11048 = vmax.f32 %v10898, %v10974
        %v11049 = vmax.f32 %v10899, %v10976
        %v11050 = vmax.f32 %v10900, %v10978
        %v11051 = vmax.f32 %v10901, %v10980
        %v11052 = vmax.f32 %v10902, %v10982
        %v11053 = vmax.f32 %v10903, %v10984
        %v11054 = vmax.f32 %v10904, %v10986
        %v11055 = vmax.f32 %v10905, %v10988
        %v11056 = vmax.f32 %v10906, %v10990
        %v11057 = vmax.f32 %v10907, %v10992
        %v11058 = vmax.f32 %v10908, %v10994
        %v11059 = vmax.f32 %v10909, %v10996
        %v11060 = vmax.f32 %v10910, %v10998
        %v11061 = vmax.f32 %v10911, %v11000
        %v11062 = vmax.f32 %v10912, %v11002
        %v11063 = vmax.f32 %v10913, %v11003
        %v11064 = vld [vmem:[%s6] sm:$0xff]
        %v11065 = vld [vmem:[%s6 + $0x8] sm:$0xff]
        %v11066 = vld [vmem:[%s6 + $0x10] sm:$0xff]
        %v11067 = vld [vmem:[%s6 + $0x18] sm:$0xff]
        %v11068 = vld [vmem:[%s6 + $0x20] sm:$0xff]
        %v11069 = vld [vmem:[%s6 + $0x28] sm:$0xff]
        %v11070 = vld [vmem:[%s6 + $0x30] sm:$0xff]
        %v11071 = vld [vmem:[%s6 + $0x38] sm:$0xff]
        %v11072 = vld [vmem:[%s6 + $0x40] sm:$0xff]
        %v11073 = vld [vmem:[%s6 + $0x48] sm:$0xff]
        %v11074 = vld [vmem:[%s6 + $0x50] sm:$0xff]
        %v11075 = vld [vmem:[%s6 + $0x58] sm:$0xff]
        %v11076 = vld [vmem:[%s6 + $0x60] sm:$0xff]
        %v11077 = vld [vmem:[%s6 + $0x68] sm:$0xff]
        %v11078 = vld [vmem:[%s6 + $0x70] sm:$0xff]
        %v11079 = vld [vmem:[%s6 + $0x78] sm:$0xff]
        %v11080 = vld [vmem:[%s6 + $0x80] sm:$0xff]
        %v11081 = vld [vmem:[%s6 + $0x88] sm:$0xff]
        %v11082 = vld [vmem:[%s6 + $0x90] sm:$0xff]
        %v11083 = vld [vmem:[%s6 + $0x98] sm:$0xff]
        %v11084 = vld [vmem:[%s6 + $0xa0] sm:$0xff]
        %v11085 = vld [vmem:[%s6 + $0xa8] sm:$0xff]
        %v11086 = vld [vmem:[%s6 + $0xb0] sm:$0xff]
        %v11087 = vld [vmem:[%s6 + $0xb8] sm:$0xff]
        %v11088 = vld [vmem:[%s6 + $0xc0] sm:$0xff]
        %v11089 = vld [vmem:[%s6 + $0xc8] sm:$0xff]
        %v11090 = vld [vmem:[%s6 + $0xd0] sm:$0xff]
        %v11091 = vld [vmem:[%s6 + $0xd8] sm:$0xff]
        %v11092 = vld [vmem:[%s6 + $0xe0] sm:$0xff]
        %v11093 = vld [vmem:[%s6 + $0xe8] sm:$0xff]
        %v11094 = vmul.f32 %v11034, %v11064
        %v11095 = vmul.f32 %v11035, %v11065
        %v11096 = vmul.f32 %v11036, %v11066
        %v11097 = vmul.f32 %v11037, %v11067
        %v11098 = vmul.f32 %v11038, %v11068
        %v11099 = vmul.f32 %v11039, %v11069
        %v11100 = vmul.f32 %v11040, %v11070
        %v11101 = vmul.f32 %v11041, %v11071
        %v11102 = vmul.f32 %v11042, %v11072
        %v11103 = vmul.f32 %v11043, %v11073
        %v11104 = vmul.f32 %v11044, %v11074
        %v11105 = vmul.f32 %v11045, %v11075
        %v11106 = vmul.f32 %v11046, %v11076
        %v11107 = vmul.f32 %v11047, %v11077
        %v11108 = vmul.f32 %v11048, %v11078
        %v11109 = vmul.f32 %v11049, %v11079
        %v11110 = vmul.f32 %v11050, %v11080
        %v11111 = vmul.f32 %v11051, %v11081
        %v11112 = vmul.f32 %v11052, %v11082
        %v11113 = vmul.f32 %v11053, %v11083
        %v11114 = vmul.f32 %v11054, %v11084
        %v11115 = vmul.f32 %v11055, %v11085
        %v11116 = vmul.f32 %v11056, %v11086
        %v11117 = vmul.f32 %v11057, %v11087
        %v11118 = vmul.f32 %v11058, %v11088
        %v11119 = vmul.f32 %v11059, %v11089
        %v11120 = vmul.f32 %v11060, %v11090
        %v11121 = vmul.f32 %v11061, %v11091
        %v11122 = vmul.f32 %v11062, %v11092
        %v11123 = vmul.f32 %v11063, %v11093
        %v11124 = vadd.f32 %v11094, %v11095
        %v11125 = vadd.f32 %v11124, %v11096
        %v11126 = vadd.f32 %v11125, %v11097
        %v11127 = vadd.f32 %v11126, %v11098
        %v11128 = vadd.f32 %v11127, %v11099
        %v11129 = vadd.f32 %v11128, %v11100
        %v11130 = vadd.f32 %v11129, %v11101
        %v11131 = vadd.f32 %v11130, %v11102
        %v11132 = vadd.f32 %v11131, %v11103
        %v11133 = vadd.f32 %v11132, %v11104
        %v11134 = vadd.f32 %v11133, %v11105
        %v11135 = vadd.f32 %v11134, %v11106
        %v11136 = vadd.f32 %v11135, %v11107
        %v11137 = vadd.f32 %v11136, %v11108
        %v11138 = vadd.f32 %v11137, %v11109
        %v11139 = vadd.f32 %v11138, %v11110
        %v11140 = vadd.f32 %v11139, %v11111
        %v11141 = vadd.f32 %v11140, %v11112
        %v11142 = vadd.f32 %v11141, %v11113
        %v11143 = vadd.f32 %v11142, %v11114
        %v11144 = vadd.f32 %v11143, %v11115
        %v11145 = vadd.f32 %v11144, %v11116
        %v11146 = vadd.f32 %v11145, %v11117
        %v11147 = vadd.f32 %v11146, %v11118
        %v11148 = vadd.f32 %v11147, %v11119
        %v11149 = vadd.f32 %v11148, %v11120
        %v11150 = vadd.f32 %v11149, %v11121
        %v11151 = vadd.f32 %v11150, %v11122
        %v11152 = vadd.f32 %v11151, %v11123
        %v11153 = vrot.slane %v11152, 4
        %v11154 = vadd.f32 %v11152, %v11153
        %v11155 = vrot.slane %v11154, 2
        %v11156 = vadd.f32 %v11154, %v11155
        %v11157 = vrot.slane %v11156, 1
        %v11158 = vadd.f32 %v11156, %v11157
        %11159 = vadd.xlane.f32.xlu0 %v11158
        %v11160 = vpop.xlane.xlu0 %11159
        %s11161 = scalar_lea.vmem %s6, 240
        %v11162 = vld [vmem:[%s11161] sm:$0xff]
        %v11163 = vld [vmem:[%s11161 + $0x8] sm:$0xff]
        %v11164 = vld [vmem:[%s11161 + $0x10] sm:$0xff]
        %v11165 = vld [vmem:[%s11161 + $0x18] sm:$0xff]
        %v11166 = vld [vmem:[%s11161 + $0x20] sm:$0xff]
        %v11167 = vld [vmem:[%s11161 + $0x28] sm:$0xff]
        %v11168 = vld [vmem:[%s11161 + $0x30] sm:$0xff]
        %v11169 = vld [vmem:[%s11161 + $0x38] sm:$0xff]
        %v11170 = vld [vmem:[%s11161 + $0x40] sm:$0xff]
        %v11171 = vld [vmem:[%s11161 + $0x48] sm:$0xff]
        %v11172 = vld [vmem:[%s11161 + $0x50] sm:$0xff]
        %v11173 = vld [vmem:[%s11161 + $0x58] sm:$0xff]
        %v11174 = vld [vmem:[%s11161 + $0x60] sm:$0xff]
        %v11175 = vld [vmem:[%s11161 + $0x68] sm:$0xff]
        %v11176 = vld [vmem:[%s11161 + $0x70] sm:$0xff]
        %v11177 = vld [vmem:[%s11161 + $0x78] sm:$0xff]
        %v11178 = vld [vmem:[%s11161 + $0x80] sm:$0xff]
        %v11179 = vld [vmem:[%s11161 + $0x88] sm:$0xff]
        %v11180 = vld [vmem:[%s11161 + $0x90] sm:$0xff]
        %v11181 = vld [vmem:[%s11161 + $0x98] sm:$0xff]
        %v11182 = vld [vmem:[%s11161 + $0xa0] sm:$0xff]
        %v11183 = vld [vmem:[%s11161 + $0xa8] sm:$0xff]
        %v11184 = vld [vmem:[%s11161 + $0xb0] sm:$0xff]
        %v11185 = vld [vmem:[%s11161 + $0xb8] sm:$0xff]
        %v11186 = vld [vmem:[%s11161 + $0xc0] sm:$0xff]
        %v11187 = vld [vmem:[%s11161 + $0xc8] sm:$0xff]
        %v11188 = vld [vmem:[%s11161 + $0xd0] sm:$0xff]
        %v11189 = vld [vmem:[%s11161 + $0xd8] sm:$0xff]
        %v11190 = vld [vmem:[%s11161 + $0xe0] sm:$0xff]
        %v11191 = vld [vmem:[%s11161 + $0xe8] sm:$0xff]
        %v11192 = vmul.f32 %v11034, %v11162
        %v11193 = vmul.f32 %v11035, %v11163
        %v11194 = vmul.f32 %v11036, %v11164
        %v11195 = vmul.f32 %v11037, %v11165
        %v11196 = vmul.f32 %v11038, %v11166
        %v11197 = vmul.f32 %v11039, %v11167
        %v11198 = vmul.f32 %v11040, %v11168
        %v11199 = vmul.f32 %v11041, %v11169
        %v11200 = vmul.f32 %v11042, %v11170
        %v11201 = vmul.f32 %v11043, %v11171
        %v11202 = vmul.f32 %v11044, %v11172
        %v11203 = vmul.f32 %v11045, %v11173
        %v11204 = vmul.f32 %v11046, %v11174
        %v11205 = vmul.f32 %v11047, %v11175
        %v11206 = vmul.f32 %v11048, %v11176
        %v11207 = vmul.f32 %v11049, %v11177
        %v11208 = vmul.f32 %v11050, %v11178
        %v11209 = vmul.f32 %v11051, %v11179
        %v11210 = vmul.f32 %v11052, %v11180
        %v11211 = vmul.f32 %v11053, %v11181
        %v11212 = vmul.f32 %v11054, %v11182
        %v11213 = vmul.f32 %v11055, %v11183
        %v11214 = vmul.f32 %v11056, %v11184
        %v11215 = vmul.f32 %v11057, %v11185
        %v11216 = vmul.f32 %v11058, %v11186
        %v11217 = vmul.f32 %v11059, %v11187
        %v11218 = vmul.f32 %v11060, %v11188
        %v11219 = vmul.f32 %v11061, %v11189
        %v11220 = vmul.f32 %v11062, %v11190
        %v11221 = vmul.f32 %v11063, %v11191
        %v11222 = vadd.f32 %v11192, %v11193
        %v11223 = vadd.f32 %v11222, %v11194
        %v11224 = vadd.f32 %v11223, %v11195
        %v11225 = vadd.f32 %v11224, %v11196
        %v11226 = vadd.f32 %v11225, %v11197
        %v11227 = vadd.f32 %v11226, %v11198
        %v11228 = vadd.f32 %v11227, %v11199
        %v11229 = vadd.f32 %v11228, %v11200
        %v11230 = vadd.f32 %v11229, %v11201
        %v11231 = vadd.f32 %v11230, %v11202
        %v11232 = vadd.f32 %v11231, %v11203
        %v11233 = vadd.f32 %v11232, %v11204
        %v11234 = vadd.f32 %v11233, %v11205
        %v11235 = vadd.f32 %v11234, %v11206
        %v11236 = vadd.f32 %v11235, %v11207
        %v11237 = vadd.f32 %v11236, %v11208
        %v11238 = vadd.f32 %v11237, %v11209
        %v11239 = vadd.f32 %v11238, %v11210
        %v11240 = vadd.f32 %v11239, %v11211
        %v11241 = vadd.f32 %v11240, %v11212
        %v11242 = vadd.f32 %v11241, %v11213
        %v11243 = vadd.f32 %v11242, %v11214
        %v11244 = vadd.f32 %v11243, %v11215
        %v11245 = vadd.f32 %v11244, %v11216
        %v11246 = vadd.f32 %v11245, %v11217
        %v11247 = vadd.f32 %v11246, %v11218
        %v11248 = vadd.f32 %v11247, %v11219
        %v11249 = vadd.f32 %v11248, %v11220
        %v11250 = vadd.f32 %v11249, %v11221
        %v11251 = vrot.slane %v11250, 4
        %v11252 = vadd.f32 %v11250, %v11251
        %v11253 = vrot.slane %v11252, 2
        %v11254 = vadd.f32 %v11252, %v11253
        %v11255 = vrot.slane %v11254, 1
        %v11256 = vadd.f32 %v11254, %v11255
        %11257 = vadd.xlane.f32.xlu0 %v11256
        %v11258 = vpop.xlane.xlu0 %11257
        %vm11259 = vcmask 7168
        %v11260 = vsel %vm11259, %v11160, %v11258
        %v11261 = vld [vmem:[%s7] sm:$0x1]
        %v11262 = vadd.f32 %v11260, %v11261
        %vm11263 = vcmask 8192
        %v11264 = vsel %vm11263, %v11262, -inf
        %11265 = vmax.xlane.f32.xlu0 %v11264
        %v11266 = vpop.xlane.xlu0 %11265
        %v11267 = vsub.f32 %v11262, %v11266
        %v11268 = vmul.f32 %v11267, 1.442695
        %v11269 = vpow.pop %v11268
        %v11270 = vsel %vm11263, %v11269, 0.0
        %11271 = vadd.xlane.f32.xlu0 %v11270
        %v11272 = vpop.xlane.xlu0 %11271
        %v11273 = vrcp.pop %v11272
        %v11274 = vmul.f32 %v11269, %v11273
        %11275 = vst.msk [vmem:[%s297] sm:$0x1] %vm11263, %v11274
        %s11276 = sand.u32 %s203, 1
        %s11277 = scalar_lea.sflag [#allocation3], %s11276
        %s11278 = sand.u32 %s203, 1
        %s11279 = scalar_lea.vmem [#allocation2], %s11278
        // Predicated region
        $region53: #{cnn_5d_forward.1} parent=51 // pred_check
          %p11280 = pneg %p213
        $region54: #{cnn_5d_forward.1} parent=51 // pred_check_branch
          %11282 = sbr.rel (%p11280) target = $region56
        $region55: #{cnn_5d_forward.1} parent=51 // pred_region
          %s11284 = ssub.s32 16, 16
          %11285 = vsyncadd %s11277, %s11284
          %s11286 = smul.addr %s22, 16
          %s11287 = scalar_lea.hbm %s8, %s11286
          %s11289 = sshll.u32 %s11279, 4
          %s11290 = int_to_ptr.vmem [resolvable:$true] %s11289
          %11292 = dma.vmem_to_hbm [thread:$0]  %s11290, 16, %s11287, %s11277
        $region56: #{cnn_5d_forward.1} parent=51 // pred_fallthru
          _
      $region52: #{cnn_5d_forward.1} parent=5 // pred_fallthru
        _
      %p11293 = scmp.le.s32.totalorder 2, %s17
      // Predicated region
      $region57: #{cnn_5d_forward.1} parent=5 // pred_check
        %p11294 = pneg %p11293
      $region58: #{cnn_5d_forward.1} parent=5 // pred_check_branch
        %11296 = sbr.rel (%p11294) target = $region60
      $region59: #{cnn_5d_forward.1} parent=5 // pred_region
        %s11297 = ssub.s32 %s17, 2
        // Predicated region
        $region61: #{cnn_5d_forward.1} parent=59 // pred_check
          %p11298 = pneg %p219
        $region62: #{cnn_5d_forward.1} parent=59 // pred_check_branch
          %11300 = sbr.rel (%p11298) target = $region64
        $region63: #{cnn_5d_forward.1} parent=59 // pred_region
          %s11301 = sand.u32 %s204, 1
          %s11302 = scalar_lea.sflag [#allocation3], %s11301
          %s11303 = sand.u32 %s204, 1
          %s11304 = scalar_lea.vmem [#allocation2], %s11303
          %11305 = dma.done %s11302, 16
        $region64: #{cnn_5d_forward.1} parent=59 // pred_fallthru
          _
      $region60: #{cnn_5d_forward.1} parent=5 // pred_fallthru
        _
    $region6: #{cnn_5d_forward.1} parent=1 // loop_footer
      %s21 = sadd.s32 1, %s17
    $region7: #{cnn_5d_forward.1} parent=1 // loop_footer_branch
      %16 = sbr.rel target = $region3
    $region8: #{cnn_5d_forward.1} parent=1 // loop_exit
      _
    %11306 = vsyncpa [#allocation3], 1
    %s11307 = scalar_lea.sflag [#allocation3], 1
    %11308 = vsyncpa %s11307, 1

</llo_original>
